<compile_context>
chip_gen: v7x
topology: tpu7x:2x2x1
jax: 0.10.0
libtpu: 0.0.40
codegen_flags: <defaults>
</compile_context>

<pallas_src>
import functools

import jax
import jax.numpy as jnp
from jax import lax
from jax.experimental import pallas as pl
from jax.experimental.pallas import tpu as pltpu

EPS = 1e-5
# Scoped-VMEM cap: fine on v5e/v6e (128 MiB physical) and <= v7x's 64 MiB per-TC.
# TODO(synk): per-generation tuning (raise toward ~96 MiB on v5e/v6e, row-band tile
# kernel 2 on v7x for very large H*W*Cexp).
VMEM_LIMIT = 64 * 1024 * 1024


def _hardswish(x):
    return x * jnp.clip(x + 3.0, 0.0, 6.0) * (1.0 / 6.0)


def _hardsigmoid(x):
    return jnp.clip(x + 3.0, 0.0, 6.0) * (1.0 / 6.0)


# ----------------------------------------------------------------------------
# Kernel 1: per-sample moments of the expand pre-activation (x @ We)
#           -> analytic BN0 batch statistics.
# ----------------------------------------------------------------------------
def _input_stats_kernel(x_ref, we_ref, s_ref, sq_ref):
    y0 = jnp.dot(x_ref[0].astype(jnp.bfloat16), we_ref[...],
                 preferred_element_type=jnp.float32)          # (HW, Cexp) f32
    s_ref[0] = jnp.sum(y0, axis=0, keepdims=True)             # (1, Cexp)
    sq_ref[0] = jnp.sum(y0 * y0, axis=0, keepdims=True)       # (1, Cexp)


def input_stats(x_nmc, we_bf16):
    N, HW, Cin = x_nmc.shape
    Cexp = we_bf16.shape[1]
    return pl.pallas_call(
        _input_stats_kernel,
        out_shape=(jax.ShapeDtypeStruct((N, 1, Cexp), jnp.float32),
                   jax.ShapeDtypeStruct((N, 1, Cexp), jnp.float32)),
        grid=(N,),
        in_specs=[pl.BlockSpec((1, HW, Cin), lambda n: (n, 0, 0)),
                  pl.BlockSpec((Cin, Cexp), lambda n: (0, 0))],
        out_specs=(pl.BlockSpec((1, 1, Cexp), lambda n: (n, 0, 0)),
                   pl.BlockSpec((1, 1, Cexp), lambda n: (n, 0, 0))),
        compiler_params=pltpu.CompilerParams(
            dimension_semantics=("parallel",), vmem_limit_bytes=VMEM_LIMIT),
    )(x_nmc, we_bf16)


# ----------------------------------------------------------------------------
# Kernel 2 (fused): expand 1x1 conv (BN0 folded) + activation + depthwise conv
# (+ subsampled shortcut input when stride > 1).  The expanded activation stays
# in a flat VMEM scratch; per-sample y1 moments come out for BN1/SE/analytic BN2.
# ----------------------------------------------------------------------------
def _expand_dw_kernel(x_ref, we_ref, b0_ref, wdw_ref, *rest,
                      H, W, Cexp, kh, kw, stride, pad, Ho, Wo, Wf, act):
    if stride > 1:
        selw_ref, y1_ref, s_ref, ss_ref, xs_ref, y0_scr = rest
    else:
        y1_ref, s_ref, ss_ref, y0_scr = rest
        selw_ref = None
        xs_ref = None

    OFF = 8                     # guard rows before/after the image (sublane aligned)
    HW = H * W

    # ---- phase 1: expand + BN0(fold) + activation, straight into the flat scratch.
    # One big bf16 matmul per row band (amortizes MXU fill/drain); no zero-fill of the
    # scratch is needed: every guard-region read in phase 2 is discarded by a select.
    we = we_ref[...]                                   # (Cin, Cexp) bf16
    b0 = b0_ref[...]                                   # (1, Cexp) f32
    band_rows = H if HW <= 4096 else max(1, 4096 // W)
    h0 = 0
    while h0 < H:                                      # static Python loop
        bh = min(band_rows, H - h0)
        xb = x_ref[0, pl.ds(h0 * W, bh * W), :].astype(jnp.bfloat16)
        y0 = jnp.dot(xb, we, preferred_element_type=jnp.float32) + b0
        if act == "hardswish":
            y0 = _hardswish(y0)
        else:
            y0 = jnp.maximum(y0, 0.0)
        y0_scr[pl.ds(OFF + h0 * W, bh * W), :] = y0
        h0 += bh

    # ---- hoisted per-tap weights and column-validity masks (JAX does not CSE
    # broadcasts inside loops, so build them once, outside the row loop).
    w_rows = [wdw_ref[k:k + 1, :] for k in range(kh * kw)]          # each (1, Cexp)
    col_idx = lax.broadcasted_iota(jnp.int32, (Wf, 1), 0)
    col_ok = [jnp.logical_and(col_idx + (j - pad) >= 0, col_idx + (j - pad) < W)
              for j in range(kw)]
    selw = selw_ref[...] if stride > 1 else None                    # (Wo, Wf) f32

    # ---- phase 2: depthwise conv via shifted flat-scratch slices.
    def dw_row(ho, carry):
        acc = jnp.zeros((Wf, Cexp), jnp.float32)
        for i in range(kh):                                         # static tap unroll
            r = ho * stride + i - pad
            rc = jnp.clip(r, 0, H - 1)
            base = OFF + rc * W - pad
            contrib = jnp.zeros((Wf, Cexp), jnp.float32)
            for j in range(kw):
                tap = y0_scr[pl.ds(base + j, Wf), :] * w_rows[i * kw + j]
                if j != pad:            # center column never crosses a row boundary
                    tap = jnp.where(col_ok[j], tap, 0.0)
                contrib = contrib + tap
            if i != pad:                # center row is always inside [0, H)
                contrib = jnp.where(jnp.logical_and(r >= 0, r < H), contrib, 0.0)
            acc = acc + contrib

        if stride > 1:
            # W subsample via a tiny 0/1 selection matmul (avoids strided sublanes).
            row = jnp.dot(selw, acc, preferred_element_type=jnp.float32)   # (Wo, Cexp)
        else:
            row = acc                                                       # Wf == Wo

        start = ho * Wo
        if Wo % 8 == 0:
            start = pl.multiple_of(start, 8)
        y1_ref[0, pl.ds(start, Wo), :] = row.astype(y1_ref.dtype)

        if stride > 1:
            # Subsampled shortcut input (avoids an XLA strided-gather HBM round trip).
            xrow = x_ref[0, pl.ds(ho * stride * W, W), :]                   # (W, Cin)
            xs_row = jnp.dot(selw, xrow, preferred_element_type=jnp.float32)
            xs_ref[0, pl.ds(start, Wo), :] = xs_row.astype(xs_ref.dtype)
        return carry

    unroll = Ho if Ho <= 8 else 4
    lax.fori_loop(0, Ho, dw_row, 0, unroll=unroll)

    # ---- per-sample moments of y1 (BN1 / SE pooling / analytic BN2), computed once
    # after the loop instead of Ho read-modify-write accumulations.
    y1b = y1_ref[0]                                                 # (P, Cexp) bf16
    s_ref[0] = jnp.sum(y1b.astype(jnp.float32), axis=0, keepdims=True)
    ss_ref[0] = lax.dot_general(y1b, y1b, (((0,), (0,)), ((), ())),
                                preferred_element_type=jnp.float32)


def expand_depthwise(x_nmc, we_fold, bias0, wdw, selw, *, H, W, kh, kw, stride,
                     pad, Ho, Wo, act):
    N, HW, Cin = x_nmc.shape
    Cexp = we_fold.shape[1]
    P = Ho * Wo
    Wf = W + 2 * pad - kw + 1
    OFF = 8
    kernel = functools.partial(
        _expand_dw_kernel, H=H, W=W, Cexp=Cexp, kh=kh, kw=kw, stride=stride,
        pad=pad, Ho=Ho, Wo=Wo, Wf=Wf, act=act)

    in_specs = [
        pl.BlockSpec((1, HW, Cin), lambda n: (n, 0, 0)),
        pl.BlockSpec((Cin, Cexp), lambda n: (0, 0)),
        pl.BlockSpec((1, Cexp), lambda n: (0, 0)),
        pl.BlockSpec((kh * kw, Cexp), lambda n: (0, 0)),
    ]
    inputs = [x_nmc, we_fold, bias0, wdw]
    out_shapes = [jax.ShapeDtypeStruct((N, P, Cexp), jnp.bfloat16),
                  jax.ShapeDtypeStruct((N, 1, Cexp), jnp.float32),
                  jax.ShapeDtypeStruct((N, Cexp, Cexp), jnp.float32)]
    out_specs = [pl.BlockSpec((1, P, Cexp), lambda n: (n, 0, 0)),
                 pl.BlockSpec((1, 1, Cexp), lambda n: (n, 0, 0)),
                 pl.BlockSpec((1, Cexp, Cexp), lambda n: (n, 0, 0))]
    if stride > 1:
        in_specs.append(pl.BlockSpec((Wo, Wf), lambda n: (0, 0)))
        inputs.append(selw)
        out_shapes.append(jax.ShapeDtypeStruct((N, P, Cin), jnp.bfloat16))
        out_specs.append(pl.BlockSpec((1, P, Cin), lambda n: (n, 0, 0)))

    return pl.pallas_call(
        kernel,
        out_shape=tuple(out_shapes),
        grid=(N,),
        in_specs=in_specs,
        out_specs=tuple(out_specs),
        scratch_shapes=[pltpu.VMEM((OFF + H * W + OFF, Cexp), jnp.float32)],
        compiler_params=pltpu.CompilerParams(
            dimension_semantics=("parallel",), vmem_limit_bytes=VMEM_LIMIT),
    )(*inputs)


# ----------------------------------------------------------------------------
# Kernel 3 (fused): BN1-apply + SE gate + final 1x1 conv (BN2 folded) + shortcut
# 1x1 conv + residual add.  The output block is (Cout, TP): lane-dense along the
# spatial axis (P >= 128 at real sizes) and already in PyTorch NCHW layout.
# ----------------------------------------------------------------------------
def _final_kernel(y1_ref, xs_ref, ga_ref, gb_ref, wft_ref, wst_ref, b2_ref, o_ref):
    z = y1_ref[0].astype(jnp.float32) * ga_ref[0] + gb_ref[0]       # (TP, Cexp) f32
    y2t = lax.dot_general(wft_ref[...], z.astype(jnp.bfloat16),
                          (((1,), (1,)), ((), ())),
                          preferred_element_type=jnp.float32)       # (Cout, TP)
    xbt = lax.dot_general(wst_ref[...], xs_ref[0].astype(jnp.bfloat16),
                          (((1,), (1,)), ((), ())),
                          preferred_element_type=jnp.float32)       # (Cout, TP)
    o_ref[0] = y2t + b2_ref[...] + xbt


def final_fused(y1, xs, ga, gb, wft, wst, bias2, *, tile_p=1024):
    N, P, Cexp = y1.shape
    Cin = xs.shape[2]
    Cout = wft.shape[0]
    TP = P if P <= tile_p else tile_p
    PT = pl.cdiv(P, TP)
    return pl.pallas_call(
        _final_kernel,
        out_shape=jax.ShapeDtypeStruct((N, Cout, P), jnp.float32),
        grid=(N, PT),
        in_specs=[
            pl.BlockSpec((1, TP, Cexp), lambda n, t: (n, t, 0)),
            pl.BlockSpec((1, TP, Cin), lambda n, t: (n, t, 0)),
            pl.BlockSpec((1, 1, Cexp), lambda n, t: (n, 0, 0)),
            pl.BlockSpec((1, 1, Cexp), lambda n, t: (n, 0, 0)),
            pl.BlockSpec((Cout, Cexp), lambda n, t: (0, 0)),
            pl.BlockSpec((Cout, Cin), lambda n, t: (0, 0)),
            pl.BlockSpec((Cout, 1), lambda n, t: (0, 0)),
        ],
        out_specs=pl.BlockSpec((1, Cout, TP), lambda n, t: (n, 0, t)),
        compiler_params=pltpu.CompilerParams(
            dimension_semantics=("parallel", "parallel"),
            vmem_limit_bytes=VMEM_LIMIT),
    )(y1, xs, ga, gb, wft, wst, bias2)


# ----------------------------------------------------------------------------
# Full Bottleneck forward.  Input/output are PyTorch NCHW.  Hot tensor passes run
# in the Pallas kernels above; the remaining glue is O(C^2)/O(N*C^2) per-channel
# math (BN stat finalization, weight folding, SE MLP on the pooled (N, C) vector).
# ----------------------------------------------------------------------------
def bottleneck_forward(x_nchw, params, *, stride, dw_kernel_size, squeeze_excite,
                       nonlinearity):
    N, Cin, H, W = x_nchw.shape
    kh, kw = dw_kernel_size
    assert kh == kw and kh % 2 == 1, "square odd depthwise kernels only"
    pad = kh // 2                          # torch uses dw_kernel_size[0] // 2
    s = stride
    Ho = (H + 2 * pad - kh) // s + 1
    Wo = (W + 2 * pad - kw) // s + 1
    P = Ho * Wo
    Min = N * H * W
    M2 = N * P

    we = params["w_expand"]                # (Cin, Cexp)
    wf = params["w_final"]                 # (Cexp, Cout)
    ws = params["w_shortcut"]              # (Cin, Cout)
    Cexp = we.shape[1]
    Cout = wf.shape[1]

    # single boundary transpose to channels-last
    x_nmc = jnp.transpose(x_nchw, (0, 2, 3, 1)).reshape(N, H * W, Cin)

    # ---- pass 1: analytic BN0 statistics from moments of x @ We ------------------
    we_bf16 = we.astype(jnp.bfloat16)
    s0_n, sq0_n = input_stats(x_nmc, we_bf16)
    sum0 = jnp.sum(s0_n[:, 0, :], axis=0)
    sumsq0 = jnp.sum(sq0_n[:, 0, :], axis=0)
    mean0 = sum0 / Min
    var0 = jnp.maximum(sumsq0 / Min - mean0 ** 2, 0.0)
    a0 = params["bn0_gamma"] * lax.rsqrt(var0 + EPS)
    b0 = params["bn0_beta"] - mean0 * a0
    we_fold = (we * a0[None, :]).astype(jnp.bfloat16)       # fold BN0 into the conv
    bias0 = b0.reshape(1, Cexp).astype(jnp.float32)

    # ---- pass 2: fused expand + BN0 + act + depthwise (+ shortcut subsample) -----
    wdw = params["w_dw"].reshape(kh * kw, Cexp).astype(jnp.float32)
    Wf = W + 2 * pad - kw + 1
    if s > 1:
        selw = (jnp.arange(Wf)[None, :] ==
                (s * jnp.arange(Wo))[:, None]).astype(jnp.float32)
    else:
        selw = None
    outs = expand_depthwise(x_nmc, we_fold, bias0, wdw, selw,
                            H=H, W=W, kh=kh, kw=kw, stride=s, pad=pad,
                            Ho=Ho, Wo=Wo, act=nonlinearity)
    if s > 1:
        y1, s1_n, ss1_n, xs = outs
    else:
        y1, s1_n, ss1_n = outs
        xs = x_nmc                          # stride 1: shortcut input is x itself
    s1 = s1_n[:, 0, :]                      # (N, Cexp) per-sample spatial sums

    # ---- tiny per-channel math: BN1, SE gate, analytic BN2 stats -----------------
    sum1 = jnp.sum(s1, axis=0)
    e1 = jnp.sum(jnp.diagonal(ss1_n, axis1=1, axis2=2), axis=0)
    mean1 = sum1 / M2
    var1 = jnp.maximum(e1 / M2 - mean1 ** 2, 0.0)
    a1 = params["bn1_gamma"] * lax.rsqrt(var1 + EPS)
    b1 = params["bn1_beta"] - mean1 * a1

    if squeeze_excite:
        pooled = (s1 / P) * a1[None, :] + b1[None, :]       # pool of BN1 output
        z1 = jnp.maximum(pooled @ params["se_w1"] + params["se_b1"], 0.0)
        gate = _hardsigmoid(z1 @ params["se_w2"] + params["se_b2"])
    else:
        gate = jnp.ones((N, Cexp), jnp.float32)

    # z = gate * (a1*y1 + b1); BN2 stats of z @ wf computed analytically from the
    # per-sample first/second moments of y1 produced by kernel 2 (exact because the
    # gate is constant per (sample, channel)).
    pvec = gate * a1[None, :]
    qvec = gate * b1[None, :]
    sz = jnp.sum(pvec * s1 + P * qvec, axis=0)
    ps = pvec * s1
    # TODO(synk): for very large Cexp, replace this O(N*Cexp^2) analytic path with a
    # lightweight extra pass over y1 that emits only Cout-dim moments.
    szz = (jnp.einsum("nc,ncd,nd->cd", pvec, ss1_n, pvec)
           + jnp.einsum("nc,nd->cd", ps, qvec)
           + jnp.einsum("nc,nd->cd", qvec, ps)
           + P * jnp.einsum("nc,nd->cd", qvec, qvec))
    mean2 = (sz @ wf) / M2
    e2 = jnp.einsum("ic,ij,jc->c", wf, szz, wf) / M2
    var2 = jnp.maximum(e2 - mean2 ** 2, 0.0)
    a2 = params["bn2_gamma"] * lax.rsqrt(var2 + EPS)
    b2 = params["bn2_beta"] - mean2 * a2

    # ---- pass 3: BN1-apply + SE scale + final conv + BN2-apply + shortcut + add --
    ga = pvec.reshape(N, 1, Cexp).astype(jnp.float32)
    gb = qvec.reshape(N, 1, Cexp).astype(jnp.float32)
    wft = (wf * a2[None, :]).T.astype(jnp.bfloat16)          # (Cout, Cexp), BN2 folded
    wst = ws.T.astype(jnp.bfloat16)                          # (Cout, Cin)
    bias2 = b2.reshape(Cout, 1).astype(jnp.float32)
    out = final_fused(y1, xs, ga, gb, wft, wst, bias2)       # (N, Cout, P)
    return out.reshape(N, Cout, Ho, Wo)                      # NCHW, PyTorch layout


# ----------------------------------------------------------------------------
# Pure-JAX reference (correctness check), NHWC in / NHWC out.
# ----------------------------------------------------------------------------
def bottleneck_ref(x_nhwc, params, *, stride, dw_kernel_size, squeeze_excite,
                   nonlinearity):
    kh, kw = dw_kernel_size
    pad = kh // 2
    s = stride
    dn = ("NHWC", "HWIO", "NHWC")
    Cin = x_nhwc.shape[-1]
    Cexp = params["w_expand"].shape[1]
    Cout = params["w_final"].shape[1]

    def bn(y, g, b):
        m = jnp.mean(y, axis=(0, 1, 2), keepdims=True)
        v = jnp.mean((y - m) ** 2, axis=(0, 1, 2), keepdims=True)
        return (y - m) * lax.rsqrt(v + EPS) * g + b

    y = lax.conv_general_dilated(
        x_nhwc, params["w_expand"].reshape(1, 1, Cin, Cexp), (1, 1), "VALID",
        dimension_numbers=dn)
    y = bn(y, params["bn0_gamma"], params["bn0_beta"])
    y = _hardswish(y) if nonlinearity == "hardswish" else jnp.maximum(y, 0.0)

    y = lax.conv_general_dilated(
        y, params["w_dw"].reshape(kh, kw, 1, Cexp), (s, s),
        [(pad, pad), (pad, pad)], dimension_numbers=dn, feature_group_count=Cexp)
    y = bn(y, params["bn1_gamma"], params["bn1_beta"])

    if squeeze_excite:
        pooled = jnp.mean(y, axis=(1, 2))
        z = jnp.maximum(pooled @ params["se_w1"] + params["se_b1"], 0.0)
        g = _hardsigmoid(z @ params["se_w2"] + params["se_b2"])
        y = y * g[:, None, None, :]

    y = lax.conv_general_dilated(
        y, params["w_final"].reshape(1, 1, Cexp, Cout), (1, 1), "VALID",
        dimension_numbers=dn)
    y = bn(y, params["bn2_gamma"], params["bn2_beta"])

    xb = lax.conv_general_dilated(
        x_nhwc, params["w_shortcut"].reshape(1, 1, Cin, Cout), (s, s), "VALID",
        dimension_numbers=dn)
    return y + xb


def _make_params(key, Cin, Cexp, Cout, dw_ks):
    ks = jax.random.split(key, 12)
    kh, kw = dw_ks
    return {
        "w_expand": 0.2 * jax.random.normal(ks[0], (Cin, Cexp), jnp.float32),
        "bn0_gamma": 1.0 + 0.1 * jax.random.normal(ks[1], (Cexp,), jnp.float32),
        "bn0_beta": 0.1 * jax.random.normal(ks[2], (Cexp,), jnp.float32),
        "w_dw": 0.2 * jax.random.normal(ks[3], (kh, kw, Cexp), jnp.float32),
        "bn1_gamma": 1.0 + 0.1 * jax.random.normal(ks[4], (Cexp,), jnp.float32),
        "bn1_beta": 0.1 * jax.random.normal(ks[5], (Cexp,), jnp.float32),
        "se_w1": 0.2 * jax.random.normal(ks[6], (Cexp, Cexp), jnp.float32),
        "se_b1": 0.1 * jax.random.normal(ks[7], (Cexp,), jnp.float32),
        "se_w2": 0.2 * jax.random.normal(ks[8], (Cexp, Cexp), jnp.float32),
        "se_b2": 0.1 * jax.random.normal(ks[9], (Cexp,), jnp.float32),
        "w_final": 0.2 * jax.random.normal(ks[10], (Cexp, Cout), jnp.float32),
        "bn2_gamma": jnp.ones((Cout,), jnp.float32),
        "bn2_beta": jnp.zeros((Cout,), jnp.float32),
        "w_shortcut": 0.2 * jax.random.normal(ks[11], (Cin, Cout), jnp.float32),
    }


def _run_config(key, *, N, Cin, H, W, Cexp, Cout, dw_ks, stride, squeeze_excite,
                nonlinearity):
    kp, kx = jax.random.split(key)
    params = _make_params(kp, Cin, Cexp, Cout, dw_ks)
    x_nchw = jax.random.normal(kx, (N, Cin, H, W), jnp.float32)   # PyTorch layout

    fwd = jax.jit(functools.partial(
        bottleneck_forward, stride=stride, dw_kernel_size=dw_ks,
        squeeze_excite=squeeze_excite, nonlinearity=nonlinearity))
    out = jax.block_until_ready(fwd(x_nchw, params))

    x_nhwc = jnp.transpose(x_nchw, (0, 2, 3, 1))
    ref = bottleneck_ref(x_nhwc, params, stride=stride, dw_kernel_size=dw_ks,
                         squeeze_excite=squeeze_excite, nonlinearity=nonlinearity)
    ref = jnp.transpose(ref, (0, 3, 1, 2))                        # NHWC -> NCHW
    assert out.shape == ref.shape, (out.shape, ref.shape)
    err = float(jnp.max(jnp.abs(out - ref)))
    # bf16 matmul operands and bf16 y1/xs intermediates => relaxed (but meaningful)
    # absolute tolerance against the f32 reference.
    assert err < 3e-2, err
    return err


if __name__ == "__main__":
    key = jax.random.PRNGKey(0)
    k1, k2 = jax.random.split(key)
    # Config A: in=4, out=8, expand=16, 3x3 depthwise, stride=2, SE, hardswish.
    _run_config(k1, N=2, Cin=4, H=16, W=16, Cexp=16, Cout=8, dw_ks=(3, 3),
                stride=2, squeeze_excite=True, nonlinearity="hardswish")
    # Config B: stride=1, no SE, relu (exercises the stride-1 specialized paths).
    _run_config(k2, N=2, Cin=8, H=8, W=8, Cexp=24, Cout=16, dw_ks=(3, 3),
                stride=1, squeeze_excite=False, nonlinearity="relu")
    print("KERNEL_OK")
</pallas_src>

<mosaic_0001>
module attributes {stable_mosaic.version = 11 : i64} {
  func.func @_input_stats_kernel(%arg0: i32, %arg1: memref<1x256x4xf32, #tpu.memory_space<vmem>>, %arg2: memref<4x16xbf16, #tpu.memory_space<vmem>>, %arg3: memref<1x1x16xf32, #tpu.memory_space<vmem>>, %arg4: memref<1x1x16xf32, #tpu.memory_space<vmem>>) attributes {dimension_semantics = [#tpu.dimension_semantics<parallel>], iteration_bounds = array<i64: 2>, scalar_prefetch = 0 : i64, scratch_operands = 0 : i64, tpu.core_type = #tpu.core_type<tc>, window_params = [{transform_indices = @transform_0, window_bounds = array<i64: 1, 256, 4>}, {pipeline_mode = #tpu.pipeline_mode<synchronous>, transform_indices = @transform_1, window_bounds = array<i64: 4, 16>}, {transform_indices = @transform_2, window_bounds = array<i64: 1, 1, 16>}, {transform_indices = @transform_3, window_bounds = array<i64: 1, 1, 16>}]} {
    %c0 = arith.constant 0 : index
    %c0_0 = arith.constant 0 : index
    %c0_1 = arith.constant 0 : index
    %0 = vector.load %arg1[%c0, %c0_0, %c0_1] : memref<1x256x4xf32, #tpu.memory_space<vmem>>, vector<1x256x4xf32>
    %1 = vector.shape_cast %0 : vector<1x256x4xf32> to vector<256x4xf32>
    %2 = arith.truncf %1 : vector<256x4xf32> to vector<256x4xbf16>
    %c0_2 = arith.constant 0 : index
    %c0_3 = arith.constant 0 : index
    %3 = vector.load %arg2[%c0_2, %c0_3] : memref<4x16xbf16, #tpu.memory_space<vmem>>, vector<4x16xbf16>
    %cst = arith.constant dense<0.000000e+00> : vector<256x16xf32>
    %4 = tpu.matmul %2, %3, %cst {dimension_numbers = #tpu.dot_dimension_numbers<[1], [0], [0], [1], [0, 0, 1, 1], [], []>} : vector<256x4xbf16>, vector<4x16xbf16>, vector<256x16xf32> -> vector<256x16xf32>
    %cst_4 = arith.constant dense<0.000000e+00> : vector<16xf32>
    %5 = vector.multi_reduction <add>, %4, %cst_4 [0] : vector<256x16xf32> to vector<16xf32>
    %6 = vector.shape_cast %5 : vector<16xf32> to vector<1x16xf32>
    %c0_5 = arith.constant 0 : index
    %c0_6 = arith.constant 0 : index
    %c0_7 = arith.constant 0 : index
    %7 = vector.load %arg3[%c0_5, %c0_6, %c0_7] : memref<1x1x16xf32, #tpu.memory_space<vmem>>, vector<1x1x16xf32>
    %8 = vector.shape_cast %7 : vector<1x1x16xf32> to vector<1x16xf32>
    %9 = vector.shape_cast %6 : vector<1x16xf32> to vector<1x1x16xf32>
    tpu.vector_store %arg3[%c0_5, %c0_6, %c0_7], %9 {strides = array<i32>} : memref<1x1x16xf32, #tpu.memory_space<vmem>>, vector<1x1x16xf32>,
    %10 = arith.mulf %4, %4 : vector<256x16xf32>
    %cst_8 = arith.constant dense<0.000000e+00> : vector<16xf32>
    %11 = vector.multi_reduction <add>, %10, %cst_8 [0] : vector<256x16xf32> to vector<16xf32>
    %12 = vector.shape_cast %11 : vector<16xf32> to vector<1x16xf32>
    %c0_9 = arith.constant 0 : index
    %c0_10 = arith.constant 0 : index
    %c0_11 = arith.constant 0 : index
    %13 = vector.load %arg4[%c0_9, %c0_10, %c0_11] : memref<1x1x16xf32, #tpu.memory_space<vmem>>, vector<1x1x16xf32>
    %14 = vector.shape_cast %13 : vector<1x1x16xf32> to vector<1x16xf32>
    %15 = vector.shape_cast %12 : vector<1x16xf32> to vector<1x1x16xf32>
    tpu.vector_store %arg4[%c0_9, %c0_10, %c0_11], %15 {strides = array<i32>} : memref<1x1x16xf32, #tpu.memory_space<vmem>>, vector<1x1x16xf32>,
    return
  }
  func.func @transform_0(%arg0: i32) -> (i32, i32, i32) {
    %c0_i32 = arith.constant 0 : i32
    %c0_i32_0 = arith.constant 0 : i32
    %c0_i32_1 = arith.constant 0 : i32
    return %arg0, %c0_i32, %c0_i32_0 : i32, i32, i32
  }
  func.func @transform_1(%arg0: i32) -> (i32, i32) {
    %c0_i32 = arith.constant 0 : i32
    %c0_i32_0 = arith.constant 0 : i32
    %c0_i32_1 = arith.constant 0 : i32
    return %c0_i32, %c0_i32_0 : i32, i32
  }
  func.func @transform_2(%arg0: i32) -> (i32, i32, i32) {
    %c0_i32 = arith.constant 0 : i32
    %c0_i32_0 = arith.constant 0 : i32
    %c0_i32_1 = arith.constant 0 : i32
    return %arg0, %c0_i32, %c0_i32_0 : i32, i32, i32
  }
  func.func @transform_3(%arg0: i32) -> (i32, i32, i32) {
    %c0_i32 = arith.constant 0 : i32
    %c0_i32_0 = arith.constant 0 : i32
    %c0_i32_1 = arith.constant 0 : i32
    return %arg0, %c0_i32, %c0_i32_0 : i32, i32, i32
  }
}

module attributes {stable_mosaic.version = 11 : i64} {
  func.func @_expand_dw_kernel(%arg0: i32, %arg1: memref<1x256x4xf32, #tpu.memory_space<vmem>>, %arg2: memref<4x16xbf16, #tpu.memory_space<vmem>>, %arg3: memref<1x16xf32, #tpu.memory_space<vmem>>, %arg4: memref<9x16xf32, #tpu.memory_space<vmem>>, %arg5: memref<8x16xf32, #tpu.memory_space<vmem>>, %arg6: memref<1x64x16xbf16, #tpu.memory_space<vmem>>, %arg7: memref<1x1x16xf32, #tpu.memory_space<vmem>>, %arg8: memref<1x16x16xf32, #tpu.memory_space<vmem>>, %arg9: memref<1x64x4xbf16, #tpu.memory_space<vmem>>, %arg10: memref<272x16xf32, #tpu.memory_space<vmem>>) attributes {dimension_semantics = [#tpu.dimension_semantics<parallel>], iteration_bounds = array<i64: 2>, scalar_prefetch = 0 : i64, scratch_operands = 1 : i64, tpu.core_type = #tpu.core_type<tc>, window_params = [{transform_indices = @transform_0, window_bounds = array<i64: 1, 256, 4>}, {pipeline_mode = #tpu.pipeline_mode<synchronous>, transform_indices = @transform_1, window_bounds = array<i64: 4, 16>}, {pipeline_mode = #tpu.pipeline_mode<synchronous>, transform_indices = @transform_2, window_bounds = array<i64: 1, 16>}, {pipeline_mode = #tpu.pipeline_mode<synchronous>, transform_indices = @transform_3, window_bounds = array<i64: 9, 16>}, {pipeline_mode = #tpu.pipeline_mode<synchronous>, transform_indices = @transform_4, window_bounds = array<i64: 8, 16>}, {transform_indices = @transform_5, window_bounds = array<i64: 1, 64, 16>}, {transform_indices = @transform_6, window_bounds = array<i64: 1, 1, 16>}, {transform_indices = @transform_7, window_bounds = array<i64: 1, 16, 16>}, {transform_indices = @transform_8, window_bounds = array<i64: 1, 64, 4>}]} {
    %c0 = arith.constant 0 : index
    %c0_0 = arith.constant 0 : index
    %0 = vector.load %arg2[%c0, %c0_0] : memref<4x16xbf16, #tpu.memory_space<vmem>>, vector<4x16xbf16>
    %c0_1 = arith.constant 0 : index
    %c0_2 = arith.constant 0 : index
    %1 = vector.load %arg3[%c0_1, %c0_2] : memref<1x16xf32, #tpu.memory_space<vmem>>, vector<1x16xf32>
    %c0_3 = arith.constant 0 : index
    %c0_4 = arith.constant 0 : index
    %c0_5 = arith.constant 0 : index
    %2 = vector.load %arg1[%c0_3, %c0_4, %c0_5] : memref<1x256x4xf32, #tpu.memory_space<vmem>>, vector<1x256x4xf32>
    %3 = vector.shape_cast %2 : vector<1x256x4xf32> to vector<256x4xf32>
    %4 = arith.truncf %3 : vector<256x4xf32> to vector<256x4xbf16>
    %cst = arith.constant dense<0.000000e+00> : vector<256x16xf32>
    %5 = tpu.matmul %4, %0, %cst {dimension_numbers = #tpu.dot_dimension_numbers<[1], [0], [0], [1], [0, 0, 1, 1], [], []>} : vector<256x4xbf16>, vector<4x16xbf16>, vector<256x16xf32> -> vector<256x16xf32>
    %6 = vector.broadcast %1 : vector<1x16xf32> to vector<256x16xf32>
    %7 = arith.addf %5, %6 : vector<256x16xf32>
    %cst_6 = arith.constant 3.000000e+00 : f32
    %8 = vector.broadcast %cst_6 : f32 to vector<256x16xf32>
    %9 = arith.addf %7, %8 : vector<256x16xf32>
    %cst_7 = arith.constant 0.000000e+00 : f32
    %cst_8 = arith.constant 6.000000e+00 : f32
    %10 = vector.broadcast %cst_7 : f32 to vector<256x16xf32>
    %11 = arith.maximumf %10, %9 : vector<256x16xf32>
    %12 = vector.broadcast %cst_8 : f32 to vector<256x16xf32>
    %13 = arith.minimumf %12, %11 : vector<256x16xf32>
    %14 = arith.mulf %7, %13 : vector<256x16xf32>
    %cst_9 = arith.constant 0.166666672 : f32
    %15 = vector.broadcast %cst_9 : f32 to vector<256x16xf32>
    %16 = arith.mulf %14, %15 : vector<256x16xf32>
    %c8 = arith.constant 8 : index
    %c0_10 = arith.constant 0 : index
    %17 = vector.load %arg10[%c8, %c0_10] : memref<272x16xf32, #tpu.memory_space<vmem>>, vector<256x16xf32>
    tpu.vector_store %arg10[%c8, %c0_10], %16 {strides = array<i32>} : memref<272x16xf32, #tpu.memory_space<vmem>>, vector<256x16xf32>,
    %c0_11 = arith.constant 0 : index
    %c0_12 = arith.constant 0 : index
    %18 = vector.load %arg4[%c0_11, %c0_12] : memref<9x16xf32, #tpu.memory_space<vmem>>, vector<1x16xf32>
    %c1 = arith.constant 1 : index
    %c0_13 = arith.constant 0 : index
    %19 = vector.load %arg4[%c1, %c0_13] : memref<9x16xf32, #tpu.memory_space<vmem>>, vector<1x16xf32>
    %c2 = arith.constant 2 : index
    %c0_14 = arith.constant 0 : index
    %20 = vector.load %arg4[%c2, %c0_14] : memref<9x16xf32, #tpu.memory_space<vmem>>, vector<1x16xf32>
    %c3 = arith.constant 3 : index
    %c0_15 = arith.constant 0 : index
    %21 = vector.load %arg4[%c3, %c0_15] : memref<9x16xf32, #tpu.memory_space<vmem>>, vector<1x16xf32>
    %c4 = arith.constant 4 : index
    %c0_16 = arith.constant 0 : index
    %22 = vector.load %arg4[%c4, %c0_16] : memref<9x16xf32, #tpu.memory_space<vmem>>, vector<1x16xf32>
    %c5 = arith.constant 5 : index
    %c0_17 = arith.constant 0 : index
    %23 = vector.load %arg4[%c5, %c0_17] : memref<9x16xf32, #tpu.memory_space<vmem>>, vector<1x16xf32>
    %c6 = arith.constant 6 : index
    %c0_18 = arith.constant 0 : index
    %24 = vector.load %arg4[%c6, %c0_18] : memref<9x16xf32, #tpu.memory_space<vmem>>, vector<1x16xf32>
    %c7 = arith.constant 7 : index
    %c0_19 = arith.constant 0 : index
    %25 = vector.load %arg4[%c7, %c0_19] : memref<9x16xf32, #tpu.memory_space<vmem>>, vector<1x16xf32>
    %c8_20 = arith.constant 8 : index
    %c0_21 = arith.constant 0 : index
    %26 = vector.load %arg4[%c8_20, %c0_21] : memref<9x16xf32, #tpu.memory_space<vmem>>, vector<1x16xf32>
    %27 = tpu.iota {dimensions = array<i32: 0>} : vector<16x1xi32>
    %c-1_i32 = arith.constant -1 : i32
    %28 = vector.broadcast %c-1_i32 : i32 to vector<16x1xi32>
    %29 = arith.addi %27, %28 : vector<16x1xi32>
    %c0_i32 = arith.constant 0 : i32
    %30 = vector.broadcast %c0_i32 : i32 to vector<16x1xi32>
    %31 = arith.cmpi sge, %29, %30 : vector<16x1xi32>
    %c-1_i32_22 = arith.constant -1 : i32
    %32 = vector.broadcast %c-1_i32_22 : i32 to vector<16x1xi32>
    %33 = arith.addi %27, %32 : vector<16x1xi32>
    %c16_i32 = arith.constant 16 : i32
    %34 = vector.broadcast %c16_i32 : i32 to vector<16x1xi32>
    %35 = arith.cmpi slt, %33, %34 : vector<16x1xi32>
    %36 = arith.andi %31, %35 : vector<16x1xi1>
    %c1_i32 = arith.constant 1 : i32
    %37 = vector.broadcast %c1_i32 : i32 to vector<16x1xi32>
    %38 = arith.addi %27, %37 : vector<16x1xi32>
    %c0_i32_23 = arith.constant 0 : i32
    %39 = vector.broadcast %c0_i32_23 : i32 to vector<16x1xi32>
    %40 = arith.cmpi sge, %38, %39 : vector<16x1xi32>
    %c1_i32_24 = arith.constant 1 : i32
    %41 = vector.broadcast %c1_i32_24 : i32 to vector<16x1xi32>
    %42 = arith.addi %27, %41 : vector<16x1xi32>
    %c16_i32_25 = arith.constant 16 : i32
    %43 = vector.broadcast %c16_i32_25 : i32 to vector<16x1xi32>
    %44 = arith.cmpi slt, %42, %43 : vector<16x1xi32>
    %45 = arith.andi %40, %44 : vector<16x1xi1>
    %c0_26 = arith.constant 0 : index
    %c0_27 = arith.constant 0 : index
    %46 = vector.load %arg5[%c0_26, %c0_27] : memref<8x16xf32, #tpu.memory_space<vmem>>, vector<8x16xf32>
    %c0_i32_28 = arith.constant 0 : i32
    %cst_29 = arith.constant 0.000000e+00 : f32
    %47 = vector.broadcast %cst_29 : f32 to vector<16x16xf32>
    %c2_i32 = arith.constant 2 : i32
    %48 = arith.muli %c0_i32_28, %c2_i32 : i32
    %c0_i32_30 = arith.constant 0 : i32
    %49 = arith.addi %48, %c0_i32_30 : i32
    %c1_i32_31 = arith.constant 1 : i32
    %50 = arith.subi %49, %c1_i32_31 : i32
    %c0_i32_32 = arith.constant 0 : i32
    %c15_i32 = arith.constant 15 : i32
    %51 = arith.maxsi %c0_i32_32, %50 : i32
    %52 = arith.minsi %c15_i32, %51 : i32
    %c16_i32_33 = arith.constant 16 : i32
    %53 = arith.muli %52, %c16_i32_33 : i32
    %c8_i32 = arith.constant 8 : i32
    %54 = arith.addi %c8_i32, %53 : i32
    %c1_i32_34 = arith.constant 1 : i32
    %55 = arith.subi %54, %c1_i32_34 : i32
    %cst_35 = arith.constant 0.000000e+00 : f32
    %56 = vector.broadcast %cst_35 : f32 to vector<16x16xf32>
    %c0_i32_36 = arith.constant 0 : i32
    %57 = arith.addi %55, %c0_i32_36 : i32
    %58 = arith.index_cast %57 : i32 to index
    %c0_37 = arith.constant 0 : index
    %59 = vector.load %arg10[%58, %c0_37] : memref<272x16xf32, #tpu.memory_space<vmem>>, vector<16x16xf32>
    %60 = vector.broadcast %18 : vector<1x16xf32> to vector<16x16xf32>
    %61 = arith.mulf %59, %60 : vector<16x16xf32>
    %cst_38 = arith.constant 0.000000e+00 : f32
    %62 = vector.shape_cast %36 : vector<16x1xi1> to vector<16x1xi1>
    %63 = vector.broadcast %62 : vector<16x1xi1> to vector<16x16xi1>
    %64 = vector.broadcast %cst_38 : f32 to vector<16x16xf32>
    %65 = arith.select %63, %61, %64 : vector<16x16xi1>, vector<16x16xf32>
    %66 = arith.addf %56, %65 : vector<16x16xf32>
    %c1_i32_39 = arith.constant 1 : i32
    %67 = arith.addi %55, %c1_i32_39 : i32
    %68 = arith.index_cast %67 : i32 to index
    %c0_40 = arith.constant 0 : index
    %69 = vector.load %arg10[%68, %c0_40] : memref<272x16xf32, #tpu.memory_space<vmem>>, vector<16x16xf32>
    %70 = vector.broadcast %19 : vector<1x16xf32> to vector<16x16xf32>
    %71 = arith.mulf %69, %70 : vector<16x16xf32>
    %72 = arith.addf %66, %71 : vector<16x16xf32>
    %c2_i32_41 = arith.constant 2 : i32
    %73 = arith.addi %55, %c2_i32_41 : i32
    %74 = arith.index_cast %73 : i32 to index
    %c0_42 = arith.constant 0 : index
    %75 = vector.load %arg10[%74, %c0_42] : memref<272x16xf32, #tpu.memory_space<vmem>>, vector<16x16xf32>
    %76 = vector.broadcast %20 : vector<1x16xf32> to vector<16x16xf32>
    %77 = arith.mulf %75, %76 : vector<16x16xf32>
    %cst_43 = arith.constant 0.000000e+00 : f32
    %78 = vector.shape_cast %45 : vector<16x1xi1> to vector<16x1xi1>
    %79 = vector.broadcast %78 : vector<16x1xi1> to vector<16x16xi1>
    %80 = vector.broadcast %cst_43 : f32 to vector<16x16xf32>
    %81 = arith.select %79, %77, %80 : vector<16x16xi1>, vector<16x16xf32>
    %82 = arith.addf %72, %81 : vector<16x16xf32>
    %c0_i32_44 = arith.constant 0 : i32
    %83 = arith.cmpi sge, %50, %c0_i32_44 : i32
    %c16_i32_45 = arith.constant 16 : i32
    %84 = arith.cmpi slt, %50, %c16_i32_45 : i32
    %85 = arith.andi %83, %84 : i1
    %cst_46 = arith.constant 0.000000e+00 : f32
    %86 = vector.broadcast %cst_46 : f32 to vector<16x16xf32>
    %87 = arith.select %85, %82, %86 : vector<16x16xf32>
    %88 = arith.addf %47, %87 : vector<16x16xf32>
    %c2_i32_47 = arith.constant 2 : i32
    %89 = arith.muli %c0_i32_28, %c2_i32_47 : i32
    %c1_i32_48 = arith.constant 1 : i32
    %90 = arith.addi %89, %c1_i32_48 : i32
    %c1_i32_49 = arith.constant 1 : i32
    %91 = arith.subi %90, %c1_i32_49 : i32
    %c0_i32_50 = arith.constant 0 : i32
    %c15_i32_51 = arith.constant 15 : i32
    %92 = arith.maxsi %c0_i32_50, %91 : i32
    %93 = arith.minsi %c15_i32_51, %92 : i32
    %c16_i32_52 = arith.constant 16 : i32
    %94 = arith.muli %93, %c16_i32_52 : i32
    %c8_i32_53 = arith.constant 8 : i32
    %95 = arith.addi %c8_i32_53, %94 : i32
    %c1_i32_54 = arith.constant 1 : i32
    %96 = arith.subi %95, %c1_i32_54 : i32
    %cst_55 = arith.constant 0.000000e+00 : f32
    %97 = vector.broadcast %cst_55 : f32 to vector<16x16xf32>
    %c0_i32_56 = arith.constant 0 : i32
    %98 = arith.addi %96, %c0_i32_56 : i32
    %99 = arith.index_cast %98 : i32 to index
    %c0_57 = arith.constant 0 : index
    %100 = vector.load %arg10[%99, %c0_57] : memref<272x16xf32, #tpu.memory_space<vmem>>, vector<16x16xf32>
    %101 = vector.broadcast %21 : vector<1x16xf32> to vector<16x16xf32>
    %102 = arith.mulf %100, %101 : vector<16x16xf32>
    %cst_58 = arith.constant 0.000000e+00 : f32
    %103 = vector.shape_cast %36 : vector<16x1xi1> to vector<16x1xi1>
    %104 = vector.broadcast %103 : vector<16x1xi1> to vector<16x16xi1>
    %105 = vector.broadcast %cst_58 : f32 to vector<16x16xf32>
    %106 = arith.select %104, %102, %105 : vector<16x16xi1>, vector<16x16xf32>
    %107 = arith.addf %97, %106 : vector<16x16xf32>
    %c1_i32_59 = arith.constant 1 : i32
    %108 = arith.addi %96, %c1_i32_59 : i32
    %109 = arith.index_cast %108 : i32 to index
    %c0_60 = arith.constant 0 : index
    %110 = vector.load %arg10[%109, %c0_60] : memref<272x16xf32, #tpu.memory_space<vmem>>, vector<16x16xf32>
    %111 = vector.broadcast %22 : vector<1x16xf32> to vector<16x16xf32>
    %112 = arith.mulf %110, %111 : vector<16x16xf32>
    %113 = arith.addf %107, %112 : vector<16x16xf32>
    %c2_i32_61 = arith.constant 2 : i32
    %114 = arith.addi %96, %c2_i32_61 : i32
    %115 = arith.index_cast %114 : i32 to index
    %c0_62 = arith.constant 0 : index
    %116 = vector.load %arg10[%115, %c0_62] : memref<272x16xf32, #tpu.memory_space<vmem>>, vector<16x16xf32>
    %117 = vector.broadcast %23 : vector<1x16xf32> to vector<16x16xf32>
    %118 = arith.mulf %116, %117 : vector<16x16xf32>
    %cst_63 = arith.constant 0.000000e+00 : f32
    %119 = vector.shape_cast %45 : vector<16x1xi1> to vector<16x1xi1>
    %120 = vector.broadcast %119 : vector<16x1xi1> to vector<16x16xi1>
    %121 = vector.broadcast %cst_63 : f32 to vector<16x16xf32>
    %122 = arith.select %120, %118, %121 : vector<16x16xi1>, vector<16x16xf32>
    %123 = arith.addf %113, %122 : vector<16x16xf32>
    %124 = arith.addf %88, %123 : vector<16x16xf32>
    %c2_i32_64 = arith.constant 2 : i32
    %125 = arith.muli %c0_i32_28, %c2_i32_64 : i32
    %c2_i32_65 = arith.constant 2 : i32
    %126 = arith.addi %125, %c2_i32_65 : i32
    %c1_i32_66 = arith.constant 1 : i32
    %127 = arith.subi %126, %c1_i32_66 : i32
    %c0_i32_67 = arith.constant 0 : i32
    %c15_i32_68 = arith.constant 15 : i32
    %128 = arith.maxsi %c0_i32_67, %127 : i32
    %129 = arith.minsi %c15_i32_68, %128 : i32
    %c16_i32_69 = arith.constant 16 : i32
    %130 = arith.muli %129, %c16_i32_69 : i32
    %c8_i32_70 = arith.constant 8 : i32
    %131 = arith.addi %c8_i32_70, %130 : i32
    %c1_i32_71 = arith.constant 1 : i32
    %132 = arith.subi %131, %c1_i32_71 : i32
    %cst_72 = arith.constant 0.000000e+00 : f32
    %133 = vector.broadcast %cst_72 : f32 to vector<16x16xf32>
    %c0_i32_73 = arith.constant 0 : i32
    %134 = arith.addi %132, %c0_i32_73 : i32
    %135 = arith.index_cast %134 : i32 to index
    %c0_74 = arith.constant 0 : index
    %136 = vector.load %arg10[%135, %c0_74] : memref<272x16xf32, #tpu.memory_space<vmem>>, vector<16x16xf32>
    %137 = vector.broadcast %24 : vector<1x16xf32> to vector<16x16xf32>
    %138 = arith.mulf %136, %137 : vector<16x16xf32>
    %cst_75 = arith.constant 0.000000e+00 : f32
    %139 = vector.shape_cast %36 : vector<16x1xi1> to vector<16x1xi1>
    %140 = vector.broadcast %139 : vector<16x1xi1> to vector<16x16xi1>
    %141 = vector.broadcast %cst_75 : f32 to vector<16x16xf32>
    %142 = arith.select %140, %138, %141 : vector<16x16xi1>, vector<16x16xf32>
    %143 = arith.addf %133, %142 : vector<16x16xf32>
    %c1_i32_76 = arith.constant 1 : i32
    %144 = arith.addi %132, %c1_i32_76 : i32
    %145 = arith.index_cast %144 : i32 to index
    %c0_77 = arith.constant 0 : index
    %146 = vector.load %arg10[%145, %c0_77] : memref<272x16xf32, #tpu.memory_space<vmem>>, vector<16x16xf32>
    %147 = vector.broadcast %25 : vector<1x16xf32> to vector<16x16xf32>
    %148 = arith.mulf %146, %147 : vector<16x16xf32>
    %149 = arith.addf %143, %148 : vector<16x16xf32>
    %c2_i32_78 = arith.constant 2 : i32
    %150 = arith.addi %132, %c2_i32_78 : i32
    %151 = arith.index_cast %150 : i32 to index
    %c0_79 = arith.constant 0 : index
    %152 = vector.load %arg10[%151, %c0_79] : memref<272x16xf32, #tpu.memory_space<vmem>>, vector<16x16xf32>
    %153 = vector.broadcast %26 : vector<1x16xf32> to vector<16x16xf32>
    %154 = arith.mulf %152, %153 : vector<16x16xf32>
    %cst_80 = arith.constant 0.000000e+00 : f32
    %155 = vector.shape_cast %45 : vector<16x1xi1> to vector<16x1xi1>
    %156 = vector.broadcast %155 : vector<16x1xi1> to vector<16x16xi1>
    %157 = vector.broadcast %cst_80 : f32 to vector<16x16xf32>
    %158 = arith.select %156, %154, %157 : vector<16x16xi1>, vector<16x16xf32>
    %159 = arith.addf %149, %158 : vector<16x16xf32>
    %c0_i32_81 = arith.constant 0 : i32
    %160 = arith.cmpi sge, %127, %c0_i32_81 : i32
    %c16_i32_82 = arith.constant 16 : i32
    %161 = arith.cmpi slt, %127, %c16_i32_82 : i32
    %162 = arith.andi %160, %161 : i1
    %cst_83 = arith.constant 0.000000e+00 : f32
    %163 = vector.broadcast %cst_83 : f32 to vector<16x16xf32>
    %164 = arith.select %162, %159, %163 : vector<16x16xf32>
    %165 = arith.addf %124, %164 : vector<16x16xf32>
    %cst_84 = arith.constant dense<0.000000e+00> : vector<8x16xf32>
    %166 = tpu.matmul %46, %165, %cst_84 {dimension_numbers = #tpu.dot_dimension_numbers<[1], [0], [0], [1], [0, 0, 1, 1], [], []>} : vector<8x16xf32>, vector<16x16xf32>, vector<8x16xf32> -> vector<8x16xf32>
    %c8_i32_85 = arith.constant 8 : i32
    %167 = arith.muli %c0_i32_28, %c8_i32_85 : i32
    %168 = tpu.assume_multiple %167, 8 : i32
    %169 = arith.truncf %166 : vector<8x16xf32> to vector<8x16xbf16>
    %c0_86 = arith.constant 0 : index
    %170 = arith.index_cast %168 : i32 to index
    %c0_87 = arith.constant 0 : index
    %171 = vector.load %arg6[%c0_86, %170, %c0_87] : memref<1x64x16xbf16, #tpu.memory_space<vmem>>, vector<1x8x16xbf16>
    %172 = vector.shape_cast %171 : vector<1x8x16xbf16> to vector<8x16xbf16>
    %173 = vector.shape_cast %169 : vector<8x16xbf16> to vector<1x8x16xbf16>
    tpu.vector_store %arg6[%c0_86, %170, %c0_87], %173 {strides = array<i32>} : memref<1x64x16xbf16, #tpu.memory_space<vmem>>, vector<1x8x16xbf16>,
    %c2_i32_88 = arith.constant 2 : i32
    %174 = arith.muli %c0_i32_28, %c2_i32_88 : i32
    %c16_i32_89 = arith.constant 16 : i32
    %175 = arith.muli %174, %c16_i32_89 : i32
    %c0_90 = arith.constant 0 : index
    %176 = arith.index_cast %175 : i32 to index
    %c0_91 = arith.constant 0 : index
    %177 = vector.load %arg1[%c0_90, %176, %c0_91] : memref<1x256x4xf32, #tpu.memory_space<vmem>>, vector<1x16x4xf32>
    %178 = vector.shape_cast %177 : vector<1x16x4xf32> to vector<16x4xf32>
    %cst_92 = arith.constant dense<0.000000e+00> : vector<8x4xf32>
    %179 = tpu.matmul %46, %178, %cst_92 {dimension_numbers = #tpu.dot_dimension_numbers<[1], [0], [0], [1], [0, 0, 1, 1], [], []>} : vector<8x16xf32>, vector<16x4xf32>, vector<8x4xf32> -> vector<8x4xf32>
    %180 = arith.truncf %179 : vector<8x4xf32> to vector<8x4xbf16>
    %c0_93 = arith.constant 0 : index
    %181 = arith.index_cast %168 : i32 to index
    %c0_94 = arith.constant 0 : index
    %182 = vector.load %arg9[%c0_93, %181, %c0_94] : memref<1x64x4xbf16, #tpu.memory_space<vmem>>, vector<1x8x4xbf16>
    %183 = vector.shape_cast %182 : vector<1x8x4xbf16> to vector<8x4xbf16>
    %184 = vector.shape_cast %180 : vector<8x4xbf16> to vector<1x8x4xbf16>
    tpu.vector_store %arg9[%c0_93, %181, %c0_94], %184 {strides = array<i32>} : memref<1x64x4xbf16, #tpu.memory_space<vmem>>, vector<1x8x4xbf16>,
    %c1_i32_95 = arith.constant 1 : i32
    %cst_96 = arith.constant 0.000000e+00 : f32
    %185 = vector.broadcast %cst_96 : f32 to vector<16x16xf32>
    %c2_i32_97 = arith.constant 2 : i32
    %186 = arith.muli %c1_i32_95, %c2_i32_97 : i32
    %c0_i32_98 = arith.constant 0 : i32
    %187 = arith.addi %186, %c0_i32_98 : i32
    %c1_i32_99 = arith.constant 1 : i32
    %188 = arith.subi %187, %c1_i32_99 : i32
    %c0_i32_100 = arith.constant 0 : i32
    %c15_i32_101 = arith.constant 15 : i32
    %189 = arith.maxsi %c0_i32_100, %188 : i32
    %190 = arith.minsi %c15_i32_101, %189 : i32
    %c16_i32_102 = arith.constant 16 : i32
    %191 = arith.muli %190, %c16_i32_102 : i32
    %c8_i32_103 = arith.constant 8 : i32
    %192 = arith.addi %c8_i32_103, %191 : i32
    %c1_i32_104 = arith.constant 1 : i32
    %193 = arith.subi %192, %c1_i32_104 : i32
    %cst_105 = arith.constant 0.000000e+00 : f32
    %194 = vector.broadcast %cst_105 : f32 to vector<16x16xf32>
    %c0_i32_106 = arith.constant 0 : i32
    %195 = arith.addi %193, %c0_i32_106 : i32
    %196 = arith.index_cast %195 : i32 to index
    %c0_107 = arith.constant 0 : index
    %197 = vector.load %arg10[%196, %c0_107] : memref<272x16xf32, #tpu.memory_space<vmem>>, vector<16x16xf32>
    %198 = vector.broadcast %18 : vector<1x16xf32> to vector<16x16xf32>
    %199 = arith.mulf %197, %198 : vector<16x16xf32>
    %cst_108 = arith.constant 0.000000e+00 : f32
    %200 = vector.shape_cast %36 : vector<16x1xi1> to vector<16x1xi1>
    %201 = vector.broadcast %200 : vector<16x1xi1> to vector<16x16xi1>
    %202 = vector.broadcast %cst_108 : f32 to vector<16x16xf32>
    %203 = arith.select %201, %199, %202 : vector<16x16xi1>, vector<16x16xf32>
    %204 = arith.addf %194, %203 : vector<16x16xf32>
    %c1_i32_109 = arith.constant 1 : i32
    %205 = arith.addi %193, %c1_i32_109 : i32
    %206 = arith.index_cast %205 : i32 to index
    %c0_110 = arith.constant 0 : index
    %207 = vector.load %arg10[%206, %c0_110] : memref<272x16xf32, #tpu.memory_space<vmem>>, vector<16x16xf32>
    %208 = vector.broadcast %19 : vector<1x16xf32> to vector<16x16xf32>
    %209 = arith.mulf %207, %208 : vector<16x16xf32>
    %210 = arith.addf %204, %209 : vector<16x16xf32>
    %c2_i32_111 = arith.constant 2 : i32
    %211 = arith.addi %193, %c2_i32_111 : i32
    %212 = arith.index_cast %211 : i32 to index
    %c0_112 = arith.constant 0 : index
    %213 = vector.load %arg10[%212, %c0_112] : memref<272x16xf32, #tpu.memory_space<vmem>>, vector<16x16xf32>
    %214 = vector.broadcast %20 : vector<1x16xf32> to vector<16x16xf32>
    %215 = arith.mulf %213, %214 : vector<16x16xf32>
    %cst_113 = arith.constant 0.000000e+00 : f32
    %216 = vector.shape_cast %45 : vector<16x1xi1> to vector<16x1xi1>
    %217 = vector.broadcast %216 : vector<16x1xi1> to vector<16x16xi1>
    %218 = vector.broadcast %cst_113 : f32 to vector<16x16xf32>
    %219 = arith.select %217, %215, %218 : vector<16x16xi1>, vector<16x16xf32>
    %220 = arith.addf %210, %219 : vector<16x16xf32>
    %c0_i32_114 = arith.constant 0 : i32
    %221 = arith.cmpi sge, %188, %c0_i32_114 : i32
    %c16_i32_115 = arith.constant 16 : i32
    %222 = arith.cmpi slt, %188, %c16_i32_115 : i32
    %223 = arith.andi %221, %222 : i1
    %cst_116 = arith.constant 0.000000e+00 : f32
    %224 = vector.broadcast %cst_116 : f32 to vector<16x16xf32>
    %225 = arith.select %223, %220, %224 : vector<16x16xf32>
    %226 = arith.addf %185, %225 : vector<16x16xf32>
    %c2_i32_117 = arith.constant 2 : i32
    %227 = arith.muli %c1_i32_95, %c2_i32_117 : i32
    %c1_i32_118 = arith.constant 1 : i32
    %228 = arith.addi %227, %c1_i32_118 : i32
    %c1_i32_119 = arith.constant 1 : i32
    %229 = arith.subi %228, %c1_i32_119 : i32
    %c0_i32_120 = arith.constant 0 : i32
    %c15_i32_121 = arith.constant 15 : i32
    %230 = arith.maxsi %c0_i32_120, %229 : i32
    %231 = arith.minsi %c15_i32_121, %230 : i32
    %c16_i32_122 = arith.constant 16 : i32
    %232 = arith.muli %231, %c16_i32_122 : i32
    %c8_i32_123 = arith.constant 8 : i32
    %233 = arith.addi %c8_i32_123, %232 : i32
    %c1_i32_124 = arith.constant 1 : i32
    %234 = arith.subi %233, %c1_i32_124 : i32
    %cst_125 = arith.constant 0.000000e+00 : f32
    %235 = vector.broadcast %cst_125 : f32 to vector<16x16xf32>
    %c0_i32_126 = arith.constant 0 : i32
    %236 = arith.addi %234, %c0_i32_126 : i32
    %237 = arith.index_cast %236 : i32 to index
    %c0_127 = arith.constant 0 : index
    %238 = vector.load %arg10[%237, %c0_127] : memref<272x16xf32, #tpu.memory_space<vmem>>, vector<16x16xf32>
    %239 = vector.broadcast %21 : vector<1x16xf32> to vector<16x16xf32>
    %240 = arith.mulf %238, %239 : vector<16x16xf32>
    %cst_128 = arith.constant 0.000000e+00 : f32
    %241 = vector.shape_cast %36 : vector<16x1xi1> to vector<16x1xi1>
    %242 = vector.broadcast %241 : vector<16x1xi1> to vector<16x16xi1>
    %243 = vector.broadcast %cst_128 : f32 to vector<16x16xf32>
    %244 = arith.select %242, %240, %243 : vector<16x16xi1>, vector<16x16xf32>
    %245 = arith.addf %235, %244 : vector<16x16xf32>
    %c1_i32_129 = arith.constant 1 : i32
    %246 = arith.addi %234, %c1_i32_129 : i32
    %247 = arith.index_cast %246 : i32 to index
    %c0_130 = arith.constant 0 : index
    %248 = vector.load %arg10[%247, %c0_130] : memref<272x16xf32, #tpu.memory_space<vmem>>, vector<16x16xf32>
    %249 = vector.broadcast %22 : vector<1x16xf32> to vector<16x16xf32>
    %250 = arith.mulf %248, %249 : vector<16x16xf32>
    %251 = arith.addf %245, %250 : vector<16x16xf32>
    %c2_i32_131 = arith.constant 2 : i32
    %252 = arith.addi %234, %c2_i32_131 : i32
    %253 = arith.index_cast %252 : i32 to index
    %c0_132 = arith.constant 0 : index
    %254 = vector.load %arg10[%253, %c0_132] : memref<272x16xf32, #tpu.memory_space<vmem>>, vector<16x16xf32>
    %255 = vector.broadcast %23 : vector<1x16xf32> to vector<16x16xf32>
    %256 = arith.mulf %254, %255 : vector<16x16xf32>
    %cst_133 = arith.constant 0.000000e+00 : f32
    %257 = vector.shape_cast %45 : vector<16x1xi1> to vector<16x1xi1>
    %258 = vector.broadcast %257 : vector<16x1xi1> to vector<16x16xi1>
    %259 = vector.broadcast %cst_133 : f32 to vector<16x16xf32>
    %260 = arith.select %258, %256, %259 : vector<16x16xi1>, vector<16x16xf32>
    %261 = arith.addf %251, %260 : vector<16x16xf32>
    %262 = arith.addf %226, %261 : vector<16x16xf32>
    %c2_i32_134 = arith.constant 2 : i32
    %263 = arith.muli %c1_i32_95, %c2_i32_134 : i32
    %c2_i32_135 = arith.constant 2 : i32
    %264 = arith.addi %263, %c2_i32_135 : i32
    %c1_i32_136 = arith.constant 1 : i32
    %265 = arith.subi %264, %c1_i32_136 : i32
    %c0_i32_137 = arith.constant 0 : i32
    %c15_i32_138 = arith.constant 15 : i32
    %266 = arith.maxsi %c0_i32_137, %265 : i32
    %267 = arith.minsi %c15_i32_138, %266 : i32
    %c16_i32_139 = arith.constant 16 : i32
    %268 = arith.muli %267, %c16_i32_139 : i32
    %c8_i32_140 = arith.constant 8 : i32
    %269 = arith.addi %c8_i32_140, %268 : i32
    %c1_i32_141 = arith.constant 1 : i32
    %270 = arith.subi %269, %c1_i32_141 : i32
    %cst_142 = arith.constant 0.000000e+00 : f32
    %271 = vector.broadcast %cst_142 : f32 to vector<16x16xf32>
    %c0_i32_143 = arith.constant 0 : i32
    %272 = arith.addi %270, %c0_i32_143 : i32
    %273 = arith.index_cast %272 : i32 to index
    %c0_144 = arith.constant 0 : index
    %274 = vector.load %arg10[%273, %c0_144] : memref<272x16xf32, #tpu.memory_space<vmem>>, vector<16x16xf32>
    %275 = vector.broadcast %24 : vector<1x16xf32> to vector<16x16xf32>
    %276 = arith.mulf %274, %275 : vector<16x16xf32>
    %cst_145 = arith.constant 0.000000e+00 : f32
    %277 = vector.shape_cast %36 : vector<16x1xi1> to vector<16x1xi1>
    %278 = vector.broadcast %277 : vector<16x1xi1> to vector<16x16xi1>
    %279 = vector.broadcast %cst_145 : f32 to vector<16x16xf32>
    %280 = arith.select %278, %276, %279 : vector<16x16xi1>, vector<16x16xf32>
    %281 = arith.addf %271, %280 : vector<16x16xf32>
    %c1_i32_146 = arith.constant 1 : i32
    %282 = arith.addi %270, %c1_i32_146 : i32
    %283 = arith.index_cast %282 : i32 to index
    %c0_147 = arith.constant 0 : index
    %284 = vector.load %arg10[%283, %c0_147] : memref<272x16xf32, #tpu.memory_space<vmem>>, vector<16x16xf32>
    %285 = vector.broadcast %25 : vector<1x16xf32> to vector<16x16xf32>
    %286 = arith.mulf %284, %285 : vector<16x16xf32>
    %287 = arith.addf %281, %286 : vector<16x16xf32>
    %c2_i32_148 = arith.constant 2 : i32
    %288 = arith.addi %270, %c2_i32_148 : i32
    %289 = arith.index_cast %288 : i32 to index
    %c0_149 = arith.constant 0 : index
    %290 = vector.load %arg10[%289, %c0_149] : memref<272x16xf32, #tpu.memory_space<vmem>>, vector<16x16xf32>
    %291 = vector.broadcast %26 : vector<1x16xf32> to vector<16x16xf32>
    %292 = arith.mulf %290, %291 : vector<16x16xf32>
    %cst_150 = arith.constant 0.000000e+00 : f32
    %293 = vector.shape_cast %45 : vector<16x1xi1> to vector<16x1xi1>
    %294 = vector.broadcast %293 : vector<16x1xi1> to vector<16x16xi1>
    %295 = vector.broadcast %cst_150 : f32 to vector<16x16xf32>
    %296 = arith.select %294, %292, %295 : vector<16x16xi1>, vector<16x16xf32>
    %297 = arith.addf %287, %296 : vector<16x16xf32>
    %c0_i32_151 = arith.constant 0 : i32
    %298 = arith.cmpi sge, %265, %c0_i32_151 : i32
    %c16_i32_152 = arith.constant 16 : i32
    %299 = arith.cmpi slt, %265, %c16_i32_152 : i32
    %300 = arith.andi %298, %299 : i1
    %cst_153 = arith.constant 0.000000e+00 : f32
    %301 = vector.broadcast %cst_153 : f32 to vector<16x16xf32>
    %302 = arith.select %300, %297, %301 : vector<16x16xf32>
    %303 = arith.addf %262, %302 : vector<16x16xf32>
    %cst_154 = arith.constant dense<0.000000e+00> : vector<8x16xf32>
    %304 = tpu.matmul %46, %303, %cst_154 {dimension_numbers = #tpu.dot_dimension_numbers<[1], [0], [0], [1], [0, 0, 1, 1], [], []>} : vector<8x16xf32>, vector<16x16xf32>, vector<8x16xf32> -> vector<8x16xf32>
    %c8_i32_155 = arith.constant 8 : i32
    %305 = arith.muli %c1_i32_95, %c8_i32_155 : i32
    %306 = tpu.assume_multiple %305, 8 : i32
    %307 = arith.truncf %304 : vector<8x16xf32> to vector<8x16xbf16>
    %c0_156 = arith.constant 0 : index
    %308 = arith.index_cast %306 : i32 to index
    %c0_157 = arith.constant 0 : index
    %309 = vector.load %arg6[%c0_156, %308, %c0_157] : memref<1x64x16xbf16, #tpu.memory_space<vmem>>, vector<1x8x16xbf16>
    %310 = vector.shape_cast %309 : vector<1x8x16xbf16> to vector<8x16xbf16>
    %311 = vector.shape_cast %307 : vector<8x16xbf16> to vector<1x8x16xbf16>
    tpu.vector_store %arg6[%c0_156, %308, %c0_157], %311 {strides = array<i32>} : memref<1x64x16xbf16, #tpu.memory_space<vmem>>, vector<1x8x16xbf16>,
    %c2_i32_158 = arith.constant 2 : i32
    %312 = arith.muli %c1_i32_95, %c2_i32_158 : i32
    %c16_i32_159 = arith.constant 16 : i32
    %313 = arith.muli %312, %c16_i32_159 : i32
    %c0_160 = arith.constant 0 : index
    %314 = arith.index_cast %313 : i32 to index
    %c0_161 = arith.constant 0 : index
    %315 = vector.load %arg1[%c0_160, %314, %c0_161] : memref<1x256x4xf32, #tpu.memory_space<vmem>>, vector<1x16x4xf32>
    %316 = vector.shape_cast %315 : vector<1x16x4xf32> to vector<16x4xf32>
    %cst_162 = arith.constant dense<0.000000e+00> : vector<8x4xf32>
    %317 = tpu.matmul %46, %316, %cst_162 {dimension_numbers = #tpu.dot_dimension_numbers<[1], [0], [0], [1], [0, 0, 1, 1], [], []>} : vector<8x16xf32>, vector<16x4xf32>, vector<8x4xf32> -> vector<8x4xf32>
    %318 = arith.truncf %317 : vector<8x4xf32> to vector<8x4xbf16>
    %c0_163 = arith.constant 0 : index
    %319 = arith.index_cast %306 : i32 to index
    %c0_164 = arith.constant 0 : index
    %320 = vector.load %arg9[%c0_163, %319, %c0_164] : memref<1x64x4xbf16, #tpu.memory_space<vmem>>, vector<1x8x4xbf16>
    %321 = vector.shape_cast %320 : vector<1x8x4xbf16> to vector<8x4xbf16>
    %322 = vector.shape_cast %318 : vector<8x4xbf16> to vector<1x8x4xbf16>
    tpu.vector_store %arg9[%c0_163, %319, %c0_164], %322 {strides = array<i32>} : memref<1x64x4xbf16, #tpu.memory_space<vmem>>, vector<1x8x4xbf16>,
    %c2_i32_165 = arith.constant 2 : i32
    %cst_166 = arith.constant 0.000000e+00 : f32
    %323 = vector.broadcast %cst_166 : f32 to vector<16x16xf32>
    %c2_i32_167 = arith.constant 2 : i32
    %324 = arith.muli %c2_i32_165, %c2_i32_167 : i32
    %c0_i32_168 = arith.constant 0 : i32
    %325 = arith.addi %324, %c0_i32_168 : i32
    %c1_i32_169 = arith.constant 1 : i32
    %326 = arith.subi %325, %c1_i32_169 : i32
    %c0_i32_170 = arith.constant 0 : i32
    %c15_i32_171 = arith.constant 15 : i32
    %327 = arith.maxsi %c0_i32_170, %326 : i32
    %328 = arith.minsi %c15_i32_171, %327 : i32
    %c16_i32_172 = arith.constant 16 : i32
    %329 = arith.muli %328, %c16_i32_172 : i32
    %c8_i32_173 = arith.constant 8 : i32
    %330 = arith.addi %c8_i32_173, %329 : i32
    %c1_i32_174 = arith.constant 1 : i32
    %331 = arith.subi %330, %c1_i32_174 : i32
    %cst_175 = arith.constant 0.000000e+00 : f32
    %332 = vector.broadcast %cst_175 : f32 to vector<16x16xf32>
    %c0_i32_176 = arith.constant 0 : i32
    %333 = arith.addi %331, %c0_i32_176 : i32
    %334 = arith.index_cast %333 : i32 to index
    %c0_177 = arith.constant 0 : index
    %335 = vector.load %arg10[%334, %c0_177] : memref<272x16xf32, #tpu.memory_space<vmem>>, vector<16x16xf32>
    %336 = vector.broadcast %18 : vector<1x16xf32> to vector<16x16xf32>
    %337 = arith.mulf %335, %336 : vector<16x16xf32>
    %cst_178 = arith.constant 0.000000e+00 : f32
    %338 = vector.shape_cast %36 : vector<16x1xi1> to vector<16x1xi1>
    %339 = vector.broadcast %338 : vector<16x1xi1> to vector<16x16xi1>
    %340 = vector.broadcast %cst_178 : f32 to vector<16x16xf32>
    %341 = arith.select %339, %337, %340 : vector<16x16xi1>, vector<16x16xf32>
    %342 = arith.addf %332, %341 : vector<16x16xf32>
    %c1_i32_179 = arith.constant 1 : i32
    %343 = arith.addi %331, %c1_i32_179 : i32
    %344 = arith.index_cast %343 : i32 to index
    %c0_180 = arith.constant 0 : index
    %345 = vector.load %arg10[%344, %c0_180] : memref<272x16xf32, #tpu.memory_space<vmem>>, vector<16x16xf32>
    %346 = vector.broadcast %19 : vector<1x16xf32> to vector<16x16xf32>
    %347 = arith.mulf %345, %346 : vector<16x16xf32>
    %348 = arith.addf %342, %347 : vector<16x16xf32>
    %c2_i32_181 = arith.constant 2 : i32
    %349 = arith.addi %331, %c2_i32_181 : i32
    %350 = arith.index_cast %349 : i32 to index
    %c0_182 = arith.constant 0 : index
    %351 = vector.load %arg10[%350, %c0_182] : memref<272x16xf32, #tpu.memory_space<vmem>>, vector<16x16xf32>
    %352 = vector.broadcast %20 : vector<1x16xf32> to vector<16x16xf32>
    %353 = arith.mulf %351, %352 : vector<16x16xf32>
    %cst_183 = arith.constant 0.000000e+00 : f32
    %354 = vector.shape_cast %45 : vector<16x1xi1> to vector<16x1xi1>
    %355 = vector.broadcast %354 : vector<16x1xi1> to vector<16x16xi1>
    %356 = vector.broadcast %cst_183 : f32 to vector<16x16xf32>
    %357 = arith.select %355, %353, %356 : vector<16x16xi1>, vector<16x16xf32>
    %358 = arith.addf %348, %357 : vector<16x16xf32>
    %c0_i32_184 = arith.constant 0 : i32
    %359 = arith.cmpi sge, %326, %c0_i32_184 : i32
    %c16_i32_185 = arith.constant 16 : i32
    %360 = arith.cmpi slt, %326, %c16_i32_185 : i32
    %361 = arith.andi %359, %360 : i1
    %cst_186 = arith.constant 0.000000e+00 : f32
    %362 = vector.broadcast %cst_186 : f32 to vector<16x16xf32>
    %363 = arith.select %361, %358, %362 : vector<16x16xf32>
    %364 = arith.addf %323, %363 : vector<16x16xf32>
    %c2_i32_187 = arith.constant 2 : i32
    %365 = arith.muli %c2_i32_165, %c2_i32_187 : i32
    %c1_i32_188 = arith.constant 1 : i32
    %366 = arith.addi %365, %c1_i32_188 : i32
    %c1_i32_189 = arith.constant 1 : i32
    %367 = arith.subi %366, %c1_i32_189 : i32
    %c0_i32_190 = arith.constant 0 : i32
    %c15_i32_191 = arith.constant 15 : i32
    %368 = arith.maxsi %c0_i32_190, %367 : i32
    %369 = arith.minsi %c15_i32_191, %368 : i32
    %c16_i32_192 = arith.constant 16 : i32
    %370 = arith.muli %369, %c16_i32_192 : i32
    %c8_i32_193 = arith.constant 8 : i32
    %371 = arith.addi %c8_i32_193, %370 : i32
    %c1_i32_194 = arith.constant 1 : i32
    %372 = arith.subi %371, %c1_i32_194 : i32
    %cst_195 = arith.constant 0.000000e+00 : f32
    %373 = vector.broadcast %cst_195 : f32 to vector<16x16xf32>
    %c0_i32_196 = arith.constant 0 : i32
    %374 = arith.addi %372, %c0_i32_196 : i32
    %375 = arith.index_cast %374 : i32 to index
    %c0_197 = arith.constant 0 : index
    %376 = vector.load %arg10[%375, %c0_197] : memref<272x16xf32, #tpu.memory_space<vmem>>, vector<16x16xf32>
    %377 = vector.broadcast %21 : vector<1x16xf32> to vector<16x16xf32>
    %378 = arith.mulf %376, %377 : vector<16x16xf32>
    %cst_198 = arith.constant 0.000000e+00 : f32
    %379 = vector.shape_cast %36 : vector<16x1xi1> to vector<16x1xi1>
    %380 = vector.broadcast %379 : vector<16x1xi1> to vector<16x16xi1>
    %381 = vector.broadcast %cst_198 : f32 to vector<16x16xf32>
    %382 = arith.select %380, %378, %381 : vector<16x16xi1>, vector<16x16xf32>
    %383 = arith.addf %373, %382 : vector<16x16xf32>
    %c1_i32_199 = arith.constant 1 : i32
    %384 = arith.addi %372, %c1_i32_199 : i32
    %385 = arith.index_cast %384 : i32 to index
    %c0_200 = arith.constant 0 : index
    %386 = vector.load %arg10[%385, %c0_200] : memref<272x16xf32, #tpu.memory_space<vmem>>, vector<16x16xf32>
    %387 = vector.broadcast %22 : vector<1x16xf32> to vector<16x16xf32>
    %388 = arith.mulf %386, %387 : vector<16x16xf32>
    %389 = arith.addf %383, %388 : vector<16x16xf32>
    %c2_i32_201 = arith.constant 2 : i32
    %390 = arith.addi %372, %c2_i32_201 : i32
    %391 = arith.index_cast %390 : i32 to index
    %c0_202 = arith.constant 0 : index
    %392 = vector.load %arg10[%391, %c0_202] : memref<272x16xf32, #tpu.memory_space<vmem>>, vector<16x16xf32>
    %393 = vector.broadcast %23 : vector<1x16xf32> to vector<16x16xf32>
    %394 = arith.mulf %392, %393 : vector<16x16xf32>
    %cst_203 = arith.constant 0.000000e+00 : f32
    %395 = vector.shape_cast %45 : vector<16x1xi1> to vector<16x1xi1>
    %396 = vector.broadcast %395 : vector<16x1xi1> to vector<16x16xi1>
    %397 = vector.broadcast %cst_203 : f32 to vector<16x16xf32>
    %398 = arith.select %396, %394, %397 : vector<16x16xi1>, vector<16x16xf32>
    %399 = arith.addf %389, %398 : vector<16x16xf32>
    %400 = arith.addf %364, %399 : vector<16x16xf32>
    %c2_i32_204 = arith.constant 2 : i32
    %401 = arith.muli %c2_i32_165, %c2_i32_204 : i32
    %c2_i32_205 = arith.constant 2 : i32
    %402 = arith.addi %401, %c2_i32_205 : i32
    %c1_i32_206 = arith.constant 1 : i32
    %403 = arith.subi %402, %c1_i32_206 : i32
    %c0_i32_207 = arith.constant 0 : i32
    %c15_i32_208 = arith.constant 15 : i32
    %404 = arith.maxsi %c0_i32_207, %403 : i32
    %405 = arith.minsi %c15_i32_208, %404 : i32
    %c16_i32_209 = arith.constant 16 : i32
    %406 = arith.muli %405, %c16_i32_209 : i32
    %c8_i32_210 = arith.constant 8 : i32
    %407 = arith.addi %c8_i32_210, %406 : i32
    %c1_i32_211 = arith.constant 1 : i32
    %408 = arith.subi %407, %c1_i32_211 : i32
    %cst_212 = arith.constant 0.000000e+00 : f32
    %409 = vector.broadcast %cst_212 : f32 to vector<16x16xf32>
    %c0_i32_213 = arith.constant 0 : i32
    %410 = arith.addi %408, %c0_i32_213 : i32
    %411 = arith.index_cast %410 : i32 to index
    %c0_214 = arith.constant 0 : index
    %412 = vector.load %arg10[%411, %c0_214] : memref<272x16xf32, #tpu.memory_space<vmem>>, vector<16x16xf32>
    %413 = vector.broadcast %24 : vector<1x16xf32> to vector<16x16xf32>
    %414 = arith.mulf %412, %413 : vector<16x16xf32>
    %cst_215 = arith.constant 0.000000e+00 : f32
    %415 = vector.shape_cast %36 : vector<16x1xi1> to vector<16x1xi1>
    %416 = vector.broadcast %415 : vector<16x1xi1> to vector<16x16xi1>
    %417 = vector.broadcast %cst_215 : f32 to vector<16x16xf32>
    %418 = arith.select %416, %414, %417 : vector<16x16xi1>, vector<16x16xf32>
    %419 = arith.addf %409, %418 : vector<16x16xf32>
    %c1_i32_216 = arith.constant 1 : i32
    %420 = arith.addi %408, %c1_i32_216 : i32
    %421 = arith.index_cast %420 : i32 to index
    %c0_217 = arith.constant 0 : index
    %422 = vector.load %arg10[%421, %c0_217] : memref<272x16xf32, #tpu.memory_space<vmem>>, vector<16x16xf32>
    %423 = vector.broadcast %25 : vector<1x16xf32> to vector<16x16xf32>
    %424 = arith.mulf %422, %423 : vector<16x16xf32>
    %425 = arith.addf %419, %424 : vector<16x16xf32>
    %c2_i32_218 = arith.constant 2 : i32
    %426 = arith.addi %408, %c2_i32_218 : i32
    %427 = arith.index_cast %426 : i32 to index
    %c0_219 = arith.constant 0 : index
    %428 = vector.load %arg10[%427, %c0_219] : memref<272x16xf32, #tpu.memory_space<vmem>>, vector<16x16xf32>
    %429 = vector.broadcast %26 : vector<1x16xf32> to vector<16x16xf32>
    %430 = arith.mulf %428, %429 : vector<16x16xf32>
    %cst_220 = arith.constant 0.000000e+00 : f32
    %431 = vector.shape_cast %45 : vector<16x1xi1> to vector<16x1xi1>
    %432 = vector.broadcast %431 : vector<16x1xi1> to vector<16x16xi1>
    %433 = vector.broadcast %cst_220 : f32 to vector<16x16xf32>
    %434 = arith.select %432, %430, %433 : vector<16x16xi1>, vector<16x16xf32>
    %435 = arith.addf %425, %434 : vector<16x16xf32>
    %c0_i32_221 = arith.constant 0 : i32
    %436 = arith.cmpi sge, %403, %c0_i32_221 : i32
    %c16_i32_222 = arith.constant 16 : i32
    %437 = arith.cmpi slt, %403, %c16_i32_222 : i32
    %438 = arith.andi %436, %437 : i1
    %cst_223 = arith.constant 0.000000e+00 : f32
    %439 = vector.broadcast %cst_223 : f32 to vector<16x16xf32>
    %440 = arith.select %438, %435, %439 : vector<16x16xf32>
    %441 = arith.addf %400, %440 : vector<16x16xf32>
    %cst_224 = arith.constant dense<0.000000e+00> : vector<8x16xf32>
    %442 = tpu.matmul %46, %441, %cst_224 {dimension_numbers = #tpu.dot_dimension_numbers<[1], [0], [0], [1], [0, 0, 1, 1], [], []>} : vector<8x16xf32>, vector<16x16xf32>, vector<8x16xf32> -> vector<8x16xf32>
    %c8_i32_225 = arith.constant 8 : i32
    %443 = arith.muli %c2_i32_165, %c8_i32_225 : i32
    %444 = tpu.assume_multiple %443, 8 : i32
    %445 = arith.truncf %442 : vector<8x16xf32> to vector<8x16xbf16>
    %c0_226 = arith.constant 0 : index
    %446 = arith.index_cast %444 : i32 to index
    %c0_227 = arith.constant 0 : index
    %447 = vector.load %arg6[%c0_226, %446, %c0_227] : memref<1x64x16xbf16, #tpu.memory_space<vmem>>, vector<1x8x16xbf16>
    %448 = vector.shape_cast %447 : vector<1x8x16xbf16> to vector<8x16xbf16>
    %449 = vector.shape_cast %445 : vector<8x16xbf16> to vector<1x8x16xbf16>
    tpu.vector_store %arg6[%c0_226, %446, %c0_227], %449 {strides = array<i32>} : memref<1x64x16xbf16, #tpu.memory_space<vmem>>, vector<1x8x16xbf16>,
    %c2_i32_228 = arith.constant 2 : i32
    %450 = arith.muli %c2_i32_165, %c2_i32_228 : i32
    %c16_i32_229 = arith.constant 16 : i32
    %451 = arith.muli %450, %c16_i32_229 : i32
    %c0_230 = arith.constant 0 : index
    %452 = arith.index_cast %451 : i32 to index
    %c0_231 = arith.constant 0 : index
    %453 = vector.load %arg1[%c0_230, %452, %c0_231] : memref<1x256x4xf32, #tpu.memory_space<vmem>>, vector<1x16x4xf32>
    %454 = vector.shape_cast %453 : vector<1x16x4xf32> to vector<16x4xf32>
    %cst_232 = arith.constant dense<0.000000e+00> : vector<8x4xf32>
    %455 = tpu.matmul %46, %454, %cst_232 {dimension_numbers = #tpu.dot_dimension_numbers<[1], [0], [0], [1], [0, 0, 1, 1], [], []>} : vector<8x16xf32>, vector<16x4xf32>, vector<8x4xf32> -> vector<8x4xf32>
    %456 = arith.truncf %455 : vector<8x4xf32> to vector<8x4xbf16>
    %c0_233 = arith.constant 0 : index
    %457 = arith.index_cast %444 : i32 to index
    %c0_234 = arith.constant 0 : index
    %458 = vector.load %arg9[%c0_233, %457, %c0_234] : memref<1x64x4xbf16, #tpu.memory_space<vmem>>, vector<1x8x4xbf16>
    %459 = vector.shape_cast %458 : vector<1x8x4xbf16> to vector<8x4xbf16>
    %460 = vector.shape_cast %456 : vector<8x4xbf16> to vector<1x8x4xbf16>
    tpu.vector_store %arg9[%c0_233, %457, %c0_234], %460 {strides = array<i32>} : memref<1x64x4xbf16, #tpu.memory_space<vmem>>, vector<1x8x4xbf16>,
    %c3_i32 = arith.constant 3 : i32
    %cst_235 = arith.constant 0.000000e+00 : f32
    %461 = vector.broadcast %cst_235 : f32 to vector<16x16xf32>
    %c2_i32_236 = arith.constant 2 : i32
    %462 = arith.muli %c3_i32, %c2_i32_236 : i32
    %c0_i32_237 = arith.constant 0 : i32
    %463 = arith.addi %462, %c0_i32_237 : i32
    %c1_i32_238 = arith.constant 1 : i32
    %464 = arith.subi %463, %c1_i32_238 : i32
    %c0_i32_239 = arith.constant 0 : i32
    %c15_i32_240 = arith.constant 15 : i32
    %465 = arith.maxsi %c0_i32_239, %464 : i32
    %466 = arith.minsi %c15_i32_240, %465 : i32
    %c16_i32_241 = arith.constant 16 : i32
    %467 = arith.muli %466, %c16_i32_241 : i32
    %c8_i32_242 = arith.constant 8 : i32
    %468 = arith.addi %c8_i32_242, %467 : i32
    %c1_i32_243 = arith.constant 1 : i32
    %469 = arith.subi %468, %c1_i32_243 : i32
    %cst_244 = arith.constant 0.000000e+00 : f32
    %470 = vector.broadcast %cst_244 : f32 to vector<16x16xf32>
    %c0_i32_245 = arith.constant 0 : i32
    %471 = arith.addi %469, %c0_i32_245 : i32
    %472 = arith.index_cast %471 : i32 to index
    %c0_246 = arith.constant 0 : index
    %473 = vector.load %arg10[%472, %c0_246] : memref<272x16xf32, #tpu.memory_space<vmem>>, vector<16x16xf32>
    %474 = vector.broadcast %18 : vector<1x16xf32> to vector<16x16xf32>
    %475 = arith.mulf %473, %474 : vector<16x16xf32>
    %cst_247 = arith.constant 0.000000e+00 : f32
    %476 = vector.shape_cast %36 : vector<16x1xi1> to vector<16x1xi1>
    %477 = vector.broadcast %476 : vector<16x1xi1> to vector<16x16xi1>
    %478 = vector.broadcast %cst_247 : f32 to vector<16x16xf32>
    %479 = arith.select %477, %475, %478 : vector<16x16xi1>, vector<16x16xf32>
    %480 = arith.addf %470, %479 : vector<16x16xf32>
    %c1_i32_248 = arith.constant 1 : i32
    %481 = arith.addi %469, %c1_i32_248 : i32
    %482 = arith.index_cast %481 : i32 to index
    %c0_249 = arith.constant 0 : index
    %483 = vector.load %arg10[%482, %c0_249] : memref<272x16xf32, #tpu.memory_space<vmem>>, vector<16x16xf32>
    %484 = vector.broadcast %19 : vector<1x16xf32> to vector<16x16xf32>
    %485 = arith.mulf %483, %484 : vector<16x16xf32>
    %486 = arith.addf %480, %485 : vector<16x16xf32>
    %c2_i32_250 = arith.constant 2 : i32
    %487 = arith.addi %469, %c2_i32_250 : i32
    %488 = arith.index_cast %487 : i32 to index
    %c0_251 = arith.constant 0 : index
    %489 = vector.load %arg10[%488, %c0_251] : memref<272x16xf32, #tpu.memory_space<vmem>>, vector<16x16xf32>
    %490 = vector.broadcast %20 : vector<1x16xf32> to vector<16x16xf32>
    %491 = arith.mulf %489, %490 : vector<16x16xf32>
    %cst_252 = arith.constant 0.000000e+00 : f32
    %492 = vector.shape_cast %45 : vector<16x1xi1> to vector<16x1xi1>
    %493 = vector.broadcast %492 : vector<16x1xi1> to vector<16x16xi1>
    %494 = vector.broadcast %cst_252 : f32 to vector<16x16xf32>
    %495 = arith.select %493, %491, %494 : vector<16x16xi1>, vector<16x16xf32>
    %496 = arith.addf %486, %495 : vector<16x16xf32>
    %c0_i32_253 = arith.constant 0 : i32
    %497 = arith.cmpi sge, %464, %c0_i32_253 : i32
    %c16_i32_254 = arith.constant 16 : i32
    %498 = arith.cmpi slt, %464, %c16_i32_254 : i32
    %499 = arith.andi %497, %498 : i1
    %cst_255 = arith.constant 0.000000e+00 : f32
    %500 = vector.broadcast %cst_255 : f32 to vector<16x16xf32>
    %501 = arith.select %499, %496, %500 : vector<16x16xf32>
    %502 = arith.addf %461, %501 : vector<16x16xf32>
    %c2_i32_256 = arith.constant 2 : i32
    %503 = arith.muli %c3_i32, %c2_i32_256 : i32
    %c1_i32_257 = arith.constant 1 : i32
    %504 = arith.addi %503, %c1_i32_257 : i32
    %c1_i32_258 = arith.constant 1 : i32
    %505 = arith.subi %504, %c1_i32_258 : i32
    %c0_i32_259 = arith.constant 0 : i32
    %c15_i32_260 = arith.constant 15 : i32
    %506 = arith.maxsi %c0_i32_259, %505 : i32
    %507 = arith.minsi %c15_i32_260, %506 : i32
    %c16_i32_261 = arith.constant 16 : i32
    %508 = arith.muli %507, %c16_i32_261 : i32
    %c8_i32_262 = arith.constant 8 : i32
    %509 = arith.addi %c8_i32_262, %508 : i32
    %c1_i32_263 = arith.constant 1 : i32
    %510 = arith.subi %509, %c1_i32_263 : i32
    %cst_264 = arith.constant 0.000000e+00 : f32
    %511 = vector.broadcast %cst_264 : f32 to vector<16x16xf32>
    %c0_i32_265 = arith.constant 0 : i32
    %512 = arith.addi %510, %c0_i32_265 : i32
    %513 = arith.index_cast %512 : i32 to index
    %c0_266 = arith.constant 0 : index
    %514 = vector.load %arg10[%513, %c0_266] : memref<272x16xf32, #tpu.memory_space<vmem>>, vector<16x16xf32>
    %515 = vector.broadcast %21 : vector<1x16xf32> to vector<16x16xf32>
    %516 = arith.mulf %514, %515 : vector<16x16xf32>
    %cst_267 = arith.constant 0.000000e+00 : f32
    %517 = vector.shape_cast %36 : vector<16x1xi1> to vector<16x1xi1>
    %518 = vector.broadcast %517 : vector<16x1xi1> to vector<16x16xi1>
    %519 = vector.broadcast %cst_267 : f32 to vector<16x16xf32>
    %520 = arith.select %518, %516, %519 : vector<16x16xi1>, vector<16x16xf32>
    %521 = arith.addf %511, %520 : vector<16x16xf32>
    %c1_i32_268 = arith.constant 1 : i32
    %522 = arith.addi %510, %c1_i32_268 : i32
    %523 = arith.index_cast %522 : i32 to index
    %c0_269 = arith.constant 0 : index
    %524 = vector.load %arg10[%523, %c0_269] : memref<272x16xf32, #tpu.memory_space<vmem>>, vector<16x16xf32>
    %525 = vector.broadcast %22 : vector<1x16xf32> to vector<16x16xf32>
    %526 = arith.mulf %524, %525 : vector<16x16xf32>
    %527 = arith.addf %521, %526 : vector<16x16xf32>
    %c2_i32_270 = arith.constant 2 : i32
    %528 = arith.addi %510, %c2_i32_270 : i32
    %529 = arith.index_cast %528 : i32 to index
    %c0_271 = arith.constant 0 : index
    %530 = vector.load %arg10[%529, %c0_271] : memref<272x16xf32, #tpu.memory_space<vmem>>, vector<16x16xf32>
    %531 = vector.broadcast %23 : vector<1x16xf32> to vector<16x16xf32>
    %532 = arith.mulf %530, %531 : vector<16x16xf32>
    %cst_272 = arith.constant 0.000000e+00 : f32
    %533 = vector.shape_cast %45 : vector<16x1xi1> to vector<16x1xi1>
    %534 = vector.broadcast %533 : vector<16x1xi1> to vector<16x16xi1>
    %535 = vector.broadcast %cst_272 : f32 to vector<16x16xf32>
    %536 = arith.select %534, %532, %535 : vector<16x16xi1>, vector<16x16xf32>
    %537 = arith.addf %527, %536 : vector<16x16xf32>
    %538 = arith.addf %502, %537 : vector<16x16xf32>
    %c2_i32_273 = arith.constant 2 : i32
    %539 = arith.muli %c3_i32, %c2_i32_273 : i32
    %c2_i32_274 = arith.constant 2 : i32
    %540 = arith.addi %539, %c2_i32_274 : i32
    %c1_i32_275 = arith.constant 1 : i32
    %541 = arith.subi %540, %c1_i32_275 : i32
    %c0_i32_276 = arith.constant 0 : i32
    %c15_i32_277 = arith.constant 15 : i32
    %542 = arith.maxsi %c0_i32_276, %541 : i32
    %543 = arith.minsi %c15_i32_277, %542 : i32
    %c16_i32_278 = arith.constant 16 : i32
    %544 = arith.muli %543, %c16_i32_278 : i32
    %c8_i32_279 = arith.constant 8 : i32
    %545 = arith.addi %c8_i32_279, %544 : i32
    %c1_i32_280 = arith.constant 1 : i32
    %546 = arith.subi %545, %c1_i32_280 : i32
    %cst_281 = arith.constant 0.000000e+00 : f32
    %547 = vector.broadcast %cst_281 : f32 to vector<16x16xf32>
    %c0_i32_282 = arith.constant 0 : i32
    %548 = arith.addi %546, %c0_i32_282 : i32
    %549 = arith.index_cast %548 : i32 to index
    %c0_283 = arith.constant 0 : index
    %550 = vector.load %arg10[%549, %c0_283] : memref<272x16xf32, #tpu.memory_space<vmem>>, vector<16x16xf32>
    %551 = vector.broadcast %24 : vector<1x16xf32> to vector<16x16xf32>
    %552 = arith.mulf %550, %551 : vector<16x16xf32>
    %cst_284 = arith.constant 0.000000e+00 : f32
    %553 = vector.shape_cast %36 : vector<16x1xi1> to vector<16x1xi1>
    %554 = vector.broadcast %553 : vector<16x1xi1> to vector<16x16xi1>
    %555 = vector.broadcast %cst_284 : f32 to vector<16x16xf32>
    %556 = arith.select %554, %552, %555 : vector<16x16xi1>, vector<16x16xf32>
    %557 = arith.addf %547, %556 : vector<16x16xf32>
    %c1_i32_285 = arith.constant 1 : i32
    %558 = arith.addi %546, %c1_i32_285 : i32
    %559 = arith.index_cast %558 : i32 to index
    %c0_286 = arith.constant 0 : index
    %560 = vector.load %arg10[%559, %c0_286] : memref<272x16xf32, #tpu.memory_space<vmem>>, vector<16x16xf32>
    %561 = vector.broadcast %25 : vector<1x16xf32> to vector<16x16xf32>
    %562 = arith.mulf %560, %561 : vector<16x16xf32>
    %563 = arith.addf %557, %562 : vector<16x16xf32>
    %c2_i32_287 = arith.constant 2 : i32
    %564 = arith.addi %546, %c2_i32_287 : i32
    %565 = arith.index_cast %564 : i32 to index
    %c0_288 = arith.constant 0 : index
    %566 = vector.load %arg10[%565, %c0_288] : memref<272x16xf32, #tpu.memory_space<vmem>>, vector<16x16xf32>
    %567 = vector.broadcast %26 : vector<1x16xf32> to vector<16x16xf32>
    %568 = arith.mulf %566, %567 : vector<16x16xf32>
    %cst_289 = arith.constant 0.000000e+00 : f32
    %569 = vector.shape_cast %45 : vector<16x1xi1> to vector<16x1xi1>
    %570 = vector.broadcast %569 : vector<16x1xi1> to vector<16x16xi1>
    %571 = vector.broadcast %cst_289 : f32 to vector<16x16xf32>
    %572 = arith.select %570, %568, %571 : vector<16x16xi1>, vector<16x16xf32>
    %573 = arith.addf %563, %572 : vector<16x16xf32>
    %c0_i32_290 = arith.constant 0 : i32
    %574 = arith.cmpi sge, %541, %c0_i32_290 : i32
    %c16_i32_291 = arith.constant 16 : i32
    %575 = arith.cmpi slt, %541, %c16_i32_291 : i32
    %576 = arith.andi %574, %575 : i1
    %cst_292 = arith.constant 0.000000e+00 : f32
    %577 = vector.broadcast %cst_292 : f32 to vector<16x16xf32>
    %578 = arith.select %576, %573, %577 : vector<16x16xf32>
    %579 = arith.addf %538, %578 : vector<16x16xf32>
    %cst_293 = arith.constant dense<0.000000e+00> : vector<8x16xf32>
    %580 = tpu.matmul %46, %579, %cst_293 {dimension_numbers = #tpu.dot_dimension_numbers<[1], [0], [0], [1], [0, 0, 1, 1], [], []>} : vector<8x16xf32>, vector<16x16xf32>, vector<8x16xf32> -> vector<8x16xf32>
    %c8_i32_294 = arith.constant 8 : i32
    %581 = arith.muli %c3_i32, %c8_i32_294 : i32
    %582 = tpu.assume_multiple %581, 8 : i32
    %583 = arith.truncf %580 : vector<8x16xf32> to vector<8x16xbf16>
    %c0_295 = arith.constant 0 : index
    %584 = arith.index_cast %582 : i32 to index
    %c0_296 = arith.constant 0 : index
    %585 = vector.load %arg6[%c0_295, %584, %c0_296] : memref<1x64x16xbf16, #tpu.memory_space<vmem>>, vector<1x8x16xbf16>
    %586 = vector.shape_cast %585 : vector<1x8x16xbf16> to vector<8x16xbf16>
    %587 = vector.shape_cast %583 : vector<8x16xbf16> to vector<1x8x16xbf16>
    tpu.vector_store %arg6[%c0_295, %584, %c0_296], %587 {strides = array<i32>} : memref<1x64x16xbf16, #tpu.memory_space<vmem>>, vector<1x8x16xbf16>,
    %c2_i32_297 = arith.constant 2 : i32
    %588 = arith.muli %c3_i32, %c2_i32_297 : i32
    %c16_i32_298 = arith.constant 16 : i32
    %589 = arith.muli %588, %c16_i32_298 : i32
    %c0_299 = arith.constant 0 : index
    %590 = arith.index_cast %589 : i32 to index
    %c0_300 = arith.constant 0 : index
    %591 = vector.load %arg1[%c0_299, %590, %c0_300] : memref<1x256x4xf32, #tpu.memory_space<vmem>>, vector<1x16x4xf32>
    %592 = vector.shape_cast %591 : vector<1x16x4xf32> to vector<16x4xf32>
    %cst_301 = arith.constant dense<0.000000e+00> : vector<8x4xf32>
    %593 = tpu.matmul %46, %592, %cst_301 {dimension_numbers = #tpu.dot_dimension_numbers<[1], [0], [0], [1], [0, 0, 1, 1], [], []>} : vector<8x16xf32>, vector<16x4xf32>, vector<8x4xf32> -> vector<8x4xf32>
    %594 = arith.truncf %593 : vector<8x4xf32> to vector<8x4xbf16>
    %c0_302 = arith.constant 0 : index
    %595 = arith.index_cast %582 : i32 to index
    %c0_303 = arith.constant 0 : index
    %596 = vector.load %arg9[%c0_302, %595, %c0_303] : memref<1x64x4xbf16, #tpu.memory_space<vmem>>, vector<1x8x4xbf16>
    %597 = vector.shape_cast %596 : vector<1x8x4xbf16> to vector<8x4xbf16>
    %598 = vector.shape_cast %594 : vector<8x4xbf16> to vector<1x8x4xbf16>
    tpu.vector_store %arg9[%c0_302, %595, %c0_303], %598 {strides = array<i32>} : memref<1x64x4xbf16, #tpu.memory_space<vmem>>, vector<1x8x4xbf16>,
    %c4_i32 = arith.constant 4 : i32
    %cst_304 = arith.constant 0.000000e+00 : f32
    %599 = vector.broadcast %cst_304 : f32 to vector<16x16xf32>
    %c2_i32_305 = arith.constant 2 : i32
    %600 = arith.muli %c4_i32, %c2_i32_305 : i32
    %c0_i32_306 = arith.constant 0 : i32
    %601 = arith.addi %600, %c0_i32_306 : i32
    %c1_i32_307 = arith.constant 1 : i32
    %602 = arith.subi %601, %c1_i32_307 : i32
    %c0_i32_308 = arith.constant 0 : i32
    %c15_i32_309 = arith.constant 15 : i32
    %603 = arith.maxsi %c0_i32_308, %602 : i32
    %604 = arith.minsi %c15_i32_309, %603 : i32
    %c16_i32_310 = arith.constant 16 : i32
    %605 = arith.muli %604, %c16_i32_310 : i32
    %c8_i32_311 = arith.constant 8 : i32
    %606 = arith.addi %c8_i32_311, %605 : i32
    %c1_i32_312 = arith.constant 1 : i32
    %607 = arith.subi %606, %c1_i32_312 : i32
    %cst_313 = arith.constant 0.000000e+00 : f32
    %608 = vector.broadcast %cst_313 : f32 to vector<16x16xf32>
    %c0_i32_314 = arith.constant 0 : i32
    %609 = arith.addi %607, %c0_i32_314 : i32
    %610 = arith.index_cast %609 : i32 to index
    %c0_315 = arith.constant 0 : index
    %611 = vector.load %arg10[%610, %c0_315] : memref<272x16xf32, #tpu.memory_space<vmem>>, vector<16x16xf32>
    %612 = vector.broadcast %18 : vector<1x16xf32> to vector<16x16xf32>
    %613 = arith.mulf %611, %612 : vector<16x16xf32>
    %cst_316 = arith.constant 0.000000e+00 : f32
    %614 = vector.shape_cast %36 : vector<16x1xi1> to vector<16x1xi1>
    %615 = vector.broadcast %614 : vector<16x1xi1> to vector<16x16xi1>
    %616 = vector.broadcast %cst_316 : f32 to vector<16x16xf32>
    %617 = arith.select %615, %613, %616 : vector<16x16xi1>, vector<16x16xf32>
    %618 = arith.addf %608, %617 : vector<16x16xf32>
    %c1_i32_317 = arith.constant 1 : i32
    %619 = arith.addi %607, %c1_i32_317 : i32
    %620 = arith.index_cast %619 : i32 to index
    %c0_318 = arith.constant 0 : index
    %621 = vector.load %arg10[%620, %c0_318] : memref<272x16xf32, #tpu.memory_space<vmem>>, vector<16x16xf32>
    %622 = vector.broadcast %19 : vector<1x16xf32> to vector<16x16xf32>
    %623 = arith.mulf %621, %622 : vector<16x16xf32>
    %624 = arith.addf %618, %623 : vector<16x16xf32>
    %c2_i32_319 = arith.constant 2 : i32
    %625 = arith.addi %607, %c2_i32_319 : i32
    %626 = arith.index_cast %625 : i32 to index
    %c0_320 = arith.constant 0 : index
    %627 = vector.load %arg10[%626, %c0_320] : memref<272x16xf32, #tpu.memory_space<vmem>>, vector<16x16xf32>
    %628 = vector.broadcast %20 : vector<1x16xf32> to vector<16x16xf32>
    %629 = arith.mulf %627, %628 : vector<16x16xf32>
    %cst_321 = arith.constant 0.000000e+00 : f32
    %630 = vector.shape_cast %45 : vector<16x1xi1> to vector<16x1xi1>
    %631 = vector.broadcast %630 : vector<16x1xi1> to vector<16x16xi1>
    %632 = vector.broadcast %cst_321 : f32 to vector<16x16xf32>
    %633 = arith.select %631, %629, %632 : vector<16x16xi1>, vector<16x16xf32>
    %634 = arith.addf %624, %633 : vector<16x16xf32>
    %c0_i32_322 = arith.constant 0 : i32
    %635 = arith.cmpi sge, %602, %c0_i32_322 : i32
    %c16_i32_323 = arith.constant 16 : i32
    %636 = arith.cmpi slt, %602, %c16_i32_323 : i32
    %637 = arith.andi %635, %636 : i1
    %cst_324 = arith.constant 0.000000e+00 : f32
    %638 = vector.broadcast %cst_324 : f32 to vector<16x16xf32>
    %639 = arith.select %637, %634, %638 : vector<16x16xf32>
    %640 = arith.addf %599, %639 : vector<16x16xf32>
    %c2_i32_325 = arith.constant 2 : i32
    %641 = arith.muli %c4_i32, %c2_i32_325 : i32
    %c1_i32_326 = arith.constant 1 : i32
    %642 = arith.addi %641, %c1_i32_326 : i32
    %c1_i32_327 = arith.constant 1 : i32
    %643 = arith.subi %642, %c1_i32_327 : i32
    %c0_i32_328 = arith.constant 0 : i32
    %c15_i32_329 = arith.constant 15 : i32
    %644 = arith.maxsi %c0_i32_328, %643 : i32
    %645 = arith.minsi %c15_i32_329, %644 : i32
    %c16_i32_330 = arith.constant 16 : i32
    %646 = arith.muli %645, %c16_i32_330 : i32
    %c8_i32_331 = arith.constant 8 : i32
    %647 = arith.addi %c8_i32_331, %646 : i32
    %c1_i32_332 = arith.constant 1 : i32
    %648 = arith.subi %647, %c1_i32_332 : i32
    %cst_333 = arith.constant 0.000000e+00 : f32
    %649 = vector.broadcast %cst_333 : f32 to vector<16x16xf32>
    %c0_i32_334 = arith.constant 0 : i32
    %650 = arith.addi %648, %c0_i32_334 : i32
    %651 = arith.index_cast %650 : i32 to index
    %c0_335 = arith.constant 0 : index
    %652 = vector.load %arg10[%651, %c0_335] : memref<272x16xf32, #tpu.memory_space<vmem>>, vector<16x16xf32>
    %653 = vector.broadcast %21 : vector<1x16xf32> to vector<16x16xf32>
    %654 = arith.mulf %652, %653 : vector<16x16xf32>
    %cst_336 = arith.constant 0.000000e+00 : f32
    %655 = vector.shape_cast %36 : vector<16x1xi1> to vector<16x1xi1>
    %656 = vector.broadcast %655 : vector<16x1xi1> to vector<16x16xi1>
    %657 = vector.broadcast %cst_336 : f32 to vector<16x16xf32>
    %658 = arith.select %656, %654, %657 : vector<16x16xi1>, vector<16x16xf32>
    %659 = arith.addf %649, %658 : vector<16x16xf32>
    %c1_i32_337 = arith.constant 1 : i32
    %660 = arith.addi %648, %c1_i32_337 : i32
    %661 = arith.index_cast %660 : i32 to index
    %c0_338 = arith.constant 0 : index
    %662 = vector.load %arg10[%661, %c0_338] : memref<272x16xf32, #tpu.memory_space<vmem>>, vector<16x16xf32>
    %663 = vector.broadcast %22 : vector<1x16xf32> to vector<16x16xf32>
    %664 = arith.mulf %662, %663 : vector<16x16xf32>
    %665 = arith.addf %659, %664 : vector<16x16xf32>
    %c2_i32_339 = arith.constant 2 : i32
    %666 = arith.addi %648, %c2_i32_339 : i32
    %667 = arith.index_cast %666 : i32 to index
    %c0_340 = arith.constant 0 : index
    %668 = vector.load %arg10[%667, %c0_340] : memref<272x16xf32, #tpu.memory_space<vmem>>, vector<16x16xf32>
    %669 = vector.broadcast %23 : vector<1x16xf32> to vector<16x16xf32>
    %670 = arith.mulf %668, %669 : vector<16x16xf32>
    %cst_341 = arith.constant 0.000000e+00 : f32
    %671 = vector.shape_cast %45 : vector<16x1xi1> to vector<16x1xi1>
    %672 = vector.broadcast %671 : vector<16x1xi1> to vector<16x16xi1>
    %673 = vector.broadcast %cst_341 : f32 to vector<16x16xf32>
    %674 = arith.select %672, %670, %673 : vector<16x16xi1>, vector<16x16xf32>
    %675 = arith.addf %665, %674 : vector<16x16xf32>
    %676 = arith.addf %640, %675 : vector<16x16xf32>
    %c2_i32_342 = arith.constant 2 : i32
    %677 = arith.muli %c4_i32, %c2_i32_342 : i32
    %c2_i32_343 = arith.constant 2 : i32
    %678 = arith.addi %677, %c2_i32_343 : i32
    %c1_i32_344 = arith.constant 1 : i32
    %679 = arith.subi %678, %c1_i32_344 : i32
    %c0_i32_345 = arith.constant 0 : i32
    %c15_i32_346 = arith.constant 15 : i32
    %680 = arith.maxsi %c0_i32_345, %679 : i32
    %681 = arith.minsi %c15_i32_346, %680 : i32
    %c16_i32_347 = arith.constant 16 : i32
    %682 = arith.muli %681, %c16_i32_347 : i32
    %c8_i32_348 = arith.constant 8 : i32
    %683 = arith.addi %c8_i32_348, %682 : i32
    %c1_i32_349 = arith.constant 1 : i32
    %684 = arith.subi %683, %c1_i32_349 : i32
    %cst_350 = arith.constant 0.000000e+00 : f32
    %685 = vector.broadcast %cst_350 : f32 to vector<16x16xf32>
    %c0_i32_351 = arith.constant 0 : i32
    %686 = arith.addi %684, %c0_i32_351 : i32
    %687 = arith.index_cast %686 : i32 to index
    %c0_352 = arith.constant 0 : index
    %688 = vector.load %arg10[%687, %c0_352] : memref<272x16xf32, #tpu.memory_space<vmem>>, vector<16x16xf32>
    %689 = vector.broadcast %24 : vector<1x16xf32> to vector<16x16xf32>
    %690 = arith.mulf %688, %689 : vector<16x16xf32>
    %cst_353 = arith.constant 0.000000e+00 : f32
    %691 = vector.shape_cast %36 : vector<16x1xi1> to vector<16x1xi1>
    %692 = vector.broadcast %691 : vector<16x1xi1> to vector<16x16xi1>
    %693 = vector.broadcast %cst_353 : f32 to vector<16x16xf32>
    %694 = arith.select %692, %690, %693 : vector<16x16xi1>, vector<16x16xf32>
    %695 = arith.addf %685, %694 : vector<16x16xf32>
    %c1_i32_354 = arith.constant 1 : i32
    %696 = arith.addi %684, %c1_i32_354 : i32
    %697 = arith.index_cast %696 : i32 to index
    %c0_355 = arith.constant 0 : index
    %698 = vector.load %arg10[%697, %c0_355] : memref<272x16xf32, #tpu.memory_space<vmem>>, vector<16x16xf32>
    %699 = vector.broadcast %25 : vector<1x16xf32> to vector<16x16xf32>
    %700 = arith.mulf %698, %699 : vector<16x16xf32>
    %701 = arith.addf %695, %700 : vector<16x16xf32>
    %c2_i32_356 = arith.constant 2 : i32
    %702 = arith.addi %684, %c2_i32_356 : i32
    %703 = arith.index_cast %702 : i32 to index
    %c0_357 = arith.constant 0 : index
    %704 = vector.load %arg10[%703, %c0_357] : memref<272x16xf32, #tpu.memory_space<vmem>>, vector<16x16xf32>
    %705 = vector.broadcast %26 : vector<1x16xf32> to vector<16x16xf32>
    %706 = arith.mulf %704, %705 : vector<16x16xf32>
    %cst_358 = arith.constant 0.000000e+00 : f32
    %707 = vector.shape_cast %45 : vector<16x1xi1> to vector<16x1xi1>
    %708 = vector.broadcast %707 : vector<16x1xi1> to vector<16x16xi1>
    %709 = vector.broadcast %cst_358 : f32 to vector<16x16xf32>
    %710 = arith.select %708, %706, %709 : vector<16x16xi1>, vector<16x16xf32>
    %711 = arith.addf %701, %710 : vector<16x16xf32>
    %c0_i32_359 = arith.constant 0 : i32
    %712 = arith.cmpi sge, %679, %c0_i32_359 : i32
    %c16_i32_360 = arith.constant 16 : i32
    %713 = arith.cmpi slt, %679, %c16_i32_360 : i32
    %714 = arith.andi %712, %713 : i1
    %cst_361 = arith.constant 0.000000e+00 : f32
    %715 = vector.broadcast %cst_361 : f32 to vector<16x16xf32>
    %716 = arith.select %714, %711, %715 : vector<16x16xf32>
    %717 = arith.addf %676, %716 : vector<16x16xf32>
    %cst_362 = arith.constant dense<0.000000e+00> : vector<8x16xf32>
    %718 = tpu.matmul %46, %717, %cst_362 {dimension_numbers = #tpu.dot_dimension_numbers<[1], [0], [0], [1], [0, 0, 1, 1], [], []>} : vector<8x16xf32>, vector<16x16xf32>, vector<8x16xf32> -> vector<8x16xf32>
    %c8_i32_363 = arith.constant 8 : i32
    %719 = arith.muli %c4_i32, %c8_i32_363 : i32
    %720 = tpu.assume_multiple %719, 8 : i32
    %721 = arith.truncf %718 : vector<8x16xf32> to vector<8x16xbf16>
    %c0_364 = arith.constant 0 : index
    %722 = arith.index_cast %720 : i32 to index
    %c0_365 = arith.constant 0 : index
    %723 = vector.load %arg6[%c0_364, %722, %c0_365] : memref<1x64x16xbf16, #tpu.memory_space<vmem>>, vector<1x8x16xbf16>
    %724 = vector.shape_cast %723 : vector<1x8x16xbf16> to vector<8x16xbf16>
    %725 = vector.shape_cast %721 : vector<8x16xbf16> to vector<1x8x16xbf16>
    tpu.vector_store %arg6[%c0_364, %722, %c0_365], %725 {strides = array<i32>} : memref<1x64x16xbf16, #tpu.memory_space<vmem>>, vector<1x8x16xbf16>,
    %c2_i32_366 = arith.constant 2 : i32
    %726 = arith.muli %c4_i32, %c2_i32_366 : i32
    %c16_i32_367 = arith.constant 16 : i32
    %727 = arith.muli %726, %c16_i32_367 : i32
    %c0_368 = arith.constant 0 : index
    %728 = arith.index_cast %727 : i32 to index
    %c0_369 = arith.constant 0 : index
    %729 = vector.load %arg1[%c0_368, %728, %c0_369] : memref<1x256x4xf32, #tpu.memory_space<vmem>>, vector<1x16x4xf32>
    %730 = vector.shape_cast %729 : vector<1x16x4xf32> to vector<16x4xf32>
    %cst_370 = arith.constant dense<0.000000e+00> : vector<8x4xf32>
    %731 = tpu.matmul %46, %730, %cst_370 {dimension_numbers = #tpu.dot_dimension_numbers<[1], [0], [0], [1], [0, 0, 1, 1], [], []>} : vector<8x16xf32>, vector<16x4xf32>, vector<8x4xf32> -> vector<8x4xf32>
    %732 = arith.truncf %731 : vector<8x4xf32> to vector<8x4xbf16>
    %c0_371 = arith.constant 0 : index
    %733 = arith.index_cast %720 : i32 to index
    %c0_372 = arith.constant 0 : index
    %734 = vector.load %arg9[%c0_371, %733, %c0_372] : memref<1x64x4xbf16, #tpu.memory_space<vmem>>, vector<1x8x4xbf16>
    %735 = vector.shape_cast %734 : vector<1x8x4xbf16> to vector<8x4xbf16>
    %736 = vector.shape_cast %732 : vector<8x4xbf16> to vector<1x8x4xbf16>
    tpu.vector_store %arg9[%c0_371, %733, %c0_372], %736 {strides = array<i32>} : memref<1x64x4xbf16, #tpu.memory_space<vmem>>, vector<1x8x4xbf16>,
    %c5_i32 = arith.constant 5 : i32
    %cst_373 = arith.constant 0.000000e+00 : f32
    %737 = vector.broadcast %cst_373 : f32 to vector<16x16xf32>
    %c2_i32_374 = arith.constant 2 : i32
    %738 = arith.muli %c5_i32, %c2_i32_374 : i32
    %c0_i32_375 = arith.constant 0 : i32
    %739 = arith.addi %738, %c0_i32_375 : i32
    %c1_i32_376 = arith.constant 1 : i32
    %740 = arith.subi %739, %c1_i32_376 : i32
    %c0_i32_377 = arith.constant 0 : i32
    %c15_i32_378 = arith.constant 15 : i32
    %741 = arith.maxsi %c0_i32_377, %740 : i32
    %742 = arith.minsi %c15_i32_378, %741 : i32
    %c16_i32_379 = arith.constant 16 : i32
    %743 = arith.muli %742, %c16_i32_379 : i32
    %c8_i32_380 = arith.constant 8 : i32
    %744 = arith.addi %c8_i32_380, %743 : i32
    %c1_i32_381 = arith.constant 1 : i32
    %745 = arith.subi %744, %c1_i32_381 : i32
    %cst_382 = arith.constant 0.000000e+00 : f32
    %746 = vector.broadcast %cst_382 : f32 to vector<16x16xf32>
    %c0_i32_383 = arith.constant 0 : i32
    %747 = arith.addi %745, %c0_i32_383 : i32
    %748 = arith.index_cast %747 : i32 to index
    %c0_384 = arith.constant 0 : index
    %749 = vector.load %arg10[%748, %c0_384] : memref<272x16xf32, #tpu.memory_space<vmem>>, vector<16x16xf32>
    %750 = vector.broadcast %18 : vector<1x16xf32> to vector<16x16xf32>
    %751 = arith.mulf %749, %750 : vector<16x16xf32>
    %cst_385 = arith.constant 0.000000e+00 : f32
    %752 = vector.shape_cast %36 : vector<16x1xi1> to vector<16x1xi1>
    %753 = vector.broadcast %752 : vector<16x1xi1> to vector<16x16xi1>
    %754 = vector.broadcast %cst_385 : f32 to vector<16x16xf32>
    %755 = arith.select %753, %751, %754 : vector<16x16xi1>, vector<16x16xf32>
    %756 = arith.addf %746, %755 : vector<16x16xf32>
    %c1_i32_386 = arith.constant 1 : i32
    %757 = arith.addi %745, %c1_i32_386 : i32
    %758 = arith.index_cast %757 : i32 to index
    %c0_387 = arith.constant 0 : index
    %759 = vector.load %arg10[%758, %c0_387] : memref<272x16xf32, #tpu.memory_space<vmem>>, vector<16x16xf32>
    %760 = vector.broadcast %19 : vector<1x16xf32> to vector<16x16xf32>
    %761 = arith.mulf %759, %760 : vector<16x16xf32>
    %762 = arith.addf %756, %761 : vector<16x16xf32>
    %c2_i32_388 = arith.constant 2 : i32
    %763 = arith.addi %745, %c2_i32_388 : i32
    %764 = arith.index_cast %763 : i32 to index
    %c0_389 = arith.constant 0 : index
    %765 = vector.load %arg10[%764, %c0_389] : memref<272x16xf32, #tpu.memory_space<vmem>>, vector<16x16xf32>
    %766 = vector.broadcast %20 : vector<1x16xf32> to vector<16x16xf32>
    %767 = arith.mulf %765, %766 : vector<16x16xf32>
    %cst_390 = arith.constant 0.000000e+00 : f32
    %768 = vector.shape_cast %45 : vector<16x1xi1> to vector<16x1xi1>
    %769 = vector.broadcast %768 : vector<16x1xi1> to vector<16x16xi1>
    %770 = vector.broadcast %cst_390 : f32 to vector<16x16xf32>
    %771 = arith.select %769, %767, %770 : vector<16x16xi1>, vector<16x16xf32>
    %772 = arith.addf %762, %771 : vector<16x16xf32>
    %c0_i32_391 = arith.constant 0 : i32
    %773 = arith.cmpi sge, %740, %c0_i32_391 : i32
    %c16_i32_392 = arith.constant 16 : i32
    %774 = arith.cmpi slt, %740, %c16_i32_392 : i32
    %775 = arith.andi %773, %774 : i1
    %cst_393 = arith.constant 0.000000e+00 : f32
    %776 = vector.broadcast %cst_393 : f32 to vector<16x16xf32>
    %777 = arith.select %775, %772, %776 : vector<16x16xf32>
    %778 = arith.addf %737, %777 : vector<16x16xf32>
    %c2_i32_394 = arith.constant 2 : i32
    %779 = arith.muli %c5_i32, %c2_i32_394 : i32
    %c1_i32_395 = arith.constant 1 : i32
    %780 = arith.addi %779, %c1_i32_395 : i32
    %c1_i32_396 = arith.constant 1 : i32
    %781 = arith.subi %780, %c1_i32_396 : i32
    %c0_i32_397 = arith.constant 0 : i32
    %c15_i32_398 = arith.constant 15 : i32
    %782 = arith.maxsi %c0_i32_397, %781 : i32
    %783 = arith.minsi %c15_i32_398, %782 : i32
    %c16_i32_399 = arith.constant 16 : i32
    %784 = arith.muli %783, %c16_i32_399 : i32
    %c8_i32_400 = arith.constant 8 : i32
    %785 = arith.addi %c8_i32_400, %784 : i32
    %c1_i32_401 = arith.constant 1 : i32
    %786 = arith.subi %785, %c1_i32_401 : i32
    %cst_402 = arith.constant 0.000000e+00 : f32
    %787 = vector.broadcast %cst_402 : f32 to vector<16x16xf32>
    %c0_i32_403 = arith.constant 0 : i32
    %788 = arith.addi %786, %c0_i32_403 : i32
    %789 = arith.index_cast %788 : i32 to index
    %c0_404 = arith.constant 0 : index
    %790 = vector.load %arg10[%789, %c0_404] : memref<272x16xf32, #tpu.memory_space<vmem>>, vector<16x16xf32>
    %791 = vector.broadcast %21 : vector<1x16xf32> to vector<16x16xf32>
    %792 = arith.mulf %790, %791 : vector<16x16xf32>
    %cst_405 = arith.constant 0.000000e+00 : f32
    %793 = vector.shape_cast %36 : vector<16x1xi1> to vector<16x1xi1>
    %794 = vector.broadcast %793 : vector<16x1xi1> to vector<16x16xi1>
    %795 = vector.broadcast %cst_405 : f32 to vector<16x16xf32>
    %796 = arith.select %794, %792, %795 : vector<16x16xi1>, vector<16x16xf32>
    %797 = arith.addf %787, %796 : vector<16x16xf32>
    %c1_i32_406 = arith.constant 1 : i32
    %798 = arith.addi %786, %c1_i32_406 : i32
    %799 = arith.index_cast %798 : i32 to index
    %c0_407 = arith.constant 0 : index
    %800 = vector.load %arg10[%799, %c0_407] : memref<272x16xf32, #tpu.memory_space<vmem>>, vector<16x16xf32>
    %801 = vector.broadcast %22 : vector<1x16xf32> to vector<16x16xf32>
    %802 = arith.mulf %800, %801 : vector<16x16xf32>
    %803 = arith.addf %797, %802 : vector<16x16xf32>
    %c2_i32_408 = arith.constant 2 : i32
    %804 = arith.addi %786, %c2_i32_408 : i32
    %805 = arith.index_cast %804 : i32 to index
    %c0_409 = arith.constant 0 : index
    %806 = vector.load %arg10[%805, %c0_409] : memref<272x16xf32, #tpu.memory_space<vmem>>, vector<16x16xf32>
    %807 = vector.broadcast %23 : vector<1x16xf32> to vector<16x16xf32>
    %808 = arith.mulf %806, %807 : vector<16x16xf32>
    %cst_410 = arith.constant 0.000000e+00 : f32
    %809 = vector.shape_cast %45 : vector<16x1xi1> to vector<16x1xi1>
    %810 = vector.broadcast %809 : vector<16x1xi1> to vector<16x16xi1>
    %811 = vector.broadcast %cst_410 : f32 to vector<16x16xf32>
    %812 = arith.select %810, %808, %811 : vector<16x16xi1>, vector<16x16xf32>
    %813 = arith.addf %803, %812 : vector<16x16xf32>
    %814 = arith.addf %778, %813 : vector<16x16xf32>
    %c2_i32_411 = arith.constant 2 : i32
    %815 = arith.muli %c5_i32, %c2_i32_411 : i32
    %c2_i32_412 = arith.constant 2 : i32
    %816 = arith.addi %815, %c2_i32_412 : i32
    %c1_i32_413 = arith.constant 1 : i32
    %817 = arith.subi %816, %c1_i32_413 : i32
    %c0_i32_414 = arith.constant 0 : i32
    %c15_i32_415 = arith.constant 15 : i32
    %818 = arith.maxsi %c0_i32_414, %817 : i32
    %819 = arith.minsi %c15_i32_415, %818 : i32
    %c16_i32_416 = arith.constant 16 : i32
    %820 = arith.muli %819, %c16_i32_416 : i32
    %c8_i32_417 = arith.constant 8 : i32
    %821 = arith.addi %c8_i32_417, %820 : i32
    %c1_i32_418 = arith.constant 1 : i32
    %822 = arith.subi %821, %c1_i32_418 : i32
    %cst_419 = arith.constant 0.000000e+00 : f32
    %823 = vector.broadcast %cst_419 : f32 to vector<16x16xf32>
    %c0_i32_420 = arith.constant 0 : i32
    %824 = arith.addi %822, %c0_i32_420 : i32
    %825 = arith.index_cast %824 : i32 to index
    %c0_421 = arith.constant 0 : index
    %826 = vector.load %arg10[%825, %c0_421] : memref<272x16xf32, #tpu.memory_space<vmem>>, vector<16x16xf32>
    %827 = vector.broadcast %24 : vector<1x16xf32> to vector<16x16xf32>
    %828 = arith.mulf %826, %827 : vector<16x16xf32>
    %cst_422 = arith.constant 0.000000e+00 : f32
    %829 = vector.shape_cast %36 : vector<16x1xi1> to vector<16x1xi1>
    %830 = vector.broadcast %829 : vector<16x1xi1> to vector<16x16xi1>
    %831 = vector.broadcast %cst_422 : f32 to vector<16x16xf32>
    %832 = arith.select %830, %828, %831 : vector<16x16xi1>, vector<16x16xf32>
    %833 = arith.addf %823, %832 : vector<16x16xf32>
    %c1_i32_423 = arith.constant 1 : i32
    %834 = arith.addi %822, %c1_i32_423 : i32
    %835 = arith.index_cast %834 : i32 to index
    %c0_424 = arith.constant 0 : index
    %836 = vector.load %arg10[%835, %c0_424] : memref<272x16xf32, #tpu.memory_space<vmem>>, vector<16x16xf32>
    %837 = vector.broadcast %25 : vector<1x16xf32> to vector<16x16xf32>
    %838 = arith.mulf %836, %837 : vector<16x16xf32>
    %839 = arith.addf %833, %838 : vector<16x16xf32>
    %c2_i32_425 = arith.constant 2 : i32
    %840 = arith.addi %822, %c2_i32_425 : i32
    %841 = arith.index_cast %840 : i32 to index
    %c0_426 = arith.constant 0 : index
    %842 = vector.load %arg10[%841, %c0_426] : memref<272x16xf32, #tpu.memory_space<vmem>>, vector<16x16xf32>
    %843 = vector.broadcast %26 : vector<1x16xf32> to vector<16x16xf32>
    %844 = arith.mulf %842, %843 : vector<16x16xf32>
    %cst_427 = arith.constant 0.000000e+00 : f32
    %845 = vector.shape_cast %45 : vector<16x1xi1> to vector<16x1xi1>
    %846 = vector.broadcast %845 : vector<16x1xi1> to vector<16x16xi1>
    %847 = vector.broadcast %cst_427 : f32 to vector<16x16xf32>
    %848 = arith.select %846, %844, %847 : vector<16x16xi1>, vector<16x16xf32>
    %849 = arith.addf %839, %848 : vector<16x16xf32>
    %c0_i32_428 = arith.constant 0 : i32
    %850 = arith.cmpi sge, %817, %c0_i32_428 : i32
    %c16_i32_429 = arith.constant 16 : i32
    %851 = arith.cmpi slt, %817, %c16_i32_429 : i32
    %852 = arith.andi %850, %851 : i1
    %cst_430 = arith.constant 0.000000e+00 : f32
    %853 = vector.broadcast %cst_430 : f32 to vector<16x16xf32>
    %854 = arith.select %852, %849, %853 : vector<16x16xf32>
    %855 = arith.addf %814, %854 : vector<16x16xf32>
    %cst_431 = arith.constant dense<0.000000e+00> : vector<8x16xf32>
    %856 = tpu.matmul %46, %855, %cst_431 {dimension_numbers = #tpu.dot_dimension_numbers<[1], [0], [0], [1], [0, 0, 1, 1], [], []>} : vector<8x16xf32>, vector<16x16xf32>, vector<8x16xf32> -> vector<8x16xf32>
    %c8_i32_432 = arith.constant 8 : i32
    %857 = arith.muli %c5_i32, %c8_i32_432 : i32
    %858 = tpu.assume_multiple %857, 8 : i32
    %859 = arith.truncf %856 : vector<8x16xf32> to vector<8x16xbf16>
    %c0_433 = arith.constant 0 : index
    %860 = arith.index_cast %858 : i32 to index
    %c0_434 = arith.constant 0 : index
    %861 = vector.load %arg6[%c0_433, %860, %c0_434] : memref<1x64x16xbf16, #tpu.memory_space<vmem>>, vector<1x8x16xbf16>
    %862 = vector.shape_cast %861 : vector<1x8x16xbf16> to vector<8x16xbf16>
    %863 = vector.shape_cast %859 : vector<8x16xbf16> to vector<1x8x16xbf16>
    tpu.vector_store %arg6[%c0_433, %860, %c0_434], %863 {strides = array<i32>} : memref<1x64x16xbf16, #tpu.memory_space<vmem>>, vector<1x8x16xbf16>,
    %c2_i32_435 = arith.constant 2 : i32
    %864 = arith.muli %c5_i32, %c2_i32_435 : i32
    %c16_i32_436 = arith.constant 16 : i32
    %865 = arith.muli %864, %c16_i32_436 : i32
    %c0_437 = arith.constant 0 : index
    %866 = arith.index_cast %865 : i32 to index
    %c0_438 = arith.constant 0 : index
    %867 = vector.load %arg1[%c0_437, %866, %c0_438] : memref<1x256x4xf32, #tpu.memory_space<vmem>>, vector<1x16x4xf32>
    %868 = vector.shape_cast %867 : vector<1x16x4xf32> to vector<16x4xf32>
    %cst_439 = arith.constant dense<0.000000e+00> : vector<8x4xf32>
    %869 = tpu.matmul %46, %868, %cst_439 {dimension_numbers = #tpu.dot_dimension_numbers<[1], [0], [0], [1], [0, 0, 1, 1], [], []>} : vector<8x16xf32>, vector<16x4xf32>, vector<8x4xf32> -> vector<8x4xf32>
    %870 = arith.truncf %869 : vector<8x4xf32> to vector<8x4xbf16>
    %c0_440 = arith.constant 0 : index
    %871 = arith.index_cast %858 : i32 to index
    %c0_441 = arith.constant 0 : index
    %872 = vector.load %arg9[%c0_440, %871, %c0_441] : memref<1x64x4xbf16, #tpu.memory_space<vmem>>, vector<1x8x4xbf16>
    %873 = vector.shape_cast %872 : vector<1x8x4xbf16> to vector<8x4xbf16>
    %874 = vector.shape_cast %870 : vector<8x4xbf16> to vector<1x8x4xbf16>
    tpu.vector_store %arg9[%c0_440, %871, %c0_441], %874 {strides = array<i32>} : memref<1x64x4xbf16, #tpu.memory_space<vmem>>, vector<1x8x4xbf16>,
    %c6_i32 = arith.constant 6 : i32
    %cst_442 = arith.constant 0.000000e+00 : f32
    %875 = vector.broadcast %cst_442 : f32 to vector<16x16xf32>
    %c2_i32_443 = arith.constant 2 : i32
    %876 = arith.muli %c6_i32, %c2_i32_443 : i32
    %c0_i32_444 = arith.constant 0 : i32
    %877 = arith.addi %876, %c0_i32_444 : i32
    %c1_i32_445 = arith.constant 1 : i32
    %878 = arith.subi %877, %c1_i32_445 : i32
    %c0_i32_446 = arith.constant 0 : i32
    %c15_i32_447 = arith.constant 15 : i32
    %879 = arith.maxsi %c0_i32_446, %878 : i32
    %880 = arith.minsi %c15_i32_447, %879 : i32
    %c16_i32_448 = arith.constant 16 : i32
    %881 = arith.muli %880, %c16_i32_448 : i32
    %c8_i32_449 = arith.constant 8 : i32
    %882 = arith.addi %c8_i32_449, %881 : i32
    %c1_i32_450 = arith.constant 1 : i32
    %883 = arith.subi %882, %c1_i32_450 : i32
    %cst_451 = arith.constant 0.000000e+00 : f32
    %884 = vector.broadcast %cst_451 : f32 to vector<16x16xf32>
    %c0_i32_452 = arith.constant 0 : i32
    %885 = arith.addi %883, %c0_i32_452 : i32
    %886 = arith.index_cast %885 : i32 to index
    %c0_453 = arith.constant 0 : index
    %887 = vector.load %arg10[%886, %c0_453] : memref<272x16xf32, #tpu.memory_space<vmem>>, vector<16x16xf32>
    %888 = vector.broadcast %18 : vector<1x16xf32> to vector<16x16xf32>
    %889 = arith.mulf %887, %888 : vector<16x16xf32>
    %cst_454 = arith.constant 0.000000e+00 : f32
    %890 = vector.shape_cast %36 : vector<16x1xi1> to vector<16x1xi1>
    %891 = vector.broadcast %890 : vector<16x1xi1> to vector<16x16xi1>
    %892 = vector.broadcast %cst_454 : f32 to vector<16x16xf32>
    %893 = arith.select %891, %889, %892 : vector<16x16xi1>, vector<16x16xf32>
    %894 = arith.addf %884, %893 : vector<16x16xf32>
    %c1_i32_455 = arith.constant 1 : i32
    %895 = arith.addi %883, %c1_i32_455 : i32
    %896 = arith.index_cast %895 : i32 to index
    %c0_456 = arith.constant 0 : index
    %897 = vector.load %arg10[%896, %c0_456] : memref<272x16xf32, #tpu.memory_space<vmem>>, vector<16x16xf32>
    %898 = vector.broadcast %19 : vector<1x16xf32> to vector<16x16xf32>
    %899 = arith.mulf %897, %898 : vector<16x16xf32>
    %900 = arith.addf %894, %899 : vector<16x16xf32>
    %c2_i32_457 = arith.constant 2 : i32
    %901 = arith.addi %883, %c2_i32_457 : i32
    %902 = arith.index_cast %901 : i32 to index
    %c0_458 = arith.constant 0 : index
    %903 = vector.load %arg10[%902, %c0_458] : memref<272x16xf32, #tpu.memory_space<vmem>>, vector<16x16xf32>
    %904 = vector.broadcast %20 : vector<1x16xf32> to vector<16x16xf32>
    %905 = arith.mulf %903, %904 : vector<16x16xf32>
    %cst_459 = arith.constant 0.000000e+00 : f32
    %906 = vector.shape_cast %45 : vector<16x1xi1> to vector<16x1xi1>
    %907 = vector.broadcast %906 : vector<16x1xi1> to vector<16x16xi1>
    %908 = vector.broadcast %cst_459 : f32 to vector<16x16xf32>
    %909 = arith.select %907, %905, %908 : vector<16x16xi1>, vector<16x16xf32>
    %910 = arith.addf %900, %909 : vector<16x16xf32>
    %c0_i32_460 = arith.constant 0 : i32
    %911 = arith.cmpi sge, %878, %c0_i32_460 : i32
    %c16_i32_461 = arith.constant 16 : i32
    %912 = arith.cmpi slt, %878, %c16_i32_461 : i32
    %913 = arith.andi %911, %912 : i1
    %cst_462 = arith.constant 0.000000e+00 : f32
    %914 = vector.broadcast %cst_462 : f32 to vector<16x16xf32>
    %915 = arith.select %913, %910, %914 : vector<16x16xf32>
    %916 = arith.addf %875, %915 : vector<16x16xf32>
    %c2_i32_463 = arith.constant 2 : i32
    %917 = arith.muli %c6_i32, %c2_i32_463 : i32
    %c1_i32_464 = arith.constant 1 : i32
    %918 = arith.addi %917, %c1_i32_464 : i32
    %c1_i32_465 = arith.constant 1 : i32
    %919 = arith.subi %918, %c1_i32_465 : i32
    %c0_i32_466 = arith.constant 0 : i32
    %c15_i32_467 = arith.constant 15 : i32
    %920 = arith.maxsi %c0_i32_466, %919 : i32
    %921 = arith.minsi %c15_i32_467, %920 : i32
    %c16_i32_468 = arith.constant 16 : i32
    %922 = arith.muli %921, %c16_i32_468 : i32
    %c8_i32_469 = arith.constant 8 : i32
    %923 = arith.addi %c8_i32_469, %922 : i32
    %c1_i32_470 = arith.constant 1 : i32
    %924 = arith.subi %923, %c1_i32_470 : i32
    %cst_471 = arith.constant 0.000000e+00 : f32
    %925 = vector.broadcast %cst_471 : f32 to vector<16x16xf32>
    %c0_i32_472 = arith.constant 0 : i32
    %926 = arith.addi %924, %c0_i32_472 : i32
    %927 = arith.index_cast %926 : i32 to index
    %c0_473 = arith.constant 0 : index
    %928 = vector.load %arg10[%927, %c0_473] : memref<272x16xf32, #tpu.memory_space<vmem>>, vector<16x16xf32>
    %929 = vector.broadcast %21 : vector<1x16xf32> to vector<16x16xf32>
    %930 = arith.mulf %928, %929 : vector<16x16xf32>
    %cst_474 = arith.constant 0.000000e+00 : f32
    %931 = vector.shape_cast %36 : vector<16x1xi1> to vector<16x1xi1>
    %932 = vector.broadcast %931 : vector<16x1xi1> to vector<16x16xi1>
    %933 = vector.broadcast %cst_474 : f32 to vector<16x16xf32>
    %934 = arith.select %932, %930, %933 : vector<16x16xi1>, vector<16x16xf32>
    %935 = arith.addf %925, %934 : vector<16x16xf32>
    %c1_i32_475 = arith.constant 1 : i32
    %936 = arith.addi %924, %c1_i32_475 : i32
    %937 = arith.index_cast %936 : i32 to index
    %c0_476 = arith.constant 0 : index
    %938 = vector.load %arg10[%937, %c0_476] : memref<272x16xf32, #tpu.memory_space<vmem>>, vector<16x16xf32>
    %939 = vector.broadcast %22 : vector<1x16xf32> to vector<16x16xf32>
    %940 = arith.mulf %938, %939 : vector<16x16xf32>
    %941 = arith.addf %935, %940 : vector<16x16xf32>
    %c2_i32_477 = arith.constant 2 : i32
    %942 = arith.addi %924, %c2_i32_477 : i32
    %943 = arith.index_cast %942 : i32 to index
    %c0_478 = arith.constant 0 : index
    %944 = vector.load %arg10[%943, %c0_478] : memref<272x16xf32, #tpu.memory_space<vmem>>, vector<16x16xf32>
    %945 = vector.broadcast %23 : vector<1x16xf32> to vector<16x16xf32>
    %946 = arith.mulf %944, %945 : vector<16x16xf32>
    %cst_479 = arith.constant 0.000000e+00 : f32
    %947 = vector.shape_cast %45 : vector<16x1xi1> to vector<16x1xi1>
    %948 = vector.broadcast %947 : vector<16x1xi1> to vector<16x16xi1>
    %949 = vector.broadcast %cst_479 : f32 to vector<16x16xf32>
    %950 = arith.select %948, %946, %949 : vector<16x16xi1>, vector<16x16xf32>
    %951 = arith.addf %941, %950 : vector<16x16xf32>
    %952 = arith.addf %916, %951 : vector<16x16xf32>
    %c2_i32_480 = arith.constant 2 : i32
    %953 = arith.muli %c6_i32, %c2_i32_480 : i32
    %c2_i32_481 = arith.constant 2 : i32
    %954 = arith.addi %953, %c2_i32_481 : i32
    %c1_i32_482 = arith.constant 1 : i32
    %955 = arith.subi %954, %c1_i32_482 : i32
    %c0_i32_483 = arith.constant 0 : i32
    %c15_i32_484 = arith.constant 15 : i32
    %956 = arith.maxsi %c0_i32_483, %955 : i32
    %957 = arith.minsi %c15_i32_484, %956 : i32
    %c16_i32_485 = arith.constant 16 : i32
    %958 = arith.muli %957, %c16_i32_485 : i32
    %c8_i32_486 = arith.constant 8 : i32
    %959 = arith.addi %c8_i32_486, %958 : i32
    %c1_i32_487 = arith.constant 1 : i32
    %960 = arith.subi %959, %c1_i32_487 : i32
    %cst_488 = arith.constant 0.000000e+00 : f32
    %961 = vector.broadcast %cst_488 : f32 to vector<16x16xf32>
    %c0_i32_489 = arith.constant 0 : i32
    %962 = arith.addi %960, %c0_i32_489 : i32
    %963 = arith.index_cast %962 : i32 to index
    %c0_490 = arith.constant 0 : index
    %964 = vector.load %arg10[%963, %c0_490] : memref<272x16xf32, #tpu.memory_space<vmem>>, vector<16x16xf32>
    %965 = vector.broadcast %24 : vector<1x16xf32> to vector<16x16xf32>
    %966 = arith.mulf %964, %965 : vector<16x16xf32>
    %cst_491 = arith.constant 0.000000e+00 : f32
    %967 = vector.shape_cast %36 : vector<16x1xi1> to vector<16x1xi1>
    %968 = vector.broadcast %967 : vector<16x1xi1> to vector<16x16xi1>
    %969 = vector.broadcast %cst_491 : f32 to vector<16x16xf32>
    %970 = arith.select %968, %966, %969 : vector<16x16xi1>, vector<16x16xf32>
    %971 = arith.addf %961, %970 : vector<16x16xf32>
    %c1_i32_492 = arith.constant 1 : i32
    %972 = arith.addi %960, %c1_i32_492 : i32
    %973 = arith.index_cast %972 : i32 to index
    %c0_493 = arith.constant 0 : index
    %974 = vector.load %arg10[%973, %c0_493] : memref<272x16xf32, #tpu.memory_space<vmem>>, vector<16x16xf32>
    %975 = vector.broadcast %25 : vector<1x16xf32> to vector<16x16xf32>
    %976 = arith.mulf %974, %975 : vector<16x16xf32>
    %977 = arith.addf %971, %976 : vector<16x16xf32>
    %c2_i32_494 = arith.constant 2 : i32
    %978 = arith.addi %960, %c2_i32_494 : i32
    %979 = arith.index_cast %978 : i32 to index
    %c0_495 = arith.constant 0 : index
    %980 = vector.load %arg10[%979, %c0_495] : memref<272x16xf32, #tpu.memory_space<vmem>>, vector<16x16xf32>
    %981 = vector.broadcast %26 : vector<1x16xf32> to vector<16x16xf32>
    %982 = arith.mulf %980, %981 : vector<16x16xf32>
    %cst_496 = arith.constant 0.000000e+00 : f32
    %983 = vector.shape_cast %45 : vector<16x1xi1> to vector<16x1xi1>
    %984 = vector.broadcast %983 : vector<16x1xi1> to vector<16x16xi1>
    %985 = vector.broadcast %cst_496 : f32 to vector<16x16xf32>
    %986 = arith.select %984, %982, %985 : vector<16x16xi1>, vector<16x16xf32>
    %987 = arith.addf %977, %986 : vector<16x16xf32>
    %c0_i32_497 = arith.constant 0 : i32
    %988 = arith.cmpi sge, %955, %c0_i32_497 : i32
    %c16_i32_498 = arith.constant 16 : i32
    %989 = arith.cmpi slt, %955, %c16_i32_498 : i32
    %990 = arith.andi %988, %989 : i1
    %cst_499 = arith.constant 0.000000e+00 : f32
    %991 = vector.broadcast %cst_499 : f32 to vector<16x16xf32>
    %992 = arith.select %990, %987, %991 : vector<16x16xf32>
    %993 = arith.addf %952, %992 : vector<16x16xf32>
    %cst_500 = arith.constant dense<0.000000e+00> : vector<8x16xf32>
    %994 = tpu.matmul %46, %993, %cst_500 {dimension_numbers = #tpu.dot_dimension_numbers<[1], [0], [0], [1], [0, 0, 1, 1], [], []>} : vector<8x16xf32>, vector<16x16xf32>, vector<8x16xf32> -> vector<8x16xf32>
    %c8_i32_501 = arith.constant 8 : i32
    %995 = arith.muli %c6_i32, %c8_i32_501 : i32
    %996 = tpu.assume_multiple %995, 8 : i32
    %997 = arith.truncf %994 : vector<8x16xf32> to vector<8x16xbf16>
    %c0_502 = arith.constant 0 : index
    %998 = arith.index_cast %996 : i32 to index
    %c0_503 = arith.constant 0 : index
    %999 = vector.load %arg6[%c0_502, %998, %c0_503] : memref<1x64x16xbf16, #tpu.memory_space<vmem>>, vector<1x8x16xbf16>
    %1000 = vector.shape_cast %999 : vector<1x8x16xbf16> to vector<8x16xbf16>
    %1001 = vector.shape_cast %997 : vector<8x16xbf16> to vector<1x8x16xbf16>
    tpu.vector_store %arg6[%c0_502, %998, %c0_503], %1001 {strides = array<i32>} : memref<1x64x16xbf16, #tpu.memory_space<vmem>>, vector<1x8x16xbf16>,
    %c2_i32_504 = arith.constant 2 : i32
    %1002 = arith.muli %c6_i32, %c2_i32_504 : i32
    %c16_i32_505 = arith.constant 16 : i32
    %1003 = arith.muli %1002, %c16_i32_505 : i32
    %c0_506 = arith.constant 0 : index
    %1004 = arith.index_cast %1003 : i32 to index
    %c0_507 = arith.constant 0 : index
    %1005 = vector.load %arg1[%c0_506, %1004, %c0_507] : memref<1x256x4xf32, #tpu.memory_space<vmem>>, vector<1x16x4xf32>
    %1006 = vector.shape_cast %1005 : vector<1x16x4xf32> to vector<16x4xf32>
    %cst_508 = arith.constant dense<0.000000e+00> : vector<8x4xf32>
    %1007 = tpu.matmul %46, %1006, %cst_508 {dimension_numbers = #tpu.dot_dimension_numbers<[1], [0], [0], [1], [0, 0, 1, 1], [], []>} : vector<8x16xf32>, vector<16x4xf32>, vector<8x4xf32> -> vector<8x4xf32>
    %1008 = arith.truncf %1007 : vector<8x4xf32> to vector<8x4xbf16>
    %c0_509 = arith.constant 0 : index
    %1009 = arith.index_cast %996 : i32 to index
    %c0_510 = arith.constant 0 : index
    %1010 = vector.load %arg9[%c0_509, %1009, %c0_510] : memref<1x64x4xbf16, #tpu.memory_space<vmem>>, vector<1x8x4xbf16>
    %1011 = vector.shape_cast %1010 : vector<1x8x4xbf16> to vector<8x4xbf16>
    %1012 = vector.shape_cast %1008 : vector<8x4xbf16> to vector<1x8x4xbf16>
    tpu.vector_store %arg9[%c0_509, %1009, %c0_510], %1012 {strides = array<i32>} : memref<1x64x4xbf16, #tpu.memory_space<vmem>>, vector<1x8x4xbf16>,
    %c7_i32 = arith.constant 7 : i32
    %cst_511 = arith.constant 0.000000e+00 : f32
    %1013 = vector.broadcast %cst_511 : f32 to vector<16x16xf32>
    %c2_i32_512 = arith.constant 2 : i32
    %1014 = arith.muli %c7_i32, %c2_i32_512 : i32
    %c0_i32_513 = arith.constant 0 : i32
    %1015 = arith.addi %1014, %c0_i32_513 : i32
    %c1_i32_514 = arith.constant 1 : i32
    %1016 = arith.subi %1015, %c1_i32_514 : i32
    %c0_i32_515 = arith.constant 0 : i32
    %c15_i32_516 = arith.constant 15 : i32
    %1017 = arith.maxsi %c0_i32_515, %1016 : i32
    %1018 = arith.minsi %c15_i32_516, %1017 : i32
    %c16_i32_517 = arith.constant 16 : i32
    %1019 = arith.muli %1018, %c16_i32_517 : i32
    %c8_i32_518 = arith.constant 8 : i32
    %1020 = arith.addi %c8_i32_518, %1019 : i32
    %c1_i32_519 = arith.constant 1 : i32
    %1021 = arith.subi %1020, %c1_i32_519 : i32
    %cst_520 = arith.constant 0.000000e+00 : f32
    %1022 = vector.broadcast %cst_520 : f32 to vector<16x16xf32>
    %c0_i32_521 = arith.constant 0 : i32
    %1023 = arith.addi %1021, %c0_i32_521 : i32
    %1024 = arith.index_cast %1023 : i32 to index
    %c0_522 = arith.constant 0 : index
    %1025 = vector.load %arg10[%1024, %c0_522] : memref<272x16xf32, #tpu.memory_space<vmem>>, vector<16x16xf32>
    %1026 = vector.broadcast %18 : vector<1x16xf32> to vector<16x16xf32>
    %1027 = arith.mulf %1025, %1026 : vector<16x16xf32>
    %cst_523 = arith.constant 0.000000e+00 : f32
    %1028 = vector.shape_cast %36 : vector<16x1xi1> to vector<16x1xi1>
    %1029 = vector.broadcast %1028 : vector<16x1xi1> to vector<16x16xi1>
    %1030 = vector.broadcast %cst_523 : f32 to vector<16x16xf32>
    %1031 = arith.select %1029, %1027, %1030 : vector<16x16xi1>, vector<16x16xf32>
    %1032 = arith.addf %1022, %1031 : vector<16x16xf32>
    %c1_i32_524 = arith.constant 1 : i32
    %1033 = arith.addi %1021, %c1_i32_524 : i32
    %1034 = arith.index_cast %1033 : i32 to index
    %c0_525 = arith.constant 0 : index
    %1035 = vector.load %arg10[%1034, %c0_525] : memref<272x16xf32, #tpu.memory_space<vmem>>, vector<16x16xf32>
    %1036 = vector.broadcast %19 : vector<1x16xf32> to vector<16x16xf32>
    %1037 = arith.mulf %1035, %1036 : vector<16x16xf32>
    %1038 = arith.addf %1032, %1037 : vector<16x16xf32>
    %c2_i32_526 = arith.constant 2 : i32
    %1039 = arith.addi %1021, %c2_i32_526 : i32
    %1040 = arith.index_cast %1039 : i32 to index
    %c0_527 = arith.constant 0 : index
    %1041 = vector.load %arg10[%1040, %c0_527] : memref<272x16xf32, #tpu.memory_space<vmem>>, vector<16x16xf32>
    %1042 = vector.broadcast %20 : vector<1x16xf32> to vector<16x16xf32>
    %1043 = arith.mulf %1041, %1042 : vector<16x16xf32>
    %cst_528 = arith.constant 0.000000e+00 : f32
    %1044 = vector.shape_cast %45 : vector<16x1xi1> to vector<16x1xi1>
    %1045 = vector.broadcast %1044 : vector<16x1xi1> to vector<16x16xi1>
    %1046 = vector.broadcast %cst_528 : f32 to vector<16x16xf32>
    %1047 = arith.select %1045, %1043, %1046 : vector<16x16xi1>, vector<16x16xf32>
    %1048 = arith.addf %1038, %1047 : vector<16x16xf32>
    %c0_i32_529 = arith.constant 0 : i32
    %1049 = arith.cmpi sge, %1016, %c0_i32_529 : i32
    %c16_i32_530 = arith.constant 16 : i32
    %1050 = arith.cmpi slt, %1016, %c16_i32_530 : i32
    %1051 = arith.andi %1049, %1050 : i1
    %cst_531 = arith.constant 0.000000e+00 : f32
    %1052 = vector.broadcast %cst_531 : f32 to vector<16x16xf32>
    %1053 = arith.select %1051, %1048, %1052 : vector<16x16xf32>
    %1054 = arith.addf %1013, %1053 : vector<16x16xf32>
    %c2_i32_532 = arith.constant 2 : i32
    %1055 = arith.muli %c7_i32, %c2_i32_532 : i32
    %c1_i32_533 = arith.constant 1 : i32
    %1056 = arith.addi %1055, %c1_i32_533 : i32
    %c1_i32_534 = arith.constant 1 : i32
    %1057 = arith.subi %1056, %c1_i32_534 : i32
    %c0_i32_535 = arith.constant 0 : i32
    %c15_i32_536 = arith.constant 15 : i32
    %1058 = arith.maxsi %c0_i32_535, %1057 : i32
    %1059 = arith.minsi %c15_i32_536, %1058 : i32
    %c16_i32_537 = arith.constant 16 : i32
    %1060 = arith.muli %1059, %c16_i32_537 : i32
    %c8_i32_538 = arith.constant 8 : i32
    %1061 = arith.addi %c8_i32_538, %1060 : i32
    %c1_i32_539 = arith.constant 1 : i32
    %1062 = arith.subi %1061, %c1_i32_539 : i32
    %cst_540 = arith.constant 0.000000e+00 : f32
    %1063 = vector.broadcast %cst_540 : f32 to vector<16x16xf32>
    %c0_i32_541 = arith.constant 0 : i32
    %1064 = arith.addi %1062, %c0_i32_541 : i32
    %1065 = arith.index_cast %1064 : i32 to index
    %c0_542 = arith.constant 0 : index
    %1066 = vector.load %arg10[%1065, %c0_542] : memref<272x16xf32, #tpu.memory_space<vmem>>, vector<16x16xf32>
    %1067 = vector.broadcast %21 : vector<1x16xf32> to vector<16x16xf32>
    %1068 = arith.mulf %1066, %1067 : vector<16x16xf32>
    %cst_543 = arith.constant 0.000000e+00 : f32
    %1069 = vector.shape_cast %36 : vector<16x1xi1> to vector<16x1xi1>
    %1070 = vector.broadcast %1069 : vector<16x1xi1> to vector<16x16xi1>
    %1071 = vector.broadcast %cst_543 : f32 to vector<16x16xf32>
    %1072 = arith.select %1070, %1068, %1071 : vector<16x16xi1>, vector<16x16xf32>
    %1073 = arith.addf %1063, %1072 : vector<16x16xf32>
    %c1_i32_544 = arith.constant 1 : i32
    %1074 = arith.addi %1062, %c1_i32_544 : i32
    %1075 = arith.index_cast %1074 : i32 to index
    %c0_545 = arith.constant 0 : index
    %1076 = vector.load %arg10[%1075, %c0_545] : memref<272x16xf32, #tpu.memory_space<vmem>>, vector<16x16xf32>
    %1077 = vector.broadcast %22 : vector<1x16xf32> to vector<16x16xf32>
    %1078 = arith.mulf %1076, %1077 : vector<16x16xf32>
    %1079 = arith.addf %1073, %1078 : vector<16x16xf32>
    %c2_i32_546 = arith.constant 2 : i32
    %1080 = arith.addi %1062, %c2_i32_546 : i32
    %1081 = arith.index_cast %1080 : i32 to index
    %c0_547 = arith.constant 0 : index
    %1082 = vector.load %arg10[%1081, %c0_547] : memref<272x16xf32, #tpu.memory_space<vmem>>, vector<16x16xf32>
    %1083 = vector.broadcast %23 : vector<1x16xf32> to vector<16x16xf32>
    %1084 = arith.mulf %1082, %1083 : vector<16x16xf32>
    %cst_548 = arith.constant 0.000000e+00 : f32
    %1085 = vector.shape_cast %45 : vector<16x1xi1> to vector<16x1xi1>
    %1086 = vector.broadcast %1085 : vector<16x1xi1> to vector<16x16xi1>
    %1087 = vector.broadcast %cst_548 : f32 to vector<16x16xf32>
    %1088 = arith.select %1086, %1084, %1087 : vector<16x16xi1>, vector<16x16xf32>
    %1089 = arith.addf %1079, %1088 : vector<16x16xf32>
    %1090 = arith.addf %1054, %1089 : vector<16x16xf32>
    %c2_i32_549 = arith.constant 2 : i32
    %1091 = arith.muli %c7_i32, %c2_i32_549 : i32
    %c2_i32_550 = arith.constant 2 : i32
    %1092 = arith.addi %1091, %c2_i32_550 : i32
    %c1_i32_551 = arith.constant 1 : i32
    %1093 = arith.subi %1092, %c1_i32_551 : i32
    %c0_i32_552 = arith.constant 0 : i32
    %c15_i32_553 = arith.constant 15 : i32
    %1094 = arith.maxsi %c0_i32_552, %1093 : i32
    %1095 = arith.minsi %c15_i32_553, %1094 : i32
    %c16_i32_554 = arith.constant 16 : i32
    %1096 = arith.muli %1095, %c16_i32_554 : i32
    %c8_i32_555 = arith.constant 8 : i32
    %1097 = arith.addi %c8_i32_555, %1096 : i32
    %c1_i32_556 = arith.constant 1 : i32
    %1098 = arith.subi %1097, %c1_i32_556 : i32
    %cst_557 = arith.constant 0.000000e+00 : f32
    %1099 = vector.broadcast %cst_557 : f32 to vector<16x16xf32>
    %c0_i32_558 = arith.constant 0 : i32
    %1100 = arith.addi %1098, %c0_i32_558 : i32
    %1101 = arith.index_cast %1100 : i32 to index
    %c0_559 = arith.constant 0 : index
    %1102 = vector.load %arg10[%1101, %c0_559] : memref<272x16xf32, #tpu.memory_space<vmem>>, vector<16x16xf32>
    %1103 = vector.broadcast %24 : vector<1x16xf32> to vector<16x16xf32>
    %1104 = arith.mulf %1102, %1103 : vector<16x16xf32>
    %cst_560 = arith.constant 0.000000e+00 : f32
    %1105 = vector.shape_cast %36 : vector<16x1xi1> to vector<16x1xi1>
    %1106 = vector.broadcast %1105 : vector<16x1xi1> to vector<16x16xi1>
    %1107 = vector.broadcast %cst_560 : f32 to vector<16x16xf32>
    %1108 = arith.select %1106, %1104, %1107 : vector<16x16xi1>, vector<16x16xf32>
    %1109 = arith.addf %1099, %1108 : vector<16x16xf32>
    %c1_i32_561 = arith.constant 1 : i32
    %1110 = arith.addi %1098, %c1_i32_561 : i32
    %1111 = arith.index_cast %1110 : i32 to index
    %c0_562 = arith.constant 0 : index
    %1112 = vector.load %arg10[%1111, %c0_562] : memref<272x16xf32, #tpu.memory_space<vmem>>, vector<16x16xf32>
    %1113 = vector.broadcast %25 : vector<1x16xf32> to vector<16x16xf32>
    %1114 = arith.mulf %1112, %1113 : vector<16x16xf32>
    %1115 = arith.addf %1109, %1114 : vector<16x16xf32>
    %c2_i32_563 = arith.constant 2 : i32
    %1116 = arith.addi %1098, %c2_i32_563 : i32
    %1117 = arith.index_cast %1116 : i32 to index
    %c0_564 = arith.constant 0 : index
    %1118 = vector.load %arg10[%1117, %c0_564] : memref<272x16xf32, #tpu.memory_space<vmem>>, vector<16x16xf32>
    %1119 = vector.broadcast %26 : vector<1x16xf32> to vector<16x16xf32>
    %1120 = arith.mulf %1118, %1119 : vector<16x16xf32>
    %cst_565 = arith.constant 0.000000e+00 : f32
    %1121 = vector.shape_cast %45 : vector<16x1xi1> to vector<16x1xi1>
    %1122 = vector.broadcast %1121 : vector<16x1xi1> to vector<16x16xi1>
    %1123 = vector.broadcast %cst_565 : f32 to vector<16x16xf32>
    %1124 = arith.select %1122, %1120, %1123 : vector<16x16xi1>, vector<16x16xf32>
    %1125 = arith.addf %1115, %1124 : vector<16x16xf32>
    %c0_i32_566 = arith.constant 0 : i32
    %1126 = arith.cmpi sge, %1093, %c0_i32_566 : i32
    %c16_i32_567 = arith.constant 16 : i32
    %1127 = arith.cmpi slt, %1093, %c16_i32_567 : i32
    %1128 = arith.andi %1126, %1127 : i1
    %cst_568 = arith.constant 0.000000e+00 : f32
    %1129 = vector.broadcast %cst_568 : f32 to vector<16x16xf32>
    %1130 = arith.select %1128, %1125, %1129 : vector<16x16xf32>
    %1131 = arith.addf %1090, %1130 : vector<16x16xf32>
    %cst_569 = arith.constant dense<0.000000e+00> : vector<8x16xf32>
    %1132 = tpu.matmul %46, %1131, %cst_569 {dimension_numbers = #tpu.dot_dimension_numbers<[1], [0], [0], [1], [0, 0, 1, 1], [], []>} : vector<8x16xf32>, vector<16x16xf32>, vector<8x16xf32> -> vector<8x16xf32>
    %c8_i32_570 = arith.constant 8 : i32
    %1133 = arith.muli %c7_i32, %c8_i32_570 : i32
    %1134 = tpu.assume_multiple %1133, 8 : i32
    %1135 = arith.truncf %1132 : vector<8x16xf32> to vector<8x16xbf16>
    %c0_571 = arith.constant 0 : index
    %1136 = arith.index_cast %1134 : i32 to index
    %c0_572 = arith.constant 0 : index
    %1137 = vector.load %arg6[%c0_571, %1136, %c0_572] : memref<1x64x16xbf16, #tpu.memory_space<vmem>>, vector<1x8x16xbf16>
    %1138 = vector.shape_cast %1137 : vector<1x8x16xbf16> to vector<8x16xbf16>
    %1139 = vector.shape_cast %1135 : vector<8x16xbf16> to vector<1x8x16xbf16>
    tpu.vector_store %arg6[%c0_571, %1136, %c0_572], %1139 {strides = array<i32>} : memref<1x64x16xbf16, #tpu.memory_space<vmem>>, vector<1x8x16xbf16>,
    %c2_i32_573 = arith.constant 2 : i32
    %1140 = arith.muli %c7_i32, %c2_i32_573 : i32
    %c16_i32_574 = arith.constant 16 : i32
    %1141 = arith.muli %1140, %c16_i32_574 : i32
    %c0_575 = arith.constant 0 : index
    %1142 = arith.index_cast %1141 : i32 to index
    %c0_576 = arith.constant 0 : index
    %1143 = vector.load %arg1[%c0_575, %1142, %c0_576] : memref<1x256x4xf32, #tpu.memory_space<vmem>>, vector<1x16x4xf32>
    %1144 = vector.shape_cast %1143 : vector<1x16x4xf32> to vector<16x4xf32>
    %cst_577 = arith.constant dense<0.000000e+00> : vector<8x4xf32>
    %1145 = tpu.matmul %46, %1144, %cst_577 {dimension_numbers = #tpu.dot_dimension_numbers<[1], [0], [0], [1], [0, 0, 1, 1], [], []>} : vector<8x16xf32>, vector<16x4xf32>, vector<8x4xf32> -> vector<8x4xf32>
    %1146 = arith.truncf %1145 : vector<8x4xf32> to vector<8x4xbf16>
    %c0_578 = arith.constant 0 : index
    %1147 = arith.index_cast %1134 : i32 to index
    %c0_579 = arith.constant 0 : index
    %1148 = vector.load %arg9[%c0_578, %1147, %c0_579] : memref<1x64x4xbf16, #tpu.memory_space<vmem>>, vector<1x8x4xbf16>
    %1149 = vector.shape_cast %1148 : vector<1x8x4xbf16> to vector<8x4xbf16>
    %1150 = vector.shape_cast %1146 : vector<8x4xbf16> to vector<1x8x4xbf16>
    tpu.vector_store %arg9[%c0_578, %1147, %c0_579], %1150 {strides = array<i32>} : memref<1x64x4xbf16, #tpu.memory_space<vmem>>, vector<1x8x4xbf16>,
    %c8_i32_580 = arith.constant 8 : i32
    %c0_581 = arith.constant 0 : index
    %c0_582 = arith.constant 0 : index
    %c0_583 = arith.constant 0 : index
    %1151 = vector.load %arg6[%c0_581, %c0_582, %c0_583] : memref<1x64x16xbf16, #tpu.memory_space<vmem>>, vector<1x64x16xbf16>
    %1152 = vector.shape_cast %1151 : vector<1x64x16xbf16> to vector<64x16xbf16>
    %1153 = arith.extf %1152 : vector<64x16xbf16> to vector<64x16xf32>
    %cst_584 = arith.constant dense<0.000000e+00> : vector<16xf32>
    %1154 = vector.multi_reduction <add>, %1153, %cst_584 [0] : vector<64x16xf32> to vector<16xf32>
    %1155 = vector.shape_cast %1154 : vector<16xf32> to vector<1x16xf32>
    %c0_585 = arith.constant 0 : index
    %c0_586 = arith.constant 0 : index
    %c0_587 = arith.constant 0 : index
    %1156 = vector.load %arg7[%c0_585, %c0_586, %c0_587] : memref<1x1x16xf32, #tpu.memory_space<vmem>>, vector<1x1x16xf32>
    %1157 = vector.shape_cast %1156 : vector<1x1x16xf32> to vector<1x16xf32>
    %1158 = vector.shape_cast %1155 : vector<1x16xf32> to vector<1x1x16xf32>
    tpu.vector_store %arg7[%c0_585, %c0_586, %c0_587], %1158 {strides = array<i32>} : memref<1x1x16xf32, #tpu.memory_space<vmem>>, vector<1x1x16xf32>,
    %cst_588 = arith.constant dense<0.000000e+00> : vector<16x16xf32>
    %1159 = tpu.matmul %1152, %1152, %cst_588 {dimension_numbers = #tpu.dot_dimension_numbers<[0], [0], [1], [1], [0, 1, 1, 1], [], []>} : vector<64x16xbf16>, vector<64x16xbf16>, vector<16x16xf32> -> vector<16x16xf32>
    %c0_589 = arith.constant 0 : index
    %c0_590 = arith.constant 0 : index
    %c0_591 = arith.constant 0 : index
    %1160 = vector.load %arg8[%c0_589, %c0_590, %c0_591] : memref<1x16x16xf32, #tpu.memory_space<vmem>>, vector<1x16x16xf32>
    %1161 = vector.shape_cast %1160 : vector<1x16x16xf32> to vector<16x16xf32>
    %1162 = vector.shape_cast %1159 : vector<16x16xf32> to vector<1x16x16xf32>
    tpu.vector_store %arg8[%c0_589, %c0_590, %c0_591], %1162 {strides = array<i32>} : memref<1x16x16xf32, #tpu.memory_space<vmem>>, vector<1x16x16xf32>,
    return
  }
  func.func @transform_0(%arg0: i32) -> (i32, i32, i32) {
    %c0_i32 = arith.constant 0 : i32
    %c0_i32_0 = arith.constant 0 : i32
    %c0_i32_1 = arith.constant 0 : i32
    return %arg0, %c0_i32, %c0_i32_0 : i32, i32, i32
  }
  func.func @transform_1(%arg0: i32) -> (i32, i32) {
    %c0_i32 = arith.constant 0 : i32
    %c0_i32_0 = arith.constant 0 : i32
    %c0_i32_1 = arith.constant 0 : i32
    return %c0_i32, %c0_i32_0 : i32, i32
  }
  func.func @transform_2(%arg0: i32) -> (i32, i32) {
    %c0_i32 = arith.constant 0 : i32
    %c0_i32_0 = arith.constant 0 : i32
    %c0_i32_1 = arith.constant 0 : i32
    return %c0_i32, %c0_i32_0 : i32, i32
  }
  func.func @transform_3(%arg0: i32) -> (i32, i32) {
    %c0_i32 = arith.constant 0 : i32
    %c0_i32_0 = arith.constant 0 : i32
    %c0_i32_1 = arith.constant 0 : i32
    return %c0_i32, %c0_i32_0 : i32, i32
  }
  func.func @transform_4(%arg0: i32) -> (i32, i32) {
    %c0_i32 = arith.constant 0 : i32
    %c0_i32_0 = arith.constant 0 : i32
    %c0_i32_1 = arith.constant 0 : i32
    return %c0_i32, %c0_i32_0 : i32, i32
  }
  func.func @transform_5(%arg0: i32) -> (i32, i32, i32) {
    %c0_i32 = arith.constant 0 : i32
    %c0_i32_0 = arith.constant 0 : i32
    %c0_i32_1 = arith.constant 0 : i32
    return %arg0, %c0_i32, %c0_i32_0 : i32, i32, i32
  }
  func.func @transform_6(%arg0: i32) -> (i32, i32, i32) {
    %c0_i32 = arith.constant 0 : i32
    %c0_i32_0 = arith.constant 0 : i32
    %c0_i32_1 = arith.constant 0 : i32
    return %arg0, %c0_i32, %c0_i32_0 : i32, i32, i32
  }
  func.func @transform_7(%arg0: i32) -> (i32, i32, i32) {
    %c0_i32 = arith.constant 0 : i32
    %c0_i32_0 = arith.constant 0 : i32
    %c0_i32_1 = arith.constant 0 : i32
    return %arg0, %c0_i32, %c0_i32_0 : i32, i32, i32
  }
  func.func @transform_8(%arg0: i32) -> (i32, i32, i32) {
    %c0_i32 = arith.constant 0 : i32
    %c0_i32_0 = arith.constant 0 : i32
    %c0_i32_1 = arith.constant 0 : i32
    return %arg0, %c0_i32, %c0_i32_0 : i32, i32, i32
  }
}

module attributes {stable_mosaic.version = 11 : i64} {
  func.func @_final_kernel(%arg0: i32, %arg1: i32, %arg2: memref<1x64x16xbf16, #tpu.memory_space<vmem>>, %arg3: memref<1x64x4xbf16, #tpu.memory_space<vmem>>, %arg4: memref<1x1x16xf32, #tpu.memory_space<vmem>>, %arg5: memref<1x1x16xf32, #tpu.memory_space<vmem>>, %arg6: memref<8x16xbf16, #tpu.memory_space<vmem>>, %arg7: memref<8x4xbf16, #tpu.memory_space<vmem>>, %arg8: memref<8x1xf32, #tpu.memory_space<vmem>>, %arg9: memref<1x8x64xf32, #tpu.memory_space<vmem>>) attributes {dimension_semantics = [#tpu.dimension_semantics<parallel>, #tpu.dimension_semantics<parallel>], iteration_bounds = array<i64: 2, 1>, scalar_prefetch = 0 : i64, scratch_operands = 0 : i64, tpu.core_type = #tpu.core_type<tc>, window_params = [{transform_indices = @transform_0, window_bounds = array<i64: 1, 64, 16>}, {transform_indices = @transform_1, window_bounds = array<i64: 1, 64, 4>}, {transform_indices = @transform_2, window_bounds = array<i64: 1, 1, 16>}, {transform_indices = @transform_3, window_bounds = array<i64: 1, 1, 16>}, {pipeline_mode = #tpu.pipeline_mode<synchronous>, transform_indices = @transform_4, window_bounds = array<i64: 8, 16>}, {pipeline_mode = #tpu.pipeline_mode<synchronous>, transform_indices = @transform_5, window_bounds = array<i64: 8, 4>}, {pipeline_mode = #tpu.pipeline_mode<synchronous>, transform_indices = @transform_6, window_bounds = array<i64: 8, 1>}, {transform_indices = @transform_7, window_bounds = array<i64: 1, 8, 64>}]} {
    %c0 = arith.constant 0 : index
    %c0_0 = arith.constant 0 : index
    %c0_1 = arith.constant 0 : index
    %0 = vector.load %arg2[%c0, %c0_0, %c0_1] : memref<1x64x16xbf16, #tpu.memory_space<vmem>>, vector<1x64x16xbf16>
    %1 = vector.shape_cast %0 : vector<1x64x16xbf16> to vector<64x16xbf16>
    %2 = arith.extf %1 : vector<64x16xbf16> to vector<64x16xf32>
    %c0_2 = arith.constant 0 : index
    %c0_3 = arith.constant 0 : index
    %c0_4 = arith.constant 0 : index
    %3 = vector.load %arg4[%c0_2, %c0_3, %c0_4] : memref<1x1x16xf32, #tpu.memory_space<vmem>>, vector<1x1x16xf32>
    %4 = vector.shape_cast %3 : vector<1x1x16xf32> to vector<1x16xf32>
    %5 = vector.broadcast %4 : vector<1x16xf32> to vector<64x16xf32>
    %6 = arith.mulf %2, %5 : vector<64x16xf32>
    %c0_5 = arith.constant 0 : index
    %c0_6 = arith.constant 0 : index
    %c0_7 = arith.constant 0 : index
    %7 = vector.load %arg5[%c0_5, %c0_6, %c0_7] : memref<1x1x16xf32, #tpu.memory_space<vmem>>, vector<1x1x16xf32>
    %8 = vector.shape_cast %7 : vector<1x1x16xf32> to vector<1x16xf32>
    %9 = vector.broadcast %8 : vector<1x16xf32> to vector<64x16xf32>
    %10 = arith.addf %6, %9 : vector<64x16xf32>
    %c0_8 = arith.constant 0 : index
    %c0_9 = arith.constant 0 : index
    %11 = vector.load %arg6[%c0_8, %c0_9] : memref<8x16xbf16, #tpu.memory_space<vmem>>, vector<8x16xbf16>
    %12 = arith.truncf %10 : vector<64x16xf32> to vector<64x16xbf16>
    %cst = arith.constant dense<0.000000e+00> : vector<8x64xf32>
    %13 = tpu.matmul %11, %12, %cst {dimension_numbers = #tpu.dot_dimension_numbers<[1], [1], [0], [0], [0, 0, 1, 0], [], []>} : vector<8x16xbf16>, vector<64x16xbf16>, vector<8x64xf32> -> vector<8x64xf32>
    %c0_10 = arith.constant 0 : index
    %c0_11 = arith.constant 0 : index
    %14 = vector.load %arg7[%c0_10, %c0_11] : memref<8x4xbf16, #tpu.memory_space<vmem>>, vector<8x4xbf16>
    %c0_12 = arith.constant 0 : index
    %c0_13 = arith.constant 0 : index
    %c0_14 = arith.constant 0 : index
    %15 = vector.load %arg3[%c0_12, %c0_13, %c0_14] : memref<1x64x4xbf16, #tpu.memory_space<vmem>>, vector<1x64x4xbf16>
    %16 = vector.shape_cast %15 : vector<1x64x4xbf16> to vector<64x4xbf16>
    %cst_15 = arith.constant dense<0.000000e+00> : vector<8x64xf32>
    %17 = tpu.matmul %14, %16, %cst_15 {dimension_numbers = #tpu.dot_dimension_numbers<[1], [1], [0], [0], [0, 0, 1, 0], [], []>} : vector<8x4xbf16>, vector<64x4xbf16>, vector<8x64xf32> -> vector<8x64xf32>
    %c0_16 = arith.constant 0 : index
    %c0_17 = arith.constant 0 : index
    %18 = vector.load %arg8[%c0_16, %c0_17] : memref<8x1xf32, #tpu.memory_space<vmem>>, vector<8x1xf32>
    %19 = vector.broadcast %18 : vector<8x1xf32> to vector<8x64xf32>
    %20 = arith.addf %13, %19 : vector<8x64xf32>
    %21 = arith.addf %20, %17 : vector<8x64xf32>
    %c0_18 = arith.constant 0 : index
    %c0_19 = arith.constant 0 : index
    %c0_20 = arith.constant 0 : index
    %22 = vector.load %arg9[%c0_18, %c0_19, %c0_20] : memref<1x8x64xf32, #tpu.memory_space<vmem>>, vector<1x8x64xf32>
    %23 = vector.shape_cast %22 : vector<1x8x64xf32> to vector<8x64xf32>
    %24 = vector.shape_cast %21 : vector<8x64xf32> to vector<1x8x64xf32>
    tpu.vector_store %arg9[%c0_18, %c0_19, %c0_20], %24 {strides = array<i32>} : memref<1x8x64xf32, #tpu.memory_space<vmem>>, vector<1x8x64xf32>,
    return
  }
  func.func @transform_0(%arg0: i32, %arg1: i32) -> (i32, i32, i32) {
    %c0_i32 = arith.constant 0 : i32
    %c0_i32_0 = arith.constant 0 : i32
    return %arg0, %arg1, %c0_i32 : i32, i32, i32
  }
  func.func @transform_1(%arg0: i32, %arg1: i32) -> (i32, i32, i32) {
    %c0_i32 = arith.constant 0 : i32
    %c0_i32_0 = arith.constant 0 : i32
    return %arg0, %arg1, %c0_i32 : i32, i32, i32
  }
  func.func @transform_2(%arg0: i32, %arg1: i32) -> (i32, i32, i32) {
    %c0_i32 = arith.constant 0 : i32
    %c0_i32_0 = arith.constant 0 : i32
    %c0_i32_1 = arith.constant 0 : i32
    return %arg0, %c0_i32, %c0_i32_0 : i32, i32, i32
  }
  func.func @transform_3(%arg0: i32, %arg1: i32) -> (i32, i32, i32) {
    %c0_i32 = arith.constant 0 : i32
    %c0_i32_0 = arith.constant 0 : i32
    %c0_i32_1 = arith.constant 0 : i32
    return %arg0, %c0_i32, %c0_i32_0 : i32, i32, i32
  }
  func.func @transform_4(%arg0: i32, %arg1: i32) -> (i32, i32) {
    %c0_i32 = arith.constant 0 : i32
    %c0_i32_0 = arith.constant 0 : i32
    %c0_i32_1 = arith.constant 0 : i32
    return %c0_i32, %c0_i32_0 : i32, i32
  }
  func.func @transform_5(%arg0: i32, %arg1: i32) -> (i32, i32) {
    %c0_i32 = arith.constant 0 : i32
    %c0_i32_0 = arith.constant 0 : i32
    %c0_i32_1 = arith.constant 0 : i32
    return %c0_i32, %c0_i32_0 : i32, i32
  }
  func.func @transform_6(%arg0: i32, %arg1: i32) -> (i32, i32) {
    %c0_i32 = arith.constant 0 : i32
    %c0_i32_0 = arith.constant 0 : i32
    %c0_i32_1 = arith.constant 0 : i32
    return %c0_i32, %c0_i32_0 : i32, i32
  }
  func.func @transform_7(%arg0: i32, %arg1: i32) -> (i32, i32, i32) {
    %c0_i32 = arith.constant 0 : i32
    %c0_i32_0 = arith.constant 0 : i32
    return %arg0, %c0_i32, %arg1 : i32, i32, i32
  }
}

</mosaic_0001>

<llo_original>
// kernel: bottleneck_forward.3
$region0: #{bottleneck_forward.3}
  #allocation0 [shape = 'u32[]', space=smem, size = 0x4, offset = 0x4, fixed_abs, tag = 'smem constant byte address 0x4 - core index']
  #allocation1 [shape = 'u32[144,128]{1,0:T(1,128)}', space=vmem, size = 0x12000, scoped, tag = 'internal scratch']
  %s0 = inlined_call_operand.hbm [shape: f32[2,256,4], index: 0, kind: input, shape index: {}]
  %s1 = inlined_call_operand.hbm [shape: bf16[4,16], index: 1, kind: input, shape index: {}]
  %s2 = inlined_call_operand.hbm [shape: f32[2,1,16], index: 2, kind: output, shape index: {0}]
  %s3 = inlined_call_operand.hbm [shape: f32[2,1,16], index: 3, kind: output, shape index: {1}]
  %4 = xla_tuple %s2, %s3
  %s5 = sld [smem:[#allocation0]]
  $region57: #{bottleneck_forward.3} parent=0
    _
  %s7 = ssub.s32 1, %s5
  %s8 = scalar_select 0, %s7, %s5
  $region1: #{bottleneck_forward.3} parent=0
    #allocation2 [shape = 'u8[262144]{0}', space=vmem, size = 0x40000, scoped, tag = 'input window, operand 0']
    #allocation3 [shape = 's32[2]{0}', space=sflag, size = 0x8, scoped, tag = 'scoped memory for bottleneck_forward.3']
    #allocation4 [shape = 's32[2]{0}', space=sflag, size = 0x8, scoped, tag = 'scoped memory for bottleneck_forward.3']
    #allocation5 [shape = 'u8[1024]{0}', space=vmem, size = 0x400, scoped, tag = 'input window, operand 1, single buffered']
    #allocation6 [shape = 's32[1]{0}', space=sflag, size = 0x4, scoped, tag = 'scoped memory for bottleneck_forward.3']
    #allocation7 [shape = 'u8[1024]{0}', space=vmem, size = 0x400, scoped, tag = 'output window, operand 0']
    #allocation8 [shape = 'u8[1024]{0}', space=vmem, size = 0x400, scoped, tag = 'output window, operand 1']
    #allocation9 [shape = 's32[2]{0}', space=sflag, size = 0x8, scoped, tag = 'scoped memory for bottleneck_forward.3']
    %9 = vsyncpa [#allocation3], 0
    %s10 = scalar_lea.sflag [#allocation3], 1
    %11 = vsyncpa %s10, 0
    %12 = vsyncpa [#allocation6], 0
    %13 = vsyncpa [#allocation4], 0
    %s14 = scalar_lea.sflag [#allocation4], 1
    %15 = vsyncpa %s14, 0
    %16 = vsyncpa [#allocation9], 0
    %s17 = scalar_lea.sflag [#allocation9], 1
    %18 = vsyncpa %s17, 0
    loop: start=0, step=1, limit=4
    $region2: #{bottleneck_forward.3} parent=1 // loop_pre_header
      _
    $region3: #{bottleneck_forward.3} parent=1 // loop_header
      %s20 = sphi 0, %s24
      %p21 = scmp.ge.s32.totalorder %s20, 4
      %s30 = sphi 0, %s32
      %s33 = sphi 0, %s30
      %s34 = sphi 0, %s33
      %s50 = sphi 0, %s34
      %s54 = sphi 0, %s54
      %s56 = sphi 0, %s54
      %s57 = sphi 0, %s56
      %s71 = sphi 0, %s57
      %s77 = sphi 0, %s79
      %s80 = sphi 0, %s77
      %s81 = sphi 0, %s80
      %s97 = sphi 0, %s81
      %s103 = sphi 0, %s105
      %s106 = sphi 0, %s103
      %s107 = sphi 0, %s106
      %s123 = sphi 0, %s107
    $region4: #{bottleneck_forward.3} parent=1 // loop_header_branch
      %23 = sbr.rel (%p21) target = $region8
    $region5: #{bottleneck_forward.3} parent=1 // loop_body
      %s25 = ssub.s32 %s20, 1
      %s26 = ssub.s32 %s20, 2
      %s27 = sadd.s32 %s20, 1
      %s28 = ssub.s32 %s20, %s27
      %p29 = scmp.eq.s32.totalorder %s28, 0
      %s31 = sadd.s32 %s30, 1
      %s32 = scalar_select %p29, %s30, %s31
      %p35 = pneg %p29
      %p36 = scmp.eq.s32.totalorder %s20, 1
      %p37 = por %p35, %p36
      %p38 = scmp.ne.s32.totalorder %s30, %s33
      %p39 = scmp.eq.s32.totalorder %s20, 0
      %p40 = por %p38, %p39
      %p41 = scmp.ne.s32.totalorder %s30, %s33
      %p42 = scmp.eq.s32.totalorder %s25, 1
      %p43 = por %p41, %p42
      %p44 = scmp.ne.s32.totalorder %s33, %s34
      %p45 = scmp.eq.s32.totalorder %s25, 0
      %p46 = por %p44, %p45
      %p47 = scmp.ne.s32.totalorder %s33, %s34
      %p48 = scmp.eq.s32.totalorder %s26, 1
      %p49 = por %p47, %p48
      %p51 = scmp.ne.s32.totalorder %s34, %s50
      %p52 = scmp.eq.s32.totalorder %s26, 0
      %p53 = por %p51, %p52
      %s55 = sadd.s32 %s54, 1
      %p58 = scmp.eq.s32.totalorder %s20, 1
      %p59 = scmp.ne.s32.totalorder %s54, %s56
      %p60 = scmp.eq.s32.totalorder %s20, 0
      %p61 = por %p59, %p60
      %p62 = scmp.ne.s32.totalorder %s54, %s56
      %p63 = scmp.eq.s32.totalorder %s25, 1
      %p64 = por %p62, %p63
      %p65 = scmp.ne.s32.totalorder %s56, %s57
      %p66 = scmp.eq.s32.totalorder %s25, 0
      %p67 = por %p65, %p66
      %p68 = scmp.ne.s32.totalorder %s56, %s57
      %p69 = scmp.eq.s32.totalorder %s26, 1
      %p70 = por %p68, %p69
      %p72 = scmp.ne.s32.totalorder %s57, %s71
      %p73 = scmp.eq.s32.totalorder %s26, 0
      %p74 = por %p72, %p73
      %s75 = ssub.s32 %s20, %s27
      %p76 = scmp.eq.s32.totalorder %s75, 0
      %s78 = sadd.s32 %s77, 1
      %s79 = scalar_select %p76, %s77, %s78
      %p82 = pneg %p76
      %p83 = scmp.eq.s32.totalorder %s20, 1
      %p84 = por %p82, %p83
      %p85 = scmp.ne.s32.totalorder %s77, %s80
      %p86 = scmp.eq.s32.totalorder %s20, 0
      %p87 = por %p85, %p86
      %p88 = scmp.ne.s32.totalorder %s77, %s80
      %p89 = scmp.eq.s32.totalorder %s25, 1
      %p90 = por %p88, %p89
      %p91 = scmp.ne.s32.totalorder %s80, %s81
      %p92 = scmp.eq.s32.totalorder %s25, 0
      %p93 = por %p91, %p92
      %p94 = scmp.ne.s32.totalorder %s80, %s81
      %p95 = scmp.eq.s32.totalorder %s26, 1
      %p96 = por %p94, %p95
      %p98 = scmp.ne.s32.totalorder %s81, %s97
      %p99 = scmp.eq.s32.totalorder %s26, 0
      %p100 = por %p98, %p99
      %s101 = ssub.s32 %s20, %s27
      %p102 = scmp.eq.s32.totalorder %s101, 0
      %s104 = sadd.s32 %s103, 1
      %s105 = scalar_select %p102, %s103, %s104
      %p108 = pneg %p102
      %p109 = scmp.eq.s32.totalorder %s20, 1
      %p110 = por %p108, %p109
      %p111 = scmp.ne.s32.totalorder %s103, %s106
      %p112 = scmp.eq.s32.totalorder %s20, 0
      %p113 = por %p111, %p112
      %p114 = scmp.ne.s32.totalorder %s103, %s106
      %p115 = scmp.eq.s32.totalorder %s25, 1
      %p116 = por %p114, %p115
      %p117 = scmp.ne.s32.totalorder %s106, %s107
      %p118 = scmp.eq.s32.totalorder %s25, 0
      %p119 = por %p117, %p118
      %p120 = scmp.ne.s32.totalorder %s106, %s107
      %p121 = scmp.eq.s32.totalorder %s26, 1
      %p122 = por %p120, %p121
      %p124 = scmp.ne.s32.totalorder %s107, %s123
      %p125 = scmp.eq.s32.totalorder %s26, 0
      %p126 = por %p124, %p125
      %p127 = scmp.le.s32.totalorder 1, %s20
      %p128 = scmp.lt.s32.totalorder %s20, 3
      %p129 = pnand %p127, %p128
      %p130 = pneg %p129
      // Predicated region
      $region9: #{bottleneck_forward.3} parent=5 // pred_check
        _
      $region10: #{bottleneck_forward.3} parent=5 // pred_check_branch
        %132 = sbr.rel (%p129) target = $region12
      $region11: #{bottleneck_forward.3} parent=5 // pred_region
        %s133 = ssub.s32 %s20, 1
        // Predicated region
        $region13: #{bottleneck_forward.3} parent=11 // pred_check
          %p134 = pneg %p67
        $region14: #{bottleneck_forward.3} parent=11 // pred_check_branch
          %136 = sbr.rel (%p134) target = $region16
        $region15: #{bottleneck_forward.3} parent=11 // pred_region
          %s138 = ssub.s32 32, 32
          %139 = vsyncadd [#allocation6], %s138
          %s141 = sshll.u32 [#allocation5], 4
          %s142 = int_to_ptr.vmem [resolvable:$true] %s141
          %144 = dma.hbm_to_vmem [thread:$0]  %s1, 32, %s142, [#allocation6]
        $region16: #{bottleneck_forward.3} parent=11 // pred_fallthru
          _
      $region12: #{bottleneck_forward.3} parent=5 // pred_fallthru
        _
      %p145 = scmp.lt.s32.totalorder %s20, 2
      // Predicated region
      $region17: #{bottleneck_forward.3} parent=5 // pred_check
        %p146 = pneg %p145
      $region18: #{bottleneck_forward.3} parent=5 // pred_check_branch
        %148 = sbr.rel (%p146) target = $region20
      $region19: #{bottleneck_forward.3} parent=5 // pred_region
        // Predicated region
        $region21: #{bottleneck_forward.3} parent=19 // pred_check
          %p149 = pneg %p40
        $region22: #{bottleneck_forward.3} parent=19 // pred_check_branch
          %151 = sbr.rel (%p149) target = $region24
        $region23: #{bottleneck_forward.3} parent=19 // pred_region
          %s152 = sand.u32 %s30, 1
          %s153 = scalar_lea.sflag [#allocation3], %s152
          %s154 = sand.u32 %s30, 1
          %s155 = smul.addr %s154, 256
          %s156 = scalar_lea.vmem [#allocation2], %s155
          %s158 = ssub.s32 4096, 4096
          %159 = vsyncadd %s153, %s158
          %s160 = smul.addr %s20, 32
          %s161 = smul.addr %s160, 128
          %s162 = scalar_lea.hbm %s0, %s161
          %s163 = sshll.u32 %s156, 4
          %s164 = int_to_ptr.vmem [resolvable:$true] %s163
          %169 = dma.hbm_to_vmem [thread:$0]  %s162, 4096, %s164, %s153, 128, 128, 8
        $region24: #{bottleneck_forward.3} parent=19 // pred_fallthru
          _
      $region20: #{bottleneck_forward.3} parent=5 // pred_fallthru
        _
      %p170 = scmp.le.s32.totalorder 1, %s20
      %p171 = scmp.lt.s32.totalorder %s20, 3
      %p172 = pnand %p170, %p171
      %p173 = pneg %p172
      // Predicated region
      $region25: #{bottleneck_forward.3} parent=5 // pred_check
        _
      $region26: #{bottleneck_forward.3} parent=5 // pred_check_branch
        %175 = sbr.rel (%p172) target = $region28
      $region27: #{bottleneck_forward.3} parent=5 // pred_region
        %s176 = ssub.s32 %s20, 1
        %s177 = sand.u32 %s33, 1
        %s178 = scalar_lea.sflag [#allocation3], %s177
        %s179 = sand.u32 %s33, 1
        %s180 = smul.addr %s179, 256
        %s181 = scalar_lea.vmem [#allocation2], %s180
        // Predicated region
        $region29: #{bottleneck_forward.3} parent=27 // pred_check
          %p182 = pneg %p46
        $region30: #{bottleneck_forward.3} parent=27 // pred_check_branch
          %184 = sbr.rel (%p182) target = $region32
        $region31: #{bottleneck_forward.3} parent=27 // pred_region
          %185 = dma.done %s178, 4096
        $region32: #{bottleneck_forward.3} parent=27 // pred_fallthru
          _
        // Predicated region
        $region33: #{bottleneck_forward.3} parent=27 // pred_check
          %p186 = pneg %p67
        $region34: #{bottleneck_forward.3} parent=27 // pred_check_branch
          %188 = sbr.rel (%p186) target = $region36
        $region35: #{bottleneck_forward.3} parent=27 // pred_region
          %189 = dma.done [#allocation6], 32
        $region36: #{bottleneck_forward.3} parent=27 // pred_fallthru
          _
        %s190 = sand.u32 %s33, 1
        %s191 = scalar_lea.sflag [#allocation3], %s190
        %s192 = sand.u32 %s33, 1
        %s193 = smul.addr %s192, 256
        %s194 = scalar_lea.vmem [#allocation2], %s193
        %p195 = pneg %p46
        %p196 = pneg %p43
        %p197 = pneg %p67
        %p198 = pneg %p64
        %p199 = pneg %p93
        %p200 = pneg %p90
        %s201 = sand.u32 %s80, 1
        %s202 = scalar_lea.sflag [#allocation4], %s201
        %s203 = sand.u32 %s80, 1
        %s204 = scalar_lea.vmem [#allocation7], %s203
        %p205 = pneg %p119
        %p206 = pneg %p116
        %s207 = sand.u32 %s106, 1
        %s208 = scalar_lea.sflag [#allocation9], %s207
        %s209 = sand.u32 %s106, 1
        %s210 = scalar_lea.vmem [#allocation8], %s209
        %v212 = vld [vmem:[%s181] sm:$0xff]
        %v213 = vld [vmem:[%s181 + $0x8] sm:$0xff]
        %v214 = vld [vmem:[%s181 + $0x10] sm:$0xff]
        %v215 = vld [vmem:[%s181 + $0x18] sm:$0xff]
        %v216 = vld [vmem:[%s181 + $0x20] sm:$0xff]
        %v217 = vld [vmem:[%s181 + $0x28] sm:$0xff]
        %v218 = vld [vmem:[%s181 + $0x30] sm:$0xff]
        %v219 = vld [vmem:[%s181 + $0x38] sm:$0xff]
        %v220 = vld [vmem:[%s181 + $0x40] sm:$0xff]
        %v221 = vld [vmem:[%s181 + $0x48] sm:$0xff]
        %v222 = vld [vmem:[%s181 + $0x50] sm:$0xff]
        %v223 = vld [vmem:[%s181 + $0x58] sm:$0xff]
        %v224 = vld [vmem:[%s181 + $0x60] sm:$0xff]
        %v225 = vld [vmem:[%s181 + $0x68] sm:$0xff]
        %v226 = vld [vmem:[%s181 + $0x70] sm:$0xff]
        %v227 = vld [vmem:[%s181 + $0x78] sm:$0xff]
        %v228 = vld [vmem:[%s181 + $0x80] sm:$0xff]
        %v229 = vld [vmem:[%s181 + $0x88] sm:$0xff]
        %v230 = vld [vmem:[%s181 + $0x90] sm:$0xff]
        %v231 = vld [vmem:[%s181 + $0x98] sm:$0xff]
        %v232 = vld [vmem:[%s181 + $0xa0] sm:$0xff]
        %v233 = vld [vmem:[%s181 + $0xa8] sm:$0xff]
        %v234 = vld [vmem:[%s181 + $0xb0] sm:$0xff]
        %v235 = vld [vmem:[%s181 + $0xb8] sm:$0xff]
        %v236 = vld [vmem:[%s181 + $0xc0] sm:$0xff]
        %v237 = vld [vmem:[%s181 + $0xc8] sm:$0xff]
        %v238 = vld [vmem:[%s181 + $0xd0] sm:$0xff]
        %v239 = vld [vmem:[%s181 + $0xd8] sm:$0xff]
        %v240 = vld [vmem:[%s181 + $0xe0] sm:$0xff]
        %v241 = vld [vmem:[%s181 + $0xe8] sm:$0xff]
        %v242 = vld [vmem:[%s181 + $0xf0] sm:$0xff]
        %v243 = vld [vmem:[%s181 + $0xf8] sm:$0xff]
        %v244 = vpack.c.bf16 %v213, %v212
        %v245 = vpack.c.bf16 %v215, %v214
        %v246 = vpack.c.bf16 %v217, %v216
        %v247 = vpack.c.bf16 %v219, %v218
        %v248 = vpack.c.bf16 %v221, %v220
        %v249 = vpack.c.bf16 %v223, %v222
        %v250 = vpack.c.bf16 %v225, %v224
        %v251 = vpack.c.bf16 %v227, %v226
        %v252 = vpack.c.bf16 %v229, %v228
        %v253 = vpack.c.bf16 %v231, %v230
        %v254 = vpack.c.bf16 %v233, %v232
        %v255 = vpack.c.bf16 %v235, %v234
        %v256 = vpack.c.bf16 %v237, %v236
        %v257 = vpack.c.bf16 %v239, %v238
        %v258 = vpack.c.bf16 %v241, %v240
        %v259 = vpack.c.bf16 %v243, %v242
        %v260 = vld [vmem:[#allocation5] sm:$0x3]
        %vm261 = vcmask 31744
        %v263 = vsel %vm261, %v244, 0
        %v266 = vsel %vm261, %v245, 0
        %v269 = vsel %vm261, %v246, 0
        %v272 = vsel %vm261, %v247, 0
        %v275 = vsel %vm261, %v248, 0
        %v278 = vsel %vm261, %v249, 0
        %v281 = vsel %vm261, %v250, 0
        %v284 = vsel %vm261, %v251, 0
        %v287 = vsel %vm261, %v252, 0
        %v290 = vsel %vm261, %v253, 0
        %v293 = vsel %vm261, %v254, 0
        %v296 = vsel %vm261, %v255, 0
        %v299 = vsel %vm261, %v256, 0
        %v302 = vsel %vm261, %v257, 0
        %v305 = vsel %vm261, %v258, 0
        %v308 = vsel %vm261, %v259, 0
        %vm310 = vcmask 1041408
        %v312 = vsel %vm310, %v260, 0
        %314 = vmatprep.subr.bf16.mxu0 0
        %315 = vmatpush1.bf16.msra.mxu0 %v312
        %316 = vmatprep.subr.bf16.mxu0 0
        %317 = vmatpush1.bf16.msra.mxu0 0
        %318 = vmatprep.subr.bf16.mxu0 0
        %319 = vmatpush1.bf16.msra.mxu0 0
        %320 = vmatprep.subr.bf16.mxu0 0
        %321 = vmatpush1.bf16.msra.mxu0 0
        %322 = vmatprep.subr.bf16.mxu0 0
        %323 = vmatpush1.bf16.msra.mxu0 0
        %324 = vmatprep.subr.bf16.mxu0 0
        %325 = vmatpush1.bf16.msra.mxu0 0
        %326 = vmatprep.subr.bf16.mxu0 0
        %327 = vmatpush1.bf16.msra.mxu0 0
        %328 = vmatprep.subr.bf16.mxu0 0
        %329 = vmatpush1.bf16.msra.mxu0 0
        %330 = vmatprep.subr.bf16.mxu0 0
        %331 = vmatpush1.bf16.msra.mxu0 0
        %332 = vmatprep.subr.bf16.mxu0 0
        %333 = vmatpush1.bf16.msra.mxu0 0
        %334 = vmatprep.subr.bf16.mxu0 0
        %335 = vmatpush1.bf16.msra.mxu0 0
        %336 = vmatprep.subr.bf16.mxu0 0
        %337 = vmatpush1.bf16.msra.mxu0 0
        %338 = vmatprep.subr.bf16.mxu0 0
        %339 = vmatpush1.bf16.msra.mxu0 0
        %340 = vmatprep.subr.bf16.mxu0 0
        %341 = vmatpush1.bf16.msra.mxu0 0
        %342 = vmatprep.subr.bf16.mxu0 0
        %343 = vmatpush1.bf16.msra.mxu0 0
        %344 = vmatprep.subr.bf16.mxu0 0
        %345 = vmatpush1.bf16.msra.mxu0 0
        %346 = vmatprep.mubr.bf16.mxu0 0
        %347 = vmatmul.mubr.bf16.gmra.mrb[0].mxu0 %v263
        %v348 = vpop.f32.mrb[0].mxu0
        %v349 = vadd.f32 0.0, %v348
        %v350 = vpop.f32.mrb[0].mxu0
        %v351 = vpop.f32.mrb[0].mxu0
        %v352 = vadd.f32 0.0, %v351
        %v353 = vpop.f32.mrb[0].mxu0
        %354 = vmatprep.mubr.bf16.mxu0 0
        %355 = vmatmul.mubr.bf16.gmra.mrb[0].mxu0 %v266
        %v356 = vpop.f32.mrb[0].mxu0
        %v357 = vadd.f32 0.0, %v356
        %v358 = vpop.f32.mrb[0].mxu0
        %v359 = vpop.f32.mrb[0].mxu0
        %v360 = vadd.f32 0.0, %v359
        %v361 = vpop.f32.mrb[0].mxu0
        %362 = vmatprep.mubr.bf16.mxu0 0
        %363 = vmatmul.mubr.bf16.gmra.mrb[0].mxu0 %v269
        %v364 = vpop.f32.mrb[0].mxu0
        %v365 = vadd.f32 0.0, %v364
        %v366 = vpop.f32.mrb[0].mxu0
        %v367 = vpop.f32.mrb[0].mxu0
        %v368 = vadd.f32 0.0, %v367
        %v369 = vpop.f32.mrb[0].mxu0
        %370 = vmatprep.mubr.bf16.mxu0 0
        %371 = vmatmul.mubr.bf16.gmra.mrb[0].mxu0 %v272
        %v372 = vpop.f32.mrb[0].mxu0
        %v373 = vadd.f32 0.0, %v372
        %v374 = vpop.f32.mrb[0].mxu0
        %v375 = vpop.f32.mrb[0].mxu0
        %v376 = vadd.f32 0.0, %v375
        %v377 = vpop.f32.mrb[0].mxu0
        %378 = vmatprep.mubr.bf16.mxu0 0
        %379 = vmatmul.mubr.bf16.gmra.mrb[0].mxu0 %v275
        %v380 = vpop.f32.mrb[0].mxu0
        %v381 = vadd.f32 0.0, %v380
        %v382 = vpop.f32.mrb[0].mxu0
        %v383 = vpop.f32.mrb[0].mxu0
        %v384 = vadd.f32 0.0, %v383
        %v385 = vpop.f32.mrb[0].mxu0
        %386 = vmatprep.mubr.bf16.mxu0 0
        %387 = vmatmul.mubr.bf16.gmra.mrb[0].mxu0 %v278
        %v388 = vpop.f32.mrb[0].mxu0
        %v389 = vadd.f32 0.0, %v388
        %v390 = vpop.f32.mrb[0].mxu0
        %v391 = vpop.f32.mrb[0].mxu0
        %v392 = vadd.f32 0.0, %v391
        %v393 = vpop.f32.mrb[0].mxu0
        %394 = vmatprep.mubr.bf16.mxu0 0
        %395 = vmatmul.mubr.bf16.gmra.mrb[0].mxu0 %v281
        %v396 = vpop.f32.mrb[0].mxu0
        %v397 = vadd.f32 0.0, %v396
        %v398 = vpop.f32.mrb[0].mxu0
        %v399 = vpop.f32.mrb[0].mxu0
        %v400 = vadd.f32 0.0, %v399
        %v401 = vpop.f32.mrb[0].mxu0
        %402 = vmatprep.mubr.bf16.mxu0 0
        %403 = vmatmul.mubr.bf16.gmra.mrb[0].mxu0 %v284
        %v404 = vpop.f32.mrb[0].mxu0
        %v405 = vadd.f32 0.0, %v404
        %v406 = vpop.f32.mrb[0].mxu0
        %v407 = vpop.f32.mrb[0].mxu0
        %v408 = vadd.f32 0.0, %v407
        %v409 = vpop.f32.mrb[0].mxu0
        %410 = vmatprep.mubr.bf16.mxu0 0
        %411 = vmatmul.mubr.bf16.gmra.mrb[0].mxu0 %v287
        %v412 = vpop.f32.mrb[0].mxu0
        %v413 = vadd.f32 0.0, %v412
        %v414 = vpop.f32.mrb[0].mxu0
        %v415 = vpop.f32.mrb[0].mxu0
        %v416 = vadd.f32 0.0, %v415
        %v417 = vpop.f32.mrb[0].mxu0
        %418 = vmatprep.mubr.bf16.mxu0 0
        %419 = vmatmul.mubr.bf16.gmra.mrb[0].mxu0 %v290
        %v420 = vpop.f32.mrb[0].mxu0
        %v421 = vadd.f32 0.0, %v420
        %v422 = vpop.f32.mrb[0].mxu0
        %v423 = vpop.f32.mrb[0].mxu0
        %v424 = vadd.f32 0.0, %v423
        %v425 = vpop.f32.mrb[0].mxu0
        %426 = vmatprep.mubr.bf16.mxu0 0
        %427 = vmatmul.mubr.bf16.gmra.mrb[0].mxu0 %v293
        %v428 = vpop.f32.mrb[0].mxu0
        %v429 = vadd.f32 0.0, %v428
        %v430 = vpop.f32.mrb[0].mxu0
        %v431 = vpop.f32.mrb[0].mxu0
        %v432 = vadd.f32 0.0, %v431
        %v433 = vpop.f32.mrb[0].mxu0
        %434 = vmatprep.mubr.bf16.mxu0 0
        %435 = vmatmul.mubr.bf16.gmra.mrb[0].mxu0 %v296
        %v436 = vpop.f32.mrb[0].mxu0
        %v437 = vadd.f32 0.0, %v436
        %v438 = vpop.f32.mrb[0].mxu0
        %v439 = vpop.f32.mrb[0].mxu0
        %v440 = vadd.f32 0.0, %v439
        %v441 = vpop.f32.mrb[0].mxu0
        %442 = vmatprep.mubr.bf16.mxu0 0
        %443 = vmatmul.mubr.bf16.gmra.mrb[0].mxu0 %v299
        %v444 = vpop.f32.mrb[0].mxu0
        %v445 = vadd.f32 0.0, %v444
        %v446 = vpop.f32.mrb[0].mxu0
        %v447 = vpop.f32.mrb[0].mxu0
        %v448 = vadd.f32 0.0, %v447
        %v449 = vpop.f32.mrb[0].mxu0
        %450 = vmatprep.mubr.bf16.mxu0 0
        %451 = vmatmul.mubr.bf16.gmra.mrb[0].mxu0 %v302
        %v452 = vpop.f32.mrb[0].mxu0
        %v453 = vadd.f32 0.0, %v452
        %v454 = vpop.f32.mrb[0].mxu0
        %v455 = vpop.f32.mrb[0].mxu0
        %v456 = vadd.f32 0.0, %v455
        %v457 = vpop.f32.mrb[0].mxu0
        %458 = vmatprep.mubr.bf16.mxu0 0
        %459 = vmatmul.mubr.bf16.gmra.mrb[0].mxu0 %v305
        %v460 = vpop.f32.mrb[0].mxu0
        %v461 = vadd.f32 0.0, %v460
        %v462 = vpop.f32.mrb[0].mxu0
        %v463 = vpop.f32.mrb[0].mxu0
        %v464 = vadd.f32 0.0, %v463
        %v465 = vpop.f32.mrb[0].mxu0
        %466 = vmatprep.mubr.bf16.mxu0 0
        %467 = vmatmul.mubr.bf16.gmra.mrb[0].mxu0 %v308
        %v468 = vpop.f32.mrb[0].mxu0
        %v469 = vadd.f32 0.0, %v468
        %v470 = vpop.f32.mrb[0].mxu0
        %v471 = vpop.f32.mrb[0].mxu0
        %v472 = vadd.f32 0.0, %v471
        %v473 = vpop.f32.mrb[0].mxu0
        %474 = vdwg.mxu0
        %vm475 = vcmask 130048
        %v476 = vsel %vm475, %v349, 0.0
        %v477 = vsel %vm475, %v352, 0.0
        %v478 = vadd.f32 %v476, %v477
        %v479 = vsel %vm475, %v357, 0.0
        %v480 = vadd.f32 %v478, %v479
        %v481 = vsel %vm475, %v360, 0.0
        %v482 = vadd.f32 %v480, %v481
        %v483 = vsel %vm475, %v365, 0.0
        %v484 = vadd.f32 %v482, %v483
        %v485 = vsel %vm475, %v368, 0.0
        %v486 = vadd.f32 %v484, %v485
        %v487 = vsel %vm475, %v373, 0.0
        %v488 = vadd.f32 %v486, %v487
        %v489 = vsel %vm475, %v376, 0.0
        %v490 = vadd.f32 %v488, %v489
        %v491 = vsel %vm475, %v381, 0.0
        %v492 = vadd.f32 %v490, %v491
        %v493 = vsel %vm475, %v384, 0.0
        %v494 = vadd.f32 %v492, %v493
        %v495 = vsel %vm475, %v389, 0.0
        %v496 = vadd.f32 %v494, %v495
        %v497 = vsel %vm475, %v392, 0.0
        %v498 = vadd.f32 %v496, %v497
        %v499 = vsel %vm475, %v397, 0.0
        %v500 = vadd.f32 %v498, %v499
        %v501 = vsel %vm475, %v400, 0.0
        %v502 = vadd.f32 %v500, %v501
        %v503 = vsel %vm475, %v405, 0.0
        %v504 = vadd.f32 %v502, %v503
        %v505 = vsel %vm475, %v408, 0.0
        %v506 = vadd.f32 %v504, %v505
        %v507 = vsel %vm475, %v413, 0.0
        %v508 = vadd.f32 %v506, %v507
        %v509 = vsel %vm475, %v416, 0.0
        %v510 = vadd.f32 %v508, %v509
        %v511 = vsel %vm475, %v421, 0.0
        %v512 = vadd.f32 %v510, %v511
        %v513 = vsel %vm475, %v424, 0.0
        %v514 = vadd.f32 %v512, %v513
        %v515 = vsel %vm475, %v429, 0.0
        %v516 = vadd.f32 %v514, %v515
        %v517 = vsel %vm475, %v432, 0.0
        %v518 = vadd.f32 %v516, %v517
        %v519 = vsel %vm475, %v437, 0.0
        %v520 = vadd.f32 %v518, %v519
        %v521 = vsel %vm475, %v440, 0.0
        %v522 = vadd.f32 %v520, %v521
        %v523 = vsel %vm475, %v445, 0.0
        %v524 = vadd.f32 %v522, %v523
        %v525 = vsel %vm475, %v448, 0.0
        %v526 = vadd.f32 %v524, %v525
        %v527 = vsel %vm475, %v453, 0.0
        %v528 = vadd.f32 %v526, %v527
        %v529 = vsel %vm475, %v456, 0.0
        %v530 = vadd.f32 %v528, %v529
        %v531 = vsel %vm475, %v461, 0.0
        %v532 = vadd.f32 %v530, %v531
        %v533 = vsel %vm475, %v464, 0.0
        %v534 = vadd.f32 %v532, %v533
        %v535 = vsel %vm475, %v469, 0.0
        %v536 = vadd.f32 %v534, %v535
        %v537 = vsel %vm475, %v472, 0.0
        %v538 = vadd.f32 %v536, %v537
        %v539 = vrot.slane %v538, 4
        %v540 = vadd.f32 %v538, %v539
        %v541 = vrot.slane %v540, 2
        %v542 = vadd.f32 %v540, %v541
        %v543 = vrot.slane %v542, 1
        %v544 = vadd.f32 %v542, %v543
        %vm545 = vcmask 122880
        %546 = vst.msk [vmem:[%s204] sm:$0x1] %vm545, %v544
        %v547 = vmul.f32 %v349, %v349
        %v548 = vmul.f32 %v352, %v352
        %v549 = vmul.f32 %v357, %v357
        %v550 = vmul.f32 %v360, %v360
        %v551 = vmul.f32 %v365, %v365
        %v552 = vmul.f32 %v368, %v368
        %v553 = vmul.f32 %v373, %v373
        %v554 = vmul.f32 %v376, %v376
        %v555 = vmul.f32 %v381, %v381
        %v556 = vmul.f32 %v384, %v384
        %v557 = vmul.f32 %v389, %v389
        %v558 = vmul.f32 %v392, %v392
        %v559 = vmul.f32 %v397, %v397
        %v560 = vmul.f32 %v400, %v400
        %v561 = vmul.f32 %v405, %v405
        %v562 = vmul.f32 %v408, %v408
        %v563 = vmul.f32 %v413, %v413
        %v564 = vmul.f32 %v416, %v416
        %v565 = vmul.f32 %v421, %v421
        %v566 = vmul.f32 %v424, %v424
        %v567 = vmul.f32 %v429, %v429
        %v568 = vmul.f32 %v432, %v432
        %v569 = vmul.f32 %v437, %v437
        %v570 = vmul.f32 %v440, %v440
        %v571 = vmul.f32 %v445, %v445
        %v572 = vmul.f32 %v448, %v448
        %v573 = vmul.f32 %v453, %v453
        %v574 = vmul.f32 %v456, %v456
        %v575 = vmul.f32 %v461, %v461
        %v576 = vmul.f32 %v464, %v464
        %v577 = vmul.f32 %v469, %v469
        %v578 = vmul.f32 %v472, %v472
        %v579 = vsel %vm475, %v547, 0.0
        %v580 = vsel %vm475, %v548, 0.0
        %v581 = vadd.f32 %v579, %v580
        %v582 = vsel %vm475, %v549, 0.0
        %v583 = vadd.f32 %v581, %v582
        %v584 = vsel %vm475, %v550, 0.0
        %v585 = vadd.f32 %v583, %v584
        %v586 = vsel %vm475, %v551, 0.0
        %v587 = vadd.f32 %v585, %v586
        %v588 = vsel %vm475, %v552, 0.0
        %v589 = vadd.f32 %v587, %v588
        %v590 = vsel %vm475, %v553, 0.0
        %v591 = vadd.f32 %v589, %v590
        %v592 = vsel %vm475, %v554, 0.0
        %v593 = vadd.f32 %v591, %v592
        %v594 = vsel %vm475, %v555, 0.0
        %v595 = vadd.f32 %v593, %v594
        %v596 = vsel %vm475, %v556, 0.0
        %v597 = vadd.f32 %v595, %v596
        %v598 = vsel %vm475, %v557, 0.0
        %v599 = vadd.f32 %v597, %v598
        %v600 = vsel %vm475, %v558, 0.0
        %v601 = vadd.f32 %v599, %v600
        %v602 = vsel %vm475, %v559, 0.0
        %v603 = vadd.f32 %v601, %v602
        %v604 = vsel %vm475, %v560, 0.0
        %v605 = vadd.f32 %v603, %v604
        %v606 = vsel %vm475, %v561, 0.0
        %v607 = vadd.f32 %v605, %v606
        %v608 = vsel %vm475, %v562, 0.0
        %v609 = vadd.f32 %v607, %v608
        %v610 = vsel %vm475, %v563, 0.0
        %v611 = vadd.f32 %v609, %v610
        %v612 = vsel %vm475, %v564, 0.0
        %v613 = vadd.f32 %v611, %v612
        %v614 = vsel %vm475, %v565, 0.0
        %v615 = vadd.f32 %v613, %v614
        %v616 = vsel %vm475, %v566, 0.0
        %v617 = vadd.f32 %v615, %v616
        %v618 = vsel %vm475, %v567, 0.0
        %v619 = vadd.f32 %v617, %v618
        %v620 = vsel %vm475, %v568, 0.0
        %v621 = vadd.f32 %v619, %v620
        %v622 = vsel %vm475, %v569, 0.0
        %v623 = vadd.f32 %v621, %v622
        %v624 = vsel %vm475, %v570, 0.0
        %v625 = vadd.f32 %v623, %v624
        %v626 = vsel %vm475, %v571, 0.0
        %v627 = vadd.f32 %v625, %v626
        %v628 = vsel %vm475, %v572, 0.0
        %v629 = vadd.f32 %v627, %v628
        %v630 = vsel %vm475, %v573, 0.0
        %v631 = vadd.f32 %v629, %v630
        %v632 = vsel %vm475, %v574, 0.0
        %v633 = vadd.f32 %v631, %v632
        %v634 = vsel %vm475, %v575, 0.0
        %v635 = vadd.f32 %v633, %v634
        %v636 = vsel %vm475, %v576, 0.0
        %v637 = vadd.f32 %v635, %v636
        %v638 = vsel %vm475, %v577, 0.0
        %v639 = vadd.f32 %v637, %v638
        %v640 = vsel %vm475, %v578, 0.0
        %v641 = vadd.f32 %v639, %v640
        %v642 = vrot.slane %v641, 4
        %v643 = vadd.f32 %v641, %v642
        %v644 = vrot.slane %v643, 2
        %v645 = vadd.f32 %v643, %v644
        %v646 = vrot.slane %v645, 1
        %v647 = vadd.f32 %v645, %v646
        %648 = vst.msk [vmem:[%s210] sm:$0x1] %vm545, %v647
        %s649 = sand.u32 %s80, 1
        %s650 = scalar_lea.sflag [#allocation4], %s649
        %s651 = sand.u32 %s80, 1
        %s652 = scalar_lea.vmem [#allocation7], %s651
        %s653 = sand.u32 %s106, 1
        %s654 = scalar_lea.sflag [#allocation9], %s653
        %s655 = sand.u32 %s106, 1
        %s656 = scalar_lea.vmem [#allocation8], %s655
        // Predicated region
        $region37: #{bottleneck_forward.3} parent=27 // pred_check
          %p657 = pneg %p90
        $region38: #{bottleneck_forward.3} parent=27 // pred_check_branch
          %659 = sbr.rel (%p657) target = $region40
        $region39: #{bottleneck_forward.3} parent=27 // pred_region
          %s661 = ssub.s32 16, 16
          %662 = vsyncadd %s650, %s661
          %s663 = smul.addr %s25, 16
          %s664 = scalar_lea.hbm %s2, %s663
          %s666 = sshll.u32 %s652, 4
          %s667 = int_to_ptr.vmem [resolvable:$true] %s666
          %669 = dma.vmem_to_hbm [thread:$0]  %s667, 16, %s664, %s650
        $region40: #{bottleneck_forward.3} parent=27 // pred_fallthru
          _
        // Predicated region
        $region41: #{bottleneck_forward.3} parent=27 // pred_check
          %p670 = pneg %p116
        $region42: #{bottleneck_forward.3} parent=27 // pred_check_branch
          %672 = sbr.rel (%p670) target = $region44
        $region43: #{bottleneck_forward.3} parent=27 // pred_region
          %s674 = ssub.s32 16, 16
          %675 = vsyncadd %s654, %s674
          %s676 = smul.addr %s25, 16
          %s677 = scalar_lea.hbm %s3, %s676
          %s679 = sshll.u32 %s656, 4
          %s680 = int_to_ptr.vmem [resolvable:$true] %s679
          %682 = dma.vmem_to_hbm [thread:$0]  %s680, 16, %s677, %s654
        $region44: #{bottleneck_forward.3} parent=27 // pred_fallthru
          _
      $region28: #{bottleneck_forward.3} parent=5 // pred_fallthru
        _
      %p683 = scmp.le.s32.totalorder 2, %s20
      // Predicated region
      $region45: #{bottleneck_forward.3} parent=5 // pred_check
        %p684 = pneg %p683
      $region46: #{bottleneck_forward.3} parent=5 // pred_check_branch
        %686 = sbr.rel (%p684) target = $region48
      $region47: #{bottleneck_forward.3} parent=5 // pred_region
        %s687 = ssub.s32 %s20, 2
        // Predicated region
        $region49: #{bottleneck_forward.3} parent=47 // pred_check
          %p688 = pneg %p96
        $region50: #{bottleneck_forward.3} parent=47 // pred_check_branch
          %690 = sbr.rel (%p688) target = $region52
        $region51: #{bottleneck_forward.3} parent=47 // pred_region
          %s691 = sand.u32 %s81, 1
          %s692 = scalar_lea.sflag [#allocation4], %s691
          %s693 = sand.u32 %s81, 1
          %s694 = scalar_lea.vmem [#allocation7], %s693
          %695 = dma.done %s692, 16
        $region52: #{bottleneck_forward.3} parent=47 // pred_fallthru
          _
        // Predicated region
        $region53: #{bottleneck_forward.3} parent=47 // pred_check
          %p696 = pneg %p122
        $region54: #{bottleneck_forward.3} parent=47 // pred_check_branch
          %698 = sbr.rel (%p696) target = $region56
        $region55: #{bottleneck_forward.3} parent=47 // pred_region
          %s699 = sand.u32 %s107, 1
          %s700 = scalar_lea.sflag [#allocation9], %s699
          %s701 = sand.u32 %s107, 1
          %s702 = scalar_lea.vmem [#allocation8], %s701
          %703 = dma.done %s700, 16
        $region56: #{bottleneck_forward.3} parent=47 // pred_fallthru
          _
      $region48: #{bottleneck_forward.3} parent=5 // pred_fallthru
        _
    $region6: #{bottleneck_forward.3} parent=1 // loop_footer
      %s24 = sadd.s32 1, %s20
    $region7: #{bottleneck_forward.3} parent=1 // loop_footer_branch
      %19 = sbr.rel target = $region3
    $region8: #{bottleneck_forward.3} parent=1 // loop_exit
      _
    %704 = vsyncpa [#allocation3], 1
    %s705 = scalar_lea.sflag [#allocation3], 1
    %706 = vsyncpa %s705, 1
    %707 = vsyncpa [#allocation6], 1
    %708 = vsyncpa [#allocation4], 1
    %s709 = scalar_lea.sflag [#allocation4], 1
    %710 = vsyncpa %s709, 1
    %711 = vsyncpa [#allocation9], 1
    %s712 = scalar_lea.sflag [#allocation9], 1
    %713 = vsyncpa %s712, 1

// kernel: bottleneck_forward.5
$region0: #{bottleneck_forward.5}
  #allocation0 [shape = 'u32[]', space=smem, size = 0x4, offset = 0x4, fixed_abs, tag = 'smem constant byte address 0x4 - core index']
  #allocation1 [shape = 'u32[144,128]{1,0:T(1,128)}', space=vmem, size = 0x12000, scoped, tag = 'internal scratch']
  %s0 = inlined_call_operand.hbm [shape: bf16[2,64,16], index: 0, kind: input, shape index: {}]
  %s1 = inlined_call_operand.hbm [shape: bf16[2,64,4], index: 1, kind: input, shape index: {}]
  %s2 = inlined_call_operand.hbm [shape: f32[2,1,16], index: 2, kind: input, shape index: {}]
  %s3 = inlined_call_operand.hbm [shape: f32[2,1,16], index: 3, kind: input, shape index: {}]
  %s4 = inlined_call_operand.hbm [shape: bf16[8,16], index: 4, kind: input, shape index: {}]
  %s5 = inlined_call_operand.hbm [shape: bf16[8,4], index: 5, kind: input, shape index: {}]
  %s6 = inlined_call_operand.hbm [shape: f32[8,1], index: 6, kind: input, shape index: {}]
  %s7 = inlined_call_operand.hbm [shape: f32[2,8,64], index: 7, kind: output, shape index: {}]
  %s8 = sld [smem:[#allocation0]]
  $region89: #{bottleneck_forward.5} parent=0
    _
  %s10 = ssub.s32 1, %s8
  %s11 = scalar_select 0, %s10, %s8
  $region1: #{bottleneck_forward.5} parent=0
    #allocation2 [shape = 'u8[32768]{0}', space=vmem, size = 0x8000, scoped, tag = 'input window, operand 0']
    #allocation3 [shape = 's32[2]{0}', space=sflag, size = 0x8, scoped, tag = 'scoped memory for bottleneck_forward.5']
    #allocation4 [shape = 's32[2]{0}', space=sflag, size = 0x8, scoped, tag = 'scoped memory for bottleneck_forward.5']
    #allocation5 [shape = 'u8[32768]{0}', space=vmem, size = 0x8000, scoped, tag = 'input window, operand 1']
    #allocation6 [shape = 's32[2]{0}', space=sflag, size = 0x8, scoped, tag = 'scoped memory for bottleneck_forward.5']
    #allocation7 [shape = 'u8[1024]{0}', space=vmem, size = 0x400, scoped, tag = 'input window, operand 2']
    #allocation8 [shape = 'u8[1024]{0}', space=vmem, size = 0x400, scoped, tag = 'input window, operand 3']
    #allocation9 [shape = 's32[2]{0}', space=sflag, size = 0x8, scoped, tag = 'scoped memory for bottleneck_forward.5']
    #allocation10 [shape = 'u8[2048]{0}', space=vmem, size = 0x800, scoped, tag = 'input window, operand 4, single buffered']
    #allocation11 [shape = 'u8[2048]{0}', space=vmem, size = 0x800, scoped, tag = 'input window, operand 5, single buffered']
    #allocation12 [shape = 's32[1]{0}', space=sflag, size = 0x4, scoped, tag = 'scoped memory for bottleneck_forward.5']
    #allocation13 [shape = 'u8[4096]{0}', space=vmem, size = 0x1000, scoped, tag = 'input window, operand 6, single buffered']
    #allocation14 [shape = 'u8[8192]{0}', space=vmem, size = 0x2000, scoped, tag = 'output window, operand 0']
    %12 = vsyncpa [#allocation3], 0
    %s13 = scalar_lea.sflag [#allocation3], 1
    %14 = vsyncpa %s13, 0
    %15 = vsyncpa [#allocation6], 0
    %s16 = scalar_lea.sflag [#allocation6], 1
    %17 = vsyncpa %s16, 0
    %18 = vsyncpa [#allocation9], 0
    %s19 = scalar_lea.sflag [#allocation9], 1
    %20 = vsyncpa %s19, 0
    %21 = vsyncpa [#allocation12], 0
    %22 = vsyncpa [#allocation4], 0
    %s23 = scalar_lea.sflag [#allocation4], 1
    %24 = vsyncpa %s23, 0
    loop: start=0, step=1, limit=4
    $region2: #{bottleneck_forward.5} parent=1 // loop_pre_header
      _
    $region3: #{bottleneck_forward.5} parent=1 // loop_header
      %s26 = sphi 0, %s30
      %p27 = scmp.ge.s32.totalorder %s26, 4
      %s33 = sphi 0, %s45
      %s34 = sphi 0, %s41
      %s35 = sphi 0, %s33
      %s36 = sphi 0, %s34
      %s37 = sphi 0, %s35
      %s38 = sphi 0, %s36
      %s50 = sphi 0, %s52
      %s53 = sphi 0, %s50
      %s54 = sphi 0, %s53
      %s70 = sphi 0, %s54
      %s78 = sphi 0, %s80
      %s81 = sphi 0, %s78
      %s82 = sphi 0, %s81
      %s98 = sphi 0, %s82
      %s104 = sphi 0, %s106
      %s107 = sphi 0, %s104
      %s108 = sphi 0, %s107
      %s124 = sphi 0, %s108
      %s130 = sphi 0, %s132
      %s133 = sphi 0, %s130
      %s134 = sphi 0, %s133
      %s150 = sphi 0, %s134
      %s154 = sphi 0, %s154
      %s156 = sphi 0, %s154
      %s157 = sphi 0, %s156
      %s171 = sphi 0, %s157
      %s175 = sphi 0, %s175
      %s177 = sphi 0, %s175
      %s178 = sphi 0, %s177
      %s192 = sphi 0, %s178
      %s196 = sphi 0, %s196
      %s198 = sphi 0, %s196
      %s199 = sphi 0, %s198
      %s213 = sphi 0, %s199
      %s221 = sphi 0, %s223
      %s224 = sphi 0, %s221
      %s225 = sphi 0, %s224
      %s241 = sphi 0, %s225
    $region4: #{bottleneck_forward.5} parent=1 // loop_header_branch
      %29 = sbr.rel (%p27) target = $region8
    $region5: #{bottleneck_forward.5} parent=1 // loop_body
      %s31 = ssub.s32 %s26, 1
      %s32 = ssub.s32 %s26, 2
      %s39 = sadd.s32 1, %s34
      %p40 = scmp.ge.s32.totalorder %s39, 1
      %s41 = scalar_select %p40, 0, %s39
      %s42 = sadd.s32 1, %s33
      %s43 = scalar_select %p40, %s42, %s33
      %p44 = scmp.ge.s32.totalorder %s43, 2
      %s45 = scalar_select %p44, 0, %s43
      %s46 = ssub.s32 %s33, %s45
      %s47 = ssub.s32 %s34, %s41
      %s48 = sor.u32 %s46, %s47
      %p49 = scmp.eq.s32.totalorder %s48, 0
      %s51 = sadd.s32 %s50, 1
      %s52 = scalar_select %p49, %s50, %s51
      %p55 = pneg %p49
      %p56 = scmp.eq.s32.totalorder %s26, 1
      %p57 = por %p55, %p56
      %p58 = scmp.ne.s32.totalorder %s50, %s53
      %p59 = scmp.eq.s32.totalorder %s26, 0
      %p60 = por %p58, %p59
      %p61 = scmp.ne.s32.totalorder %s50, %s53
      %p62 = scmp.eq.s32.totalorder %s31, 1
      %p63 = por %p61, %p62
      %p64 = scmp.ne.s32.totalorder %s53, %s54
      %p65 = scmp.eq.s32.totalorder %s31, 0
      %p66 = por %p64, %p65
      %p67 = scmp.ne.s32.totalorder %s53, %s54
      %p68 = scmp.eq.s32.totalorder %s32, 1
      %p69 = por %p67, %p68
      %p71 = scmp.ne.s32.totalorder %s54, %s70
      %p72 = scmp.eq.s32.totalorder %s32, 0
      %p73 = por %p71, %p72
      %s74 = ssub.s32 %s33, %s45
      %s75 = ssub.s32 %s34, %s41
      %s76 = sor.u32 %s74, %s75
      %p77 = scmp.eq.s32.totalorder %s76, 0
      %s79 = sadd.s32 %s78, 1
      %s80 = scalar_select %p77, %s78, %s79
      %p83 = pneg %p77
      %p84 = scmp.eq.s32.totalorder %s26, 1
      %p85 = por %p83, %p84
      %p86 = scmp.ne.s32.totalorder %s78, %s81
      %p87 = scmp.eq.s32.totalorder %s26, 0
      %p88 = por %p86, %p87
      %p89 = scmp.ne.s32.totalorder %s78, %s81
      %p90 = scmp.eq.s32.totalorder %s31, 1
      %p91 = por %p89, %p90
      %p92 = scmp.ne.s32.totalorder %s81, %s82
      %p93 = scmp.eq.s32.totalorder %s31, 0
      %p94 = por %p92, %p93
      %p95 = scmp.ne.s32.totalorder %s81, %s82
      %p96 = scmp.eq.s32.totalorder %s32, 1
      %p97 = por %p95, %p96
      %p99 = scmp.ne.s32.totalorder %s82, %s98
      %p100 = scmp.eq.s32.totalorder %s32, 0
      %p101 = por %p99, %p100
      %s102 = ssub.s32 %s33, %s45
      %p103 = scmp.eq.s32.totalorder %s102, 0
      %s105 = sadd.s32 %s104, 1
      %s106 = scalar_select %p103, %s104, %s105
      %p109 = pneg %p103
      %p110 = scmp.eq.s32.totalorder %s26, 1
      %p111 = por %p109, %p110
      %p112 = scmp.ne.s32.totalorder %s104, %s107
      %p113 = scmp.eq.s32.totalorder %s26, 0
      %p114 = por %p112, %p113
      %p115 = scmp.ne.s32.totalorder %s104, %s107
      %p116 = scmp.eq.s32.totalorder %s31, 1
      %p117 = por %p115, %p116
      %p118 = scmp.ne.s32.totalorder %s107, %s108
      %p119 = scmp.eq.s32.totalorder %s31, 0
      %p120 = por %p118, %p119
      %p121 = scmp.ne.s32.totalorder %s107, %s108
      %p122 = scmp.eq.s32.totalorder %s32, 1
      %p123 = por %p121, %p122
      %p125 = scmp.ne.s32.totalorder %s108, %s124
      %p126 = scmp.eq.s32.totalorder %s32, 0
      %p127 = por %p125, %p126
      %s128 = ssub.s32 %s33, %s45
      %p129 = scmp.eq.s32.totalorder %s128, 0
      %s131 = sadd.s32 %s130, 1
      %s132 = scalar_select %p129, %s130, %s131
      %p135 = pneg %p129
      %p136 = scmp.eq.s32.totalorder %s26, 1
      %p137 = por %p135, %p136
      %p138 = scmp.ne.s32.totalorder %s130, %s133
      %p139 = scmp.eq.s32.totalorder %s26, 0
      %p140 = por %p138, %p139
      %p141 = scmp.ne.s32.totalorder %s130, %s133
      %p142 = scmp.eq.s32.totalorder %s31, 1
      %p143 = por %p141, %p142
      %p144 = scmp.ne.s32.totalorder %s133, %s134
      %p145 = scmp.eq.s32.totalorder %s31, 0
      %p146 = por %p144, %p145
      %p147 = scmp.ne.s32.totalorder %s133, %s134
      %p148 = scmp.eq.s32.totalorder %s32, 1
      %p149 = por %p147, %p148
      %p151 = scmp.ne.s32.totalorder %s134, %s150
      %p152 = scmp.eq.s32.totalorder %s32, 0
      %p153 = por %p151, %p152
      %s155 = sadd.s32 %s154, 1
      %p158 = scmp.eq.s32.totalorder %s26, 1
      %p159 = scmp.ne.s32.totalorder %s154, %s156
      %p160 = scmp.eq.s32.totalorder %s26, 0
      %p161 = por %p159, %p160
      %p162 = scmp.ne.s32.totalorder %s154, %s156
      %p163 = scmp.eq.s32.totalorder %s31, 1
      %p164 = por %p162, %p163
      %p165 = scmp.ne.s32.totalorder %s156, %s157
      %p166 = scmp.eq.s32.totalorder %s31, 0
      %p167 = por %p165, %p166
      %p168 = scmp.ne.s32.totalorder %s156, %s157
      %p169 = scmp.eq.s32.totalorder %s32, 1
      %p170 = por %p168, %p169
      %p172 = scmp.ne.s32.totalorder %s157, %s171
      %p173 = scmp.eq.s32.totalorder %s32, 0
      %p174 = por %p172, %p173
      %s176 = sadd.s32 %s175, 1
      %p179 = scmp.eq.s32.totalorder %s26, 1
      %p180 = scmp.ne.s32.totalorder %s175, %s177
      %p181 = scmp.eq.s32.totalorder %s26, 0
      %p182 = por %p180, %p181
      %p183 = scmp.ne.s32.totalorder %s175, %s177
      %p184 = scmp.eq.s32.totalorder %s31, 1
      %p185 = por %p183, %p184
      %p186 = scmp.ne.s32.totalorder %s177, %s178
      %p187 = scmp.eq.s32.totalorder %s31, 0
      %p188 = por %p186, %p187
      %p189 = scmp.ne.s32.totalorder %s177, %s178
      %p190 = scmp.eq.s32.totalorder %s32, 1
      %p191 = por %p189, %p190
      %p193 = scmp.ne.s32.totalorder %s178, %s192
      %p194 = scmp.eq.s32.totalorder %s32, 0
      %p195 = por %p193, %p194
      %s197 = sadd.s32 %s196, 1
      %p200 = scmp.eq.s32.totalorder %s26, 1
      %p201 = scmp.ne.s32.totalorder %s196, %s198
      %p202 = scmp.eq.s32.totalorder %s26, 0
      %p203 = por %p201, %p202
      %p204 = scmp.ne.s32.totalorder %s196, %s198
      %p205 = scmp.eq.s32.totalorder %s31, 1
      %p206 = por %p204, %p205
      %p207 = scmp.ne.s32.totalorder %s198, %s199
      %p208 = scmp.eq.s32.totalorder %s31, 0
      %p209 = por %p207, %p208
      %p210 = scmp.ne.s32.totalorder %s198, %s199
      %p211 = scmp.eq.s32.totalorder %s32, 1
      %p212 = por %p210, %p211
      %p214 = scmp.ne.s32.totalorder %s199, %s213
      %p215 = scmp.eq.s32.totalorder %s32, 0
      %p216 = por %p214, %p215
      %s217 = ssub.s32 %s33, %s45
      %s218 = ssub.s32 %s34, %s41
      %s219 = sor.u32 %s217, %s218
      %p220 = scmp.eq.s32.totalorder %s219, 0
      %s222 = sadd.s32 %s221, 1
      %s223 = scalar_select %p220, %s221, %s222
      %p226 = pneg %p220
      %p227 = scmp.eq.s32.totalorder %s26, 1
      %p228 = por %p226, %p227
      %p229 = scmp.ne.s32.totalorder %s221, %s224
      %p230 = scmp.eq.s32.totalorder %s26, 0
      %p231 = por %p229, %p230
      %p232 = scmp.ne.s32.totalorder %s221, %s224
      %p233 = scmp.eq.s32.totalorder %s31, 1
      %p234 = por %p232, %p233
      %p235 = scmp.ne.s32.totalorder %s224, %s225
      %p236 = scmp.eq.s32.totalorder %s31, 0
      %p237 = por %p235, %p236
      %p238 = scmp.ne.s32.totalorder %s224, %s225
      %p239 = scmp.eq.s32.totalorder %s32, 1
      %p240 = por %p238, %p239
      %p242 = scmp.ne.s32.totalorder %s225, %s241
      %p243 = scmp.eq.s32.totalorder %s32, 0
      %p244 = por %p242, %p243
      %p245 = scmp.le.s32.totalorder 1, %s26
      %p246 = scmp.lt.s32.totalorder %s26, 3
      %p247 = pnand %p245, %p246
      %p248 = pneg %p247
      // Predicated region
      $region9: #{bottleneck_forward.5} parent=5 // pred_check
        _
      $region10: #{bottleneck_forward.5} parent=5 // pred_check_branch
        %250 = sbr.rel (%p247) target = $region12
      $region11: #{bottleneck_forward.5} parent=5 // pred_region
        %s251 = ssub.s32 %s26, 1
        // Predicated region
        $region13: #{bottleneck_forward.5} parent=11 // pred_check
          %p252 = pneg %p167
        $region14: #{bottleneck_forward.5} parent=11 // pred_check_branch
          %254 = sbr.rel (%p252) target = $region16
        $region15: #{bottleneck_forward.5} parent=11 // pred_region
          %s256 = ssub.s32 64, 64
          %257 = vsyncadd [#allocation9], %s256
          %s259 = sshll.u32 [#allocation10], 4
          %s260 = int_to_ptr.vmem [resolvable:$true] %s259
          %262 = dma.hbm_to_vmem [thread:$0]  %s4, 64, %s260, [#allocation9]
        $region16: #{bottleneck_forward.5} parent=11 // pred_fallthru
          _
        // Predicated region
        $region17: #{bottleneck_forward.5} parent=11 // pred_check
          %p263 = pneg %p188
        $region18: #{bottleneck_forward.5} parent=11 // pred_check_branch
          %265 = sbr.rel (%p263) target = $region20
        $region19: #{bottleneck_forward.5} parent=11 // pred_region
          %s267 = ssub.s32 64, 64
          %268 = vsyncadd [#allocation12], %s267
          %s270 = sshll.u32 [#allocation11], 4
          %s271 = int_to_ptr.vmem [resolvable:$true] %s270
          %273 = dma.hbm_to_vmem [thread:$0]  %s5, 64, %s271, [#allocation12]
        $region20: #{bottleneck_forward.5} parent=11 // pred_fallthru
          _
        // Predicated region
        $region21: #{bottleneck_forward.5} parent=11 // pred_check
          %p274 = pneg %p209
        $region22: #{bottleneck_forward.5} parent=11 // pred_check_branch
          %276 = sbr.rel (%p274) target = $region24
        $region23: #{bottleneck_forward.5} parent=11 // pred_region
          %s278 = ssub.s32 128, 128
          %279 = vsyncadd [#allocation12], %s278
          %s281 = sshll.u32 [#allocation13], 4
          %s282 = int_to_ptr.vmem [resolvable:$true] %s281
          %284 = dma.hbm_to_vmem [thread:$0]  %s6, 128, %s282, [#allocation12]
        $region24: #{bottleneck_forward.5} parent=11 // pred_fallthru
          _
      $region12: #{bottleneck_forward.5} parent=5 // pred_fallthru
        _
      %p285 = scmp.lt.s32.totalorder %s26, 2
      // Predicated region
      $region25: #{bottleneck_forward.5} parent=5 // pred_check
        %p286 = pneg %p285
      $region26: #{bottleneck_forward.5} parent=5 // pred_check_branch
        %288 = sbr.rel (%p286) target = $region28
      $region27: #{bottleneck_forward.5} parent=5 // pred_region
        // Predicated region
        $region29: #{bottleneck_forward.5} parent=27 // pred_check
          %p289 = pneg %p60
        $region30: #{bottleneck_forward.5} parent=27 // pred_check_branch
          %291 = sbr.rel (%p289) target = $region32
        $region31: #{bottleneck_forward.5} parent=27 // pred_region
          %s292 = sand.u32 %s50, 1
          %s293 = scalar_lea.sflag [#allocation3], %s292
          %s294 = sand.u32 %s50, 1
          %s295 = smul.addr %s294, 32
          %s296 = scalar_lea.vmem [#allocation2], %s295
          %s297 = smul.u32 8, %s34
          %s299 = ssub.s32 512, 512
          %300 = vsyncadd %s293, %s299
          %s301 = smul.addr %s33, 8
          %s302 = sadd.s32 %s297, %s301
          %s303 = smul.addr %s302, 64
          %s304 = scalar_lea.hbm %s0, %s303
          %s305 = sshll.u32 %s296, 4
          %s306 = int_to_ptr.vmem [resolvable:$true] %s305
          %311 = dma.hbm_to_vmem [thread:$0]  %s304, 512, %s306, %s293, 64, 64, 4
        $region32: #{bottleneck_forward.5} parent=27 // pred_fallthru
          _
        // Predicated region
        $region33: #{bottleneck_forward.5} parent=27 // pred_check
          %p312 = pneg %p88
        $region34: #{bottleneck_forward.5} parent=27 // pred_check_branch
          %314 = sbr.rel (%p312) target = $region36
        $region35: #{bottleneck_forward.5} parent=27 // pred_region
          %s315 = sand.u32 %s26, 1
          %s316 = scalar_lea.sflag [#allocation6], %s315
          %s317 = sand.u32 %s78, 1
          %s318 = smul.addr %s317, 32
          %s319 = scalar_lea.vmem [#allocation5], %s318
          %s320 = smul.u32 8, %s34
          %s322 = ssub.s32 512, 512
          %323 = vsyncadd %s316, %s322
          %s324 = smul.addr %s33, 8
          %s325 = sadd.s32 %s320, %s324
          %s326 = smul.addr %s325, 64
          %s327 = scalar_lea.hbm %s1, %s326
          %s328 = sshll.u32 %s319, 4
          %s329 = int_to_ptr.vmem [resolvable:$true] %s328
          %334 = dma.hbm_to_vmem [thread:$0]  %s327, 512, %s329, %s316, 64, 64, 4
        $region36: #{bottleneck_forward.5} parent=27 // pred_fallthru
          _
        // Predicated region
        $region37: #{bottleneck_forward.5} parent=27 // pred_check
          %p335 = pneg %p114
        $region38: #{bottleneck_forward.5} parent=27 // pred_check_branch
          %337 = sbr.rel (%p335) target = $region40
        $region39: #{bottleneck_forward.5} parent=27 // pred_region
          %s338 = sand.u32 %s26, 1
          %s339 = scalar_lea.sflag [#allocation6], %s338
          %s340 = sand.u32 %s104, 1
          %s341 = scalar_lea.vmem [#allocation7], %s340
          %s343 = ssub.s32 16, 16
          %344 = vsyncadd %s339, %s343
          %s345 = smul.addr %s33, 16
          %s346 = scalar_lea.hbm %s2, %s345
          %s348 = sshll.u32 %s341, 4
          %s349 = int_to_ptr.vmem [resolvable:$true] %s348
          %351 = dma.hbm_to_vmem [thread:$0]  %s346, 16, %s349, %s339
        $region40: #{bottleneck_forward.5} parent=27 // pred_fallthru
          _
        // Predicated region
        $region41: #{bottleneck_forward.5} parent=27 // pred_check
          %p352 = pneg %p140
        $region42: #{bottleneck_forward.5} parent=27 // pred_check_branch
          %354 = sbr.rel (%p352) target = $region44
        $region43: #{bottleneck_forward.5} parent=27 // pred_region
          %s355 = sand.u32 %s26, 1
          %s356 = scalar_lea.sflag [#allocation9], %s355
          %s357 = sand.u32 %s130, 1
          %s358 = scalar_lea.vmem [#allocation8], %s357
          %s360 = ssub.s32 16, 16
          %361 = vsyncadd %s356, %s360
          %s362 = smul.addr %s33, 16
          %s363 = scalar_lea.hbm %s3, %s362
          %s365 = sshll.u32 %s358, 4
          %s366 = int_to_ptr.vmem [resolvable:$true] %s365
          %368 = dma.hbm_to_vmem [thread:$0]  %s363, 16, %s366, %s356
        $region44: #{bottleneck_forward.5} parent=27 // pred_fallthru
          _
      $region28: #{bottleneck_forward.5} parent=5 // pred_fallthru
        _
      %p369 = scmp.le.s32.totalorder 1, %s26
      %p370 = scmp.lt.s32.totalorder %s26, 3
      %p371 = pnand %p369, %p370
      %p372 = pneg %p371
      // Predicated region
      $region45: #{bottleneck_forward.5} parent=5 // pred_check
        _
      $region46: #{bottleneck_forward.5} parent=5 // pred_check_branch
        %374 = sbr.rel (%p371) target = $region48
      $region47: #{bottleneck_forward.5} parent=5 // pred_region
        %s375 = ssub.s32 %s26, 1
        %s376 = sand.u32 %s53, 1
        %s377 = scalar_lea.sflag [#allocation3], %s376
        %s378 = sand.u32 %s53, 1
        %s379 = smul.addr %s378, 32
        %s380 = scalar_lea.vmem [#allocation2], %s379
        // Predicated region
        $region49: #{bottleneck_forward.5} parent=47 // pred_check
          %p381 = pneg %p66
        $region50: #{bottleneck_forward.5} parent=47 // pred_check_branch
          %383 = sbr.rel (%p381) target = $region52
        $region51: #{bottleneck_forward.5} parent=47 // pred_region
          %384 = dma.done %s377, 512
        $region52: #{bottleneck_forward.5} parent=47 // pred_fallthru
          _
        %s385 = sand.u32 %s31, 1
        %s386 = scalar_lea.sflag [#allocation6], %s385
        %s387 = sand.u32 %s81, 1
        %s388 = smul.addr %s387, 32
        %s389 = scalar_lea.vmem [#allocation5], %s388
        // Predicated region
        $region53: #{bottleneck_forward.5} parent=47 // pred_check
          %p390 = pneg %p94
        $region54: #{bottleneck_forward.5} parent=47 // pred_check_branch
          %392 = sbr.rel (%p390) target = $region56
        $region55: #{bottleneck_forward.5} parent=47 // pred_region
          %393 = dma.done %s386, 512
        $region56: #{bottleneck_forward.5} parent=47 // pred_fallthru
          _
        %s394 = sand.u32 %s31, 1
        %s395 = scalar_lea.sflag [#allocation6], %s394
        %s396 = sand.u32 %s107, 1
        %s397 = scalar_lea.vmem [#allocation7], %s396
        // Predicated region
        $region57: #{bottleneck_forward.5} parent=47 // pred_check
          %p398 = pneg %p120
        $region58: #{bottleneck_forward.5} parent=47 // pred_check_branch
          %400 = sbr.rel (%p398) target = $region60
        $region59: #{bottleneck_forward.5} parent=47 // pred_region
          %401 = dma.done %s395, 16
        $region60: #{bottleneck_forward.5} parent=47 // pred_fallthru
          _
        %s402 = sand.u32 %s31, 1
        %s403 = scalar_lea.sflag [#allocation9], %s402
        %s404 = sand.u32 %s133, 1
        %s405 = scalar_lea.vmem [#allocation8], %s404
        // Predicated region
        $region61: #{bottleneck_forward.5} parent=47 // pred_check
          %p406 = pneg %p146
        $region62: #{bottleneck_forward.5} parent=47 // pred_check_branch
          %408 = sbr.rel (%p406) target = $region64
        $region63: #{bottleneck_forward.5} parent=47 // pred_region
          %409 = dma.done %s403, 16
        $region64: #{bottleneck_forward.5} parent=47 // pred_fallthru
          _
        // Predicated region
        $region65: #{bottleneck_forward.5} parent=47 // pred_check
          %p410 = pneg %p167
        $region66: #{bottleneck_forward.5} parent=47 // pred_check_branch
          %412 = sbr.rel (%p410) target = $region68
        $region67: #{bottleneck_forward.5} parent=47 // pred_region
          %413 = dma.done [#allocation9], 64
        $region68: #{bottleneck_forward.5} parent=47 // pred_fallthru
          _
        // Predicated region
        $region69: #{bottleneck_forward.5} parent=47 // pred_check
          %p414 = pneg %p188
        $region70: #{bottleneck_forward.5} parent=47 // pred_check_branch
          %416 = sbr.rel (%p414) target = $region72
        $region71: #{bottleneck_forward.5} parent=47 // pred_region
          %417 = dma.done [#allocation12], 64
        $region72: #{bottleneck_forward.5} parent=47 // pred_fallthru
          _
        // Predicated region
        $region73: #{bottleneck_forward.5} parent=47 // pred_check
          %p418 = pneg %p209
        $region74: #{bottleneck_forward.5} parent=47 // pred_check_branch
          %420 = sbr.rel (%p418) target = $region76
        $region75: #{bottleneck_forward.5} parent=47 // pred_region
          %421 = dma.done [#allocation12], 128
        $region76: #{bottleneck_forward.5} parent=47 // pred_fallthru
          _
        %s422 = sand.u32 %s53, 1
        %s423 = scalar_lea.sflag [#allocation3], %s422
        %s424 = sand.u32 %s53, 1
        %s425 = smul.addr %s424, 32
        %s426 = scalar_lea.vmem [#allocation2], %s425
        %p427 = pneg %p66
        %p428 = pneg %p63
        %s429 = sand.u32 %s31, 1
        %s430 = scalar_lea.sflag [#allocation6], %s429
        %s431 = sand.u32 %s81, 1
        %s432 = smul.addr %s431, 32
        %s433 = scalar_lea.vmem [#allocation5], %s432
        %p434 = pneg %p94
        %p435 = pneg %p91
        %s436 = sand.u32 %s31, 1
        %s437 = scalar_lea.sflag [#allocation6], %s436
        %s438 = sand.u32 %s107, 1
        %s439 = scalar_lea.vmem [#allocation7], %s438
        %p440 = pneg %p120
        %p441 = pneg %p117
        %s442 = sand.u32 %s31, 1
        %s443 = scalar_lea.sflag [#allocation9], %s442
        %s444 = sand.u32 %s133, 1
        %s445 = scalar_lea.vmem [#allocation8], %s444
        %p446 = pneg %p146
        %p447 = pneg %p143
        %p448 = pneg %p167
        %p449 = pneg %p164
        %p450 = pneg %p188
        %p451 = pneg %p185
        %p452 = pneg %p209
        %p453 = pneg %p206
        %p454 = pneg %p237
        %p455 = pneg %p234
        %s456 = sand.u32 %s224, 1
        %s457 = scalar_lea.sflag [#allocation4], %s456
        %s458 = sand.u32 %s224, 1
        %s459 = smul.addr %s458, 8
        %s460 = scalar_lea.vmem [#allocation14], %s459
        %s461 = smul.u32 8, %s36
        %s462 = smul.u32 8, %s36
        %v464 = vld [vmem:[%s380] sm:$0xf]
        %v465 = vld [vmem:[%s380 + $0x4] sm:$0xf]
        %v466 = vld [vmem:[%s380 + $0x8] sm:$0xf]
        %v467 = vld [vmem:[%s380 + $0xc] sm:$0xf]
        %v468 = vld [vmem:[%s380 + $0x10] sm:$0xf]
        %v469 = vld [vmem:[%s380 + $0x14] sm:$0xf]
        %v470 = vld [vmem:[%s380 + $0x18] sm:$0xf]
        %v471 = vld [vmem:[%s380 + $0x1c] sm:$0xf]
        %v472 = vunpack.c.l.bf16 %v464
        %v473 = vunpack.c.l.bf16 %v465
        %v474 = vunpack.c.l.bf16 %v466
        %v475 = vunpack.c.l.bf16 %v467
        %v476 = vunpack.c.l.bf16 %v468
        %v477 = vunpack.c.l.bf16 %v469
        %v478 = vunpack.c.l.bf16 %v470
        %v479 = vunpack.c.l.bf16 %v471
        %v480 = vld [vmem:[%s397] sm:$0x1]
        %v482 = vlaneseq
        %v483 = vshrl.u32 %v482, 7
        %v484 = vsub.s32 0, %v483
        %v485 = vrot.slane %v480, %v484
        %v487 = vmul.f32 %v472, %v485
        %v488 = vmul.f32 %v473, %v485
        %v489 = vmul.f32 %v474, %v485
        %v490 = vmul.f32 %v475, %v485
        %v491 = vmul.f32 %v476, %v485
        %v492 = vmul.f32 %v477, %v485
        %v493 = vmul.f32 %v478, %v485
        %v494 = vmul.f32 %v479, %v485
        %v495 = vld [vmem:[%s405] sm:$0x1]
        %v497 = vlaneseq
        %v498 = vshrl.u32 %v497, 7
        %v499 = vsub.s32 0, %v498
        %v500 = vrot.slane %v495, %v499
        %v502 = vadd.f32 %v487, %v500
        %v503 = vadd.f32 %v488, %v500
        %v504 = vadd.f32 %v489, %v500
        %v505 = vadd.f32 %v490, %v500
        %v506 = vadd.f32 %v491, %v500
        %v507 = vadd.f32 %v492, %v500
        %v508 = vadd.f32 %v493, %v500
        %v509 = vadd.f32 %v494, %v500
        %v510 = vld [vmem:[#allocation10] sm:$0xf]
        %v511 = vpack.c.bf16 %v503, %v502
        %v512 = vpack.c.bf16 %v505, %v504
        %v513 = vpack.c.bf16 %v507, %v506
        %v514 = vpack.c.bf16 %v509, %v508
        %v515 = vld [vmem:[#allocation11] sm:$0xf]
        %v516 = vld [vmem:[%s389] sm:$0xf]
        %v517 = vld [vmem:[%s389 + $0x4] sm:$0xf]
        %v518 = vld [vmem:[%s389 + $0x8] sm:$0xf]
        %v519 = vld [vmem:[%s389 + $0xc] sm:$0xf]
        %v520 = vld [vmem:[%s389 + $0x10] sm:$0xf]
        %v521 = vld [vmem:[%s389 + $0x14] sm:$0xf]
        %v522 = vld [vmem:[%s389 + $0x18] sm:$0xf]
        %v523 = vld [vmem:[%s389 + $0x1c] sm:$0xf]
        %v532 = vunpack.c.l.b16 %v516
        %v533 = vunpack.c.l.b16 %v517
        %v534 = vunpack.c.l.b16 %v518
        %v535 = vunpack.c.l.b16 %v519
        %v536 = vunpack.c.l.b16 %v520
        %v537 = vunpack.c.l.b16 %v521
        %v538 = vunpack.c.l.b16 %v522
        %v539 = vunpack.c.l.b16 %v523
        %v540 = vpack.c.b16 %v533, %v532
        %v541 = vpack.c.b16 %v535, %v534
        %v542 = vpack.c.b16 %v537, %v536
        %v543 = vpack.c.b16 %v539, %v538
        %vm544 = vcmask 31744
        %v546 = vsel %vm544, %v515, 0
        %v549 = vsel %vm544, %v540, 0
        %v552 = vsel %vm544, %v541, 0
        %v555 = vsel %vm544, %v542, 0
        %v558 = vsel %vm544, %v543, 0
        %560 = vmatprep.subr.bf16.mxu0 0
        %561 = vmatpush1.bf16.xpose.msra.mxu0 %v549
        %562 = vmatprep.subr.bf16.mxu0 0
        %563 = vmatpush1.bf16.xpose.msra.mxu0 %v552
        %564 = vmatprep.subr.bf16.mxu0 0
        %565 = vmatpush1.bf16.xpose.msra.mxu0 %v555
        %566 = vmatprep.subr.bf16.mxu0 0
        %567 = vmatpush1.bf16.xpose.msra.mxu0 %v558
        %568 = vmatprep.subr.bf16.mxu0 0
        %569 = vmatpush1.bf16.xpose.msra.mxu0 0
        %570 = vmatprep.subr.bf16.mxu0 0
        %571 = vmatpush1.bf16.xpose.msra.mxu0 0
        %572 = vmatprep.subr.bf16.mxu0 0
        %573 = vmatpush1.bf16.xpose.msra.mxu0 0
        %574 = vmatprep.subr.bf16.mxu0 0
        %575 = vmatpush1.bf16.xpose.msra.mxu0 0
        %576 = vmatprep.subr.bf16.mxu0 0
        %577 = vmatpush1.bf16.xpose.msra.mxu0 0
        %578 = vmatprep.subr.bf16.mxu0 0
        %579 = vmatpush1.bf16.xpose.msra.mxu0 0
        %580 = vmatprep.subr.bf16.mxu0 0
        %581 = vmatpush1.bf16.xpose.msra.mxu0 0
        %582 = vmatprep.subr.bf16.mxu0 0
        %583 = vmatpush1.bf16.xpose.msra.mxu0 0
        %584 = vmatprep.subr.bf16.mxu0 0
        %585 = vmatpush1.bf16.xpose.msra.mxu0 0
        %586 = vmatprep.subr.bf16.mxu0 0
        %587 = vmatpush1.bf16.xpose.msra.mxu0 0
        %588 = vmatprep.subr.bf16.mxu0 0
        %589 = vmatpush1.bf16.xpose.msra.mxu0 0
        %590 = vmatprep.subr.bf16.mxu0 0
        %591 = vmatpush1.bf16.xpose.msra.mxu0 0
        %592 = vmatprep.mubr.bf16.mxu0 0
        %593 = vmatmul.mubr.bf16.gmra.mrb[0].mxu0 %v546
        %v594 = vpop.f32.mrb[0].mxu0
        %v595 = vadd.f32 0.0, %v594
        %v596 = vpop.f32.mrb[0].mxu0
        %v597 = vpop.f32.mrb[0].mxu0
        %v598 = vpop.f32.mrb[0].mxu0
        %599 = vdwg.mxu0
        %v600 = vld [vmem:[#allocation13] sm:$0xff]
        %602 = vset.pattern.permute.xlu0 0
        %603 = vperm.xlu0 %602, %v600
        %v604 = vpop.permute.xlu0 %603
        %vm606 = vcmask 130048
        %v608 = vsel %vm606, %v510, 0
        %v611 = vsel %vm606, %v511, 0
        %v614 = vsel %vm606, %v512, 0
        %v617 = vsel %vm606, %v513, 0
        %v620 = vsel %vm606, %v514, 0
        %622 = vmatprep.subr.bf16.mxu0 0
        %623 = vmatpush1.bf16.xpose.msra.mxu0 %v611
        %624 = vmatprep.subr.bf16.mxu0 0
        %625 = vmatpush1.bf16.xpose.msra.mxu0 %v614
        %626 = vmatprep.subr.bf16.mxu0 0
        %627 = vmatpush1.bf16.xpose.msra.mxu0 %v617
        %628 = vmatprep.subr.bf16.mxu0 0
        %629 = vmatpush1.bf16.xpose.msra.mxu0 %v620
        %630 = vmatprep.subr.bf16.mxu0 0
        %631 = vmatpush1.bf16.xpose.msra.mxu0 0
        %632 = vmatprep.subr.bf16.mxu0 0
        %633 = vmatpush1.bf16.xpose.msra.mxu0 0
        %634 = vmatprep.subr.bf16.mxu0 0
        %635 = vmatpush1.bf16.xpose.msra.mxu0 0
        %636 = vmatprep.subr.bf16.mxu0 0
        %637 = vmatpush1.bf16.xpose.msra.mxu0 0
        %638 = vmatprep.subr.bf16.mxu0 0
        %639 = vmatpush1.bf16.xpose.msra.mxu0 0
        %640 = vmatprep.subr.bf16.mxu0 0
        %641 = vmatpush1.bf16.xpose.msra.mxu0 0
        %642 = vmatprep.subr.bf16.mxu0 0
        %643 = vmatpush1.bf16.xpose.msra.mxu0 0
        %644 = vmatprep.subr.bf16.mxu0 0
        %645 = vmatpush1.bf16.xpose.msra.mxu0 0
        %646 = vmatprep.subr.bf16.mxu0 0
        %647 = vmatpush1.bf16.xpose.msra.mxu0 0
        %648 = vmatprep.subr.bf16.mxu0 0
        %649 = vmatpush1.bf16.xpose.msra.mxu0 0
        %650 = vmatprep.subr.bf16.mxu0 0
        %651 = vmatpush1.bf16.xpose.msra.mxu0 0
        %652 = vmatprep.subr.bf16.mxu0 0
        %653 = vmatpush1.bf16.xpose.msra.mxu0 0
        %654 = vmatprep.mubr.bf16.mxu0 0
        %655 = vmatmul.mubr.bf16.gmra.mrb[0].mxu0 %v608
        %v656 = vpop.f32.mrb[0].mxu0
        %v657 = vadd.f32 %v604, %v656
        %v658 = vpop.f32.mrb[0].mxu0
        %v659 = vpop.f32.mrb[0].mxu0
        %v660 = vpop.f32.mrb[0].mxu0
        %661 = vdwg.mxu0
        %v662 = vadd.f32 %v657, %v595
        %vm663 = vcmask 523264
        %664 = vst.msk [vmem:[%s460] sm:$0xff] %vm663, %v662
        %s665 = sand.u32 %s224, 1
        %s666 = scalar_lea.sflag [#allocation4], %s665
        %s667 = sand.u32 %s224, 1
        %s668 = smul.addr %s667, 8
        %s669 = scalar_lea.vmem [#allocation14], %s668
        // Predicated region
        $region77: #{bottleneck_forward.5} parent=47 // pred_check
          %p670 = pneg %p234
        $region78: #{bottleneck_forward.5} parent=47 // pred_check_branch
          %672 = sbr.rel (%p670) target = $region80
        $region79: #{bottleneck_forward.5} parent=47 // pred_region
          %s674 = ssub.s32 128, 128
          %675 = vsyncadd %s666, %s674
          %s676 = sadd.s32 %s36, %s35
          %s677 = smul.addr %s676, 128
          %s678 = scalar_lea.hbm %s7, %s677
          %s680 = sshll.u32 %s669, 4
          %s681 = int_to_ptr.vmem [resolvable:$true] %s680
          %683 = dma.vmem_to_hbm [thread:$0]  %s681, 128, %s678, %s666
        $region80: #{bottleneck_forward.5} parent=47 // pred_fallthru
          _
      $region48: #{bottleneck_forward.5} parent=5 // pred_fallthru
        _
      %p684 = scmp.le.s32.totalorder 2, %s26
      // Predicated region
      $region81: #{bottleneck_forward.5} parent=5 // pred_check
        %p685 = pneg %p684
      $region82: #{bottleneck_forward.5} parent=5 // pred_check_branch
        %687 = sbr.rel (%p685) target = $region84
      $region83: #{bottleneck_forward.5} parent=5 // pred_region
        %s688 = ssub.s32 %s26, 2
        // Predicated region
        $region85: #{bottleneck_forward.5} parent=83 // pred_check
          %p689 = pneg %p240
        $region86: #{bottleneck_forward.5} parent=83 // pred_check_branch
          %691 = sbr.rel (%p689) target = $region88
        $region87: #{bottleneck_forward.5} parent=83 // pred_region
          %s692 = sand.u32 %s225, 1
          %s693 = scalar_lea.sflag [#allocation4], %s692
          %s694 = sand.u32 %s225, 1
          %s695 = smul.addr %s694, 8
          %s696 = scalar_lea.vmem [#allocation14], %s695
          %697 = dma.done %s693, 128
        $region88: #{bottleneck_forward.5} parent=83 // pred_fallthru
          _
      $region84: #{bottleneck_forward.5} parent=5 // pred_fallthru
        _
    $region6: #{bottleneck_forward.5} parent=1 // loop_footer
      %s30 = sadd.s32 1, %s26
    $region7: #{bottleneck_forward.5} parent=1 // loop_footer_branch
      %25 = sbr.rel target = $region3
    $region8: #{bottleneck_forward.5} parent=1 // loop_exit
      _
    %698 = vsyncpa [#allocation3], 1
    %s699 = scalar_lea.sflag [#allocation3], 1
    %700 = vsyncpa %s699, 1
    %701 = vsyncpa [#allocation6], 1
    %s702 = scalar_lea.sflag [#allocation6], 1
    %703 = vsyncpa %s702, 1
    %704 = vsyncpa [#allocation9], 1
    %s705 = scalar_lea.sflag [#allocation9], 1
    %706 = vsyncpa %s705, 1
    %707 = vsyncpa [#allocation12], 1
    %708 = vsyncpa [#allocation4], 1
    %s709 = scalar_lea.sflag [#allocation4], 1
    %710 = vsyncpa %s709, 1

// kernel: bottleneck_forward.4
$region0: #{bottleneck_forward.4}
  #allocation0 [shape = 'u32[]', space=smem, size = 0x4, offset = 0x4, fixed_abs, tag = 'smem constant byte address 0x4 - core index']
  #allocation1 [shape = 'u32[144,128]{1,0:T(1,128)}', space=vmem, size = 0x12000, scoped, tag = 'internal scratch']
  #allocation2 [shape = 'f32[272,16]{1,0:T(8,128)}', space=vmem, size = 0x22000, scoped, tag = 'scratch operand']
  %s0 = inlined_call_operand.hbm [shape: f32[2,256,4], index: 0, kind: input, shape index: {}]
  %s1 = inlined_call_operand.hbm [shape: bf16[4,16], index: 1, kind: input, shape index: {}]
  %s2 = inlined_call_operand.hbm [shape: f32[1,16], index: 2, kind: input, shape index: {}]
  %s3 = inlined_call_operand.hbm [shape: f32[9,16], index: 3, kind: input, shape index: {}]
  %s4 = inlined_call_operand.hbm [shape: f32[8,16], index: 4, kind: input, shape index: {}]
  %s5 = inlined_call_operand.hbm [shape: bf16[2,64,16], index: 5, kind: output, shape index: {0}]
  %s6 = inlined_call_operand.hbm [shape: f32[2,1,16], index: 6, kind: output, shape index: {1}]
  %s7 = inlined_call_operand.hbm [shape: f32[2,16,16], index: 7, kind: output, shape index: {2}]
  %s8 = inlined_call_operand.hbm [shape: bf16[2,64,4], index: 8, kind: output, shape index: {3}]
  %9 = xla_tuple %s5, %s6, %s7, %s8
  %s10 = sld [smem:[#allocation0]]
  $region97: #{bottleneck_forward.4} parent=0
    _
  %s12 = ssub.s32 1, %s10
  %s13 = scalar_select 0, %s12, %s10
  $region1: #{bottleneck_forward.4} parent=0
    #allocation3 [shape = 'u8[262144]{0}', space=vmem, size = 0x40000, scoped, tag = 'input window, operand 0']
    #allocation4 [shape = 's32[2]{0}', space=sflag, size = 0x8, scoped, tag = 'scoped memory for bottleneck_forward.4']
    #allocation5 [shape = 's32[2]{0}', space=sflag, size = 0x8, scoped, tag = 'scoped memory for bottleneck_forward.4']
    #allocation6 [shape = 'u8[1024]{0}', space=vmem, size = 0x400, scoped, tag = 'input window, operand 1, single buffered']
    #allocation7 [shape = 's32[1]{0}', space=sflag, size = 0x4, scoped, tag = 'scoped memory for bottleneck_forward.4']
    #allocation8 [shape = 'u8[512]{0}', space=vmem, size = 0x400, scoped, tag = 'input window, operand 2, single buffered']
    #allocation9 [shape = 'u8[8192]{0}', space=vmem, size = 0x2000, scoped, tag = 'input window, operand 3, single buffered']
    #allocation10 [shape = 's32[1]{0}', space=sflag, size = 0x4, scoped, tag = 'scoped memory for bottleneck_forward.4']
    #allocation11 [shape = 'u8[4096]{0}', space=vmem, size = 0x1000, scoped, tag = 'input window, operand 4, single buffered']
    #allocation12 [shape = 'u8[32768]{0}', space=vmem, size = 0x8000, scoped, tag = 'output window, operand 0']
    #allocation13 [shape = 'u8[1024]{0}', space=vmem, size = 0x400, scoped, tag = 'output window, operand 1']
    #allocation14 [shape = 's32[2]{0}', space=sflag, size = 0x8, scoped, tag = 'scoped memory for bottleneck_forward.4']
    #allocation15 [shape = 'u8[16384]{0}', space=vmem, size = 0x4000, scoped, tag = 'output window, operand 2']
    #allocation16 [shape = 'u8[32768]{0}', space=vmem, size = 0x8000, scoped, tag = 'output window, operand 3']
    #allocation17 [shape = 's32[2]{0}', space=sflag, size = 0x8, scoped, tag = 'scoped memory for bottleneck_forward.4']
    %14 = vsyncpa [#allocation4], 0
    %s15 = scalar_lea.sflag [#allocation4], 1
    %16 = vsyncpa %s15, 0
    %17 = vsyncpa [#allocation7], 0
    %18 = vsyncpa [#allocation10], 0
    %19 = vsyncpa [#allocation5], 0
    %s20 = scalar_lea.sflag [#allocation5], 1
    %21 = vsyncpa %s20, 0
    %22 = vsyncpa [#allocation14], 0
    %s23 = scalar_lea.sflag [#allocation14], 1
    %24 = vsyncpa %s23, 0
    %25 = vsyncpa [#allocation17], 0
    %s26 = scalar_lea.sflag [#allocation17], 1
    %27 = vsyncpa %s26, 0
    loop: start=0, step=1, limit=4
    $region2: #{bottleneck_forward.4} parent=1 // loop_pre_header
      _
    $region3: #{bottleneck_forward.4} parent=1 // loop_header
      %s29 = sphi 0, %s33
      %p30 = scmp.ge.s32.totalorder %s29, 4
      %s39 = sphi 0, %s41
      %s42 = sphi 0, %s39
      %s43 = sphi 0, %s42
      %s59 = sphi 0, %s43
      %s63 = sphi 0, %s63
      %s65 = sphi 0, %s63
      %s66 = sphi 0, %s65
      %s80 = sphi 0, %s66
      %s84 = sphi 0, %s84
      %s86 = sphi 0, %s84
      %s87 = sphi 0, %s86
      %s101 = sphi 0, %s87
      %s105 = sphi 0, %s105
      %s107 = sphi 0, %s105
      %s108 = sphi 0, %s107
      %s122 = sphi 0, %s108
      %s126 = sphi 0, %s126
      %s128 = sphi 0, %s126
      %s129 = sphi 0, %s128
      %s143 = sphi 0, %s129
      %s149 = sphi 0, %s151
      %s152 = sphi 0, %s149
      %s153 = sphi 0, %s152
      %s169 = sphi 0, %s153
      %s175 = sphi 0, %s177
      %s178 = sphi 0, %s175
      %s179 = sphi 0, %s178
      %s195 = sphi 0, %s179
      %s201 = sphi 0, %s203
      %s204 = sphi 0, %s201
      %s205 = sphi 0, %s204
      %s221 = sphi 0, %s205
      %s227 = sphi 0, %s229
      %s230 = sphi 0, %s227
      %s231 = sphi 0, %s230
      %s247 = sphi 0, %s231
    $region4: #{bottleneck_forward.4} parent=1 // loop_header_branch
      %32 = sbr.rel (%p30) target = $region8
    $region5: #{bottleneck_forward.4} parent=1 // loop_body
      %s34 = ssub.s32 %s29, 1
      %s35 = ssub.s32 %s29, 2
      %s36 = sadd.s32 %s29, 1
      %s37 = ssub.s32 %s29, %s36
      %p38 = scmp.eq.s32.totalorder %s37, 0
      %s40 = sadd.s32 %s39, 1
      %s41 = scalar_select %p38, %s39, %s40
      %p44 = pneg %p38
      %p45 = scmp.eq.s32.totalorder %s29, 1
      %p46 = por %p44, %p45
      %p47 = scmp.ne.s32.totalorder %s39, %s42
      %p48 = scmp.eq.s32.totalorder %s29, 0
      %p49 = por %p47, %p48
      %p50 = scmp.ne.s32.totalorder %s39, %s42
      %p51 = scmp.eq.s32.totalorder %s34, 1
      %p52 = por %p50, %p51
      %p53 = scmp.ne.s32.totalorder %s42, %s43
      %p54 = scmp.eq.s32.totalorder %s34, 0
      %p55 = por %p53, %p54
      %p56 = scmp.ne.s32.totalorder %s42, %s43
      %p57 = scmp.eq.s32.totalorder %s35, 1
      %p58 = por %p56, %p57
      %p60 = scmp.ne.s32.totalorder %s43, %s59
      %p61 = scmp.eq.s32.totalorder %s35, 0
      %p62 = por %p60, %p61
      %s64 = sadd.s32 %s63, 1
      %p67 = scmp.eq.s32.totalorder %s29, 1
      %p68 = scmp.ne.s32.totalorder %s63, %s65
      %p69 = scmp.eq.s32.totalorder %s29, 0
      %p70 = por %p68, %p69
      %p71 = scmp.ne.s32.totalorder %s63, %s65
      %p72 = scmp.eq.s32.totalorder %s34, 1
      %p73 = por %p71, %p72
      %p74 = scmp.ne.s32.totalorder %s65, %s66
      %p75 = scmp.eq.s32.totalorder %s34, 0
      %p76 = por %p74, %p75
      %p77 = scmp.ne.s32.totalorder %s65, %s66
      %p78 = scmp.eq.s32.totalorder %s35, 1
      %p79 = por %p77, %p78
      %p81 = scmp.ne.s32.totalorder %s66, %s80
      %p82 = scmp.eq.s32.totalorder %s35, 0
      %p83 = por %p81, %p82
      %s85 = sadd.s32 %s84, 1
      %p88 = scmp.eq.s32.totalorder %s29, 1
      %p89 = scmp.ne.s32.totalorder %s84, %s86
      %p90 = scmp.eq.s32.totalorder %s29, 0
      %p91 = por %p89, %p90
      %p92 = scmp.ne.s32.totalorder %s84, %s86
      %p93 = scmp.eq.s32.totalorder %s34, 1
      %p94 = por %p92, %p93
      %p95 = scmp.ne.s32.totalorder %s86, %s87
      %p96 = scmp.eq.s32.totalorder %s34, 0
      %p97 = por %p95, %p96
      %p98 = scmp.ne.s32.totalorder %s86, %s87
      %p99 = scmp.eq.s32.totalorder %s35, 1
      %p100 = por %p98, %p99
      %p102 = scmp.ne.s32.totalorder %s87, %s101
      %p103 = scmp.eq.s32.totalorder %s35, 0
      %p104 = por %p102, %p103
      %s106 = sadd.s32 %s105, 1
      %p109 = scmp.eq.s32.totalorder %s29, 1
      %p110 = scmp.ne.s32.totalorder %s105, %s107
      %p111 = scmp.eq.s32.totalorder %s29, 0
      %p112 = por %p110, %p111
      %p113 = scmp.ne.s32.totalorder %s105, %s107
      %p114 = scmp.eq.s32.totalorder %s34, 1
      %p115 = por %p113, %p114
      %p116 = scmp.ne.s32.totalorder %s107, %s108
      %p117 = scmp.eq.s32.totalorder %s34, 0
      %p118 = por %p116, %p117
      %p119 = scmp.ne.s32.totalorder %s107, %s108
      %p120 = scmp.eq.s32.totalorder %s35, 1
      %p121 = por %p119, %p120
      %p123 = scmp.ne.s32.totalorder %s108, %s122
      %p124 = scmp.eq.s32.totalorder %s35, 0
      %p125 = por %p123, %p124
      %s127 = sadd.s32 %s126, 1
      %p130 = scmp.eq.s32.totalorder %s29, 1
      %p131 = scmp.ne.s32.totalorder %s126, %s128
      %p132 = scmp.eq.s32.totalorder %s29, 0
      %p133 = por %p131, %p132
      %p134 = scmp.ne.s32.totalorder %s126, %s128
      %p135 = scmp.eq.s32.totalorder %s34, 1
      %p136 = por %p134, %p135
      %p137 = scmp.ne.s32.totalorder %s128, %s129
      %p138 = scmp.eq.s32.totalorder %s34, 0
      %p139 = por %p137, %p138
      %p140 = scmp.ne.s32.totalorder %s128, %s129
      %p141 = scmp.eq.s32.totalorder %s35, 1
      %p142 = por %p140, %p141
      %p144 = scmp.ne.s32.totalorder %s129, %s143
      %p145 = scmp.eq.s32.totalorder %s35, 0
      %p146 = por %p144, %p145
      %s147 = ssub.s32 %s29, %s36
      %p148 = scmp.eq.s32.totalorder %s147, 0
      %s150 = sadd.s32 %s149, 1
      %s151 = scalar_select %p148, %s149, %s150
      %p154 = pneg %p148
      %p155 = scmp.eq.s32.totalorder %s29, 1
      %p156 = por %p154, %p155
      %p157 = scmp.ne.s32.totalorder %s149, %s152
      %p158 = scmp.eq.s32.totalorder %s29, 0
      %p159 = por %p157, %p158
      %p160 = scmp.ne.s32.totalorder %s149, %s152
      %p161 = scmp.eq.s32.totalorder %s34, 1
      %p162 = por %p160, %p161
      %p163 = scmp.ne.s32.totalorder %s152, %s153
      %p164 = scmp.eq.s32.totalorder %s34, 0
      %p165 = por %p163, %p164
      %p166 = scmp.ne.s32.totalorder %s152, %s153
      %p167 = scmp.eq.s32.totalorder %s35, 1
      %p168 = por %p166, %p167
      %p170 = scmp.ne.s32.totalorder %s153, %s169
      %p171 = scmp.eq.s32.totalorder %s35, 0
      %p172 = por %p170, %p171
      %s173 = ssub.s32 %s29, %s36
      %p174 = scmp.eq.s32.totalorder %s173, 0
      %s176 = sadd.s32 %s175, 1
      %s177 = scalar_select %p174, %s175, %s176
      %p180 = pneg %p174
      %p181 = scmp.eq.s32.totalorder %s29, 1
      %p182 = por %p180, %p181
      %p183 = scmp.ne.s32.totalorder %s175, %s178
      %p184 = scmp.eq.s32.totalorder %s29, 0
      %p185 = por %p183, %p184
      %p186 = scmp.ne.s32.totalorder %s175, %s178
      %p187 = scmp.eq.s32.totalorder %s34, 1
      %p188 = por %p186, %p187
      %p189 = scmp.ne.s32.totalorder %s178, %s179
      %p190 = scmp.eq.s32.totalorder %s34, 0
      %p191 = por %p189, %p190
      %p192 = scmp.ne.s32.totalorder %s178, %s179
      %p193 = scmp.eq.s32.totalorder %s35, 1
      %p194 = por %p192, %p193
      %p196 = scmp.ne.s32.totalorder %s179, %s195
      %p197 = scmp.eq.s32.totalorder %s35, 0
      %p198 = por %p196, %p197
      %s199 = ssub.s32 %s29, %s36
      %p200 = scmp.eq.s32.totalorder %s199, 0
      %s202 = sadd.s32 %s201, 1
      %s203 = scalar_select %p200, %s201, %s202
      %p206 = pneg %p200
      %p207 = scmp.eq.s32.totalorder %s29, 1
      %p208 = por %p206, %p207
      %p209 = scmp.ne.s32.totalorder %s201, %s204
      %p210 = scmp.eq.s32.totalorder %s29, 0
      %p211 = por %p209, %p210
      %p212 = scmp.ne.s32.totalorder %s201, %s204
      %p213 = scmp.eq.s32.totalorder %s34, 1
      %p214 = por %p212, %p213
      %p215 = scmp.ne.s32.totalorder %s204, %s205
      %p216 = scmp.eq.s32.totalorder %s34, 0
      %p217 = por %p215, %p216
      %p218 = scmp.ne.s32.totalorder %s204, %s205
      %p219 = scmp.eq.s32.totalorder %s35, 1
      %p220 = por %p218, %p219
      %p222 = scmp.ne.s32.totalorder %s205, %s221
      %p223 = scmp.eq.s32.totalorder %s35, 0
      %p224 = por %p222, %p223
      %s225 = ssub.s32 %s29, %s36
      %p226 = scmp.eq.s32.totalorder %s225, 0
      %s228 = sadd.s32 %s227, 1
      %s229 = scalar_select %p226, %s227, %s228
      %p232 = pneg %p226
      %p233 = scmp.eq.s32.totalorder %s29, 1
      %p234 = por %p232, %p233
      %p235 = scmp.ne.s32.totalorder %s227, %s230
      %p236 = scmp.eq.s32.totalorder %s29, 0
      %p237 = por %p235, %p236
      %p238 = scmp.ne.s32.totalorder %s227, %s230
      %p239 = scmp.eq.s32.totalorder %s34, 1
      %p240 = por %p238, %p239
      %p241 = scmp.ne.s32.totalorder %s230, %s231
      %p242 = scmp.eq.s32.totalorder %s34, 0
      %p243 = por %p241, %p242
      %p244 = scmp.ne.s32.totalorder %s230, %s231
      %p245 = scmp.eq.s32.totalorder %s35, 1
      %p246 = por %p244, %p245
      %p248 = scmp.ne.s32.totalorder %s231, %s247
      %p249 = scmp.eq.s32.totalorder %s35, 0
      %p250 = por %p248, %p249
      %p251 = scmp.le.s32.totalorder 1, %s29
      %p252 = scmp.lt.s32.totalorder %s29, 3
      %p253 = pnand %p251, %p252
      %p254 = pneg %p253
      // Predicated region
      $region9: #{bottleneck_forward.4} parent=5 // pred_check
        _
      $region10: #{bottleneck_forward.4} parent=5 // pred_check_branch
        %256 = sbr.rel (%p253) target = $region12
      $region11: #{bottleneck_forward.4} parent=5 // pred_region
        %s257 = ssub.s32 %s29, 1
        // Predicated region
        $region13: #{bottleneck_forward.4} parent=11 // pred_check
          %p258 = pneg %p76
        $region14: #{bottleneck_forward.4} parent=11 // pred_check_branch
          %260 = sbr.rel (%p258) target = $region16
        $region15: #{bottleneck_forward.4} parent=11 // pred_region
          %s262 = ssub.s32 32, 32
          %263 = vsyncadd [#allocation7], %s262
          %s265 = sshll.u32 [#allocation6], 4
          %s266 = int_to_ptr.vmem [resolvable:$true] %s265
          %268 = dma.hbm_to_vmem [thread:$0]  %s1, 32, %s266, [#allocation7]
        $region16: #{bottleneck_forward.4} parent=11 // pred_fallthru
          _
        // Predicated region
        $region17: #{bottleneck_forward.4} parent=11 // pred_check
          %p269 = pneg %p97
        $region18: #{bottleneck_forward.4} parent=11 // pred_check_branch
          %271 = sbr.rel (%p269) target = $region20
        $region19: #{bottleneck_forward.4} parent=11 // pred_region
          %s273 = ssub.s32 16, 16
          %274 = vsyncadd [#allocation7], %s273
          %s276 = sshll.u32 [#allocation8], 4
          %s277 = int_to_ptr.vmem [resolvable:$true] %s276
          %279 = dma.hbm_to_vmem [thread:$0]  %s2, 16, %s277, [#allocation7]
        $region20: #{bottleneck_forward.4} parent=11 // pred_fallthru
          _
        // Predicated region
        $region21: #{bottleneck_forward.4} parent=11 // pred_check
          %p280 = pneg %p118
        $region22: #{bottleneck_forward.4} parent=11 // pred_check_branch
          %282 = sbr.rel (%p280) target = $region24
        $region23: #{bottleneck_forward.4} parent=11 // pred_region
          %s284 = ssub.s32 256, 256
          %285 = vsyncadd [#allocation10], %s284
          %s286 = sshll.u32 [#allocation9], 4
          %s287 = int_to_ptr.vmem [resolvable:$true] %s286
          %292 = dma.hbm_to_vmem [thread:$0]  %s3, 256, %s287, [#allocation10], 128, 128, 8
        $region24: #{bottleneck_forward.4} parent=11 // pred_fallthru
          _
        // Predicated region
        $region25: #{bottleneck_forward.4} parent=11 // pred_check
          %p293 = pneg %p139
        $region26: #{bottleneck_forward.4} parent=11 // pred_check_branch
          %295 = sbr.rel (%p293) target = $region28
        $region27: #{bottleneck_forward.4} parent=11 // pred_region
          %s297 = ssub.s32 128, 128
          %298 = vsyncadd [#allocation10], %s297
          %s300 = sshll.u32 [#allocation11], 4
          %s301 = int_to_ptr.vmem [resolvable:$true] %s300
          %303 = dma.hbm_to_vmem [thread:$0]  %s4, 128, %s301, [#allocation10]
        $region28: #{bottleneck_forward.4} parent=11 // pred_fallthru
          _
      $region12: #{bottleneck_forward.4} parent=5 // pred_fallthru
        _
      %p304 = scmp.lt.s32.totalorder %s29, 2
      // Predicated region
      $region29: #{bottleneck_forward.4} parent=5 // pred_check
        %p305 = pneg %p304
      $region30: #{bottleneck_forward.4} parent=5 // pred_check_branch
        %307 = sbr.rel (%p305) target = $region32
      $region31: #{bottleneck_forward.4} parent=5 // pred_region
        // Predicated region
        $region33: #{bottleneck_forward.4} parent=31 // pred_check
          %p308 = pneg %p49
        $region34: #{bottleneck_forward.4} parent=31 // pred_check_branch
          %310 = sbr.rel (%p308) target = $region36
        $region35: #{bottleneck_forward.4} parent=31 // pred_region
          %s311 = sand.u32 %s39, 1
          %s312 = scalar_lea.sflag [#allocation4], %s311
          %s313 = sand.u32 %s39, 1
          %s314 = smul.addr %s313, 256
          %s315 = scalar_lea.vmem [#allocation3], %s314
          %s317 = ssub.s32 4096, 4096
          %318 = vsyncadd %s312, %s317
          %s319 = smul.addr %s29, 32
          %s320 = smul.addr %s319, 128
          %s321 = scalar_lea.hbm %s0, %s320
          %s322 = sshll.u32 %s315, 4
          %s323 = int_to_ptr.vmem [resolvable:$true] %s322
          %328 = dma.hbm_to_vmem [thread:$0]  %s321, 4096, %s323, %s312, 128, 128, 8
        $region36: #{bottleneck_forward.4} parent=31 // pred_fallthru
          _
      $region32: #{bottleneck_forward.4} parent=5 // pred_fallthru
        _
      %p329 = scmp.le.s32.totalorder 1, %s29
      %p330 = scmp.lt.s32.totalorder %s29, 3
      %p331 = pnand %p329, %p330
      %p332 = pneg %p331
      // Predicated region
      $region37: #{bottleneck_forward.4} parent=5 // pred_check
        _
      $region38: #{bottleneck_forward.4} parent=5 // pred_check_branch
        %334 = sbr.rel (%p331) target = $region40
      $region39: #{bottleneck_forward.4} parent=5 // pred_region
        %s335 = ssub.s32 %s29, 1
        %s336 = sand.u32 %s42, 1
        %s337 = scalar_lea.sflag [#allocation4], %s336
        %s338 = sand.u32 %s42, 1
        %s339 = smul.addr %s338, 256
        %s340 = scalar_lea.vmem [#allocation3], %s339
        // Predicated region
        $region41: #{bottleneck_forward.4} parent=39 // pred_check
          %p341 = pneg %p55
        $region42: #{bottleneck_forward.4} parent=39 // pred_check_branch
          %343 = sbr.rel (%p341) target = $region44
        $region43: #{bottleneck_forward.4} parent=39 // pred_region
          %344 = dma.done %s337, 4096
        $region44: #{bottleneck_forward.4} parent=39 // pred_fallthru
          _
        // Predicated region
        $region45: #{bottleneck_forward.4} parent=39 // pred_check
          %p345 = pneg %p76
        $region46: #{bottleneck_forward.4} parent=39 // pred_check_branch
          %347 = sbr.rel (%p345) target = $region48
        $region47: #{bottleneck_forward.4} parent=39 // pred_region
          %348 = dma.done [#allocation7], 32
        $region48: #{bottleneck_forward.4} parent=39 // pred_fallthru
          _
        // Predicated region
        $region49: #{bottleneck_forward.4} parent=39 // pred_check
          %p349 = pneg %p97
        $region50: #{bottleneck_forward.4} parent=39 // pred_check_branch
          %351 = sbr.rel (%p349) target = $region52
        $region51: #{bottleneck_forward.4} parent=39 // pred_region
          %352 = dma.done [#allocation7], 16
        $region52: #{bottleneck_forward.4} parent=39 // pred_fallthru
          _
        // Predicated region
        $region53: #{bottleneck_forward.4} parent=39 // pred_check
          %p353 = pneg %p118
        $region54: #{bottleneck_forward.4} parent=39 // pred_check_branch
          %355 = sbr.rel (%p353) target = $region56
        $region55: #{bottleneck_forward.4} parent=39 // pred_region
          %356 = dma.done [#allocation10], 256
        $region56: #{bottleneck_forward.4} parent=39 // pred_fallthru
          _
        // Predicated region
        $region57: #{bottleneck_forward.4} parent=39 // pred_check
          %p357 = pneg %p139
        $region58: #{bottleneck_forward.4} parent=39 // pred_check_branch
          %359 = sbr.rel (%p357) target = $region60
        $region59: #{bottleneck_forward.4} parent=39 // pred_region
          %360 = dma.done [#allocation10], 128
        $region60: #{bottleneck_forward.4} parent=39 // pred_fallthru
          _
        %s361 = sand.u32 %s42, 1
        %s362 = scalar_lea.sflag [#allocation4], %s361
        %s363 = sand.u32 %s42, 1
        %s364 = smul.addr %s363, 256
        %s365 = scalar_lea.vmem [#allocation3], %s364
        %p366 = pneg %p55
        %p367 = pneg %p52
        %p368 = pneg %p76
        %p369 = pneg %p73
        %p370 = pneg %p97
        %p371 = pneg %p94
        %p372 = pneg %p118
        %p373 = pneg %p115
        %p374 = pneg %p139
        %p375 = pneg %p136
        %p376 = pneg %p165
        %p377 = pneg %p162
        %s378 = sand.u32 %s152, 1
        %s379 = scalar_lea.sflag [#allocation5], %s378
        %s380 = sand.u32 %s152, 1
        %s381 = smul.addr %s380, 32
        %s382 = scalar_lea.vmem [#allocation12], %s381
        %p383 = pneg %p191
        %p384 = pneg %p188
        %s385 = sand.u32 %s34, 1
        %s386 = scalar_lea.sflag [#allocation14], %s385
        %s387 = sand.u32 %s178, 1
        %s388 = scalar_lea.vmem [#allocation13], %s387
        %p389 = pneg %p217
        %p390 = pneg %p214
        %s391 = sand.u32 %s34, 1
        %s392 = scalar_lea.sflag [#allocation14], %s391
        %s393 = sand.u32 %s204, 1
        %s394 = smul.addr %s393, 16
        %s395 = scalar_lea.vmem [#allocation15], %s394
        %p396 = pneg %p243
        %p397 = pneg %p240
        %s398 = sand.u32 %s230, 1
        %s399 = scalar_lea.sflag [#allocation17], %s398
        %s400 = sand.u32 %s230, 1
        %s401 = smul.addr %s400, 32
        %s402 = scalar_lea.vmem [#allocation16], %s401
        %v404 = vld [vmem:[#allocation6] sm:$0x3]
        %v405 = vld [vmem:[#allocation8] sm:$0x1]
        %v406 = vld [vmem:[%s340] sm:$0xff]
        %v407 = vld [vmem:[%s340 + $0x8] sm:$0xff]
        %v408 = vld [vmem:[%s340 + $0x10] sm:$0xff]
        %v409 = vld [vmem:[%s340 + $0x18] sm:$0xff]
        %v410 = vld [vmem:[%s340 + $0x20] sm:$0xff]
        %v411 = vld [vmem:[%s340 + $0x28] sm:$0xff]
        %v412 = vld [vmem:[%s340 + $0x30] sm:$0xff]
        %v413 = vld [vmem:[%s340 + $0x38] sm:$0xff]
        %v414 = vld [vmem:[%s340 + $0x40] sm:$0xff]
        %v415 = vld [vmem:[%s340 + $0x48] sm:$0xff]
        %v416 = vld [vmem:[%s340 + $0x50] sm:$0xff]
        %v417 = vld [vmem:[%s340 + $0x58] sm:$0xff]
        %v418 = vld [vmem:[%s340 + $0x60] sm:$0xff]
        %v419 = vld [vmem:[%s340 + $0x68] sm:$0xff]
        %v420 = vld [vmem:[%s340 + $0x70] sm:$0xff]
        %v421 = vld [vmem:[%s340 + $0x78] sm:$0xff]
        %v422 = vld [vmem:[%s340 + $0x80] sm:$0xff]
        %v423 = vld [vmem:[%s340 + $0x88] sm:$0xff]
        %v424 = vld [vmem:[%s340 + $0x90] sm:$0xff]
        %v425 = vld [vmem:[%s340 + $0x98] sm:$0xff]
        %v426 = vld [vmem:[%s340 + $0xa0] sm:$0xff]
        %v427 = vld [vmem:[%s340 + $0xa8] sm:$0xff]
        %v428 = vld [vmem:[%s340 + $0xb0] sm:$0xff]
        %v429 = vld [vmem:[%s340 + $0xb8] sm:$0xff]
        %v430 = vld [vmem:[%s340 + $0xc0] sm:$0xff]
        %v431 = vld [vmem:[%s340 + $0xc8] sm:$0xff]
        %v432 = vld [vmem:[%s340 + $0xd0] sm:$0xff]
        %v433 = vld [vmem:[%s340 + $0xd8] sm:$0xff]
        %v434 = vld [vmem:[%s340 + $0xe0] sm:$0xff]
        %v435 = vld [vmem:[%s340 + $0xe8] sm:$0xff]
        %v436 = vld [vmem:[%s340 + $0xf0] sm:$0xff]
        %v437 = vld [vmem:[%s340 + $0xf8] sm:$0xff]
        %v438 = vpack.c.bf16 %v407, %v406
        %v439 = vpack.c.bf16 %v409, %v408
        %v440 = vpack.c.bf16 %v411, %v410
        %v441 = vpack.c.bf16 %v413, %v412
        %v442 = vpack.c.bf16 %v415, %v414
        %v443 = vpack.c.bf16 %v417, %v416
        %v444 = vpack.c.bf16 %v419, %v418
        %v445 = vpack.c.bf16 %v421, %v420
        %v446 = vpack.c.bf16 %v423, %v422
        %v447 = vpack.c.bf16 %v425, %v424
        %v448 = vpack.c.bf16 %v427, %v426
        %v449 = vpack.c.bf16 %v429, %v428
        %v450 = vpack.c.bf16 %v431, %v430
        %v451 = vpack.c.bf16 %v433, %v432
        %v452 = vpack.c.bf16 %v435, %v434
        %v453 = vpack.c.bf16 %v437, %v436
        %v455 = vlaneseq
        %v456 = vshrl.u32 %v455, 7
        %v457 = vsub.s32 0, %v456
        %v458 = vrot.slane %v405, %v457
        %vm460 = vcmask 31744
        %v462 = vsel %vm460, %v438, 0
        %v465 = vsel %vm460, %v439, 0
        %v468 = vsel %vm460, %v440, 0
        %v471 = vsel %vm460, %v441, 0
        %v474 = vsel %vm460, %v442, 0
        %v477 = vsel %vm460, %v443, 0
        %v480 = vsel %vm460, %v444, 0
        %v483 = vsel %vm460, %v445, 0
        %v486 = vsel %vm460, %v446, 0
        %v489 = vsel %vm460, %v447, 0
        %v492 = vsel %vm460, %v448, 0
        %v495 = vsel %vm460, %v449, 0
        %v498 = vsel %vm460, %v450, 0
        %v501 = vsel %vm460, %v451, 0
        %v504 = vsel %vm460, %v452, 0
        %v507 = vsel %vm460, %v453, 0
        %vm509 = vcmask 1041408
        %v511 = vsel %vm509, %v404, 0
        %513 = vmatprep.subr.bf16.mxu0 0
        %514 = vmatpush1.bf16.msra.mxu0 %v511
        %515 = vmatprep.subr.bf16.mxu0 0
        %516 = vmatpush1.bf16.msra.mxu0 0
        %517 = vmatprep.subr.bf16.mxu0 0
        %518 = vmatpush1.bf16.msra.mxu0 0
        %519 = vmatprep.subr.bf16.mxu0 0
        %520 = vmatpush1.bf16.msra.mxu0 0
        %521 = vmatprep.subr.bf16.mxu0 0
        %522 = vmatpush1.bf16.msra.mxu0 0
        %523 = vmatprep.subr.bf16.mxu0 0
        %524 = vmatpush1.bf16.msra.mxu0 0
        %525 = vmatprep.subr.bf16.mxu0 0
        %526 = vmatpush1.bf16.msra.mxu0 0
        %527 = vmatprep.subr.bf16.mxu0 0
        %528 = vmatpush1.bf16.msra.mxu0 0
        %529 = vmatprep.subr.bf16.mxu0 0
        %530 = vmatpush1.bf16.msra.mxu0 0
        %531 = vmatprep.subr.bf16.mxu0 0
        %532 = vmatpush1.bf16.msra.mxu0 0
        %533 = vmatprep.subr.bf16.mxu0 0
        %534 = vmatpush1.bf16.msra.mxu0 0
        %535 = vmatprep.subr.bf16.mxu0 0
        %536 = vmatpush1.bf16.msra.mxu0 0
        %537 = vmatprep.subr.bf16.mxu0 0
        %538 = vmatpush1.bf16.msra.mxu0 0
        %539 = vmatprep.subr.bf16.mxu0 0
        %540 = vmatpush1.bf16.msra.mxu0 0
        %541 = vmatprep.subr.bf16.mxu0 0
        %542 = vmatpush1.bf16.msra.mxu0 0
        %543 = vmatprep.subr.bf16.mxu0 0
        %544 = vmatpush1.bf16.msra.mxu0 0
        %545 = vmatprep.mubr.bf16.mxu0 0
        %546 = vmatmul.mubr.bf16.gmra.mrb[0].mxu0 %v462
        %v547 = vpop.f32.mrb[0].mxu0
        %v548 = vadd.f32 %v458, %v547
        %v549 = vpop.f32.mrb[0].mxu0
        %v550 = vpop.f32.mrb[0].mxu0
        %v551 = vadd.f32 %v458, %v550
        %v552 = vpop.f32.mrb[0].mxu0
        %553 = vmatprep.mubr.bf16.mxu0 0
        %554 = vmatmul.mubr.bf16.gmra.mrb[0].mxu0 %v465
        %v555 = vpop.f32.mrb[0].mxu0
        %v556 = vadd.f32 %v458, %v555
        %v557 = vpop.f32.mrb[0].mxu0
        %v558 = vpop.f32.mrb[0].mxu0
        %v559 = vadd.f32 %v458, %v558
        %v560 = vpop.f32.mrb[0].mxu0
        %561 = vmatprep.mubr.bf16.mxu0 0
        %562 = vmatmul.mubr.bf16.gmra.mrb[0].mxu0 %v468
        %v563 = vpop.f32.mrb[0].mxu0
        %v564 = vadd.f32 %v458, %v563
        %v565 = vpop.f32.mrb[0].mxu0
        %v566 = vpop.f32.mrb[0].mxu0
        %v567 = vadd.f32 %v458, %v566
        %v568 = vpop.f32.mrb[0].mxu0
        %569 = vmatprep.mubr.bf16.mxu0 0
        %570 = vmatmul.mubr.bf16.gmra.mrb[0].mxu0 %v471
        %v571 = vpop.f32.mrb[0].mxu0
        %v572 = vadd.f32 %v458, %v571
        %v573 = vpop.f32.mrb[0].mxu0
        %v574 = vpop.f32.mrb[0].mxu0
        %v575 = vadd.f32 %v458, %v574
        %v576 = vpop.f32.mrb[0].mxu0
        %577 = vmatprep.mubr.bf16.mxu0 0
        %578 = vmatmul.mubr.bf16.gmra.mrb[0].mxu0 %v474
        %v579 = vpop.f32.mrb[0].mxu0
        %v580 = vadd.f32 %v458, %v579
        %v581 = vpop.f32.mrb[0].mxu0
        %v582 = vpop.f32.mrb[0].mxu0
        %v583 = vadd.f32 %v458, %v582
        %v584 = vpop.f32.mrb[0].mxu0
        %585 = vmatprep.mubr.bf16.mxu0 0
        %586 = vmatmul.mubr.bf16.gmra.mrb[0].mxu0 %v477
        %v587 = vpop.f32.mrb[0].mxu0
        %v588 = vadd.f32 %v458, %v587
        %v589 = vpop.f32.mrb[0].mxu0
        %v590 = vpop.f32.mrb[0].mxu0
        %v591 = vadd.f32 %v458, %v590
        %v592 = vpop.f32.mrb[0].mxu0
        %593 = vmatprep.mubr.bf16.mxu0 0
        %594 = vmatmul.mubr.bf16.gmra.mrb[0].mxu0 %v480
        %v595 = vpop.f32.mrb[0].mxu0
        %v596 = vadd.f32 %v458, %v595
        %v597 = vpop.f32.mrb[0].mxu0
        %v598 = vpop.f32.mrb[0].mxu0
        %v599 = vadd.f32 %v458, %v598
        %v600 = vpop.f32.mrb[0].mxu0
        %601 = vmatprep.mubr.bf16.mxu0 0
        %602 = vmatmul.mubr.bf16.gmra.mrb[0].mxu0 %v483
        %v603 = vpop.f32.mrb[0].mxu0
        %v604 = vadd.f32 %v458, %v603
        %v605 = vpop.f32.mrb[0].mxu0
        %v606 = vpop.f32.mrb[0].mxu0
        %v607 = vadd.f32 %v458, %v606
        %v608 = vpop.f32.mrb[0].mxu0
        %609 = vmatprep.mubr.bf16.mxu0 0
        %610 = vmatmul.mubr.bf16.gmra.mrb[0].mxu0 %v486
        %v611 = vpop.f32.mrb[0].mxu0
        %v612 = vadd.f32 %v458, %v611
        %v613 = vpop.f32.mrb[0].mxu0
        %v614 = vpop.f32.mrb[0].mxu0
        %v615 = vadd.f32 %v458, %v614
        %v616 = vpop.f32.mrb[0].mxu0
        %617 = vmatprep.mubr.bf16.mxu0 0
        %618 = vmatmul.mubr.bf16.gmra.mrb[0].mxu0 %v489
        %v619 = vpop.f32.mrb[0].mxu0
        %v620 = vadd.f32 %v458, %v619
        %v621 = vpop.f32.mrb[0].mxu0
        %v622 = vpop.f32.mrb[0].mxu0
        %v623 = vadd.f32 %v458, %v622
        %v624 = vpop.f32.mrb[0].mxu0
        %625 = vmatprep.mubr.bf16.mxu0 0
        %626 = vmatmul.mubr.bf16.gmra.mrb[0].mxu0 %v492
        %v627 = vpop.f32.mrb[0].mxu0
        %v628 = vadd.f32 %v458, %v627
        %v629 = vpop.f32.mrb[0].mxu0
        %v630 = vpop.f32.mrb[0].mxu0
        %v631 = vadd.f32 %v458, %v630
        %v632 = vpop.f32.mrb[0].mxu0
        %633 = vmatprep.mubr.bf16.mxu0 0
        %634 = vmatmul.mubr.bf16.gmra.mrb[0].mxu0 %v495
        %v635 = vpop.f32.mrb[0].mxu0
        %v636 = vadd.f32 %v458, %v635
        %v637 = vpop.f32.mrb[0].mxu0
        %v638 = vpop.f32.mrb[0].mxu0
        %v639 = vadd.f32 %v458, %v638
        %v640 = vpop.f32.mrb[0].mxu0
        %641 = vmatprep.mubr.bf16.mxu0 0
        %642 = vmatmul.mubr.bf16.gmra.mrb[0].mxu0 %v498
        %v643 = vpop.f32.mrb[0].mxu0
        %v644 = vadd.f32 %v458, %v643
        %v645 = vpop.f32.mrb[0].mxu0
        %v646 = vpop.f32.mrb[0].mxu0
        %v647 = vadd.f32 %v458, %v646
        %v648 = vpop.f32.mrb[0].mxu0
        %649 = vmatprep.mubr.bf16.mxu0 0
        %650 = vmatmul.mubr.bf16.gmra.mrb[0].mxu0 %v501
        %v651 = vpop.f32.mrb[0].mxu0
        %v652 = vadd.f32 %v458, %v651
        %v653 = vpop.f32.mrb[0].mxu0
        %v654 = vpop.f32.mrb[0].mxu0
        %v655 = vadd.f32 %v458, %v654
        %v656 = vpop.f32.mrb[0].mxu0
        %657 = vmatprep.mubr.bf16.mxu0 0
        %658 = vmatmul.mubr.bf16.gmra.mrb[0].mxu0 %v504
        %v659 = vpop.f32.mrb[0].mxu0
        %v660 = vadd.f32 %v458, %v659
        %v661 = vpop.f32.mrb[0].mxu0
        %v662 = vpop.f32.mrb[0].mxu0
        %v663 = vadd.f32 %v458, %v662
        %v664 = vpop.f32.mrb[0].mxu0
        %665 = vmatprep.mubr.bf16.mxu0 0
        %666 = vmatmul.mubr.bf16.gmra.mrb[0].mxu0 %v507
        %v667 = vpop.f32.mrb[0].mxu0
        %v668 = vadd.f32 %v458, %v667
        %v669 = vpop.f32.mrb[0].mxu0
        %v670 = vpop.f32.mrb[0].mxu0
        %v671 = vadd.f32 %v458, %v670
        %v672 = vpop.f32.mrb[0].mxu0
        %673 = vdwg.mxu0
        %v674 = vadd.f32 %v548, 3.0
        %v675 = vadd.f32 %v551, 3.0
        %v676 = vadd.f32 %v556, 3.0
        %v677 = vadd.f32 %v559, 3.0
        %v678 = vadd.f32 %v564, 3.0
        %v679 = vadd.f32 %v567, 3.0
        %v680 = vadd.f32 %v572, 3.0
        %v681 = vadd.f32 %v575, 3.0
        %v682 = vadd.f32 %v580, 3.0
        %v683 = vadd.f32 %v583, 3.0
        %v684 = vadd.f32 %v588, 3.0
        %v685 = vadd.f32 %v591, 3.0
        %v686 = vadd.f32 %v596, 3.0
        %v687 = vadd.f32 %v599, 3.0
        %v688 = vadd.f32 %v604, 3.0
        %v689 = vadd.f32 %v607, 3.0
        %v690 = vadd.f32 %v612, 3.0
        %v691 = vadd.f32 %v615, 3.0
        %v692 = vadd.f32 %v620, 3.0
        %v693 = vadd.f32 %v623, 3.0
        %v694 = vadd.f32 %v628, 3.0
        %v695 = vadd.f32 %v631, 3.0
        %v696 = vadd.f32 %v636, 3.0
        %v697 = vadd.f32 %v639, 3.0
        %v698 = vadd.f32 %v644, 3.0
        %v699 = vadd.f32 %v647, 3.0
        %v700 = vadd.f32 %v652, 3.0
        %v701 = vadd.f32 %v655, 3.0
        %v702 = vadd.f32 %v660, 3.0
        %v703 = vadd.f32 %v663, 3.0
        %v704 = vadd.f32 %v668, 3.0
        %v705 = vadd.f32 %v671, 3.0
        %v706 = vmax.f32 %v674, 0.0
        %v707 = vmax.f32 %v675, 0.0
        %v708 = vmax.f32 %v676, 0.0
        %v709 = vmax.f32 %v677, 0.0
        %v710 = vmax.f32 %v678, 0.0
        %v711 = vmax.f32 %v679, 0.0
        %v712 = vmax.f32 %v680, 0.0
        %v713 = vmax.f32 %v681, 0.0
        %v714 = vmax.f32 %v682, 0.0
        %v715 = vmax.f32 %v683, 0.0
        %v716 = vmax.f32 %v684, 0.0
        %v717 = vmax.f32 %v685, 0.0
        %v718 = vmax.f32 %v686, 0.0
        %v719 = vmax.f32 %v687, 0.0
        %v720 = vmax.f32 %v688, 0.0
        %v721 = vmax.f32 %v689, 0.0
        %v722 = vmax.f32 %v690, 0.0
        %v723 = vmax.f32 %v691, 0.0
        %v724 = vmax.f32 %v692, 0.0
        %v725 = vmax.f32 %v693, 0.0
        %v726 = vmax.f32 %v694, 0.0
        %v727 = vmax.f32 %v695, 0.0
        %v728 = vmax.f32 %v696, 0.0
        %v729 = vmax.f32 %v697, 0.0
        %v730 = vmax.f32 %v698, 0.0
        %v731 = vmax.f32 %v699, 0.0
        %v732 = vmax.f32 %v700, 0.0
        %v733 = vmax.f32 %v701, 0.0
        %v734 = vmax.f32 %v702, 0.0
        %v735 = vmax.f32 %v703, 0.0
        %v736 = vmax.f32 %v704, 0.0
        %v737 = vmax.f32 %v705, 0.0
        %v738 = vmin.f32 %v706, 6.0
        %v739 = vmin.f32 %v707, 6.0
        %v740 = vmin.f32 %v708, 6.0
        %v741 = vmin.f32 %v709, 6.0
        %v742 = vmin.f32 %v710, 6.0
        %v743 = vmin.f32 %v711, 6.0
        %v744 = vmin.f32 %v712, 6.0
        %v745 = vmin.f32 %v713, 6.0
        %v746 = vmin.f32 %v714, 6.0
        %v747 = vmin.f32 %v715, 6.0
        %v748 = vmin.f32 %v716, 6.0
        %v749 = vmin.f32 %v717, 6.0
        %v750 = vmin.f32 %v718, 6.0
        %v751 = vmin.f32 %v719, 6.0
        %v752 = vmin.f32 %v720, 6.0
        %v753 = vmin.f32 %v721, 6.0
        %v754 = vmin.f32 %v722, 6.0
        %v755 = vmin.f32 %v723, 6.0
        %v756 = vmin.f32 %v724, 6.0
        %v757 = vmin.f32 %v725, 6.0
        %v758 = vmin.f32 %v726, 6.0
        %v759 = vmin.f32 %v727, 6.0
        %v760 = vmin.f32 %v728, 6.0
        %v761 = vmin.f32 %v729, 6.0
        %v762 = vmin.f32 %v730, 6.0
        %v763 = vmin.f32 %v731, 6.0
        %v764 = vmin.f32 %v732, 6.0
        %v765 = vmin.f32 %v733, 6.0
        %v766 = vmin.f32 %v734, 6.0
        %v767 = vmin.f32 %v735, 6.0
        %v768 = vmin.f32 %v736, 6.0
        %v769 = vmin.f32 %v737, 6.0
        %v770 = vmul.f32 %v548, %v738
        %v771 = vmul.f32 %v551, %v739
        %v772 = vmul.f32 %v556, %v740
        %v773 = vmul.f32 %v559, %v741
        %v774 = vmul.f32 %v564, %v742
        %v775 = vmul.f32 %v567, %v743
        %v776 = vmul.f32 %v572, %v744
        %v777 = vmul.f32 %v575, %v745
        %v778 = vmul.f32 %v580, %v746
        %v779 = vmul.f32 %v583, %v747
        %v780 = vmul.f32 %v588, %v748
        %v781 = vmul.f32 %v591, %v749
        %v782 = vmul.f32 %v596, %v750
        %v783 = vmul.f32 %v599, %v751
        %v784 = vmul.f32 %v604, %v752
        %v785 = vmul.f32 %v607, %v753
        %v786 = vmul.f32 %v612, %v754
        %v787 = vmul.f32 %v615, %v755
        %v788 = vmul.f32 %v620, %v756
        %v789 = vmul.f32 %v623, %v757
        %v790 = vmul.f32 %v628, %v758
        %v791 = vmul.f32 %v631, %v759
        %v792 = vmul.f32 %v636, %v760
        %v793 = vmul.f32 %v639, %v761
        %v794 = vmul.f32 %v644, %v762
        %v795 = vmul.f32 %v647, %v763
        %v796 = vmul.f32 %v652, %v764
        %v797 = vmul.f32 %v655, %v765
        %v798 = vmul.f32 %v660, %v766
        %v799 = vmul.f32 %v663, %v767
        %v800 = vmul.f32 %v668, %v768
        %v801 = vmul.f32 %v671, %v769
        %v802 = vmul.f32 %v770, 0.16666667
        %v803 = vmul.f32 %v771, 0.16666667
        %v804 = vmul.f32 %v772, 0.16666667
        %v805 = vmul.f32 %v773, 0.16666667
        %v806 = vmul.f32 %v774, 0.16666667
        %v807 = vmul.f32 %v775, 0.16666667
        %v808 = vmul.f32 %v776, 0.16666667
        %v809 = vmul.f32 %v777, 0.16666667
        %v810 = vmul.f32 %v778, 0.16666667
        %v811 = vmul.f32 %v779, 0.16666667
        %v812 = vmul.f32 %v780, 0.16666667
        %v813 = vmul.f32 %v781, 0.16666667
        %v814 = vmul.f32 %v782, 0.16666667
        %v815 = vmul.f32 %v783, 0.16666667
        %v816 = vmul.f32 %v784, 0.16666667
        %v817 = vmul.f32 %v785, 0.16666667
        %v818 = vmul.f32 %v786, 0.16666667
        %v819 = vmul.f32 %v787, 0.16666667
        %v820 = vmul.f32 %v788, 0.16666667
        %v821 = vmul.f32 %v789, 0.16666667
        %v822 = vmul.f32 %v790, 0.16666667
        %v823 = vmul.f32 %v791, 0.16666667
        %v824 = vmul.f32 %v792, 0.16666667
        %v825 = vmul.f32 %v793, 0.16666667
        %v826 = vmul.f32 %v794, 0.16666667
        %v827 = vmul.f32 %v795, 0.16666667
        %v828 = vmul.f32 %v796, 0.16666667
        %v829 = vmul.f32 %v797, 0.16666667
        %v830 = vmul.f32 %v798, 0.16666667
        %v831 = vmul.f32 %v799, 0.16666667
        %v832 = vmul.f32 %v800, 0.16666667
        %v833 = vmul.f32 %v801, 0.16666667
        %vm834 = vcmask 130048
        %835 = vst.msk [vmem:[#allocation2 + $0x8] sm:$0xff] %vm834, %v802
        %836 = vst.msk [vmem:[#allocation2 + $0x10] sm:$0xff] %vm834, %v803
        %837 = vst.msk [vmem:[#allocation2 + $0x18] sm:$0xff] %vm834, %v804
        %838 = vst.msk [vmem:[#allocation2 + $0x20] sm:$0xff] %vm834, %v805
        %839 = vst.msk [vmem:[#allocation2 + $0x28] sm:$0xff] %vm834, %v806
        %840 = vst.msk [vmem:[#allocation2 + $0x30] sm:$0xff] %vm834, %v807
        %841 = vst.msk [vmem:[#allocation2 + $0x38] sm:$0xff] %vm834, %v808
        %842 = vst.msk [vmem:[#allocation2 + $0x40] sm:$0xff] %vm834, %v809
        %843 = vst.msk [vmem:[#allocation2 + $0x48] sm:$0xff] %vm834, %v810
        %844 = vst.msk [vmem:[#allocation2 + $0x50] sm:$0xff] %vm834, %v811
        %845 = vst.msk [vmem:[#allocation2 + $0x58] sm:$0xff] %vm834, %v812
        %846 = vst.msk [vmem:[#allocation2 + $0x60] sm:$0xff] %vm834, %v813
        %847 = vst.msk [vmem:[#allocation2 + $0x68] sm:$0xff] %vm834, %v814
        %848 = vst.msk [vmem:[#allocation2 + $0x70] sm:$0xff] %vm834, %v815
        %849 = vst.msk [vmem:[#allocation2 + $0x78] sm:$0xff] %vm834, %v816
        %850 = vst.msk [vmem:[#allocation2 + $0x80] sm:$0xff] %vm834, %v817
        %851 = vst.msk [vmem:[#allocation2 + $0x88] sm:$0xff] %vm834, %v818
        %852 = vst.msk [vmem:[#allocation2 + $0x90] sm:$0xff] %vm834, %v819
        %853 = vst.msk [vmem:[#allocation2 + $0x98] sm:$0xff] %vm834, %v820
        %854 = vst.msk [vmem:[#allocation2 + $0xa0] sm:$0xff] %vm834, %v821
        %855 = vst.msk [vmem:[#allocation2 + $0xa8] sm:$0xff] %vm834, %v822
        %856 = vst.msk [vmem:[#allocation2 + $0xb0] sm:$0xff] %vm834, %v823
        %857 = vst.msk [vmem:[#allocation2 + $0xb8] sm:$0xff] %vm834, %v824
        %858 = vst.msk [vmem:[#allocation2 + $0xc0] sm:$0xff] %vm834, %v825
        %859 = vst.msk [vmem:[#allocation2 + $0xc8] sm:$0xff] %vm834, %v826
        %860 = vst.msk [vmem:[#allocation2 + $0xd0] sm:$0xff] %vm834, %v827
        %861 = vst.msk [vmem:[#allocation2 + $0xd8] sm:$0xff] %vm834, %v828
        %862 = vst.msk [vmem:[#allocation2 + $0xe0] sm:$0xff] %vm834, %v829
        %863 = vst.msk [vmem:[#allocation2 + $0xe8] sm:$0xff] %vm834, %v830
        %864 = vst.msk [vmem:[#allocation2 + $0xf0] sm:$0xff] %vm834, %v831
        %865 = vst.msk [vmem:[#allocation2 + $0xf8] sm:$0xff] %vm834, %v832
        %866 = vst.msk [vmem:[#allocation2 + $0x100] sm:$0xff] %vm834, %v833
        %v867 = vld [vmem:[#allocation9] sm:$0x1]
        %v868 = vld [vmem:[#allocation9 + $0x1] sm:$0x1]
        %v869 = vld [vmem:[#allocation9 + $0x2] sm:$0x1]
        %v870 = vld [vmem:[#allocation9 + $0x3] sm:$0x1]
        %v871 = vld [vmem:[#allocation9 + $0x4] sm:$0x1]
        %v872 = vld [vmem:[#allocation9 + $0x5] sm:$0x1]
        %v873 = vld [vmem:[#allocation9 + $0x6] sm:$0x1]
        %v874 = vld [vmem:[#allocation9 + $0x7] sm:$0x1]
        %v875 = vld [vmem:[#allocation9 + $0x8] sm:$0x1]
        %v876 = vlaneseq
        %v877 = vshrl.u32 %v876, 7
        %v878 = vadd.s32 %v877, 8
        %v879 = vadd.s32 %v877, 4294967295
        %v880 = vadd.s32 %v878, 4294967295
        %vm881 = vcmp.ge.s32.totalorder %v879, 0
        %vm882 = vcmp.ge.s32.totalorder %v880, 0
        %vm883 = vcmp.lt.s32.totalorder %v879, 16
        %vm884 = vcmp.lt.s32.totalorder %v880, 16
        %vm885 = vmand %vm881, %vm883
        %vm886 = vmand %vm882, %vm884
        %v887 = vadd.s32 %v877, 1
        %v888 = vadd.s32 %v878, 1
        %vm889 = vcmp.ge.s32.totalorder %v887, 0
        %vm890 = vcmp.ge.s32.totalorder %v888, 0
        %vm891 = vcmp.lt.s32.totalorder %v887, 16
        %vm892 = vcmp.lt.s32.totalorder %v888, 16
        %vm893 = vmand %vm889, %vm891
        %vm894 = vmand %vm890, %vm892
        %v895 = vld [vmem:[#allocation11] sm:$0xff]
        %v896 = vld [vmem:[#allocation2 + $0x7] sm:$0xff]
        %v897 = vld [vmem:[#allocation2 + $0xf] sm:$0xff]
        %v898 = vlaneseq
        %v899 = vshrl.u32 %v898, 7
        %v900 = vsub.s32 0, %v899
        %v901 = vrot.slane %v870, %v900
        %v902 = vmul.f32 %v896, %v901
        %v903 = vmul.f32 %v897, %v901
        %v904 = vsel %vm885, 1, 0
        %v905 = vsel %vm886, 1, 0
        %vm906 = vcmp.eq.s32.totalorder %v904, 1
        %vm907 = vcmp.eq.s32.totalorder %v905, 1
        %v908 = vsel %vm906, %v902, 0.0
        %v909 = vsel %vm907, %v903, 0.0
        %v910 = vadd.f32 %v908, 0.0
        %v911 = vadd.f32 %v909, 0.0
        %v912 = vld [vmem:[#allocation2 + $0x8] sm:$0xff]
        %v913 = vld [vmem:[#allocation2 + $0x10] sm:$0xff]
        %v914 = vlaneseq
        %v915 = vshrl.u32 %v914, 7
        %v916 = vsub.s32 0, %v915
        %v917 = vrot.slane %v871, %v916
        %v918 = vmul.f32 %v912, %v917
        %v919 = vmul.f32 %v913, %v917
        %v920 = vadd.f32 %v910, %v918
        %v921 = vadd.f32 %v911, %v919
        %v922 = vld [vmem:[#allocation2 + $0x9] sm:$0xff]
        %v923 = vld [vmem:[#allocation2 + $0x11] sm:$0xff]
        %v924 = vlaneseq
        %v925 = vshrl.u32 %v924, 7
        %v926 = vsub.s32 0, %v925
        %v927 = vrot.slane %v872, %v926
        %v928 = vmul.f32 %v922, %v927
        %v929 = vmul.f32 %v923, %v927
        %v930 = vsel %vm893, 1, 0
        %v931 = vsel %vm894, 1, 0
        %vm932 = vcmp.eq.s32.totalorder %v930, 1
        %vm933 = vcmp.eq.s32.totalorder %v931, 1
        %v934 = vsel %vm932, %v928, 0.0
        %v935 = vsel %vm933, %v929, 0.0
        %v936 = vadd.f32 %v920, %v934
        %v937 = vadd.f32 %v921, %v935
        %v938 = vadd.f32 %v936, 0.0
        %v939 = vadd.f32 %v937, 0.0
        %v940 = vld [vmem:[#allocation2 + $0x17] sm:$0xff]
        %v941 = vld [vmem:[#allocation2 + $0x1f] sm:$0xff]
        %v942 = vlaneseq
        %v943 = vshrl.u32 %v942, 7
        %v944 = vsub.s32 0, %v943
        %v945 = vrot.slane %v873, %v944
        %v946 = vmul.f32 %v940, %v945
        %v947 = vmul.f32 %v941, %v945
        %v948 = vsel %vm906, %v946, 0.0
        %v949 = vsel %vm907, %v947, 0.0
        %v950 = vadd.f32 %v948, 0.0
        %v951 = vadd.f32 %v949, 0.0
        %v952 = vld [vmem:[#allocation2 + $0x18] sm:$0xff]
        %v953 = vld [vmem:[#allocation2 + $0x20] sm:$0xff]
        %v954 = vlaneseq
        %v955 = vshrl.u32 %v954, 7
        %v956 = vsub.s32 0, %v955
        %v957 = vrot.slane %v874, %v956
        %v958 = vmul.f32 %v952, %v957
        %v959 = vmul.f32 %v953, %v957
        %v960 = vadd.f32 %v950, %v958
        %v961 = vadd.f32 %v951, %v959
        %v962 = vld [vmem:[#allocation2 + $0x19] sm:$0xff]
        %v963 = vld [vmem:[#allocation2 + $0x21] sm:$0xff]
        %v964 = vlaneseq
        %v965 = vshrl.u32 %v964, 7
        %v966 = vsub.s32 0, %v965
        %v967 = vrot.slane %v875, %v966
        %v968 = vmul.f32 %v962, %v967
        %v969 = vmul.f32 %v963, %v967
        %v970 = vsel %vm932, %v968, 0.0
        %v971 = vsel %vm933, %v969, 0.0
        %v972 = vadd.f32 %v960, %v970
        %v973 = vadd.f32 %v961, %v971
        %v974 = vadd.f32 %v938, %v972
        %v975 = vadd.f32 %v939, %v973
        %v977 = vsel %vm834, %v895, 0
        %979 = vmatprep.subr.mxu0 0.0
        %980 = vmatpush1.msra.mxu0 %v974
        %981 = vmatprep.subr.mxu0 0.0
        %982 = vmatpush1.msra.mxu0 %v975
        %983 = vmatprep.subr.mxu0 0.0
        %984 = vmatpush1.msra.mxu0 0.0
        %985 = vmatprep.subr.mxu0 0.0
        %986 = vmatpush1.msra.mxu0 0.0
        %987 = vmatprep.subr.mxu0 0.0
        %988 = vmatpush1.msra.mxu0 0.0
        %989 = vmatprep.subr.mxu0 0.0
        %990 = vmatpush1.msra.mxu0 0.0
        %991 = vmatprep.subr.mxu0 0.0
        %992 = vmatpush1.msra.mxu0 0.0
        %993 = vmatprep.subr.mxu0 0.0
        %994 = vmatpush1.msra.mxu0 0.0
        %995 = vmatprep.subr.mxu0 0.0
        %996 = vmatpush1.msra.mxu0 0.0
        %997 = vmatprep.subr.mxu0 0.0
        %998 = vmatpush1.msra.mxu0 0.0
        %999 = vmatprep.subr.mxu0 0.0
        %1000 = vmatpush1.msra.mxu0 0.0
        %1001 = vmatprep.subr.mxu0 0.0
        %1002 = vmatpush1.msra.mxu0 0.0
        %1003 = vmatprep.subr.mxu0 0.0
        %1004 = vmatpush1.msra.mxu0 0.0
        %1005 = vmatprep.subr.mxu0 0.0
        %1006 = vmatpush1.msra.mxu0 0.0
        %1007 = vmatprep.subr.mxu0 0.0
        %1008 = vmatpush1.msra.mxu0 0.0
        %1009 = vmatprep.subr.mxu0 0.0
        %1010 = vmatpush1.msra.mxu0 0.0
        %1011 = vmatprep.subr.mxu0 0.0
        %1012 = vmatpush1.msra.mxu0 0.0
        %1013 = vmatprep.subr.mxu0 0.0
        %1014 = vmatpush1.msra.mxu0 0.0
        %1015 = vmatprep.subr.mxu0 0.0
        %1016 = vmatpush1.msra.mxu0 0.0
        %1017 = vmatprep.subr.mxu0 0.0
        %1018 = vmatpush1.msra.mxu0 0.0
        %1019 = vmatprep.subr.mxu0 0.0
        %1020 = vmatpush1.msra.mxu0 0.0
        %1021 = vmatprep.subr.mxu0 0.0
        %1022 = vmatpush1.msra.mxu0 0.0
        %1023 = vmatprep.subr.mxu0 0.0
        %1024 = vmatpush1.msra.mxu0 0.0
        %1025 = vmatprep.subr.mxu0 0.0
        %1026 = vmatpush1.msra.mxu0 0.0
        %1027 = vmatprep.subr.mxu0 0.0
        %1028 = vmatpush1.msra.mxu0 0.0
        %1029 = vmatprep.subr.mxu0 0.0
        %1030 = vmatpush1.msra.mxu0 0.0
        %1031 = vmatprep.subr.mxu0 0.0
        %1032 = vmatpush1.msra.mxu0 0.0
        %1033 = vmatprep.subr.mxu0 0.0
        %1034 = vmatpush1.msra.mxu0 0.0
        %1035 = vmatprep.subr.mxu0 0.0
        %1036 = vmatpush1.msra.mxu0 0.0
        %1037 = vmatprep.subr.mxu0 0.0
        %1038 = vmatpush1.msra.mxu0 0.0
        %1039 = vmatprep.subr.mxu0 0.0
        %1040 = vmatpush1.msra.mxu0 0.0
        %1041 = vmatprep.subr.mxu0 0.0
        %1042 = vmatpush1.msra.mxu0 0.0
        %1043 = vmatprep.mubr.f32.mxu0 0.0
        %1044 = vmatmul.mubr.f32.gmra.mrb[0].mxu0 %v977
        %v1045 = vpop.f32.mrb[0].mxu0
        %v1046 = vadd.f32 0.0, %v1045
        %v1047 = vpop.f32.mrb[0].mxu0
        %1048 = vdwg.mxu0
        %v1049 = vpack.c.bf16 %v1046, %v1046
        %vm1050 = vcmask 125952
        %1051 = vst.msk [vmem:[%s382] sm:$0xf] %vm1050, %v1049
        %v1052 = vld [vmem:[%s340] sm:$0xff]
        %v1053 = vld [vmem:[%s340 + $0x8] sm:$0xff]
        %1054 = vmatprep.subr.mxu0 0.0
        %1055 = vmatpush1.msra.mxu0 %v1052
        %1056 = vmatprep.subr.mxu0 0.0
        %1057 = vmatpush1.msra.mxu0 %v1053
        %1058 = vmatprep.subr.mxu0 0.0
        %1059 = vmatpush1.msra.mxu0 0.0
        %1060 = vmatprep.subr.mxu0 0.0
        %1061 = vmatpush1.msra.mxu0 0.0
        %1062 = vmatprep.subr.mxu0 0.0
        %1063 = vmatpush1.msra.mxu0 0.0
        %1064 = vmatprep.subr.mxu0 0.0
        %1065 = vmatpush1.msra.mxu0 0.0
        %1066 = vmatprep.subr.mxu0 0.0
        %1067 = vmatpush1.msra.mxu0 0.0
        %1068 = vmatprep.subr.mxu0 0.0
        %1069 = vmatpush1.msra.mxu0 0.0
        %1070 = vmatprep.subr.mxu0 0.0
        %1071 = vmatpush1.msra.mxu0 0.0
        %1072 = vmatprep.subr.mxu0 0.0
        %1073 = vmatpush1.msra.mxu0 0.0
        %1074 = vmatprep.subr.mxu0 0.0
        %1075 = vmatpush1.msra.mxu0 0.0
        %1076 = vmatprep.subr.mxu0 0.0
        %1077 = vmatpush1.msra.mxu0 0.0
        %1078 = vmatprep.subr.mxu0 0.0
        %1079 = vmatpush1.msra.mxu0 0.0
        %1080 = vmatprep.subr.mxu0 0.0
        %1081 = vmatpush1.msra.mxu0 0.0
        %1082 = vmatprep.subr.mxu0 0.0
        %1083 = vmatpush1.msra.mxu0 0.0
        %1084 = vmatprep.subr.mxu0 0.0
        %1085 = vmatpush1.msra.mxu0 0.0
        %1086 = vmatprep.subr.mxu0 0.0
        %1087 = vmatpush1.msra.mxu0 0.0
        %1088 = vmatprep.subr.mxu0 0.0
        %1089 = vmatpush1.msra.mxu0 0.0
        %1090 = vmatprep.subr.mxu0 0.0
        %1091 = vmatpush1.msra.mxu0 0.0
        %1092 = vmatprep.subr.mxu0 0.0
        %1093 = vmatpush1.msra.mxu0 0.0
        %1094 = vmatprep.subr.mxu0 0.0
        %1095 = vmatpush1.msra.mxu0 0.0
        %1096 = vmatprep.subr.mxu0 0.0
        %1097 = vmatpush1.msra.mxu0 0.0
        %1098 = vmatprep.subr.mxu0 0.0
        %1099 = vmatpush1.msra.mxu0 0.0
        %1100 = vmatprep.subr.mxu0 0.0
        %1101 = vmatpush1.msra.mxu0 0.0
        %1102 = vmatprep.subr.mxu0 0.0
        %1103 = vmatpush1.msra.mxu0 0.0
        %1104 = vmatprep.subr.mxu0 0.0
        %1105 = vmatpush1.msra.mxu0 0.0
        %1106 = vmatprep.subr.mxu0 0.0
        %1107 = vmatpush1.msra.mxu0 0.0
        %1108 = vmatprep.subr.mxu0 0.0
        %1109 = vmatpush1.msra.mxu0 0.0
        %1110 = vmatprep.subr.mxu0 0.0
        %1111 = vmatpush1.msra.mxu0 0.0
        %1112 = vmatprep.subr.mxu0 0.0
        %1113 = vmatpush1.msra.mxu0 0.0
        %1114 = vmatprep.subr.mxu0 0.0
        %1115 = vmatpush1.msra.mxu0 0.0
        %1116 = vmatprep.subr.mxu0 0.0
        %1117 = vmatpush1.msra.mxu0 0.0
        %1118 = vmatprep.mubr.f32.mxu0 0.0
        %1119 = vmatmul.mubr.f32.gmra.mrb[0].mxu0 %v977
        %v1120 = vpop.f32.mrb[0].mxu0
        %v1121 = vadd.f32 0.0, %v1120
        %v1122 = vpop.f32.mrb[0].mxu0
        %1123 = vdwg.mxu0
        %v1124 = vpack.c.bf16 %v1121, %v1121
        %vm1125 = vcmask 27648
        %1126 = vst.msk [vmem:[%s402] sm:$0xf] %vm1125, %v1124
        %v1127 = vld [vmem:[#allocation2 + $0x17] sm:$0xff]
        %v1128 = vld [vmem:[#allocation2 + $0x1f] sm:$0xff]
        %v1129 = vlaneseq
        %v1130 = vshrl.u32 %v1129, 7
        %v1131 = vsub.s32 0, %v1130
        %v1132 = vrot.slane %v867, %v1131
        %v1133 = vmul.f32 %v1127, %v1132
        %v1134 = vmul.f32 %v1128, %v1132
        %v1135 = vsel %vm906, %v1133, 0.0
        %v1136 = vsel %vm907, %v1134, 0.0
        %v1137 = vadd.f32 %v1135, 0.0
        %v1138 = vadd.f32 %v1136, 0.0
        %v1139 = vld [vmem:[#allocation2 + $0x18] sm:$0xff]
        %v1140 = vld [vmem:[#allocation2 + $0x20] sm:$0xff]
        %v1141 = vlaneseq
        %v1142 = vshrl.u32 %v1141, 7
        %v1143 = vsub.s32 0, %v1142
        %v1144 = vrot.slane %v868, %v1143
        %v1145 = vmul.f32 %v1139, %v1144
        %v1146 = vmul.f32 %v1140, %v1144
        %v1147 = vadd.f32 %v1137, %v1145
        %v1148 = vadd.f32 %v1138, %v1146
        %v1149 = vld [vmem:[#allocation2 + $0x19] sm:$0xff]
        %v1150 = vld [vmem:[#allocation2 + $0x21] sm:$0xff]
        %v1151 = vlaneseq
        %v1152 = vshrl.u32 %v1151, 7
        %v1153 = vsub.s32 0, %v1152
        %v1154 = vrot.slane %v869, %v1153
        %v1155 = vmul.f32 %v1149, %v1154
        %v1156 = vmul.f32 %v1150, %v1154
        %v1157 = vsel %vm932, %v1155, 0.0
        %v1158 = vsel %vm933, %v1156, 0.0
        %v1159 = vadd.f32 %v1147, %v1157
        %v1160 = vadd.f32 %v1148, %v1158
        %v1161 = vadd.f32 %v1159, 0.0
        %v1162 = vadd.f32 %v1160, 0.0
        %v1163 = vld [vmem:[#allocation2 + $0x27] sm:$0xff]
        %v1164 = vld [vmem:[#allocation2 + $0x2f] sm:$0xff]
        %v1165 = vmul.f32 %v1163, %v901
        %v1166 = vmul.f32 %v1164, %v901
        %v1167 = vsel %vm906, %v1165, 0.0
        %v1168 = vsel %vm907, %v1166, 0.0
        %v1169 = vadd.f32 %v1167, 0.0
        %v1170 = vadd.f32 %v1168, 0.0
        %v1171 = vld [vmem:[#allocation2 + $0x28] sm:$0xff]
        %v1172 = vld [vmem:[#allocation2 + $0x30] sm:$0xff]
        %v1173 = vmul.f32 %v1171, %v917
        %v1174 = vmul.f32 %v1172, %v917
        %v1175 = vadd.f32 %v1169, %v1173
        %v1176 = vadd.f32 %v1170, %v1174
        %v1177 = vld [vmem:[#allocation2 + $0x29] sm:$0xff]
        %v1178 = vld [vmem:[#allocation2 + $0x31] sm:$0xff]
        %v1179 = vmul.f32 %v1177, %v927
        %v1180 = vmul.f32 %v1178, %v927
        %v1181 = vsel %vm932, %v1179, 0.0
        %v1182 = vsel %vm933, %v1180, 0.0
        %v1183 = vadd.f32 %v1175, %v1181
        %v1184 = vadd.f32 %v1176, %v1182
        %v1185 = vadd.f32 %v1161, %v1183
        %v1186 = vadd.f32 %v1162, %v1184
        %v1187 = vld [vmem:[#allocation2 + $0x37] sm:$0xff]
        %v1188 = vld [vmem:[#allocation2 + $0x3f] sm:$0xff]
        %v1189 = vmul.f32 %v1187, %v945
        %v1190 = vmul.f32 %v1188, %v945
        %v1191 = vsel %vm906, %v1189, 0.0
        %v1192 = vsel %vm907, %v1190, 0.0
        %v1193 = vadd.f32 %v1191, 0.0
        %v1194 = vadd.f32 %v1192, 0.0
        %v1195 = vld [vmem:[#allocation2 + $0x38] sm:$0xff]
        %v1196 = vld [vmem:[#allocation2 + $0x40] sm:$0xff]
        %v1197 = vmul.f32 %v1195, %v957
        %v1198 = vmul.f32 %v1196, %v957
        %v1199 = vadd.f32 %v1193, %v1197
        %v1200 = vadd.f32 %v1194, %v1198
        %v1201 = vld [vmem:[#allocation2 + $0x39] sm:$0xff]
        %v1202 = vld [vmem:[#allocation2 + $0x41] sm:$0xff]
        %v1203 = vmul.f32 %v1201, %v967
        %v1204 = vmul.f32 %v1202, %v967
        %v1205 = vsel %vm932, %v1203, 0.0
        %v1206 = vsel %vm933, %v1204, 0.0
        %v1207 = vadd.f32 %v1199, %v1205
        %v1208 = vadd.f32 %v1200, %v1206
        %v1209 = vadd.f32 %v1185, %v1207
        %v1210 = vadd.f32 %v1186, %v1208
        %1211 = vmatprep.subr.mxu0 0.0
        %1212 = vmatpush1.msra.mxu0 %v1209
        %1213 = vmatprep.subr.mxu0 0.0
        %1214 = vmatpush1.msra.mxu0 %v1210
        %1215 = vmatprep.subr.mxu0 0.0
        %1216 = vmatpush1.msra.mxu0 0.0
        %1217 = vmatprep.subr.mxu0 0.0
        %1218 = vmatpush1.msra.mxu0 0.0
        %1219 = vmatprep.subr.mxu0 0.0
        %1220 = vmatpush1.msra.mxu0 0.0
        %1221 = vmatprep.subr.mxu0 0.0
        %1222 = vmatpush1.msra.mxu0 0.0
        %1223 = vmatprep.subr.mxu0 0.0
        %1224 = vmatpush1.msra.mxu0 0.0
        %1225 = vmatprep.subr.mxu0 0.0
        %1226 = vmatpush1.msra.mxu0 0.0
        %1227 = vmatprep.subr.mxu0 0.0
        %1228 = vmatpush1.msra.mxu0 0.0
        %1229 = vmatprep.subr.mxu0 0.0
        %1230 = vmatpush1.msra.mxu0 0.0
        %1231 = vmatprep.subr.mxu0 0.0
        %1232 = vmatpush1.msra.mxu0 0.0
        %1233 = vmatprep.subr.mxu0 0.0
        %1234 = vmatpush1.msra.mxu0 0.0
        %1235 = vmatprep.subr.mxu0 0.0
        %1236 = vmatpush1.msra.mxu0 0.0
        %1237 = vmatprep.subr.mxu0 0.0
        %1238 = vmatpush1.msra.mxu0 0.0
        %1239 = vmatprep.subr.mxu0 0.0
        %1240 = vmatpush1.msra.mxu0 0.0
        %1241 = vmatprep.subr.mxu0 0.0
        %1242 = vmatpush1.msra.mxu0 0.0
        %1243 = vmatprep.subr.mxu0 0.0
        %1244 = vmatpush1.msra.mxu0 0.0
        %1245 = vmatprep.subr.mxu0 0.0
        %1246 = vmatpush1.msra.mxu0 0.0
        %1247 = vmatprep.subr.mxu0 0.0
        %1248 = vmatpush1.msra.mxu0 0.0
        %1249 = vmatprep.subr.mxu0 0.0
        %1250 = vmatpush1.msra.mxu0 0.0
        %1251 = vmatprep.subr.mxu0 0.0
        %1252 = vmatpush1.msra.mxu0 0.0
        %1253 = vmatprep.subr.mxu0 0.0
        %1254 = vmatpush1.msra.mxu0 0.0
        %1255 = vmatprep.subr.mxu0 0.0
        %1256 = vmatpush1.msra.mxu0 0.0
        %1257 = vmatprep.subr.mxu0 0.0
        %1258 = vmatpush1.msra.mxu0 0.0
        %1259 = vmatprep.subr.mxu0 0.0
        %1260 = vmatpush1.msra.mxu0 0.0
        %1261 = vmatprep.subr.mxu0 0.0
        %1262 = vmatpush1.msra.mxu0 0.0
        %1263 = vmatprep.subr.mxu0 0.0
        %1264 = vmatpush1.msra.mxu0 0.0
        %1265 = vmatprep.subr.mxu0 0.0
        %1266 = vmatpush1.msra.mxu0 0.0
        %1267 = vmatprep.subr.mxu0 0.0
        %1268 = vmatpush1.msra.mxu0 0.0
        %1269 = vmatprep.subr.mxu0 0.0
        %1270 = vmatpush1.msra.mxu0 0.0
        %1271 = vmatprep.subr.mxu0 0.0
        %1272 = vmatpush1.msra.mxu0 0.0
        %1273 = vmatprep.subr.mxu0 0.0
        %1274 = vmatpush1.msra.mxu0 0.0
        %1275 = vmatprep.mubr.f32.mxu0 0.0
        %1276 = vmatmul.mubr.f32.gmra.mrb[0].mxu0 %v977
        %v1277 = vpop.f32.mrb[0].mxu0
        %v1278 = vadd.f32 0.0, %v1277
        %v1279 = vpop.f32.mrb[0].mxu0
        %1280 = vdwg.mxu0
        %v1281 = vpack.c.bf16 %v1278, %v1278
        %s1282 = scalar_lea.vmem %s382, 4 [#allocation12]
        %1283 = vst.msk [vmem:[%s1282] sm:$0xf] %vm1050, %v1281
        %v1284 = vld [vmem:[%s340 + $0x20] sm:$0xff]
        %v1285 = vld [vmem:[%s340 + $0x28] sm:$0xff]
        %1286 = vmatprep.subr.mxu0 0.0
        %1287 = vmatpush1.msra.mxu0 %v1284
        %1288 = vmatprep.subr.mxu0 0.0
        %1289 = vmatpush1.msra.mxu0 %v1285
        %1290 = vmatprep.subr.mxu0 0.0
        %1291 = vmatpush1.msra.mxu0 0.0
        %1292 = vmatprep.subr.mxu0 0.0
        %1293 = vmatpush1.msra.mxu0 0.0
        %1294 = vmatprep.subr.mxu0 0.0
        %1295 = vmatpush1.msra.mxu0 0.0
        %1296 = vmatprep.subr.mxu0 0.0
        %1297 = vmatpush1.msra.mxu0 0.0
        %1298 = vmatprep.subr.mxu0 0.0
        %1299 = vmatpush1.msra.mxu0 0.0
        %1300 = vmatprep.subr.mxu0 0.0
        %1301 = vmatpush1.msra.mxu0 0.0
        %1302 = vmatprep.subr.mxu0 0.0
        %1303 = vmatpush1.msra.mxu0 0.0
        %1304 = vmatprep.subr.mxu0 0.0
        %1305 = vmatpush1.msra.mxu0 0.0
        %1306 = vmatprep.subr.mxu0 0.0
        %1307 = vmatpush1.msra.mxu0 0.0
        %1308 = vmatprep.subr.mxu0 0.0
        %1309 = vmatpush1.msra.mxu0 0.0
        %1310 = vmatprep.subr.mxu0 0.0
        %1311 = vmatpush1.msra.mxu0 0.0
        %1312 = vmatprep.subr.mxu0 0.0
        %1313 = vmatpush1.msra.mxu0 0.0
        %1314 = vmatprep.subr.mxu0 0.0
        %1315 = vmatpush1.msra.mxu0 0.0
        %1316 = vmatprep.subr.mxu0 0.0
        %1317 = vmatpush1.msra.mxu0 0.0
        %1318 = vmatprep.subr.mxu0 0.0
        %1319 = vmatpush1.msra.mxu0 0.0
        %1320 = vmatprep.subr.mxu0 0.0
        %1321 = vmatpush1.msra.mxu0 0.0
        %1322 = vmatprep.subr.mxu0 0.0
        %1323 = vmatpush1.msra.mxu0 0.0
        %1324 = vmatprep.subr.mxu0 0.0
        %1325 = vmatpush1.msra.mxu0 0.0
        %1326 = vmatprep.subr.mxu0 0.0
        %1327 = vmatpush1.msra.mxu0 0.0
        %1328 = vmatprep.subr.mxu0 0.0
        %1329 = vmatpush1.msra.mxu0 0.0
        %1330 = vmatprep.subr.mxu0 0.0
        %1331 = vmatpush1.msra.mxu0 0.0
        %1332 = vmatprep.subr.mxu0 0.0
        %1333 = vmatpush1.msra.mxu0 0.0
        %1334 = vmatprep.subr.mxu0 0.0
        %1335 = vmatpush1.msra.mxu0 0.0
        %1336 = vmatprep.subr.mxu0 0.0
        %1337 = vmatpush1.msra.mxu0 0.0
        %1338 = vmatprep.subr.mxu0 0.0
        %1339 = vmatpush1.msra.mxu0 0.0
        %1340 = vmatprep.subr.mxu0 0.0
        %1341 = vmatpush1.msra.mxu0 0.0
        %1342 = vmatprep.subr.mxu0 0.0
        %1343 = vmatpush1.msra.mxu0 0.0
        %1344 = vmatprep.subr.mxu0 0.0
        %1345 = vmatpush1.msra.mxu0 0.0
        %1346 = vmatprep.subr.mxu0 0.0
        %1347 = vmatpush1.msra.mxu0 0.0
        %1348 = vmatprep.subr.mxu0 0.0
        %1349 = vmatpush1.msra.mxu0 0.0
        %1350 = vmatprep.mubr.f32.mxu0 0.0
        %1351 = vmatmul.mubr.f32.gmra.mrb[0].mxu0 %v977
        %v1352 = vpop.f32.mrb[0].mxu0
        %v1353 = vadd.f32 0.0, %v1352
        %v1354 = vpop.f32.mrb[0].mxu0
        %1355 = vdwg.mxu0
        %v1356 = vpack.c.bf16 %v1353, %v1353
        %s1357 = scalar_lea.vmem %s402, 4 [#allocation16]
        %1358 = vst.msk [vmem:[%s1357] sm:$0xf] %vm1125, %v1356
        %v1359 = vld [vmem:[#allocation2 + $0x37] sm:$0xff]
        %v1360 = vld [vmem:[#allocation2 + $0x3f] sm:$0xff]
        %v1361 = vmul.f32 %v1359, %v1132
        %v1362 = vmul.f32 %v1360, %v1132
        %v1363 = vsel %vm906, %v1361, 0.0
        %v1364 = vsel %vm907, %v1362, 0.0
        %v1365 = vadd.f32 %v1363, 0.0
        %v1366 = vadd.f32 %v1364, 0.0
        %v1367 = vld [vmem:[#allocation2 + $0x38] sm:$0xff]
        %v1368 = vld [vmem:[#allocation2 + $0x40] sm:$0xff]
        %v1369 = vmul.f32 %v1367, %v1144
        %v1370 = vmul.f32 %v1368, %v1144
        %v1371 = vadd.f32 %v1365, %v1369
        %v1372 = vadd.f32 %v1366, %v1370
        %v1373 = vld [vmem:[#allocation2 + $0x39] sm:$0xff]
        %v1374 = vld [vmem:[#allocation2 + $0x41] sm:$0xff]
        %v1375 = vmul.f32 %v1373, %v1154
        %v1376 = vmul.f32 %v1374, %v1154
        %v1377 = vsel %vm932, %v1375, 0.0
        %v1378 = vsel %vm933, %v1376, 0.0
        %v1379 = vadd.f32 %v1371, %v1377
        %v1380 = vadd.f32 %v1372, %v1378
        %v1381 = vadd.f32 %v1379, 0.0
        %v1382 = vadd.f32 %v1380, 0.0
        %v1383 = vld [vmem:[#allocation2 + $0x47] sm:$0xff]
        %v1384 = vld [vmem:[#allocation2 + $0x4f] sm:$0xff]
        %v1385 = vmul.f32 %v1383, %v901
        %v1386 = vmul.f32 %v1384, %v901
        %v1387 = vsel %vm906, %v1385, 0.0
        %v1388 = vsel %vm907, %v1386, 0.0
        %v1389 = vadd.f32 %v1387, 0.0
        %v1390 = vadd.f32 %v1388, 0.0
        %v1391 = vld [vmem:[#allocation2 + $0x48] sm:$0xff]
        %v1392 = vld [vmem:[#allocation2 + $0x50] sm:$0xff]
        %v1393 = vmul.f32 %v1391, %v917
        %v1394 = vmul.f32 %v1392, %v917
        %v1395 = vadd.f32 %v1389, %v1393
        %v1396 = vadd.f32 %v1390, %v1394
        %v1397 = vld [vmem:[#allocation2 + $0x49] sm:$0xff]
        %v1398 = vld [vmem:[#allocation2 + $0x51] sm:$0xff]
        %v1399 = vmul.f32 %v1397, %v927
        %v1400 = vmul.f32 %v1398, %v927
        %v1401 = vsel %vm932, %v1399, 0.0
        %v1402 = vsel %vm933, %v1400, 0.0
        %v1403 = vadd.f32 %v1395, %v1401
        %v1404 = vadd.f32 %v1396, %v1402
        %v1405 = vadd.f32 %v1381, %v1403
        %v1406 = vadd.f32 %v1382, %v1404
        %v1407 = vld [vmem:[#allocation2 + $0x57] sm:$0xff]
        %v1408 = vld [vmem:[#allocation2 + $0x5f] sm:$0xff]
        %v1409 = vmul.f32 %v1407, %v945
        %v1410 = vmul.f32 %v1408, %v945
        %v1411 = vsel %vm906, %v1409, 0.0
        %v1412 = vsel %vm907, %v1410, 0.0
        %v1413 = vadd.f32 %v1411, 0.0
        %v1414 = vadd.f32 %v1412, 0.0
        %v1415 = vld [vmem:[#allocation2 + $0x58] sm:$0xff]
        %v1416 = vld [vmem:[#allocation2 + $0x60] sm:$0xff]
        %v1417 = vmul.f32 %v1415, %v957
        %v1418 = vmul.f32 %v1416, %v957
        %v1419 = vadd.f32 %v1413, %v1417
        %v1420 = vadd.f32 %v1414, %v1418
        %v1421 = vld [vmem:[#allocation2 + $0x59] sm:$0xff]
        %v1422 = vld [vmem:[#allocation2 + $0x61] sm:$0xff]
        %v1423 = vmul.f32 %v1421, %v967
        %v1424 = vmul.f32 %v1422, %v967
        %v1425 = vsel %vm932, %v1423, 0.0
        %v1426 = vsel %vm933, %v1424, 0.0
        %v1427 = vadd.f32 %v1419, %v1425
        %v1428 = vadd.f32 %v1420, %v1426
        %v1429 = vadd.f32 %v1405, %v1427
        %v1430 = vadd.f32 %v1406, %v1428
        %1431 = vmatprep.subr.mxu0 0.0
        %1432 = vmatpush1.msra.mxu0 %v1429
        %1433 = vmatprep.subr.mxu0 0.0
        %1434 = vmatpush1.msra.mxu0 %v1430
        %1435 = vmatprep.subr.mxu0 0.0
        %1436 = vmatpush1.msra.mxu0 0.0
        %1437 = vmatprep.subr.mxu0 0.0
        %1438 = vmatpush1.msra.mxu0 0.0
        %1439 = vmatprep.subr.mxu0 0.0
        %1440 = vmatpush1.msra.mxu0 0.0
        %1441 = vmatprep.subr.mxu0 0.0
        %1442 = vmatpush1.msra.mxu0 0.0
        %1443 = vmatprep.subr.mxu0 0.0
        %1444 = vmatpush1.msra.mxu0 0.0
        %1445 = vmatprep.subr.mxu0 0.0
        %1446 = vmatpush1.msra.mxu0 0.0
        %1447 = vmatprep.subr.mxu0 0.0
        %1448 = vmatpush1.msra.mxu0 0.0
        %1449 = vmatprep.subr.mxu0 0.0
        %1450 = vmatpush1.msra.mxu0 0.0
        %1451 = vmatprep.subr.mxu0 0.0
        %1452 = vmatpush1.msra.mxu0 0.0
        %1453 = vmatprep.subr.mxu0 0.0
        %1454 = vmatpush1.msra.mxu0 0.0
        %1455 = vmatprep.subr.mxu0 0.0
        %1456 = vmatpush1.msra.mxu0 0.0
        %1457 = vmatprep.subr.mxu0 0.0
        %1458 = vmatpush1.msra.mxu0 0.0
        %1459 = vmatprep.subr.mxu0 0.0
        %1460 = vmatpush1.msra.mxu0 0.0
        %1461 = vmatprep.subr.mxu0 0.0
        %1462 = vmatpush1.msra.mxu0 0.0
        %1463 = vmatprep.subr.mxu0 0.0
        %1464 = vmatpush1.msra.mxu0 0.0
        %1465 = vmatprep.subr.mxu0 0.0
        %1466 = vmatpush1.msra.mxu0 0.0
        %1467 = vmatprep.subr.mxu0 0.0
        %1468 = vmatpush1.msra.mxu0 0.0
        %1469 = vmatprep.subr.mxu0 0.0
        %1470 = vmatpush1.msra.mxu0 0.0
        %1471 = vmatprep.subr.mxu0 0.0
        %1472 = vmatpush1.msra.mxu0 0.0
        %1473 = vmatprep.subr.mxu0 0.0
        %1474 = vmatpush1.msra.mxu0 0.0
        %1475 = vmatprep.subr.mxu0 0.0
        %1476 = vmatpush1.msra.mxu0 0.0
        %1477 = vmatprep.subr.mxu0 0.0
        %1478 = vmatpush1.msra.mxu0 0.0
        %1479 = vmatprep.subr.mxu0 0.0
        %1480 = vmatpush1.msra.mxu0 0.0
        %1481 = vmatprep.subr.mxu0 0.0
        %1482 = vmatpush1.msra.mxu0 0.0
        %1483 = vmatprep.subr.mxu0 0.0
        %1484 = vmatpush1.msra.mxu0 0.0
        %1485 = vmatprep.subr.mxu0 0.0
        %1486 = vmatpush1.msra.mxu0 0.0
        %1487 = vmatprep.subr.mxu0 0.0
        %1488 = vmatpush1.msra.mxu0 0.0
        %1489 = vmatprep.subr.mxu0 0.0
        %1490 = vmatpush1.msra.mxu0 0.0
        %1491 = vmatprep.subr.mxu0 0.0
        %1492 = vmatpush1.msra.mxu0 0.0
        %1493 = vmatprep.subr.mxu0 0.0
        %1494 = vmatpush1.msra.mxu0 0.0
        %1495 = vmatprep.mubr.f32.mxu0 0.0
        %1496 = vmatmul.mubr.f32.gmra.mrb[0].mxu0 %v977
        %v1497 = vpop.f32.mrb[0].mxu0
        %v1498 = vadd.f32 0.0, %v1497
        %v1499 = vpop.f32.mrb[0].mxu0
        %1500 = vdwg.mxu0
        %v1501 = vpack.c.bf16 %v1498, %v1498
        %s1502 = scalar_lea.vmem %s382, 8 [#allocation12]
        %1503 = vst.msk [vmem:[%s1502] sm:$0xf] %vm1050, %v1501
        %v1504 = vld [vmem:[%s340 + $0x40] sm:$0xff]
        %v1505 = vld [vmem:[%s340 + $0x48] sm:$0xff]
        %1506 = vmatprep.subr.mxu0 0.0
        %1507 = vmatpush1.msra.mxu0 %v1504
        %1508 = vmatprep.subr.mxu0 0.0
        %1509 = vmatpush1.msra.mxu0 %v1505
        %1510 = vmatprep.subr.mxu0 0.0
        %1511 = vmatpush1.msra.mxu0 0.0
        %1512 = vmatprep.subr.mxu0 0.0
        %1513 = vmatpush1.msra.mxu0 0.0
        %1514 = vmatprep.subr.mxu0 0.0
        %1515 = vmatpush1.msra.mxu0 0.0
        %1516 = vmatprep.subr.mxu0 0.0
        %1517 = vmatpush1.msra.mxu0 0.0
        %1518 = vmatprep.subr.mxu0 0.0
        %1519 = vmatpush1.msra.mxu0 0.0
        %1520 = vmatprep.subr.mxu0 0.0
        %1521 = vmatpush1.msra.mxu0 0.0
        %1522 = vmatprep.subr.mxu0 0.0
        %1523 = vmatpush1.msra.mxu0 0.0
        %1524 = vmatprep.subr.mxu0 0.0
        %1525 = vmatpush1.msra.mxu0 0.0
        %1526 = vmatprep.subr.mxu0 0.0
        %1527 = vmatpush1.msra.mxu0 0.0
        %1528 = vmatprep.subr.mxu0 0.0
        %1529 = vmatpush1.msra.mxu0 0.0
        %1530 = vmatprep.subr.mxu0 0.0
        %1531 = vmatpush1.msra.mxu0 0.0
        %1532 = vmatprep.subr.mxu0 0.0
        %1533 = vmatpush1.msra.mxu0 0.0
        %1534 = vmatprep.subr.mxu0 0.0
        %1535 = vmatpush1.msra.mxu0 0.0
        %1536 = vmatprep.subr.mxu0 0.0
        %1537 = vmatpush1.msra.mxu0 0.0
        %1538 = vmatprep.subr.mxu0 0.0
        %1539 = vmatpush1.msra.mxu0 0.0
        %1540 = vmatprep.subr.mxu0 0.0
        %1541 = vmatpush1.msra.mxu0 0.0
        %1542 = vmatprep.subr.mxu0 0.0
        %1543 = vmatpush1.msra.mxu0 0.0
        %1544 = vmatprep.subr.mxu0 0.0
        %1545 = vmatpush1.msra.mxu0 0.0
        %1546 = vmatprep.subr.mxu0 0.0
        %1547 = vmatpush1.msra.mxu0 0.0
        %1548 = vmatprep.subr.mxu0 0.0
        %1549 = vmatpush1.msra.mxu0 0.0
        %1550 = vmatprep.subr.mxu0 0.0
        %1551 = vmatpush1.msra.mxu0 0.0
        %1552 = vmatprep.subr.mxu0 0.0
        %1553 = vmatpush1.msra.mxu0 0.0
        %1554 = vmatprep.subr.mxu0 0.0
        %1555 = vmatpush1.msra.mxu0 0.0
        %1556 = vmatprep.subr.mxu0 0.0
        %1557 = vmatpush1.msra.mxu0 0.0
        %1558 = vmatprep.subr.mxu0 0.0
        %1559 = vmatpush1.msra.mxu0 0.0
        %1560 = vmatprep.subr.mxu0 0.0
        %1561 = vmatpush1.msra.mxu0 0.0
        %1562 = vmatprep.subr.mxu0 0.0
        %1563 = vmatpush1.msra.mxu0 0.0
        %1564 = vmatprep.subr.mxu0 0.0
        %1565 = vmatpush1.msra.mxu0 0.0
        %1566 = vmatprep.subr.mxu0 0.0
        %1567 = vmatpush1.msra.mxu0 0.0
        %1568 = vmatprep.subr.mxu0 0.0
        %1569 = vmatpush1.msra.mxu0 0.0
        %1570 = vmatprep.mubr.f32.mxu0 0.0
        %1571 = vmatmul.mubr.f32.gmra.mrb[0].mxu0 %v977
        %v1572 = vpop.f32.mrb[0].mxu0
        %v1573 = vadd.f32 0.0, %v1572
        %v1574 = vpop.f32.mrb[0].mxu0
        %1575 = vdwg.mxu0
        %v1576 = vpack.c.bf16 %v1573, %v1573
        %s1577 = scalar_lea.vmem %s402, 8 [#allocation16]
        %1578 = vst.msk [vmem:[%s1577] sm:$0xf] %vm1125, %v1576
        %v1579 = vld [vmem:[#allocation2 + $0x57] sm:$0xff]
        %v1580 = vld [vmem:[#allocation2 + $0x5f] sm:$0xff]
        %v1581 = vmul.f32 %v1579, %v1132
        %v1582 = vmul.f32 %v1580, %v1132
        %v1583 = vsel %vm906, %v1581, 0.0
        %v1584 = vsel %vm907, %v1582, 0.0
        %v1585 = vadd.f32 %v1583, 0.0
        %v1586 = vadd.f32 %v1584, 0.0
        %v1587 = vld [vmem:[#allocation2 + $0x58] sm:$0xff]
        %v1588 = vld [vmem:[#allocation2 + $0x60] sm:$0xff]
        %v1589 = vmul.f32 %v1587, %v1144
        %v1590 = vmul.f32 %v1588, %v1144
        %v1591 = vadd.f32 %v1585, %v1589
        %v1592 = vadd.f32 %v1586, %v1590
        %v1593 = vld [vmem:[#allocation2 + $0x59] sm:$0xff]
        %v1594 = vld [vmem:[#allocation2 + $0x61] sm:$0xff]
        %v1595 = vmul.f32 %v1593, %v1154
        %v1596 = vmul.f32 %v1594, %v1154
        %v1597 = vsel %vm932, %v1595, 0.0
        %v1598 = vsel %vm933, %v1596, 0.0
        %v1599 = vadd.f32 %v1591, %v1597
        %v1600 = vadd.f32 %v1592, %v1598
        %v1601 = vadd.f32 %v1599, 0.0
        %v1602 = vadd.f32 %v1600, 0.0
        %v1603 = vld [vmem:[#allocation2 + $0x67] sm:$0xff]
        %v1604 = vld [vmem:[#allocation2 + $0x6f] sm:$0xff]
        %v1605 = vmul.f32 %v1603, %v901
        %v1606 = vmul.f32 %v1604, %v901
        %v1607 = vsel %vm906, %v1605, 0.0
        %v1608 = vsel %vm907, %v1606, 0.0
        %v1609 = vadd.f32 %v1607, 0.0
        %v1610 = vadd.f32 %v1608, 0.0
        %v1611 = vld [vmem:[#allocation2 + $0x68] sm:$0xff]
        %v1612 = vld [vmem:[#allocation2 + $0x70] sm:$0xff]
        %v1613 = vmul.f32 %v1611, %v917
        %v1614 = vmul.f32 %v1612, %v917
        %v1615 = vadd.f32 %v1609, %v1613
        %v1616 = vadd.f32 %v1610, %v1614
        %v1617 = vld [vmem:[#allocation2 + $0x69] sm:$0xff]
        %v1618 = vld [vmem:[#allocation2 + $0x71] sm:$0xff]
        %v1619 = vmul.f32 %v1617, %v927
        %v1620 = vmul.f32 %v1618, %v927
        %v1621 = vsel %vm932, %v1619, 0.0
        %v1622 = vsel %vm933, %v1620, 0.0
        %v1623 = vadd.f32 %v1615, %v1621
        %v1624 = vadd.f32 %v1616, %v1622
        %v1625 = vadd.f32 %v1601, %v1623
        %v1626 = vadd.f32 %v1602, %v1624
        %v1627 = vld [vmem:[#allocation2 + $0x77] sm:$0xff]
        %v1628 = vld [vmem:[#allocation2 + $0x7f] sm:$0xff]
        %v1629 = vmul.f32 %v1627, %v945
        %v1630 = vmul.f32 %v1628, %v945
        %v1631 = vsel %vm906, %v1629, 0.0
        %v1632 = vsel %vm907, %v1630, 0.0
        %v1633 = vadd.f32 %v1631, 0.0
        %v1634 = vadd.f32 %v1632, 0.0
        %v1635 = vld [vmem:[#allocation2 + $0x78] sm:$0xff]
        %v1636 = vld [vmem:[#allocation2 + $0x80] sm:$0xff]
        %v1637 = vmul.f32 %v1635, %v957
        %v1638 = vmul.f32 %v1636, %v957
        %v1639 = vadd.f32 %v1633, %v1637
        %v1640 = vadd.f32 %v1634, %v1638
        %v1641 = vld [vmem:[#allocation2 + $0x79] sm:$0xff]
        %v1642 = vld [vmem:[#allocation2 + $0x81] sm:$0xff]
        %v1643 = vmul.f32 %v1641, %v967
        %v1644 = vmul.f32 %v1642, %v967
        %v1645 = vsel %vm932, %v1643, 0.0
        %v1646 = vsel %vm933, %v1644, 0.0
        %v1647 = vadd.f32 %v1639, %v1645
        %v1648 = vadd.f32 %v1640, %v1646
        %v1649 = vadd.f32 %v1625, %v1647
        %v1650 = vadd.f32 %v1626, %v1648
        %1651 = vmatprep.subr.mxu0 0.0
        %1652 = vmatpush1.msra.mxu0 %v1649
        %1653 = vmatprep.subr.mxu0 0.0
        %1654 = vmatpush1.msra.mxu0 %v1650
        %1655 = vmatprep.subr.mxu0 0.0
        %1656 = vmatpush1.msra.mxu0 0.0
        %1657 = vmatprep.subr.mxu0 0.0
        %1658 = vmatpush1.msra.mxu0 0.0
        %1659 = vmatprep.subr.mxu0 0.0
        %1660 = vmatpush1.msra.mxu0 0.0
        %1661 = vmatprep.subr.mxu0 0.0
        %1662 = vmatpush1.msra.mxu0 0.0
        %1663 = vmatprep.subr.mxu0 0.0
        %1664 = vmatpush1.msra.mxu0 0.0
        %1665 = vmatprep.subr.mxu0 0.0
        %1666 = vmatpush1.msra.mxu0 0.0
        %1667 = vmatprep.subr.mxu0 0.0
        %1668 = vmatpush1.msra.mxu0 0.0
        %1669 = vmatprep.subr.mxu0 0.0
        %1670 = vmatpush1.msra.mxu0 0.0
        %1671 = vmatprep.subr.mxu0 0.0
        %1672 = vmatpush1.msra.mxu0 0.0
        %1673 = vmatprep.subr.mxu0 0.0
        %1674 = vmatpush1.msra.mxu0 0.0
        %1675 = vmatprep.subr.mxu0 0.0
        %1676 = vmatpush1.msra.mxu0 0.0
        %1677 = vmatprep.subr.mxu0 0.0
        %1678 = vmatpush1.msra.mxu0 0.0
        %1679 = vmatprep.subr.mxu0 0.0
        %1680 = vmatpush1.msra.mxu0 0.0
        %1681 = vmatprep.subr.mxu0 0.0
        %1682 = vmatpush1.msra.mxu0 0.0
        %1683 = vmatprep.subr.mxu0 0.0
        %1684 = vmatpush1.msra.mxu0 0.0
        %1685 = vmatprep.subr.mxu0 0.0
        %1686 = vmatpush1.msra.mxu0 0.0
        %1687 = vmatprep.subr.mxu0 0.0
        %1688 = vmatpush1.msra.mxu0 0.0
        %1689 = vmatprep.subr.mxu0 0.0
        %1690 = vmatpush1.msra.mxu0 0.0
        %1691 = vmatprep.subr.mxu0 0.0
        %1692 = vmatpush1.msra.mxu0 0.0
        %1693 = vmatprep.subr.mxu0 0.0
        %1694 = vmatpush1.msra.mxu0 0.0
        %1695 = vmatprep.subr.mxu0 0.0
        %1696 = vmatpush1.msra.mxu0 0.0
        %1697 = vmatprep.subr.mxu0 0.0
        %1698 = vmatpush1.msra.mxu0 0.0
        %1699 = vmatprep.subr.mxu0 0.0
        %1700 = vmatpush1.msra.mxu0 0.0
        %1701 = vmatprep.subr.mxu0 0.0
        %1702 = vmatpush1.msra.mxu0 0.0
        %1703 = vmatprep.subr.mxu0 0.0
        %1704 = vmatpush1.msra.mxu0 0.0
        %1705 = vmatprep.subr.mxu0 0.0
        %1706 = vmatpush1.msra.mxu0 0.0
        %1707 = vmatprep.subr.mxu0 0.0
        %1708 = vmatpush1.msra.mxu0 0.0
        %1709 = vmatprep.subr.mxu0 0.0
        %1710 = vmatpush1.msra.mxu0 0.0
        %1711 = vmatprep.subr.mxu0 0.0
        %1712 = vmatpush1.msra.mxu0 0.0
        %1713 = vmatprep.subr.mxu0 0.0
        %1714 = vmatpush1.msra.mxu0 0.0
        %1715 = vmatprep.mubr.f32.mxu0 0.0
        %1716 = vmatmul.mubr.f32.gmra.mrb[0].mxu0 %v977
        %v1717 = vpop.f32.mrb[0].mxu0
        %v1718 = vadd.f32 0.0, %v1717
        %v1719 = vpop.f32.mrb[0].mxu0
        %1720 = vdwg.mxu0
        %v1721 = vpack.c.bf16 %v1718, %v1718
        %s1722 = scalar_lea.vmem %s382, 12 [#allocation12]
        %1723 = vst.msk [vmem:[%s1722] sm:$0xf] %vm1050, %v1721
        %v1724 = vld [vmem:[%s340 + $0x60] sm:$0xff]
        %v1725 = vld [vmem:[%s340 + $0x68] sm:$0xff]
        %1726 = vmatprep.subr.mxu0 0.0
        %1727 = vmatpush1.msra.mxu0 %v1724
        %1728 = vmatprep.subr.mxu0 0.0
        %1729 = vmatpush1.msra.mxu0 %v1725
        %1730 = vmatprep.subr.mxu0 0.0
        %1731 = vmatpush1.msra.mxu0 0.0
        %1732 = vmatprep.subr.mxu0 0.0
        %1733 = vmatpush1.msra.mxu0 0.0
        %1734 = vmatprep.subr.mxu0 0.0
        %1735 = vmatpush1.msra.mxu0 0.0
        %1736 = vmatprep.subr.mxu0 0.0
        %1737 = vmatpush1.msra.mxu0 0.0
        %1738 = vmatprep.subr.mxu0 0.0
        %1739 = vmatpush1.msra.mxu0 0.0
        %1740 = vmatprep.subr.mxu0 0.0
        %1741 = vmatpush1.msra.mxu0 0.0
        %1742 = vmatprep.subr.mxu0 0.0
        %1743 = vmatpush1.msra.mxu0 0.0
        %1744 = vmatprep.subr.mxu0 0.0
        %1745 = vmatpush1.msra.mxu0 0.0
        %1746 = vmatprep.subr.mxu0 0.0
        %1747 = vmatpush1.msra.mxu0 0.0
        %1748 = vmatprep.subr.mxu0 0.0
        %1749 = vmatpush1.msra.mxu0 0.0
        %1750 = vmatprep.subr.mxu0 0.0
        %1751 = vmatpush1.msra.mxu0 0.0
        %1752 = vmatprep.subr.mxu0 0.0
        %1753 = vmatpush1.msra.mxu0 0.0
        %1754 = vmatprep.subr.mxu0 0.0
        %1755 = vmatpush1.msra.mxu0 0.0
        %1756 = vmatprep.subr.mxu0 0.0
        %1757 = vmatpush1.msra.mxu0 0.0
        %1758 = vmatprep.subr.mxu0 0.0
        %1759 = vmatpush1.msra.mxu0 0.0
        %1760 = vmatprep.subr.mxu0 0.0
        %1761 = vmatpush1.msra.mxu0 0.0
        %1762 = vmatprep.subr.mxu0 0.0
        %1763 = vmatpush1.msra.mxu0 0.0
        %1764 = vmatprep.subr.mxu0 0.0
        %1765 = vmatpush1.msra.mxu0 0.0
        %1766 = vmatprep.subr.mxu0 0.0
        %1767 = vmatpush1.msra.mxu0 0.0
        %1768 = vmatprep.subr.mxu0 0.0
        %1769 = vmatpush1.msra.mxu0 0.0
        %1770 = vmatprep.subr.mxu0 0.0
        %1771 = vmatpush1.msra.mxu0 0.0
        %1772 = vmatprep.subr.mxu0 0.0
        %1773 = vmatpush1.msra.mxu0 0.0
        %1774 = vmatprep.subr.mxu0 0.0
        %1775 = vmatpush1.msra.mxu0 0.0
        %1776 = vmatprep.subr.mxu0 0.0
        %1777 = vmatpush1.msra.mxu0 0.0
        %1778 = vmatprep.subr.mxu0 0.0
        %1779 = vmatpush1.msra.mxu0 0.0
        %1780 = vmatprep.subr.mxu0 0.0
        %1781 = vmatpush1.msra.mxu0 0.0
        %1782 = vmatprep.subr.mxu0 0.0
        %1783 = vmatpush1.msra.mxu0 0.0
        %1784 = vmatprep.subr.mxu0 0.0
        %1785 = vmatpush1.msra.mxu0 0.0
        %1786 = vmatprep.subr.mxu0 0.0
        %1787 = vmatpush1.msra.mxu0 0.0
        %1788 = vmatprep.subr.mxu0 0.0
        %1789 = vmatpush1.msra.mxu0 0.0
        %1790 = vmatprep.mubr.f32.mxu0 0.0
        %1791 = vmatmul.mubr.f32.gmra.mrb[0].mxu0 %v977
        %v1792 = vpop.f32.mrb[0].mxu0
        %v1793 = vadd.f32 0.0, %v1792
        %v1794 = vpop.f32.mrb[0].mxu0
        %1795 = vdwg.mxu0
        %v1796 = vpack.c.bf16 %v1793, %v1793
        %s1797 = scalar_lea.vmem %s402, 12 [#allocation16]
        %1798 = vst.msk [vmem:[%s1797] sm:$0xf] %vm1125, %v1796
        %v1799 = vld [vmem:[#allocation2 + $0x77] sm:$0xff]
        %v1800 = vld [vmem:[#allocation2 + $0x7f] sm:$0xff]
        %v1801 = vmul.f32 %v1799, %v1132
        %v1802 = vmul.f32 %v1800, %v1132
        %v1803 = vsel %vm906, %v1801, 0.0
        %v1804 = vsel %vm907, %v1802, 0.0
        %v1805 = vadd.f32 %v1803, 0.0
        %v1806 = vadd.f32 %v1804, 0.0
        %v1807 = vld [vmem:[#allocation2 + $0x78] sm:$0xff]
        %v1808 = vld [vmem:[#allocation2 + $0x80] sm:$0xff]
        %v1809 = vmul.f32 %v1807, %v1144
        %v1810 = vmul.f32 %v1808, %v1144
        %v1811 = vadd.f32 %v1805, %v1809
        %v1812 = vadd.f32 %v1806, %v1810
        %v1813 = vld [vmem:[#allocation2 + $0x79] sm:$0xff]
        %v1814 = vld [vmem:[#allocation2 + $0x81] sm:$0xff]
        %v1815 = vmul.f32 %v1813, %v1154
        %v1816 = vmul.f32 %v1814, %v1154
        %v1817 = vsel %vm932, %v1815, 0.0
        %v1818 = vsel %vm933, %v1816, 0.0
        %v1819 = vadd.f32 %v1811, %v1817
        %v1820 = vadd.f32 %v1812, %v1818
        %v1821 = vadd.f32 %v1819, 0.0
        %v1822 = vadd.f32 %v1820, 0.0
        %v1823 = vld [vmem:[#allocation2 + $0x87] sm:$0xff]
        %v1824 = vld [vmem:[#allocation2 + $0x8f] sm:$0xff]
        %v1825 = vmul.f32 %v1823, %v901
        %v1826 = vmul.f32 %v1824, %v901
        %v1827 = vsel %vm906, %v1825, 0.0
        %v1828 = vsel %vm907, %v1826, 0.0
        %v1829 = vadd.f32 %v1827, 0.0
        %v1830 = vadd.f32 %v1828, 0.0
        %v1831 = vld [vmem:[#allocation2 + $0x88] sm:$0xff]
        %v1832 = vld [vmem:[#allocation2 + $0x90] sm:$0xff]
        %v1833 = vmul.f32 %v1831, %v917
        %v1834 = vmul.f32 %v1832, %v917
        %v1835 = vadd.f32 %v1829, %v1833
        %v1836 = vadd.f32 %v1830, %v1834
        %v1837 = vld [vmem:[#allocation2 + $0x89] sm:$0xff]
        %v1838 = vld [vmem:[#allocation2 + $0x91] sm:$0xff]
        %v1839 = vmul.f32 %v1837, %v927
        %v1840 = vmul.f32 %v1838, %v927
        %v1841 = vsel %vm932, %v1839, 0.0
        %v1842 = vsel %vm933, %v1840, 0.0
        %v1843 = vadd.f32 %v1835, %v1841
        %v1844 = vadd.f32 %v1836, %v1842
        %v1845 = vadd.f32 %v1821, %v1843
        %v1846 = vadd.f32 %v1822, %v1844
        %v1847 = vld [vmem:[#allocation2 + $0x97] sm:$0xff]
        %v1848 = vld [vmem:[#allocation2 + $0x9f] sm:$0xff]
        %v1849 = vmul.f32 %v1847, %v945
        %v1850 = vmul.f32 %v1848, %v945
        %v1851 = vsel %vm906, %v1849, 0.0
        %v1852 = vsel %vm907, %v1850, 0.0
        %v1853 = vadd.f32 %v1851, 0.0
        %v1854 = vadd.f32 %v1852, 0.0
        %v1855 = vld [vmem:[#allocation2 + $0x98] sm:$0xff]
        %v1856 = vld [vmem:[#allocation2 + $0xa0] sm:$0xff]
        %v1857 = vmul.f32 %v1855, %v957
        %v1858 = vmul.f32 %v1856, %v957
        %v1859 = vadd.f32 %v1853, %v1857
        %v1860 = vadd.f32 %v1854, %v1858
        %v1861 = vld [vmem:[#allocation2 + $0x99] sm:$0xff]
        %v1862 = vld [vmem:[#allocation2 + $0xa1] sm:$0xff]
        %v1863 = vmul.f32 %v1861, %v967
        %v1864 = vmul.f32 %v1862, %v967
        %v1865 = vsel %vm932, %v1863, 0.0
        %v1866 = vsel %vm933, %v1864, 0.0
        %v1867 = vadd.f32 %v1859, %v1865
        %v1868 = vadd.f32 %v1860, %v1866
        %v1869 = vadd.f32 %v1845, %v1867
        %v1870 = vadd.f32 %v1846, %v1868
        %1871 = vmatprep.subr.mxu0 0.0
        %1872 = vmatpush1.msra.mxu0 %v1869
        %1873 = vmatprep.subr.mxu0 0.0
        %1874 = vmatpush1.msra.mxu0 %v1870
        %1875 = vmatprep.subr.mxu0 0.0
        %1876 = vmatpush1.msra.mxu0 0.0
        %1877 = vmatprep.subr.mxu0 0.0
        %1878 = vmatpush1.msra.mxu0 0.0
        %1879 = vmatprep.subr.mxu0 0.0
        %1880 = vmatpush1.msra.mxu0 0.0
        %1881 = vmatprep.subr.mxu0 0.0
        %1882 = vmatpush1.msra.mxu0 0.0
        %1883 = vmatprep.subr.mxu0 0.0
        %1884 = vmatpush1.msra.mxu0 0.0
        %1885 = vmatprep.subr.mxu0 0.0
        %1886 = vmatpush1.msra.mxu0 0.0
        %1887 = vmatprep.subr.mxu0 0.0
        %1888 = vmatpush1.msra.mxu0 0.0
        %1889 = vmatprep.subr.mxu0 0.0
        %1890 = vmatpush1.msra.mxu0 0.0
        %1891 = vmatprep.subr.mxu0 0.0
        %1892 = vmatpush1.msra.mxu0 0.0
        %1893 = vmatprep.subr.mxu0 0.0
        %1894 = vmatpush1.msra.mxu0 0.0
        %1895 = vmatprep.subr.mxu0 0.0
        %1896 = vmatpush1.msra.mxu0 0.0
        %1897 = vmatprep.subr.mxu0 0.0
        %1898 = vmatpush1.msra.mxu0 0.0
        %1899 = vmatprep.subr.mxu0 0.0
        %1900 = vmatpush1.msra.mxu0 0.0
        %1901 = vmatprep.subr.mxu0 0.0
        %1902 = vmatpush1.msra.mxu0 0.0
        %1903 = vmatprep.subr.mxu0 0.0
        %1904 = vmatpush1.msra.mxu0 0.0
        %1905 = vmatprep.subr.mxu0 0.0
        %1906 = vmatpush1.msra.mxu0 0.0
        %1907 = vmatprep.subr.mxu0 0.0
        %1908 = vmatpush1.msra.mxu0 0.0
        %1909 = vmatprep.subr.mxu0 0.0
        %1910 = vmatpush1.msra.mxu0 0.0
        %1911 = vmatprep.subr.mxu0 0.0
        %1912 = vmatpush1.msra.mxu0 0.0
        %1913 = vmatprep.subr.mxu0 0.0
        %1914 = vmatpush1.msra.mxu0 0.0
        %1915 = vmatprep.subr.mxu0 0.0
        %1916 = vmatpush1.msra.mxu0 0.0
        %1917 = vmatprep.subr.mxu0 0.0
        %1918 = vmatpush1.msra.mxu0 0.0
        %1919 = vmatprep.subr.mxu0 0.0
        %1920 = vmatpush1.msra.mxu0 0.0
        %1921 = vmatprep.subr.mxu0 0.0
        %1922 = vmatpush1.msra.mxu0 0.0
        %1923 = vmatprep.subr.mxu0 0.0
        %1924 = vmatpush1.msra.mxu0 0.0
        %1925 = vmatprep.subr.mxu0 0.0
        %1926 = vmatpush1.msra.mxu0 0.0
        %1927 = vmatprep.subr.mxu0 0.0
        %1928 = vmatpush1.msra.mxu0 0.0
        %1929 = vmatprep.subr.mxu0 0.0
        %1930 = vmatpush1.msra.mxu0 0.0
        %1931 = vmatprep.subr.mxu0 0.0
        %1932 = vmatpush1.msra.mxu0 0.0
        %1933 = vmatprep.subr.mxu0 0.0
        %1934 = vmatpush1.msra.mxu0 0.0
        %1935 = vmatprep.mubr.f32.mxu0 0.0
        %1936 = vmatmul.mubr.f32.gmra.mrb[0].mxu0 %v977
        %v1937 = vpop.f32.mrb[0].mxu0
        %v1938 = vadd.f32 0.0, %v1937
        %v1939 = vpop.f32.mrb[0].mxu0
        %1940 = vdwg.mxu0
        %v1941 = vpack.c.bf16 %v1938, %v1938
        %s1942 = scalar_lea.vmem %s382, 16 [#allocation12]
        %1943 = vst.msk [vmem:[%s1942] sm:$0xf] %vm1050, %v1941
        %v1944 = vld [vmem:[%s340 + $0x80] sm:$0xff]
        %v1945 = vld [vmem:[%s340 + $0x88] sm:$0xff]
        %1946 = vmatprep.subr.mxu0 0.0
        %1947 = vmatpush1.msra.mxu0 %v1944
        %1948 = vmatprep.subr.mxu0 0.0
        %1949 = vmatpush1.msra.mxu0 %v1945
        %1950 = vmatprep.subr.mxu0 0.0
        %1951 = vmatpush1.msra.mxu0 0.0
        %1952 = vmatprep.subr.mxu0 0.0
        %1953 = vmatpush1.msra.mxu0 0.0
        %1954 = vmatprep.subr.mxu0 0.0
        %1955 = vmatpush1.msra.mxu0 0.0
        %1956 = vmatprep.subr.mxu0 0.0
        %1957 = vmatpush1.msra.mxu0 0.0
        %1958 = vmatprep.subr.mxu0 0.0
        %1959 = vmatpush1.msra.mxu0 0.0
        %1960 = vmatprep.subr.mxu0 0.0
        %1961 = vmatpush1.msra.mxu0 0.0
        %1962 = vmatprep.subr.mxu0 0.0
        %1963 = vmatpush1.msra.mxu0 0.0
        %1964 = vmatprep.subr.mxu0 0.0
        %1965 = vmatpush1.msra.mxu0 0.0
        %1966 = vmatprep.subr.mxu0 0.0
        %1967 = vmatpush1.msra.mxu0 0.0
        %1968 = vmatprep.subr.mxu0 0.0
        %1969 = vmatpush1.msra.mxu0 0.0
        %1970 = vmatprep.subr.mxu0 0.0
        %1971 = vmatpush1.msra.mxu0 0.0
        %1972 = vmatprep.subr.mxu0 0.0
        %1973 = vmatpush1.msra.mxu0 0.0
        %1974 = vmatprep.subr.mxu0 0.0
        %1975 = vmatpush1.msra.mxu0 0.0
        %1976 = vmatprep.subr.mxu0 0.0
        %1977 = vmatpush1.msra.mxu0 0.0
        %1978 = vmatprep.subr.mxu0 0.0
        %1979 = vmatpush1.msra.mxu0 0.0
        %1980 = vmatprep.subr.mxu0 0.0
        %1981 = vmatpush1.msra.mxu0 0.0
        %1982 = vmatprep.subr.mxu0 0.0
        %1983 = vmatpush1.msra.mxu0 0.0
        %1984 = vmatprep.subr.mxu0 0.0
        %1985 = vmatpush1.msra.mxu0 0.0
        %1986 = vmatprep.subr.mxu0 0.0
        %1987 = vmatpush1.msra.mxu0 0.0
        %1988 = vmatprep.subr.mxu0 0.0
        %1989 = vmatpush1.msra.mxu0 0.0
        %1990 = vmatprep.subr.mxu0 0.0
        %1991 = vmatpush1.msra.mxu0 0.0
        %1992 = vmatprep.subr.mxu0 0.0
        %1993 = vmatpush1.msra.mxu0 0.0
        %1994 = vmatprep.subr.mxu0 0.0
        %1995 = vmatpush1.msra.mxu0 0.0
        %1996 = vmatprep.subr.mxu0 0.0
        %1997 = vmatpush1.msra.mxu0 0.0
        %1998 = vmatprep.subr.mxu0 0.0
        %1999 = vmatpush1.msra.mxu0 0.0
        %2000 = vmatprep.subr.mxu0 0.0
        %2001 = vmatpush1.msra.mxu0 0.0
        %2002 = vmatprep.subr.mxu0 0.0
        %2003 = vmatpush1.msra.mxu0 0.0
        %2004 = vmatprep.subr.mxu0 0.0
        %2005 = vmatpush1.msra.mxu0 0.0
        %2006 = vmatprep.subr.mxu0 0.0
        %2007 = vmatpush1.msra.mxu0 0.0
        %2008 = vmatprep.subr.mxu0 0.0
        %2009 = vmatpush1.msra.mxu0 0.0
        %2010 = vmatprep.mubr.f32.mxu0 0.0
        %2011 = vmatmul.mubr.f32.gmra.mrb[0].mxu0 %v977
        %v2012 = vpop.f32.mrb[0].mxu0
        %v2013 = vadd.f32 0.0, %v2012
        %v2014 = vpop.f32.mrb[0].mxu0
        %2015 = vdwg.mxu0
        %v2016 = vpack.c.bf16 %v2013, %v2013
        %s2017 = scalar_lea.vmem %s402, 16 [#allocation16]
        %2018 = vst.msk [vmem:[%s2017] sm:$0xf] %vm1125, %v2016
        %v2019 = vld [vmem:[#allocation2 + $0x97] sm:$0xff]
        %v2020 = vld [vmem:[#allocation2 + $0x9f] sm:$0xff]
        %v2021 = vmul.f32 %v2019, %v1132
        %v2022 = vmul.f32 %v2020, %v1132
        %v2023 = vsel %vm906, %v2021, 0.0
        %v2024 = vsel %vm907, %v2022, 0.0
        %v2025 = vadd.f32 %v2023, 0.0
        %v2026 = vadd.f32 %v2024, 0.0
        %v2027 = vld [vmem:[#allocation2 + $0x98] sm:$0xff]
        %v2028 = vld [vmem:[#allocation2 + $0xa0] sm:$0xff]
        %v2029 = vmul.f32 %v2027, %v1144
        %v2030 = vmul.f32 %v2028, %v1144
        %v2031 = vadd.f32 %v2025, %v2029
        %v2032 = vadd.f32 %v2026, %v2030
        %v2033 = vld [vmem:[#allocation2 + $0x99] sm:$0xff]
        %v2034 = vld [vmem:[#allocation2 + $0xa1] sm:$0xff]
        %v2035 = vmul.f32 %v2033, %v1154
        %v2036 = vmul.f32 %v2034, %v1154
        %v2037 = vsel %vm932, %v2035, 0.0
        %v2038 = vsel %vm933, %v2036, 0.0
        %v2039 = vadd.f32 %v2031, %v2037
        %v2040 = vadd.f32 %v2032, %v2038
        %v2041 = vadd.f32 %v2039, 0.0
        %v2042 = vadd.f32 %v2040, 0.0
        %v2043 = vld [vmem:[#allocation2 + $0xa7] sm:$0xff]
        %v2044 = vld [vmem:[#allocation2 + $0xaf] sm:$0xff]
        %v2045 = vmul.f32 %v2043, %v901
        %v2046 = vmul.f32 %v2044, %v901
        %v2047 = vsel %vm906, %v2045, 0.0
        %v2048 = vsel %vm907, %v2046, 0.0
        %v2049 = vadd.f32 %v2047, 0.0
        %v2050 = vadd.f32 %v2048, 0.0
        %v2051 = vld [vmem:[#allocation2 + $0xa8] sm:$0xff]
        %v2052 = vld [vmem:[#allocation2 + $0xb0] sm:$0xff]
        %v2053 = vmul.f32 %v2051, %v917
        %v2054 = vmul.f32 %v2052, %v917
        %v2055 = vadd.f32 %v2049, %v2053
        %v2056 = vadd.f32 %v2050, %v2054
        %v2057 = vld [vmem:[#allocation2 + $0xa9] sm:$0xff]
        %v2058 = vld [vmem:[#allocation2 + $0xb1] sm:$0xff]
        %v2059 = vmul.f32 %v2057, %v927
        %v2060 = vmul.f32 %v2058, %v927
        %v2061 = vsel %vm932, %v2059, 0.0
        %v2062 = vsel %vm933, %v2060, 0.0
        %v2063 = vadd.f32 %v2055, %v2061
        %v2064 = vadd.f32 %v2056, %v2062
        %v2065 = vadd.f32 %v2041, %v2063
        %v2066 = vadd.f32 %v2042, %v2064
        %v2067 = vld [vmem:[#allocation2 + $0xb7] sm:$0xff]
        %v2068 = vld [vmem:[#allocation2 + $0xbf] sm:$0xff]
        %v2069 = vmul.f32 %v2067, %v945
        %v2070 = vmul.f32 %v2068, %v945
        %v2071 = vsel %vm906, %v2069, 0.0
        %v2072 = vsel %vm907, %v2070, 0.0
        %v2073 = vadd.f32 %v2071, 0.0
        %v2074 = vadd.f32 %v2072, 0.0
        %v2075 = vld [vmem:[#allocation2 + $0xb8] sm:$0xff]
        %v2076 = vld [vmem:[#allocation2 + $0xc0] sm:$0xff]
        %v2077 = vmul.f32 %v2075, %v957
        %v2078 = vmul.f32 %v2076, %v957
        %v2079 = vadd.f32 %v2073, %v2077
        %v2080 = vadd.f32 %v2074, %v2078
        %v2081 = vld [vmem:[#allocation2 + $0xb9] sm:$0xff]
        %v2082 = vld [vmem:[#allocation2 + $0xc1] sm:$0xff]
        %v2083 = vmul.f32 %v2081, %v967
        %v2084 = vmul.f32 %v2082, %v967
        %v2085 = vsel %vm932, %v2083, 0.0
        %v2086 = vsel %vm933, %v2084, 0.0
        %v2087 = vadd.f32 %v2079, %v2085
        %v2088 = vadd.f32 %v2080, %v2086
        %v2089 = vadd.f32 %v2065, %v2087
        %v2090 = vadd.f32 %v2066, %v2088
        %2091 = vmatprep.subr.mxu0 0.0
        %2092 = vmatpush1.msra.mxu0 %v2089
        %2093 = vmatprep.subr.mxu0 0.0
        %2094 = vmatpush1.msra.mxu0 %v2090
        %2095 = vmatprep.subr.mxu0 0.0
        %2096 = vmatpush1.msra.mxu0 0.0
        %2097 = vmatprep.subr.mxu0 0.0
        %2098 = vmatpush1.msra.mxu0 0.0
        %2099 = vmatprep.subr.mxu0 0.0
        %2100 = vmatpush1.msra.mxu0 0.0
        %2101 = vmatprep.subr.mxu0 0.0
        %2102 = vmatpush1.msra.mxu0 0.0
        %2103 = vmatprep.subr.mxu0 0.0
        %2104 = vmatpush1.msra.mxu0 0.0
        %2105 = vmatprep.subr.mxu0 0.0
        %2106 = vmatpush1.msra.mxu0 0.0
        %2107 = vmatprep.subr.mxu0 0.0
        %2108 = vmatpush1.msra.mxu0 0.0
        %2109 = vmatprep.subr.mxu0 0.0
        %2110 = vmatpush1.msra.mxu0 0.0
        %2111 = vmatprep.subr.mxu0 0.0
        %2112 = vmatpush1.msra.mxu0 0.0
        %2113 = vmatprep.subr.mxu0 0.0
        %2114 = vmatpush1.msra.mxu0 0.0
        %2115 = vmatprep.subr.mxu0 0.0
        %2116 = vmatpush1.msra.mxu0 0.0
        %2117 = vmatprep.subr.mxu0 0.0
        %2118 = vmatpush1.msra.mxu0 0.0
        %2119 = vmatprep.subr.mxu0 0.0
        %2120 = vmatpush1.msra.mxu0 0.0
        %2121 = vmatprep.subr.mxu0 0.0
        %2122 = vmatpush1.msra.mxu0 0.0
        %2123 = vmatprep.subr.mxu0 0.0
        %2124 = vmatpush1.msra.mxu0 0.0
        %2125 = vmatprep.subr.mxu0 0.0
        %2126 = vmatpush1.msra.mxu0 0.0
        %2127 = vmatprep.subr.mxu0 0.0
        %2128 = vmatpush1.msra.mxu0 0.0
        %2129 = vmatprep.subr.mxu0 0.0
        %2130 = vmatpush1.msra.mxu0 0.0
        %2131 = vmatprep.subr.mxu0 0.0
        %2132 = vmatpush1.msra.mxu0 0.0
        %2133 = vmatprep.subr.mxu0 0.0
        %2134 = vmatpush1.msra.mxu0 0.0
        %2135 = vmatprep.subr.mxu0 0.0
        %2136 = vmatpush1.msra.mxu0 0.0
        %2137 = vmatprep.subr.mxu0 0.0
        %2138 = vmatpush1.msra.mxu0 0.0
        %2139 = vmatprep.subr.mxu0 0.0
        %2140 = vmatpush1.msra.mxu0 0.0
        %2141 = vmatprep.subr.mxu0 0.0
        %2142 = vmatpush1.msra.mxu0 0.0
        %2143 = vmatprep.subr.mxu0 0.0
        %2144 = vmatpush1.msra.mxu0 0.0
        %2145 = vmatprep.subr.mxu0 0.0
        %2146 = vmatpush1.msra.mxu0 0.0
        %2147 = vmatprep.subr.mxu0 0.0
        %2148 = vmatpush1.msra.mxu0 0.0
        %2149 = vmatprep.subr.mxu0 0.0
        %2150 = vmatpush1.msra.mxu0 0.0
        %2151 = vmatprep.subr.mxu0 0.0
        %2152 = vmatpush1.msra.mxu0 0.0
        %2153 = vmatprep.subr.mxu0 0.0
        %2154 = vmatpush1.msra.mxu0 0.0
        %2155 = vmatprep.mubr.f32.mxu0 0.0
        %2156 = vmatmul.mubr.f32.gmra.mrb[0].mxu0 %v977
        %v2157 = vpop.f32.mrb[0].mxu0
        %v2158 = vadd.f32 0.0, %v2157
        %v2159 = vpop.f32.mrb[0].mxu0
        %2160 = vdwg.mxu0
        %v2161 = vpack.c.bf16 %v2158, %v2158
        %s2162 = scalar_lea.vmem %s382, 20 [#allocation12]
        %2163 = vst.msk [vmem:[%s2162] sm:$0xf] %vm1050, %v2161
        %v2164 = vld [vmem:[%s340 + $0xa0] sm:$0xff]
        %v2165 = vld [vmem:[%s340 + $0xa8] sm:$0xff]
        %2166 = vmatprep.subr.mxu0 0.0
        %2167 = vmatpush1.msra.mxu0 %v2164
        %2168 = vmatprep.subr.mxu0 0.0
        %2169 = vmatpush1.msra.mxu0 %v2165
        %2170 = vmatprep.subr.mxu0 0.0
        %2171 = vmatpush1.msra.mxu0 0.0
        %2172 = vmatprep.subr.mxu0 0.0
        %2173 = vmatpush1.msra.mxu0 0.0
        %2174 = vmatprep.subr.mxu0 0.0
        %2175 = vmatpush1.msra.mxu0 0.0
        %2176 = vmatprep.subr.mxu0 0.0
        %2177 = vmatpush1.msra.mxu0 0.0
        %2178 = vmatprep.subr.mxu0 0.0
        %2179 = vmatpush1.msra.mxu0 0.0
        %2180 = vmatprep.subr.mxu0 0.0
        %2181 = vmatpush1.msra.mxu0 0.0
        %2182 = vmatprep.subr.mxu0 0.0
        %2183 = vmatpush1.msra.mxu0 0.0
        %2184 = vmatprep.subr.mxu0 0.0
        %2185 = vmatpush1.msra.mxu0 0.0
        %2186 = vmatprep.subr.mxu0 0.0
        %2187 = vmatpush1.msra.mxu0 0.0
        %2188 = vmatprep.subr.mxu0 0.0
        %2189 = vmatpush1.msra.mxu0 0.0
        %2190 = vmatprep.subr.mxu0 0.0
        %2191 = vmatpush1.msra.mxu0 0.0
        %2192 = vmatprep.subr.mxu0 0.0
        %2193 = vmatpush1.msra.mxu0 0.0
        %2194 = vmatprep.subr.mxu0 0.0
        %2195 = vmatpush1.msra.mxu0 0.0
        %2196 = vmatprep.subr.mxu0 0.0
        %2197 = vmatpush1.msra.mxu0 0.0
        %2198 = vmatprep.subr.mxu0 0.0
        %2199 = vmatpush1.msra.mxu0 0.0
        %2200 = vmatprep.subr.mxu0 0.0
        %2201 = vmatpush1.msra.mxu0 0.0
        %2202 = vmatprep.subr.mxu0 0.0
        %2203 = vmatpush1.msra.mxu0 0.0
        %2204 = vmatprep.subr.mxu0 0.0
        %2205 = vmatpush1.msra.mxu0 0.0
        %2206 = vmatprep.subr.mxu0 0.0
        %2207 = vmatpush1.msra.mxu0 0.0
        %2208 = vmatprep.subr.mxu0 0.0
        %2209 = vmatpush1.msra.mxu0 0.0
        %2210 = vmatprep.subr.mxu0 0.0
        %2211 = vmatpush1.msra.mxu0 0.0
        %2212 = vmatprep.subr.mxu0 0.0
        %2213 = vmatpush1.msra.mxu0 0.0
        %2214 = vmatprep.subr.mxu0 0.0
        %2215 = vmatpush1.msra.mxu0 0.0
        %2216 = vmatprep.subr.mxu0 0.0
        %2217 = vmatpush1.msra.mxu0 0.0
        %2218 = vmatprep.subr.mxu0 0.0
        %2219 = vmatpush1.msra.mxu0 0.0
        %2220 = vmatprep.subr.mxu0 0.0
        %2221 = vmatpush1.msra.mxu0 0.0
        %2222 = vmatprep.subr.mxu0 0.0
        %2223 = vmatpush1.msra.mxu0 0.0
        %2224 = vmatprep.subr.mxu0 0.0
        %2225 = vmatpush1.msra.mxu0 0.0
        %2226 = vmatprep.subr.mxu0 0.0
        %2227 = vmatpush1.msra.mxu0 0.0
        %2228 = vmatprep.subr.mxu0 0.0
        %2229 = vmatpush1.msra.mxu0 0.0
        %2230 = vmatprep.mubr.f32.mxu0 0.0
        %2231 = vmatmul.mubr.f32.gmra.mrb[0].mxu0 %v977
        %v2232 = vpop.f32.mrb[0].mxu0
        %v2233 = vadd.f32 0.0, %v2232
        %v2234 = vpop.f32.mrb[0].mxu0
        %2235 = vdwg.mxu0
        %v2236 = vpack.c.bf16 %v2233, %v2233
        %s2237 = scalar_lea.vmem %s402, 20 [#allocation16]
        %2238 = vst.msk [vmem:[%s2237] sm:$0xf] %vm1125, %v2236
        %v2239 = vld [vmem:[#allocation2 + $0xb7] sm:$0xff]
        %v2240 = vld [vmem:[#allocation2 + $0xbf] sm:$0xff]
        %v2241 = vmul.f32 %v2239, %v1132
        %v2242 = vmul.f32 %v2240, %v1132
        %v2243 = vsel %vm906, %v2241, 0.0
        %v2244 = vsel %vm907, %v2242, 0.0
        %v2245 = vadd.f32 %v2243, 0.0
        %v2246 = vadd.f32 %v2244, 0.0
        %v2247 = vld [vmem:[#allocation2 + $0xb8] sm:$0xff]
        %v2248 = vld [vmem:[#allocation2 + $0xc0] sm:$0xff]
        %v2249 = vmul.f32 %v2247, %v1144
        %v2250 = vmul.f32 %v2248, %v1144
        %v2251 = vadd.f32 %v2245, %v2249
        %v2252 = vadd.f32 %v2246, %v2250
        %v2253 = vld [vmem:[#allocation2 + $0xb9] sm:$0xff]
        %v2254 = vld [vmem:[#allocation2 + $0xc1] sm:$0xff]
        %v2255 = vmul.f32 %v2253, %v1154
        %v2256 = vmul.f32 %v2254, %v1154
        %v2257 = vsel %vm932, %v2255, 0.0
        %v2258 = vsel %vm933, %v2256, 0.0
        %v2259 = vadd.f32 %v2251, %v2257
        %v2260 = vadd.f32 %v2252, %v2258
        %v2261 = vadd.f32 %v2259, 0.0
        %v2262 = vadd.f32 %v2260, 0.0
        %v2263 = vld [vmem:[#allocation2 + $0xc7] sm:$0xff]
        %v2264 = vld [vmem:[#allocation2 + $0xcf] sm:$0xff]
        %v2265 = vmul.f32 %v2263, %v901
        %v2266 = vmul.f32 %v2264, %v901
        %v2267 = vsel %vm906, %v2265, 0.0
        %v2268 = vsel %vm907, %v2266, 0.0
        %v2269 = vadd.f32 %v2267, 0.0
        %v2270 = vadd.f32 %v2268, 0.0
        %v2271 = vld [vmem:[#allocation2 + $0xc8] sm:$0xff]
        %v2272 = vld [vmem:[#allocation2 + $0xd0] sm:$0xff]
        %v2273 = vmul.f32 %v2271, %v917
        %v2274 = vmul.f32 %v2272, %v917
        %v2275 = vadd.f32 %v2269, %v2273
        %v2276 = vadd.f32 %v2270, %v2274
        %v2277 = vld [vmem:[#allocation2 + $0xc9] sm:$0xff]
        %v2278 = vld [vmem:[#allocation2 + $0xd1] sm:$0xff]
        %v2279 = vmul.f32 %v2277, %v927
        %v2280 = vmul.f32 %v2278, %v927
        %v2281 = vsel %vm932, %v2279, 0.0
        %v2282 = vsel %vm933, %v2280, 0.0
        %v2283 = vadd.f32 %v2275, %v2281
        %v2284 = vadd.f32 %v2276, %v2282
        %v2285 = vadd.f32 %v2261, %v2283
        %v2286 = vadd.f32 %v2262, %v2284
        %v2287 = vld [vmem:[#allocation2 + $0xd7] sm:$0xff]
        %v2288 = vld [vmem:[#allocation2 + $0xdf] sm:$0xff]
        %v2289 = vmul.f32 %v2287, %v945
        %v2290 = vmul.f32 %v2288, %v945
        %v2291 = vsel %vm906, %v2289, 0.0
        %v2292 = vsel %vm907, %v2290, 0.0
        %v2293 = vadd.f32 %v2291, 0.0
        %v2294 = vadd.f32 %v2292, 0.0
        %v2295 = vld [vmem:[#allocation2 + $0xd8] sm:$0xff]
        %v2296 = vld [vmem:[#allocation2 + $0xe0] sm:$0xff]
        %v2297 = vmul.f32 %v2295, %v957
        %v2298 = vmul.f32 %v2296, %v957
        %v2299 = vadd.f32 %v2293, %v2297
        %v2300 = vadd.f32 %v2294, %v2298
        %v2301 = vld [vmem:[#allocation2 + $0xd9] sm:$0xff]
        %v2302 = vld [vmem:[#allocation2 + $0xe1] sm:$0xff]
        %v2303 = vmul.f32 %v2301, %v967
        %v2304 = vmul.f32 %v2302, %v967
        %v2305 = vsel %vm932, %v2303, 0.0
        %v2306 = vsel %vm933, %v2304, 0.0
        %v2307 = vadd.f32 %v2299, %v2305
        %v2308 = vadd.f32 %v2300, %v2306
        %v2309 = vadd.f32 %v2285, %v2307
        %v2310 = vadd.f32 %v2286, %v2308
        %2311 = vmatprep.subr.mxu0 0.0
        %2312 = vmatpush1.msra.mxu0 %v2309
        %2313 = vmatprep.subr.mxu0 0.0
        %2314 = vmatpush1.msra.mxu0 %v2310
        %2315 = vmatprep.subr.mxu0 0.0
        %2316 = vmatpush1.msra.mxu0 0.0
        %2317 = vmatprep.subr.mxu0 0.0
        %2318 = vmatpush1.msra.mxu0 0.0
        %2319 = vmatprep.subr.mxu0 0.0
        %2320 = vmatpush1.msra.mxu0 0.0
        %2321 = vmatprep.subr.mxu0 0.0
        %2322 = vmatpush1.msra.mxu0 0.0
        %2323 = vmatprep.subr.mxu0 0.0
        %2324 = vmatpush1.msra.mxu0 0.0
        %2325 = vmatprep.subr.mxu0 0.0
        %2326 = vmatpush1.msra.mxu0 0.0
        %2327 = vmatprep.subr.mxu0 0.0
        %2328 = vmatpush1.msra.mxu0 0.0
        %2329 = vmatprep.subr.mxu0 0.0
        %2330 = vmatpush1.msra.mxu0 0.0
        %2331 = vmatprep.subr.mxu0 0.0
        %2332 = vmatpush1.msra.mxu0 0.0
        %2333 = vmatprep.subr.mxu0 0.0
        %2334 = vmatpush1.msra.mxu0 0.0
        %2335 = vmatprep.subr.mxu0 0.0
        %2336 = vmatpush1.msra.mxu0 0.0
        %2337 = vmatprep.subr.mxu0 0.0
        %2338 = vmatpush1.msra.mxu0 0.0
        %2339 = vmatprep.subr.mxu0 0.0
        %2340 = vmatpush1.msra.mxu0 0.0
        %2341 = vmatprep.subr.mxu0 0.0
        %2342 = vmatpush1.msra.mxu0 0.0
        %2343 = vmatprep.subr.mxu0 0.0
        %2344 = vmatpush1.msra.mxu0 0.0
        %2345 = vmatprep.subr.mxu0 0.0
        %2346 = vmatpush1.msra.mxu0 0.0
        %2347 = vmatprep.subr.mxu0 0.0
        %2348 = vmatpush1.msra.mxu0 0.0
        %2349 = vmatprep.subr.mxu0 0.0
        %2350 = vmatpush1.msra.mxu0 0.0
        %2351 = vmatprep.subr.mxu0 0.0
        %2352 = vmatpush1.msra.mxu0 0.0
        %2353 = vmatprep.subr.mxu0 0.0
        %2354 = vmatpush1.msra.mxu0 0.0
        %2355 = vmatprep.subr.mxu0 0.0
        %2356 = vmatpush1.msra.mxu0 0.0
        %2357 = vmatprep.subr.mxu0 0.0
        %2358 = vmatpush1.msra.mxu0 0.0
        %2359 = vmatprep.subr.mxu0 0.0
        %2360 = vmatpush1.msra.mxu0 0.0
        %2361 = vmatprep.subr.mxu0 0.0
        %2362 = vmatpush1.msra.mxu0 0.0
        %2363 = vmatprep.subr.mxu0 0.0
        %2364 = vmatpush1.msra.mxu0 0.0
        %2365 = vmatprep.subr.mxu0 0.0
        %2366 = vmatpush1.msra.mxu0 0.0
        %2367 = vmatprep.subr.mxu0 0.0
        %2368 = vmatpush1.msra.mxu0 0.0
        %2369 = vmatprep.subr.mxu0 0.0
        %2370 = vmatpush1.msra.mxu0 0.0
        %2371 = vmatprep.subr.mxu0 0.0
        %2372 = vmatpush1.msra.mxu0 0.0
        %2373 = vmatprep.subr.mxu0 0.0
        %2374 = vmatpush1.msra.mxu0 0.0
        %2375 = vmatprep.mubr.f32.mxu0 0.0
        %2376 = vmatmul.mubr.f32.gmra.mrb[0].mxu0 %v977
        %v2377 = vpop.f32.mrb[0].mxu0
        %v2378 = vadd.f32 0.0, %v2377
        %v2379 = vpop.f32.mrb[0].mxu0
        %2380 = vdwg.mxu0
        %v2381 = vpack.c.bf16 %v2378, %v2378
        %s2382 = scalar_lea.vmem %s382, 24 [#allocation12]
        %2383 = vst.msk [vmem:[%s2382] sm:$0xf] %vm1050, %v2381
        %v2384 = vld [vmem:[%s340 + $0xc0] sm:$0xff]
        %v2385 = vld [vmem:[%s340 + $0xc8] sm:$0xff]
        %2386 = vmatprep.subr.mxu0 0.0
        %2387 = vmatpush1.msra.mxu0 %v2384
        %2388 = vmatprep.subr.mxu0 0.0
        %2389 = vmatpush1.msra.mxu0 %v2385
        %2390 = vmatprep.subr.mxu0 0.0
        %2391 = vmatpush1.msra.mxu0 0.0
        %2392 = vmatprep.subr.mxu0 0.0
        %2393 = vmatpush1.msra.mxu0 0.0
        %2394 = vmatprep.subr.mxu0 0.0
        %2395 = vmatpush1.msra.mxu0 0.0
        %2396 = vmatprep.subr.mxu0 0.0
        %2397 = vmatpush1.msra.mxu0 0.0
        %2398 = vmatprep.subr.mxu0 0.0
        %2399 = vmatpush1.msra.mxu0 0.0
        %2400 = vmatprep.subr.mxu0 0.0
        %2401 = vmatpush1.msra.mxu0 0.0
        %2402 = vmatprep.subr.mxu0 0.0
        %2403 = vmatpush1.msra.mxu0 0.0
        %2404 = vmatprep.subr.mxu0 0.0
        %2405 = vmatpush1.msra.mxu0 0.0
        %2406 = vmatprep.subr.mxu0 0.0
        %2407 = vmatpush1.msra.mxu0 0.0
        %2408 = vmatprep.subr.mxu0 0.0
        %2409 = vmatpush1.msra.mxu0 0.0
        %2410 = vmatprep.subr.mxu0 0.0
        %2411 = vmatpush1.msra.mxu0 0.0
        %2412 = vmatprep.subr.mxu0 0.0
        %2413 = vmatpush1.msra.mxu0 0.0
        %2414 = vmatprep.subr.mxu0 0.0
        %2415 = vmatpush1.msra.mxu0 0.0
        %2416 = vmatprep.subr.mxu0 0.0
        %2417 = vmatpush1.msra.mxu0 0.0
        %2418 = vmatprep.subr.mxu0 0.0
        %2419 = vmatpush1.msra.mxu0 0.0
        %2420 = vmatprep.subr.mxu0 0.0
        %2421 = vmatpush1.msra.mxu0 0.0
        %2422 = vmatprep.subr.mxu0 0.0
        %2423 = vmatpush1.msra.mxu0 0.0
        %2424 = vmatprep.subr.mxu0 0.0
        %2425 = vmatpush1.msra.mxu0 0.0
        %2426 = vmatprep.subr.mxu0 0.0
        %2427 = vmatpush1.msra.mxu0 0.0
        %2428 = vmatprep.subr.mxu0 0.0
        %2429 = vmatpush1.msra.mxu0 0.0
        %2430 = vmatprep.subr.mxu0 0.0
        %2431 = vmatpush1.msra.mxu0 0.0
        %2432 = vmatprep.subr.mxu0 0.0
        %2433 = vmatpush1.msra.mxu0 0.0
        %2434 = vmatprep.subr.mxu0 0.0
        %2435 = vmatpush1.msra.mxu0 0.0
        %2436 = vmatprep.subr.mxu0 0.0
        %2437 = vmatpush1.msra.mxu0 0.0
        %2438 = vmatprep.subr.mxu0 0.0
        %2439 = vmatpush1.msra.mxu0 0.0
        %2440 = vmatprep.subr.mxu0 0.0
        %2441 = vmatpush1.msra.mxu0 0.0
        %2442 = vmatprep.subr.mxu0 0.0
        %2443 = vmatpush1.msra.mxu0 0.0
        %2444 = vmatprep.subr.mxu0 0.0
        %2445 = vmatpush1.msra.mxu0 0.0
        %2446 = vmatprep.subr.mxu0 0.0
        %2447 = vmatpush1.msra.mxu0 0.0
        %2448 = vmatprep.subr.mxu0 0.0
        %2449 = vmatpush1.msra.mxu0 0.0
        %2450 = vmatprep.mubr.f32.mxu0 0.0
        %2451 = vmatmul.mubr.f32.gmra.mrb[0].mxu0 %v977
        %v2452 = vpop.f32.mrb[0].mxu0
        %v2453 = vadd.f32 0.0, %v2452
        %v2454 = vpop.f32.mrb[0].mxu0
        %2455 = vdwg.mxu0
        %v2456 = vpack.c.bf16 %v2453, %v2453
        %s2457 = scalar_lea.vmem %s402, 24 [#allocation16]
        %2458 = vst.msk [vmem:[%s2457] sm:$0xf] %vm1125, %v2456
        %v2459 = vld [vmem:[#allocation2 + $0xd7] sm:$0xff]
        %v2460 = vld [vmem:[#allocation2 + $0xdf] sm:$0xff]
        %v2461 = vmul.f32 %v2459, %v1132
        %v2462 = vmul.f32 %v2460, %v1132
        %v2463 = vsel %vm906, %v2461, 0.0
        %v2464 = vsel %vm907, %v2462, 0.0
        %v2465 = vadd.f32 %v2463, 0.0
        %v2466 = vadd.f32 %v2464, 0.0
        %v2467 = vld [vmem:[#allocation2 + $0xd8] sm:$0xff]
        %v2468 = vld [vmem:[#allocation2 + $0xe0] sm:$0xff]
        %v2469 = vmul.f32 %v2467, %v1144
        %v2470 = vmul.f32 %v2468, %v1144
        %v2471 = vadd.f32 %v2465, %v2469
        %v2472 = vadd.f32 %v2466, %v2470
        %v2473 = vld [vmem:[#allocation2 + $0xd9] sm:$0xff]
        %v2474 = vld [vmem:[#allocation2 + $0xe1] sm:$0xff]
        %v2475 = vmul.f32 %v2473, %v1154
        %v2476 = vmul.f32 %v2474, %v1154
        %v2477 = vsel %vm932, %v2475, 0.0
        %v2478 = vsel %vm933, %v2476, 0.0
        %v2479 = vadd.f32 %v2471, %v2477
        %v2480 = vadd.f32 %v2472, %v2478
        %v2481 = vadd.f32 %v2479, 0.0
        %v2482 = vadd.f32 %v2480, 0.0
        %v2483 = vld [vmem:[#allocation2 + $0xe7] sm:$0xff]
        %v2484 = vld [vmem:[#allocation2 + $0xef] sm:$0xff]
        %v2485 = vmul.f32 %v2483, %v901
        %v2486 = vmul.f32 %v2484, %v901
        %v2487 = vsel %vm906, %v2485, 0.0
        %v2488 = vsel %vm907, %v2486, 0.0
        %v2489 = vadd.f32 %v2487, 0.0
        %v2490 = vadd.f32 %v2488, 0.0
        %v2491 = vld [vmem:[#allocation2 + $0xe8] sm:$0xff]
        %v2492 = vld [vmem:[#allocation2 + $0xf0] sm:$0xff]
        %v2493 = vmul.f32 %v2491, %v917
        %v2494 = vmul.f32 %v2492, %v917
        %v2495 = vadd.f32 %v2489, %v2493
        %v2496 = vadd.f32 %v2490, %v2494
        %v2497 = vld [vmem:[#allocation2 + $0xe9] sm:$0xff]
        %v2498 = vld [vmem:[#allocation2 + $0xf1] sm:$0xff]
        %v2499 = vmul.f32 %v2497, %v927
        %v2500 = vmul.f32 %v2498, %v927
        %v2501 = vsel %vm932, %v2499, 0.0
        %v2502 = vsel %vm933, %v2500, 0.0
        %v2503 = vadd.f32 %v2495, %v2501
        %v2504 = vadd.f32 %v2496, %v2502
        %v2505 = vadd.f32 %v2481, %v2503
        %v2506 = vadd.f32 %v2482, %v2504
        %v2507 = vld [vmem:[#allocation2 + $0xf7] sm:$0xff]
        %v2508 = vld [vmem:[#allocation2 + $0xff] sm:$0xff]
        %v2509 = vmul.f32 %v2507, %v945
        %v2510 = vmul.f32 %v2508, %v945
        %v2511 = vsel %vm906, %v2509, 0.0
        %v2512 = vsel %vm907, %v2510, 0.0
        %v2513 = vadd.f32 %v2511, 0.0
        %v2514 = vadd.f32 %v2512, 0.0
        %v2515 = vld [vmem:[#allocation2 + $0xf8] sm:$0xff]
        %v2516 = vld [vmem:[#allocation2 + $0x100] sm:$0xff]
        %v2517 = vmul.f32 %v2515, %v957
        %v2518 = vmul.f32 %v2516, %v957
        %v2519 = vadd.f32 %v2513, %v2517
        %v2520 = vadd.f32 %v2514, %v2518
        %v2521 = vld [vmem:[#allocation2 + $0xf9] sm:$0xff]
        %v2522 = vld [vmem:[#allocation2 + $0x101] sm:$0xff]
        %v2523 = vmul.f32 %v2521, %v967
        %v2524 = vmul.f32 %v2522, %v967
        %v2525 = vsel %vm932, %v2523, 0.0
        %v2526 = vsel %vm933, %v2524, 0.0
        %v2527 = vadd.f32 %v2519, %v2525
        %v2528 = vadd.f32 %v2520, %v2526
        %v2529 = vadd.f32 %v2505, %v2527
        %v2530 = vadd.f32 %v2506, %v2528
        %2531 = vmatprep.subr.mxu0 0.0
        %2532 = vmatpush1.msra.mxu0 %v2529
        %2533 = vmatprep.subr.mxu0 0.0
        %2534 = vmatpush1.msra.mxu0 %v2530
        %2535 = vmatprep.subr.mxu0 0.0
        %2536 = vmatpush1.msra.mxu0 0.0
        %2537 = vmatprep.subr.mxu0 0.0
        %2538 = vmatpush1.msra.mxu0 0.0
        %2539 = vmatprep.subr.mxu0 0.0
        %2540 = vmatpush1.msra.mxu0 0.0
        %2541 = vmatprep.subr.mxu0 0.0
        %2542 = vmatpush1.msra.mxu0 0.0
        %2543 = vmatprep.subr.mxu0 0.0
        %2544 = vmatpush1.msra.mxu0 0.0
        %2545 = vmatprep.subr.mxu0 0.0
        %2546 = vmatpush1.msra.mxu0 0.0
        %2547 = vmatprep.subr.mxu0 0.0
        %2548 = vmatpush1.msra.mxu0 0.0
        %2549 = vmatprep.subr.mxu0 0.0
        %2550 = vmatpush1.msra.mxu0 0.0
        %2551 = vmatprep.subr.mxu0 0.0
        %2552 = vmatpush1.msra.mxu0 0.0
        %2553 = vmatprep.subr.mxu0 0.0
        %2554 = vmatpush1.msra.mxu0 0.0
        %2555 = vmatprep.subr.mxu0 0.0
        %2556 = vmatpush1.msra.mxu0 0.0
        %2557 = vmatprep.subr.mxu0 0.0
        %2558 = vmatpush1.msra.mxu0 0.0
        %2559 = vmatprep.subr.mxu0 0.0
        %2560 = vmatpush1.msra.mxu0 0.0
        %2561 = vmatprep.subr.mxu0 0.0
        %2562 = vmatpush1.msra.mxu0 0.0
        %2563 = vmatprep.subr.mxu0 0.0
        %2564 = vmatpush1.msra.mxu0 0.0
        %2565 = vmatprep.subr.mxu0 0.0
        %2566 = vmatpush1.msra.mxu0 0.0
        %2567 = vmatprep.subr.mxu0 0.0
        %2568 = vmatpush1.msra.mxu0 0.0
        %2569 = vmatprep.subr.mxu0 0.0
        %2570 = vmatpush1.msra.mxu0 0.0
        %2571 = vmatprep.subr.mxu0 0.0
        %2572 = vmatpush1.msra.mxu0 0.0
        %2573 = vmatprep.subr.mxu0 0.0
        %2574 = vmatpush1.msra.mxu0 0.0
        %2575 = vmatprep.subr.mxu0 0.0
        %2576 = vmatpush1.msra.mxu0 0.0
        %2577 = vmatprep.subr.mxu0 0.0
        %2578 = vmatpush1.msra.mxu0 0.0
        %2579 = vmatprep.subr.mxu0 0.0
        %2580 = vmatpush1.msra.mxu0 0.0
        %2581 = vmatprep.subr.mxu0 0.0
        %2582 = vmatpush1.msra.mxu0 0.0
        %2583 = vmatprep.subr.mxu0 0.0
        %2584 = vmatpush1.msra.mxu0 0.0
        %2585 = vmatprep.subr.mxu0 0.0
        %2586 = vmatpush1.msra.mxu0 0.0
        %2587 = vmatprep.subr.mxu0 0.0
        %2588 = vmatpush1.msra.mxu0 0.0
        %2589 = vmatprep.subr.mxu0 0.0
        %2590 = vmatpush1.msra.mxu0 0.0
        %2591 = vmatprep.subr.mxu0 0.0
        %2592 = vmatpush1.msra.mxu0 0.0
        %2593 = vmatprep.subr.mxu0 0.0
        %2594 = vmatpush1.msra.mxu0 0.0
        %2595 = vmatprep.mubr.f32.mxu0 0.0
        %2596 = vmatmul.mubr.f32.gmra.mrb[0].mxu0 %v977
        %v2597 = vpop.f32.mrb[0].mxu0
        %v2598 = vadd.f32 0.0, %v2597
        %v2599 = vpop.f32.mrb[0].mxu0
        %2600 = vdwg.mxu0
        %v2601 = vpack.c.bf16 %v2598, %v2598
        %s2602 = scalar_lea.vmem %s382, 28 [#allocation12]
        %2603 = vst.msk [vmem:[%s2602] sm:$0xf] %vm1050, %v2601
        %v2604 = vld [vmem:[%s340 + $0xe0] sm:$0xff]
        %v2605 = vld [vmem:[%s340 + $0xe8] sm:$0xff]
        %2606 = vmatprep.subr.mxu0 0.0
        %2607 = vmatpush1.msra.mxu0 %v2604
        %2608 = vmatprep.subr.mxu0 0.0
        %2609 = vmatpush1.msra.mxu0 %v2605
        %2610 = vmatprep.subr.mxu0 0.0
        %2611 = vmatpush1.msra.mxu0 0.0
        %2612 = vmatprep.subr.mxu0 0.0
        %2613 = vmatpush1.msra.mxu0 0.0
        %2614 = vmatprep.subr.mxu0 0.0
        %2615 = vmatpush1.msra.mxu0 0.0
        %2616 = vmatprep.subr.mxu0 0.0
        %2617 = vmatpush1.msra.mxu0 0.0
        %2618 = vmatprep.subr.mxu0 0.0
        %2619 = vmatpush1.msra.mxu0 0.0
        %2620 = vmatprep.subr.mxu0 0.0
        %2621 = vmatpush1.msra.mxu0 0.0
        %2622 = vmatprep.subr.mxu0 0.0
        %2623 = vmatpush1.msra.mxu0 0.0
        %2624 = vmatprep.subr.mxu0 0.0
        %2625 = vmatpush1.msra.mxu0 0.0
        %2626 = vmatprep.subr.mxu0 0.0
        %2627 = vmatpush1.msra.mxu0 0.0
        %2628 = vmatprep.subr.mxu0 0.0
        %2629 = vmatpush1.msra.mxu0 0.0
        %2630 = vmatprep.subr.mxu0 0.0
        %2631 = vmatpush1.msra.mxu0 0.0
        %2632 = vmatprep.subr.mxu0 0.0
        %2633 = vmatpush1.msra.mxu0 0.0
        %2634 = vmatprep.subr.mxu0 0.0
        %2635 = vmatpush1.msra.mxu0 0.0
        %2636 = vmatprep.subr.mxu0 0.0
        %2637 = vmatpush1.msra.mxu0 0.0
        %2638 = vmatprep.subr.mxu0 0.0
        %2639 = vmatpush1.msra.mxu0 0.0
        %2640 = vmatprep.subr.mxu0 0.0
        %2641 = vmatpush1.msra.mxu0 0.0
        %2642 = vmatprep.subr.mxu0 0.0
        %2643 = vmatpush1.msra.mxu0 0.0
        %2644 = vmatprep.subr.mxu0 0.0
        %2645 = vmatpush1.msra.mxu0 0.0
        %2646 = vmatprep.subr.mxu0 0.0
        %2647 = vmatpush1.msra.mxu0 0.0
        %2648 = vmatprep.subr.mxu0 0.0
        %2649 = vmatpush1.msra.mxu0 0.0
        %2650 = vmatprep.subr.mxu0 0.0
        %2651 = vmatpush1.msra.mxu0 0.0
        %2652 = vmatprep.subr.mxu0 0.0
        %2653 = vmatpush1.msra.mxu0 0.0
        %2654 = vmatprep.subr.mxu0 0.0
        %2655 = vmatpush1.msra.mxu0 0.0
        %2656 = vmatprep.subr.mxu0 0.0
        %2657 = vmatpush1.msra.mxu0 0.0
        %2658 = vmatprep.subr.mxu0 0.0
        %2659 = vmatpush1.msra.mxu0 0.0
        %2660 = vmatprep.subr.mxu0 0.0
        %2661 = vmatpush1.msra.mxu0 0.0
        %2662 = vmatprep.subr.mxu0 0.0
        %2663 = vmatpush1.msra.mxu0 0.0
        %2664 = vmatprep.subr.mxu0 0.0
        %2665 = vmatpush1.msra.mxu0 0.0
        %2666 = vmatprep.subr.mxu0 0.0
        %2667 = vmatpush1.msra.mxu0 0.0
        %2668 = vmatprep.subr.mxu0 0.0
        %2669 = vmatpush1.msra.mxu0 0.0
        %2670 = vmatprep.mubr.f32.mxu0 0.0
        %2671 = vmatmul.mubr.f32.gmra.mrb[0].mxu0 %v977
        %v2672 = vpop.f32.mrb[0].mxu0
        %v2673 = vadd.f32 0.0, %v2672
        %v2674 = vpop.f32.mrb[0].mxu0
        %2675 = vdwg.mxu0
        %v2676 = vpack.c.bf16 %v2673, %v2673
        %s2677 = scalar_lea.vmem %s402, 28 [#allocation16]
        %2678 = vst.msk [vmem:[%s2677] sm:$0xf] %vm1125, %v2676
        %v2679 = vld [vmem:[%s382] sm:$0xf]
        %v2680 = vld [vmem:[%s382 + $0x4] sm:$0xf]
        %v2681 = vld [vmem:[%s382 + $0x8] sm:$0xf]
        %v2682 = vld [vmem:[%s382 + $0xc] sm:$0xf]
        %v2683 = vld [vmem:[%s382 + $0x10] sm:$0xf]
        %v2684 = vld [vmem:[%s382 + $0x14] sm:$0xf]
        %v2685 = vld [vmem:[%s382 + $0x18] sm:$0xf]
        %v2686 = vld [vmem:[%s382 + $0x1c] sm:$0xf]
        %v2687 = vunpack.c.l.bf16 %v2679
        %v2688 = vunpack.c.l.bf16 %v2680
        %v2689 = vunpack.c.l.bf16 %v2681
        %v2690 = vunpack.c.l.bf16 %v2682
        %v2691 = vunpack.c.l.bf16 %v2683
        %v2692 = vunpack.c.l.bf16 %v2684
        %v2693 = vunpack.c.l.bf16 %v2685
        %v2694 = vunpack.c.l.bf16 %v2686
        %v2695 = vsel %vm834, %v2687, 0.0
        %v2696 = vsel %vm834, %v2688, 0.0
        %v2697 = vadd.f32 %v2695, %v2696
        %v2698 = vsel %vm834, %v2689, 0.0
        %v2699 = vadd.f32 %v2697, %v2698
        %v2700 = vsel %vm834, %v2690, 0.0
        %v2701 = vadd.f32 %v2699, %v2700
        %v2702 = vsel %vm834, %v2691, 0.0
        %v2703 = vadd.f32 %v2701, %v2702
        %v2704 = vsel %vm834, %v2692, 0.0
        %v2705 = vadd.f32 %v2703, %v2704
        %v2706 = vsel %vm834, %v2693, 0.0
        %v2707 = vadd.f32 %v2705, %v2706
        %v2708 = vsel %vm834, %v2694, 0.0
        %v2709 = vadd.f32 %v2707, %v2708
        %v2710 = vrot.slane %v2709, 4
        %v2711 = vadd.f32 %v2709, %v2710
        %v2712 = vrot.slane %v2711, 2
        %v2713 = vadd.f32 %v2711, %v2712
        %v2714 = vrot.slane %v2713, 1
        %v2715 = vadd.f32 %v2713, %v2714
        %vm2716 = vcmask 122880
        %2717 = vst.msk [vmem:[%s388] sm:$0x1] %vm2716, %v2715
        %v2726 = vunpack.c.l.b16 %v2679
        %v2727 = vunpack.c.l.b16 %v2680
        %v2728 = vunpack.c.l.b16 %v2681
        %v2729 = vunpack.c.l.b16 %v2682
        %v2730 = vunpack.c.l.b16 %v2683
        %v2731 = vunpack.c.l.b16 %v2684
        %v2732 = vunpack.c.l.b16 %v2685
        %v2733 = vunpack.c.l.b16 %v2686
        %v2734 = vpack.c.b16 %v2727, %v2726
        %v2735 = vpack.c.b16 %v2729, %v2728
        %v2736 = vpack.c.b16 %v2731, %v2730
        %v2737 = vpack.c.b16 %v2733, %v2732
        %2742 = vxpose.xlu0.c.b16.start [1/8] %v2734, 128
        %2743 = vxpose.xlu0.c.b16.cont [2/8] %v2735, 128
        %2744 = vxpose.xlu0.c.b16.cont [3/8] %v2736, 128
        %2745 = vxpose.xlu0.c.b16.cont [4/8] %v2737, 128
        %2746 = vxpose.xlu0.c.b16.cont [5/8] 0, 128
        %2747 = vxpose.xlu0.c.b16.cont [6/8] 0, 128
        %2748 = vxpose.xlu0.c.b16.cont [7/8] 0, 128
        %2749 = vxpose.xlu0.c.b16.end [8/8] 0, 128
        %v2750 = vpop.trf.xlu0
        %v2751 = vpop.trf.xlu0
        %v2752 = vpop.trf.xlu0
        %v2753 = vpop.trf.xlu0
        %v2754 = vpop.trf.xlu0
        %v2755 = vpop.trf.xlu0
        %v2756 = vpop.trf.xlu0
        %v2757 = vpop.trf.xlu0
        %vm2758 = vcmask 523264
        %v2760 = vsel %vm2758, %v2750, 0
        %2762 = vmatprep.subr.bf16.mxu0 0
        %2763 = vmatpush1.bf16.msra.mxu0 %v2734
        %2764 = vmatprep.subr.bf16.mxu0 0
        %2765 = vmatpush1.bf16.msra.mxu0 %v2735
        %2766 = vmatprep.subr.bf16.mxu0 0
        %2767 = vmatpush1.bf16.msra.mxu0 %v2736
        %2768 = vmatprep.subr.bf16.mxu0 0
        %2769 = vmatpush1.bf16.msra.mxu0 %v2737
        %2770 = vmatprep.subr.bf16.mxu0 0
        %2771 = vmatpush1.bf16.msra.mxu0 0
        %2772 = vmatprep.subr.bf16.mxu0 0
        %2773 = vmatpush1.bf16.msra.mxu0 0
        %2774 = vmatprep.subr.bf16.mxu0 0
        %2775 = vmatpush1.bf16.msra.mxu0 0
        %2776 = vmatprep.subr.bf16.mxu0 0
        %2777 = vmatpush1.bf16.msra.mxu0 0
        %2778 = vmatprep.subr.bf16.mxu0 0
        %2779 = vmatpush1.bf16.msra.mxu0 0
        %2780 = vmatprep.subr.bf16.mxu0 0
        %2781 = vmatpush1.bf16.msra.mxu0 0
        %2782 = vmatprep.subr.bf16.mxu0 0
        %2783 = vmatpush1.bf16.msra.mxu0 0
        %2784 = vmatprep.subr.bf16.mxu0 0
        %2785 = vmatpush1.bf16.msra.mxu0 0
        %2786 = vmatprep.subr.bf16.mxu0 0
        %2787 = vmatpush1.bf16.msra.mxu0 0
        %2788 = vmatprep.subr.bf16.mxu0 0
        %2789 = vmatpush1.bf16.msra.mxu0 0
        %2790 = vmatprep.subr.bf16.mxu0 0
        %2791 = vmatpush1.bf16.msra.mxu0 0
        %2792 = vmatprep.subr.bf16.mxu0 0
        %2793 = vmatpush1.bf16.msra.mxu0 0
        %2794 = vmatprep.mubr.bf16.mxu0 0
        %2795 = vmatmul.mubr.bf16.gmra.mrb[0].mxu0 %v2760
        %v2796 = vpop.f32.mrb[0].mxu0
        %v2797 = vadd.f32 0.0, %v2796
        %v2798 = vpop.f32.mrb[0].mxu0
        %v2799 = vpop.f32.mrb[0].mxu0
        %v2800 = vadd.f32 0.0, %v2799
        %v2801 = vpop.f32.mrb[0].mxu0
        %2802 = vdwg.mxu0
        %2803 = vst.msk [vmem:[%s395] sm:$0xff] %vm834, %v2797
        %2804 = vst.msk [vmem:[%s395 + $0x8] sm:$0xff] %vm834, %v2800
        %s2805 = sand.u32 %s152, 1
        %s2806 = scalar_lea.sflag [#allocation5], %s2805
        %s2807 = sand.u32 %s152, 1
        %s2808 = smul.addr %s2807, 32
        %s2809 = scalar_lea.vmem [#allocation12], %s2808
        %s2810 = sand.u32 %s34, 1
        %s2811 = scalar_lea.sflag [#allocation14], %s2810
        %s2812 = sand.u32 %s178, 1
        %s2813 = scalar_lea.vmem [#allocation13], %s2812
        %s2814 = sand.u32 %s34, 1
        %s2815 = scalar_lea.sflag [#allocation14], %s2814
        %s2816 = sand.u32 %s204, 1
        %s2817 = smul.addr %s2816, 16
        %s2818 = scalar_lea.vmem [#allocation15], %s2817
        %s2819 = sand.u32 %s230, 1
        %s2820 = scalar_lea.sflag [#allocation17], %s2819
        %s2821 = sand.u32 %s230, 1
        %s2822 = smul.addr %s2821, 32
        %s2823 = scalar_lea.vmem [#allocation16], %s2822
        // Predicated region
        $region61: #{bottleneck_forward.4} parent=39 // pred_check
          %p2824 = pneg %p162
        $region62: #{bottleneck_forward.4} parent=39 // pred_check_branch
          %2826 = sbr.rel (%p2824) target = $region64
        $region63: #{bottleneck_forward.4} parent=39 // pred_region
          %s2828 = ssub.s32 512, 512
          %2829 = vsyncadd %s2806, %s2828
          %s2830 = smul.addr %s34, 8
          %s2831 = smul.addr %s2830, 64
          %s2832 = scalar_lea.hbm %s5, %s2831
          %s2833 = sshll.u32 %s2809, 4
          %s2834 = int_to_ptr.vmem [resolvable:$true] %s2833
          %2839 = dma.vmem_to_hbm [thread:$0]  %s2834, 512, %s2832, %s2806, 64, 64, 4
        $region64: #{bottleneck_forward.4} parent=39 // pred_fallthru
          _
        // Predicated region
        $region65: #{bottleneck_forward.4} parent=39 // pred_check
          %p2840 = pneg %p188
        $region66: #{bottleneck_forward.4} parent=39 // pred_check_branch
          %2842 = sbr.rel (%p2840) target = $region68
        $region67: #{bottleneck_forward.4} parent=39 // pred_region
          %s2844 = ssub.s32 16, 16
          %2845 = vsyncadd %s2811, %s2844
          %s2846 = smul.addr %s34, 16
          %s2847 = scalar_lea.hbm %s6, %s2846
          %s2849 = sshll.u32 %s2813, 4
          %s2850 = int_to_ptr.vmem [resolvable:$true] %s2849
          %2852 = dma.vmem_to_hbm [thread:$0]  %s2850, 16, %s2847, %s2811
        $region68: #{bottleneck_forward.4} parent=39 // pred_fallthru
          _
        // Predicated region
        $region69: #{bottleneck_forward.4} parent=39 // pred_check
          %p2853 = pneg %p214
        $region70: #{bottleneck_forward.4} parent=39 // pred_check_branch
          %2855 = sbr.rel (%p2853) target = $region72
        $region71: #{bottleneck_forward.4} parent=39 // pred_region
          %s2857 = ssub.s32 256, 256
          %2858 = vsyncadd %s2815, %s2857
          %s2859 = smul.addr %s34, 2
          %s2860 = smul.addr %s2859, 128
          %s2861 = scalar_lea.hbm %s7, %s2860
          %s2862 = sshll.u32 %s2818, 4
          %s2863 = int_to_ptr.vmem [resolvable:$true] %s2862
          %2868 = dma.vmem_to_hbm [thread:$0]  %s2863, 256, %s2861, %s2815, 128, 128, 8
        $region72: #{bottleneck_forward.4} parent=39 // pred_fallthru
          _
        // Predicated region
        $region73: #{bottleneck_forward.4} parent=39 // pred_check
          %p2869 = pneg %p240
        $region74: #{bottleneck_forward.4} parent=39 // pred_check_branch
          %2871 = sbr.rel (%p2869) target = $region76
        $region75: #{bottleneck_forward.4} parent=39 // pred_region
          %s2873 = ssub.s32 512, 512
          %2874 = vsyncadd %s2820, %s2873
          %s2875 = smul.addr %s34, 8
          %s2876 = smul.addr %s2875, 64
          %s2877 = scalar_lea.hbm %s8, %s2876
          %s2878 = sshll.u32 %s2823, 4
          %s2879 = int_to_ptr.vmem [resolvable:$true] %s2878
          %2884 = dma.vmem_to_hbm [thread:$0]  %s2879, 512, %s2877, %s2820, 64, 64, 4
        $region76: #{bottleneck_forward.4} parent=39 // pred_fallthru
          _
      $region40: #{bottleneck_forward.4} parent=5 // pred_fallthru
        _
      %p2885 = scmp.le.s32.totalorder 2, %s29
      // Predicated region
      $region77: #{bottleneck_forward.4} parent=5 // pred_check
        %p2886 = pneg %p2885
      $region78: #{bottleneck_forward.4} parent=5 // pred_check_branch
        %2888 = sbr.rel (%p2886) target = $region80
      $region79: #{bottleneck_forward.4} parent=5 // pred_region
        %s2889 = ssub.s32 %s29, 2
        // Predicated region
        $region81: #{bottleneck_forward.4} parent=79 // pred_check
          %p2890 = pneg %p168
        $region82: #{bottleneck_forward.4} parent=79 // pred_check_branch
          %2892 = sbr.rel (%p2890) target = $region84
        $region83: #{bottleneck_forward.4} parent=79 // pred_region
          %s2893 = sand.u32 %s153, 1
          %s2894 = scalar_lea.sflag [#allocation5], %s2893
          %s2895 = sand.u32 %s153, 1
          %s2896 = smul.addr %s2895, 32
          %s2897 = scalar_lea.vmem [#allocation12], %s2896
          %2898 = dma.done %s2894, 512
        $region84: #{bottleneck_forward.4} parent=79 // pred_fallthru
          _
        // Predicated region
        $region85: #{bottleneck_forward.4} parent=79 // pred_check
          %p2899 = pneg %p194
        $region86: #{bottleneck_forward.4} parent=79 // pred_check_branch
          %2901 = sbr.rel (%p2899) target = $region88
        $region87: #{bottleneck_forward.4} parent=79 // pred_region
          %s2902 = sand.u32 %s35, 1
          %s2903 = scalar_lea.sflag [#allocation14], %s2902
          %s2904 = sand.u32 %s179, 1
          %s2905 = scalar_lea.vmem [#allocation13], %s2904
          %2906 = dma.done %s2903, 16
        $region88: #{bottleneck_forward.4} parent=79 // pred_fallthru
          _
        // Predicated region
        $region89: #{bottleneck_forward.4} parent=79 // pred_check
          %p2907 = pneg %p220
        $region90: #{bottleneck_forward.4} parent=79 // pred_check_branch
          %2909 = sbr.rel (%p2907) target = $region92
        $region91: #{bottleneck_forward.4} parent=79 // pred_region
          %s2910 = sand.u32 %s35, 1
          %s2911 = scalar_lea.sflag [#allocation14], %s2910
          %s2912 = sand.u32 %s205, 1
          %s2913 = smul.addr %s2912, 16
          %s2914 = scalar_lea.vmem [#allocation15], %s2913
          %2915 = dma.done %s2911, 256
        $region92: #{bottleneck_forward.4} parent=79 // pred_fallthru
          _
        // Predicated region
        $region93: #{bottleneck_forward.4} parent=79 // pred_check
          %p2916 = pneg %p246
        $region94: #{bottleneck_forward.4} parent=79 // pred_check_branch
          %2918 = sbr.rel (%p2916) target = $region96
        $region95: #{bottleneck_forward.4} parent=79 // pred_region
          %s2919 = sand.u32 %s231, 1
          %s2920 = scalar_lea.sflag [#allocation17], %s2919
          %s2921 = sand.u32 %s231, 1
          %s2922 = smul.addr %s2921, 32
          %s2923 = scalar_lea.vmem [#allocation16], %s2922
          %2924 = dma.done %s2920, 512
        $region96: #{bottleneck_forward.4} parent=79 // pred_fallthru
          _
      $region80: #{bottleneck_forward.4} parent=5 // pred_fallthru
        _
    $region6: #{bottleneck_forward.4} parent=1 // loop_footer
      %s33 = sadd.s32 1, %s29
    $region7: #{bottleneck_forward.4} parent=1 // loop_footer_branch
      %28 = sbr.rel target = $region3
    $region8: #{bottleneck_forward.4} parent=1 // loop_exit
      _
    %2925 = vsyncpa [#allocation4], 1
    %s2926 = scalar_lea.sflag [#allocation4], 1
    %2927 = vsyncpa %s2926, 1
    %2928 = vsyncpa [#allocation7], 1
    %2929 = vsyncpa [#allocation10], 1
    %2930 = vsyncpa [#allocation5], 1
    %s2931 = scalar_lea.sflag [#allocation5], 1
    %2932 = vsyncpa %s2931, 1
    %2933 = vsyncpa [#allocation14], 1
    %s2934 = scalar_lea.sflag [#allocation14], 1
    %2935 = vsyncpa %s2934, 1
    %2936 = vsyncpa [#allocation17], 1
    %s2937 = scalar_lea.sflag [#allocation17], 1
    %2938 = vsyncpa %s2937, 1

</llo_original>
